<compile_context>
chip_gen: v7x
topology: tpu7x:2x2x1
jax: 0.10.0
libtpu: 0.0.40
codegen_flags: <defaults>
</compile_context>

<pallas_src>
import functools

import numpy as np
import jax
import jax.numpy as jnp
from jax import lax
from jax.experimental import pallas as pl
from jax.experimental.pallas import tpu as pltpu


_LANE = 128


def _round_up(x, m):
    return (x + m - 1) // m * m


# ----------------------------------------------------------------------------
# Kernel 1: ConvTranspose2d(k=2, s=2) with the pixel shuffle folded into the
# output layout.  Per grid step: TR input rows -> 2*TR output rows.
#   out7[b*H+i, ki, j, kj*Cp+c] == y[b, 2i+ki, 2j+kj, c]   (row-major identical
#   to (B, 2H, 2W, Cp), so the wrapper reshape is free).
# ----------------------------------------------------------------------------
def _deconv2x2_kernel(x_ref, w_ref, b_ref, o_ref, *, tr):
    bias = b_ref[...].astype(jnp.float32)                     # (1, 2*Cp)
    for r in range(tr):                                       # static unroll
        xr = x_ref[r]                                         # (W, Cin_p) bf16
        for ki in range(2):
            acc = jnp.dot(xr, w_ref[ki],                      # (W, 2*Cp) f32
                          preferred_element_type=jnp.float32)
            o_ref[r, ki] = (acc + bias).astype(o_ref.dtype)


def conv_transpose_2x2(x_nhwc, w_up, b_up):
    """x_nhwc: (B,H,W,Cin_p) bf16, w_up: (2,Cin_p,2*Cp) bf16, b_up: (1,2*Cp) f32
    -> (B, 2H, 2W, Cp) bf16 (bias included)."""
    B, H, W, cin_p = x_nhwc.shape
    cp = w_up.shape[-1] // 2
    BH = B * H
    tr = next(t for t in (8, 4, 2, 1) if BH % t == 0)
    x_flat = x_nhwc.reshape(BH, W, cin_p)                     # free reshape

    out7 = pl.pallas_call(
        functools.partial(_deconv2x2_kernel, tr=tr),
        out_shape=jax.ShapeDtypeStruct((BH, 2, W, 2 * cp), jnp.bfloat16),
        grid_spec=pltpu.PrefetchScalarGridSpec(
            num_scalar_prefetch=0,
            grid=(BH // tr,),
            in_specs=[
                pl.BlockSpec((tr, W, cin_p), lambda t: (t, 0, 0)),
                pl.BlockSpec(w_up.shape, lambda t: (0, 0, 0)),
                pl.BlockSpec(b_up.shape, lambda t: (0, 0)),
            ],
            out_specs=pl.BlockSpec((tr, 2, W, 2 * cp), lambda t: (t, 0, 0, 0)),
        ),
        compiler_params=pltpu.CompilerParams(
            dimension_semantics=("parallel",)),
    )(x_flat, w_up, b_up)

    # Pixel shuffle: pure-metadata reshape (identical row-major order).
    return out7.reshape(B, 2 * H, 2 * W, cp)


# ----------------------------------------------------------------------------
# Kernel 2: 3x3 valid conv + bias + ReLU, halo taps gathered in-kernel.
# Supports 1 or 2 input feature maps (2 => the skip-concat is fused in-kernel
# by splitting the channel reduction across the two operands).
# ----------------------------------------------------------------------------
def _conv3x3_relu_kernel(*refs, n_in, ho, wo):
    x_refs = refs[:n_in]
    w_refs = refs[n_in:2 * n_in]
    b_ref = refs[2 * n_in]
    o_ref = refs[2 * n_in + 1]
    nco = o_ref.shape[-1]

    bias = jnp.broadcast_to(b_ref[...].astype(jnp.float32), (wo, nco))

    def row_body(o, carry):
        acc = bias                                            # (Wo, Coutp) f32
        for n in range(n_in):
            for di in range(3):
                row = x_refs[n][0, o + di, :, :]              # (Wi, C_n) bf16
                for dj in range(3):
                    acc = acc + jnp.dot(
                        row[dj:dj + wo, :], w_refs[n][di * 3 + dj],
                        preferred_element_type=jnp.float32)
        o_ref[0, o, :, :] = jnp.maximum(acc, 0.0).astype(o_ref.dtype)
        return carry

    lax.fori_loop(0, ho, row_body, None)


def conv3x3_relu(inputs, weights, bias, *, out_dtype):
    """inputs: list of NHWC (B,Hi,Wi,Ci_p) bf16 maps (same spatial size);
    weights: list of (9, Ci_p, Coutp) bf16; bias: (1, Coutp) f32."""
    B, Hi, Wi, _ = inputs[0].shape
    Ho, Wo = Hi - 2, Wi - 2
    coutp = weights[0].shape[-1]
    n_in = len(inputs)

    in_specs = (
        [pl.BlockSpec((1, Hi, Wi, xi.shape[-1]), lambda b: (b, 0, 0, 0))
         for xi in inputs]
        + [pl.BlockSpec(wi.shape, lambda b: (0, 0, 0)) for wi in weights]
        + [pl.BlockSpec(bias.shape, lambda b: (0, 0))]
    )

    return pl.pallas_call(
        functools.partial(_conv3x3_relu_kernel, n_in=n_in, ho=Ho, wo=Wo),
        out_shape=jax.ShapeDtypeStruct((B, Ho, Wo, coutp), out_dtype),
        grid_spec=pltpu.PrefetchScalarGridSpec(
            num_scalar_prefetch=0,
            grid=(B,),
            in_specs=in_specs,
            out_specs=pl.BlockSpec((1, Ho, Wo, coutp), lambda b: (b, 0, 0, 0)),
        ),
        compiler_params=pltpu.CompilerParams(
            dimension_semantics=("parallel",)),
    )(*inputs, *weights, bias)


# ----------------------------------------------------------------------------
# Weight / bias packing (tiny, done once per forward in plain JAX)
# ----------------------------------------------------------------------------
def _prep_conv_w(w, cin_pad, cout_pad):
    """(Cout, Cin, 3, 3) -> (9, cin_pad, cout_pad) bf16, tap index = di*3 + dj."""
    cout, cin = w.shape[0], w.shape[1]
    t = jnp.transpose(w, (2, 3, 1, 0)).reshape(9, cin, cout)
    t = jnp.pad(t, ((0, 0), (0, cin_pad - cin), (0, cout_pad - cout)))
    return t.astype(jnp.bfloat16)


def _prep_up_w(w, cin_pad, cout_pad):
    """(Cin, Cout, 2, 2) -> (2[ki], cin_pad, 2[kj]*cout_pad) bf16."""
    cin, cout = w.shape[0], w.shape[1]
    a = jnp.transpose(w, (2, 0, 3, 1))                        # (ki, cin, kj, co)
    a = jnp.pad(a, ((0, 0), (0, cin_pad - cin), (0, 0), (0, cout_pad - cout)))
    return a.reshape(2, cin_pad, 2 * cout_pad).astype(jnp.bfloat16)


def _prep_bias(b, cout_pad):
    return jnp.pad(b.astype(jnp.float32), (0, cout_pad - b.shape[0]))[None, :]


# ----------------------------------------------------------------------------
# Up.forward  (NCHW in / NCHW out, PyTorch interface)
# ----------------------------------------------------------------------------
def up_forward(params, x_contract, x):
    B, Cin, H, W = x.shape
    Cout = params["up_w"].shape[1]
    Csk = x_contract.shape[1]
    cin_p = _round_up(Cin, _LANE)
    csk_p = _round_up(Csk, _LANE)
    cout_p = _round_up(Cout, _LANE)

    # Parameters (tiny): bf16, per-tap layout, channel-padded once.
    w_up = _prep_up_w(params["up_w"], cin_p, cout_p)
    b_up = jnp.tile(jnp.pad(params["up_b"].astype(jnp.float32),
                            (0, cout_p - Cout)), 2)[None, :]          # (1, 2Cp)
    w1_xc = _prep_conv_w(params["c1_w"][:, :Csk], csk_p, cout_p)
    w1_y = _prep_conv_w(params["c1_w"][:, Csk:], cout_p, cout_p)
    b1 = _prep_bias(params["c1_b"], cout_p)
    w2 = _prep_conv_w(params["c2_w"], cout_p, cout_p)
    b2 = _prep_bias(params["c2_b"], cout_p)

    # Entry layout pass (once): NCHW -> NHWC, bf16, channel-pad to 128.
    x_nhwc = jnp.pad(jnp.transpose(x, (0, 2, 3, 1)).astype(jnp.bfloat16),
                     ((0, 0), (0, 0), (0, 0), (0, cin_p - Cin)))

    # ConvTranspose2d(2,2): Pallas kernel writes the shuffled NHWC map directly.
    y = conv_transpose_2x2(x_nhwc, w_up, b_up)            # (B, 2H, 2W, Cp) bf16

    # Skip path: center-crop (torchvision semantics) + NHWC + bf16 + pad, once.
    th, tw = 2 * H, 2 * W
    Hc, Wc = x_contract.shape[2], x_contract.shape[3]
    top = int(round((Hc - th) / 2.0))
    left = int(round((Wc - tw) / 2.0))
    xc = x_contract[:, :, top:top + th, left:left + tw]
    xc = jnp.pad(jnp.transpose(xc, (0, 2, 3, 1)).astype(jnp.bfloat16),
                 ((0, 0), (0, 0), (0, 0), (0, csk_p - Csk)))

    # Conv(3x3)+ReLU twice; the cat([xc, y], dim=1) is fused into conv1's
    # in-kernel K reduction (never materialized in HBM).
    z = conv3x3_relu([xc, y], [w1_xc, w1_y], b1, out_dtype=jnp.bfloat16)
    z = conv3x3_relu([z], [w2], b2, out_dtype=jnp.float32)

    # Exit pass (once): drop channel padding, NHWC -> NCHW.
    return jnp.transpose(z[..., :Cout], (0, 3, 1, 2))


# ----------------------------------------------------------------------------
# Pure-JAX f32 reference (correctness check only)
# ----------------------------------------------------------------------------
def ref_forward(params, x_contract, x):
    B, Cin, H, W = x.shape
    Cout = params["up_w"].shape[1]
    y = jnp.einsum("bihw,iokl->bohkwl", x, params["up_w"])
    y = y.reshape(B, Cout, 2 * H, 2 * W) + params["up_b"][None, :, None, None]
    th, tw = y.shape[2], y.shape[3]
    Hc, Wc = x_contract.shape[2], x_contract.shape[3]
    top = int(round((Hc - th) / 2.0))
    left = int(round((Wc - tw) / 2.0))
    xc = x_contract[:, :, top:top + th, left:left + tw]
    z = jnp.concatenate([xc, y], axis=1)

    def conv(z, w, b):
        Ho, Wo = z.shape[2] - 2, z.shape[3] - 2
        out = jnp.zeros((z.shape[0], w.shape[0], Ho, Wo), jnp.float32)
        for di in range(3):
            for dj in range(3):
                out = out + jnp.einsum(
                    "bchw,oc->bohw", z[:, :, di:di + Ho, dj:dj + Wo],
                    w[:, :, di, dj])
        return jnp.maximum(out + b[None, :, None, None], 0.0)

    z = conv(z, params["c1_w"], params["c1_b"])
    z = conv(z, params["c2_w"], params["c2_b"])
    return z


# ----------------------------------------------------------------------------
if __name__ == "__main__":
    key = jax.random.PRNGKey(0)
    ks = jax.random.split(key, 8)

    B = 2
    in_channels, out_channels = 8, 4
    H = W = 8            # low-res input to the deconv
    Hc = Wc = 20         # contracting-path skip feature (gets center-cropped)

    x = jax.random.normal(ks[0], (B, in_channels, H, W), jnp.float32)
    x_contract = jax.random.normal(
        ks[1], (B, in_channels - out_channels, Hc, Wc), jnp.float32)

    params = {
        "up_w": 0.1 * jax.random.normal(ks[2], (in_channels, out_channels, 2, 2), jnp.float32),
        "up_b": 0.1 * jax.random.normal(ks[3], (out_channels,), jnp.float32),
        "c1_w": 0.1 * jax.random.normal(ks[4], (out_channels, in_channels, 3, 3), jnp.float32),
        "c1_b": 0.1 * jax.random.normal(ks[5], (out_channels,), jnp.float32),
        "c2_w": 0.1 * jax.random.normal(ks[6], (out_channels, out_channels, 3, 3), jnp.float32),
        "c2_b": 0.1 * jax.random.normal(ks[7], (out_channels,), jnp.float32),
    }

    out = jax.jit(up_forward)(params, x_contract, x)
    out = jax.block_until_ready(out)

    ref = ref_forward(params, x_contract, x)
    assert out.shape == (B, out_channels, 2 * H - 4, 2 * W - 4), out.shape
    np.testing.assert_allclose(np.asarray(out), np.asarray(ref), rtol=2e-2, atol=2e-2)
    print("KERNEL_OK")
</pallas_src>

<mosaic_0001>
module attributes {stable_mosaic.version = 11 : i64} {
  func.func @_deconv2x2_kernel(%arg0: i32, %arg1: memref<8x8x128xbf16, #tpu.memory_space<vmem>>, %arg2: memref<2x128x256xbf16, #tpu.memory_space<vmem>>, %arg3: memref<1x256xf32, #tpu.memory_space<vmem>>, %arg4: memref<8x2x8x256xbf16, #tpu.memory_space<vmem>>) attributes {dimension_semantics = [#tpu.dimension_semantics<parallel>], iteration_bounds = array<i64: 2>, scalar_prefetch = 0 : i64, scratch_operands = 0 : i64, tpu.core_type = #tpu.core_type<tc>, window_params = [{transform_indices = @transform_0, window_bounds = array<i64: 8, 8, 128>}, {pipeline_mode = #tpu.pipeline_mode<synchronous>, transform_indices = @transform_1, window_bounds = array<i64: 2, 128, 256>}, {pipeline_mode = #tpu.pipeline_mode<synchronous>, transform_indices = @transform_2, window_bounds = array<i64: 1, 256>}, {transform_indices = @transform_3, window_bounds = array<i64: 8, 2, 8, 256>}]} {
    %c0 = arith.constant 0 : index
    %c0_0 = arith.constant 0 : index
    %0 = vector.load %arg3[%c0, %c0_0] : memref<1x256xf32, #tpu.memory_space<vmem>>, vector<1x256xf32>
    %c0_1 = arith.constant 0 : index
    %c0_2 = arith.constant 0 : index
    %c0_3 = arith.constant 0 : index
    %1 = vector.load %arg1[%c0_1, %c0_2, %c0_3] : memref<8x8x128xbf16, #tpu.memory_space<vmem>>, vector<1x8x128xbf16>
    %2 = vector.shape_cast %1 : vector<1x8x128xbf16> to vector<8x128xbf16>
    %c0_4 = arith.constant 0 : index
    %c0_5 = arith.constant 0 : index
    %c0_6 = arith.constant 0 : index
    %3 = vector.load %arg2[%c0_4, %c0_5, %c0_6] : memref<2x128x256xbf16, #tpu.memory_space<vmem>>, vector<1x128x256xbf16>
    %4 = vector.shape_cast %3 : vector<1x128x256xbf16> to vector<128x256xbf16>
    %cst = arith.constant dense<0.000000e+00> : vector<8x256xf32>
    %5 = tpu.matmul %2, %4, %cst {dimension_numbers = #tpu.dot_dimension_numbers<[1], [0], [0], [1], [0, 0, 1, 1], [], []>} : vector<8x128xbf16>, vector<128x256xbf16>, vector<8x256xf32> -> vector<8x256xf32>
    %6 = vector.broadcast %0 : vector<1x256xf32> to vector<8x256xf32>
    %7 = arith.addf %5, %6 : vector<8x256xf32>
    %8 = arith.truncf %7 : vector<8x256xf32> to vector<8x256xbf16>
    %c0_7 = arith.constant 0 : index
    %c0_8 = arith.constant 0 : index
    %c0_9 = arith.constant 0 : index
    %c0_10 = arith.constant 0 : index
    %9 = vector.load %arg4[%c0_7, %c0_8, %c0_9, %c0_10] : memref<8x2x8x256xbf16, #tpu.memory_space<vmem>>, vector<1x1x8x256xbf16>
    %10 = vector.shape_cast %9 : vector<1x1x8x256xbf16> to vector<8x256xbf16>
    %11 = vector.shape_cast %8 : vector<8x256xbf16> to vector<1x1x8x256xbf16>
    tpu.vector_store %arg4[%c0_7, %c0_8, %c0_9, %c0_10], %11 {strides = array<i32>} : memref<8x2x8x256xbf16, #tpu.memory_space<vmem>>, vector<1x1x8x256xbf16>,
    %c1 = arith.constant 1 : index
    %c0_11 = arith.constant 0 : index
    %c0_12 = arith.constant 0 : index
    %12 = vector.load %arg2[%c1, %c0_11, %c0_12] : memref<2x128x256xbf16, #tpu.memory_space<vmem>>, vector<1x128x256xbf16>
    %13 = vector.shape_cast %12 : vector<1x128x256xbf16> to vector<128x256xbf16>
    %cst_13 = arith.constant dense<0.000000e+00> : vector<8x256xf32>
    %14 = tpu.matmul %2, %13, %cst_13 {dimension_numbers = #tpu.dot_dimension_numbers<[1], [0], [0], [1], [0, 0, 1, 1], [], []>} : vector<8x128xbf16>, vector<128x256xbf16>, vector<8x256xf32> -> vector<8x256xf32>
    %15 = vector.broadcast %0 : vector<1x256xf32> to vector<8x256xf32>
    %16 = arith.addf %14, %15 : vector<8x256xf32>
    %17 = arith.truncf %16 : vector<8x256xf32> to vector<8x256xbf16>
    %c0_14 = arith.constant 0 : index
    %c1_15 = arith.constant 1 : index
    %c0_16 = arith.constant 0 : index
    %c0_17 = arith.constant 0 : index
    %18 = vector.load %arg4[%c0_14, %c1_15, %c0_16, %c0_17] : memref<8x2x8x256xbf16, #tpu.memory_space<vmem>>, vector<1x1x8x256xbf16>
    %19 = vector.shape_cast %18 : vector<1x1x8x256xbf16> to vector<8x256xbf16>
    %20 = vector.shape_cast %17 : vector<8x256xbf16> to vector<1x1x8x256xbf16>
    tpu.vector_store %arg4[%c0_14, %c1_15, %c0_16, %c0_17], %20 {strides = array<i32>} : memref<8x2x8x256xbf16, #tpu.memory_space<vmem>>, vector<1x1x8x256xbf16>,
    %c1_18 = arith.constant 1 : index
    %c0_19 = arith.constant 0 : index
    %c0_20 = arith.constant 0 : index
    %21 = vector.load %arg1[%c1_18, %c0_19, %c0_20] : memref<8x8x128xbf16, #tpu.memory_space<vmem>>, vector<1x8x128xbf16>
    %22 = vector.shape_cast %21 : vector<1x8x128xbf16> to vector<8x128xbf16>
    %c0_21 = arith.constant 0 : index
    %c0_22 = arith.constant 0 : index
    %c0_23 = arith.constant 0 : index
    %23 = vector.load %arg2[%c0_21, %c0_22, %c0_23] : memref<2x128x256xbf16, #tpu.memory_space<vmem>>, vector<1x128x256xbf16>
    %24 = vector.shape_cast %23 : vector<1x128x256xbf16> to vector<128x256xbf16>
    %cst_24 = arith.constant dense<0.000000e+00> : vector<8x256xf32>
    %25 = tpu.matmul %22, %24, %cst_24 {dimension_numbers = #tpu.dot_dimension_numbers<[1], [0], [0], [1], [0, 0, 1, 1], [], []>} : vector<8x128xbf16>, vector<128x256xbf16>, vector<8x256xf32> -> vector<8x256xf32>
    %26 = vector.broadcast %0 : vector<1x256xf32> to vector<8x256xf32>
    %27 = arith.addf %25, %26 : vector<8x256xf32>
    %28 = arith.truncf %27 : vector<8x256xf32> to vector<8x256xbf16>
    %c1_25 = arith.constant 1 : index
    %c0_26 = arith.constant 0 : index
    %c0_27 = arith.constant 0 : index
    %c0_28 = arith.constant 0 : index
    %29 = vector.load %arg4[%c1_25, %c0_26, %c0_27, %c0_28] : memref<8x2x8x256xbf16, #tpu.memory_space<vmem>>, vector<1x1x8x256xbf16>
    %30 = vector.shape_cast %29 : vector<1x1x8x256xbf16> to vector<8x256xbf16>
    %31 = vector.shape_cast %28 : vector<8x256xbf16> to vector<1x1x8x256xbf16>
    tpu.vector_store %arg4[%c1_25, %c0_26, %c0_27, %c0_28], %31 {strides = array<i32>} : memref<8x2x8x256xbf16, #tpu.memory_space<vmem>>, vector<1x1x8x256xbf16>,
    %c1_29 = arith.constant 1 : index
    %c0_30 = arith.constant 0 : index
    %c0_31 = arith.constant 0 : index
    %32 = vector.load %arg2[%c1_29, %c0_30, %c0_31] : memref<2x128x256xbf16, #tpu.memory_space<vmem>>, vector<1x128x256xbf16>
    %33 = vector.shape_cast %32 : vector<1x128x256xbf16> to vector<128x256xbf16>
    %cst_32 = arith.constant dense<0.000000e+00> : vector<8x256xf32>
    %34 = tpu.matmul %22, %33, %cst_32 {dimension_numbers = #tpu.dot_dimension_numbers<[1], [0], [0], [1], [0, 0, 1, 1], [], []>} : vector<8x128xbf16>, vector<128x256xbf16>, vector<8x256xf32> -> vector<8x256xf32>
    %35 = vector.broadcast %0 : vector<1x256xf32> to vector<8x256xf32>
    %36 = arith.addf %34, %35 : vector<8x256xf32>
    %37 = arith.truncf %36 : vector<8x256xf32> to vector<8x256xbf16>
    %c1_33 = arith.constant 1 : index
    %c1_34 = arith.constant 1 : index
    %c0_35 = arith.constant 0 : index
    %c0_36 = arith.constant 0 : index
    %38 = vector.load %arg4[%c1_33, %c1_34, %c0_35, %c0_36] : memref<8x2x8x256xbf16, #tpu.memory_space<vmem>>, vector<1x1x8x256xbf16>
    %39 = vector.shape_cast %38 : vector<1x1x8x256xbf16> to vector<8x256xbf16>
    %40 = vector.shape_cast %37 : vector<8x256xbf16> to vector<1x1x8x256xbf16>
    tpu.vector_store %arg4[%c1_33, %c1_34, %c0_35, %c0_36], %40 {strides = array<i32>} : memref<8x2x8x256xbf16, #tpu.memory_space<vmem>>, vector<1x1x8x256xbf16>,
    %c2 = arith.constant 2 : index
    %c0_37 = arith.constant 0 : index
    %c0_38 = arith.constant 0 : index
    %41 = vector.load %arg1[%c2, %c0_37, %c0_38] : memref<8x8x128xbf16, #tpu.memory_space<vmem>>, vector<1x8x128xbf16>
    %42 = vector.shape_cast %41 : vector<1x8x128xbf16> to vector<8x128xbf16>
    %c0_39 = arith.constant 0 : index
    %c0_40 = arith.constant 0 : index
    %c0_41 = arith.constant 0 : index
    %43 = vector.load %arg2[%c0_39, %c0_40, %c0_41] : memref<2x128x256xbf16, #tpu.memory_space<vmem>>, vector<1x128x256xbf16>
    %44 = vector.shape_cast %43 : vector<1x128x256xbf16> to vector<128x256xbf16>
    %cst_42 = arith.constant dense<0.000000e+00> : vector<8x256xf32>
    %45 = tpu.matmul %42, %44, %cst_42 {dimension_numbers = #tpu.dot_dimension_numbers<[1], [0], [0], [1], [0, 0, 1, 1], [], []>} : vector<8x128xbf16>, vector<128x256xbf16>, vector<8x256xf32> -> vector<8x256xf32>
    %46 = vector.broadcast %0 : vector<1x256xf32> to vector<8x256xf32>
    %47 = arith.addf %45, %46 : vector<8x256xf32>
    %48 = arith.truncf %47 : vector<8x256xf32> to vector<8x256xbf16>
    %c2_43 = arith.constant 2 : index
    %c0_44 = arith.constant 0 : index
    %c0_45 = arith.constant 0 : index
    %c0_46 = arith.constant 0 : index
    %49 = vector.load %arg4[%c2_43, %c0_44, %c0_45, %c0_46] : memref<8x2x8x256xbf16, #tpu.memory_space<vmem>>, vector<1x1x8x256xbf16>
    %50 = vector.shape_cast %49 : vector<1x1x8x256xbf16> to vector<8x256xbf16>
    %51 = vector.shape_cast %48 : vector<8x256xbf16> to vector<1x1x8x256xbf16>
    tpu.vector_store %arg4[%c2_43, %c0_44, %c0_45, %c0_46], %51 {strides = array<i32>} : memref<8x2x8x256xbf16, #tpu.memory_space<vmem>>, vector<1x1x8x256xbf16>,
    %c1_47 = arith.constant 1 : index
    %c0_48 = arith.constant 0 : index
    %c0_49 = arith.constant 0 : index
    %52 = vector.load %arg2[%c1_47, %c0_48, %c0_49] : memref<2x128x256xbf16, #tpu.memory_space<vmem>>, vector<1x128x256xbf16>
    %53 = vector.shape_cast %52 : vector<1x128x256xbf16> to vector<128x256xbf16>
    %cst_50 = arith.constant dense<0.000000e+00> : vector<8x256xf32>
    %54 = tpu.matmul %42, %53, %cst_50 {dimension_numbers = #tpu.dot_dimension_numbers<[1], [0], [0], [1], [0, 0, 1, 1], [], []>} : vector<8x128xbf16>, vector<128x256xbf16>, vector<8x256xf32> -> vector<8x256xf32>
    %55 = vector.broadcast %0 : vector<1x256xf32> to vector<8x256xf32>
    %56 = arith.addf %54, %55 : vector<8x256xf32>
    %57 = arith.truncf %56 : vector<8x256xf32> to vector<8x256xbf16>
    %c2_51 = arith.constant 2 : index
    %c1_52 = arith.constant 1 : index
    %c0_53 = arith.constant 0 : index
    %c0_54 = arith.constant 0 : index
    %58 = vector.load %arg4[%c2_51, %c1_52, %c0_53, %c0_54] : memref<8x2x8x256xbf16, #tpu.memory_space<vmem>>, vector<1x1x8x256xbf16>
    %59 = vector.shape_cast %58 : vector<1x1x8x256xbf16> to vector<8x256xbf16>
    %60 = vector.shape_cast %57 : vector<8x256xbf16> to vector<1x1x8x256xbf16>
    tpu.vector_store %arg4[%c2_51, %c1_52, %c0_53, %c0_54], %60 {strides = array<i32>} : memref<8x2x8x256xbf16, #tpu.memory_space<vmem>>, vector<1x1x8x256xbf16>,
    %c3 = arith.constant 3 : index
    %c0_55 = arith.constant 0 : index
    %c0_56 = arith.constant 0 : index
    %61 = vector.load %arg1[%c3, %c0_55, %c0_56] : memref<8x8x128xbf16, #tpu.memory_space<vmem>>, vector<1x8x128xbf16>
    %62 = vector.shape_cast %61 : vector<1x8x128xbf16> to vector<8x128xbf16>
    %c0_57 = arith.constant 0 : index
    %c0_58 = arith.constant 0 : index
    %c0_59 = arith.constant 0 : index
    %63 = vector.load %arg2[%c0_57, %c0_58, %c0_59] : memref<2x128x256xbf16, #tpu.memory_space<vmem>>, vector<1x128x256xbf16>
    %64 = vector.shape_cast %63 : vector<1x128x256xbf16> to vector<128x256xbf16>
    %cst_60 = arith.constant dense<0.000000e+00> : vector<8x256xf32>
    %65 = tpu.matmul %62, %64, %cst_60 {dimension_numbers = #tpu.dot_dimension_numbers<[1], [0], [0], [1], [0, 0, 1, 1], [], []>} : vector<8x128xbf16>, vector<128x256xbf16>, vector<8x256xf32> -> vector<8x256xf32>
    %66 = vector.broadcast %0 : vector<1x256xf32> to vector<8x256xf32>
    %67 = arith.addf %65, %66 : vector<8x256xf32>
    %68 = arith.truncf %67 : vector<8x256xf32> to vector<8x256xbf16>
    %c3_61 = arith.constant 3 : index
    %c0_62 = arith.constant 0 : index
    %c0_63 = arith.constant 0 : index
    %c0_64 = arith.constant 0 : index
    %69 = vector.load %arg4[%c3_61, %c0_62, %c0_63, %c0_64] : memref<8x2x8x256xbf16, #tpu.memory_space<vmem>>, vector<1x1x8x256xbf16>
    %70 = vector.shape_cast %69 : vector<1x1x8x256xbf16> to vector<8x256xbf16>
    %71 = vector.shape_cast %68 : vector<8x256xbf16> to vector<1x1x8x256xbf16>
    tpu.vector_store %arg4[%c3_61, %c0_62, %c0_63, %c0_64], %71 {strides = array<i32>} : memref<8x2x8x256xbf16, #tpu.memory_space<vmem>>, vector<1x1x8x256xbf16>,
    %c1_65 = arith.constant 1 : index
    %c0_66 = arith.constant 0 : index
    %c0_67 = arith.constant 0 : index
    %72 = vector.load %arg2[%c1_65, %c0_66, %c0_67] : memref<2x128x256xbf16, #tpu.memory_space<vmem>>, vector<1x128x256xbf16>
    %73 = vector.shape_cast %72 : vector<1x128x256xbf16> to vector<128x256xbf16>
    %cst_68 = arith.constant dense<0.000000e+00> : vector<8x256xf32>
    %74 = tpu.matmul %62, %73, %cst_68 {dimension_numbers = #tpu.dot_dimension_numbers<[1], [0], [0], [1], [0, 0, 1, 1], [], []>} : vector<8x128xbf16>, vector<128x256xbf16>, vector<8x256xf32> -> vector<8x256xf32>
    %75 = vector.broadcast %0 : vector<1x256xf32> to vector<8x256xf32>
    %76 = arith.addf %74, %75 : vector<8x256xf32>
    %77 = arith.truncf %76 : vector<8x256xf32> to vector<8x256xbf16>
    %c3_69 = arith.constant 3 : index
    %c1_70 = arith.constant 1 : index
    %c0_71 = arith.constant 0 : index
    %c0_72 = arith.constant 0 : index
    %78 = vector.load %arg4[%c3_69, %c1_70, %c0_71, %c0_72] : memref<8x2x8x256xbf16, #tpu.memory_space<vmem>>, vector<1x1x8x256xbf16>
    %79 = vector.shape_cast %78 : vector<1x1x8x256xbf16> to vector<8x256xbf16>
    %80 = vector.shape_cast %77 : vector<8x256xbf16> to vector<1x1x8x256xbf16>
    tpu.vector_store %arg4[%c3_69, %c1_70, %c0_71, %c0_72], %80 {strides = array<i32>} : memref<8x2x8x256xbf16, #tpu.memory_space<vmem>>, vector<1x1x8x256xbf16>,
    %c4 = arith.constant 4 : index
    %c0_73 = arith.constant 0 : index
    %c0_74 = arith.constant 0 : index
    %81 = vector.load %arg1[%c4, %c0_73, %c0_74] : memref<8x8x128xbf16, #tpu.memory_space<vmem>>, vector<1x8x128xbf16>
    %82 = vector.shape_cast %81 : vector<1x8x128xbf16> to vector<8x128xbf16>
    %c0_75 = arith.constant 0 : index
    %c0_76 = arith.constant 0 : index
    %c0_77 = arith.constant 0 : index
    %83 = vector.load %arg2[%c0_75, %c0_76, %c0_77] : memref<2x128x256xbf16, #tpu.memory_space<vmem>>, vector<1x128x256xbf16>
    %84 = vector.shape_cast %83 : vector<1x128x256xbf16> to vector<128x256xbf16>
    %cst_78 = arith.constant dense<0.000000e+00> : vector<8x256xf32>
    %85 = tpu.matmul %82, %84, %cst_78 {dimension_numbers = #tpu.dot_dimension_numbers<[1], [0], [0], [1], [0, 0, 1, 1], [], []>} : vector<8x128xbf16>, vector<128x256xbf16>, vector<8x256xf32> -> vector<8x256xf32>
    %86 = vector.broadcast %0 : vector<1x256xf32> to vector<8x256xf32>
    %87 = arith.addf %85, %86 : vector<8x256xf32>
    %88 = arith.truncf %87 : vector<8x256xf32> to vector<8x256xbf16>
    %c4_79 = arith.constant 4 : index
    %c0_80 = arith.constant 0 : index
    %c0_81 = arith.constant 0 : index
    %c0_82 = arith.constant 0 : index
    %89 = vector.load %arg4[%c4_79, %c0_80, %c0_81, %c0_82] : memref<8x2x8x256xbf16, #tpu.memory_space<vmem>>, vector<1x1x8x256xbf16>
    %90 = vector.shape_cast %89 : vector<1x1x8x256xbf16> to vector<8x256xbf16>
    %91 = vector.shape_cast %88 : vector<8x256xbf16> to vector<1x1x8x256xbf16>
    tpu.vector_store %arg4[%c4_79, %c0_80, %c0_81, %c0_82], %91 {strides = array<i32>} : memref<8x2x8x256xbf16, #tpu.memory_space<vmem>>, vector<1x1x8x256xbf16>,
    %c1_83 = arith.constant 1 : index
    %c0_84 = arith.constant 0 : index
    %c0_85 = arith.constant 0 : index
    %92 = vector.load %arg2[%c1_83, %c0_84, %c0_85] : memref<2x128x256xbf16, #tpu.memory_space<vmem>>, vector<1x128x256xbf16>
    %93 = vector.shape_cast %92 : vector<1x128x256xbf16> to vector<128x256xbf16>
    %cst_86 = arith.constant dense<0.000000e+00> : vector<8x256xf32>
    %94 = tpu.matmul %82, %93, %cst_86 {dimension_numbers = #tpu.dot_dimension_numbers<[1], [0], [0], [1], [0, 0, 1, 1], [], []>} : vector<8x128xbf16>, vector<128x256xbf16>, vector<8x256xf32> -> vector<8x256xf32>
    %95 = vector.broadcast %0 : vector<1x256xf32> to vector<8x256xf32>
    %96 = arith.addf %94, %95 : vector<8x256xf32>
    %97 = arith.truncf %96 : vector<8x256xf32> to vector<8x256xbf16>
    %c4_87 = arith.constant 4 : index
    %c1_88 = arith.constant 1 : index
    %c0_89 = arith.constant 0 : index
    %c0_90 = arith.constant 0 : index
    %98 = vector.load %arg4[%c4_87, %c1_88, %c0_89, %c0_90] : memref<8x2x8x256xbf16, #tpu.memory_space<vmem>>, vector<1x1x8x256xbf16>
    %99 = vector.shape_cast %98 : vector<1x1x8x256xbf16> to vector<8x256xbf16>
    %100 = vector.shape_cast %97 : vector<8x256xbf16> to vector<1x1x8x256xbf16>
    tpu.vector_store %arg4[%c4_87, %c1_88, %c0_89, %c0_90], %100 {strides = array<i32>} : memref<8x2x8x256xbf16, #tpu.memory_space<vmem>>, vector<1x1x8x256xbf16>,
    %c5 = arith.constant 5 : index
    %c0_91 = arith.constant 0 : index
    %c0_92 = arith.constant 0 : index
    %101 = vector.load %arg1[%c5, %c0_91, %c0_92] : memref<8x8x128xbf16, #tpu.memory_space<vmem>>, vector<1x8x128xbf16>
    %102 = vector.shape_cast %101 : vector<1x8x128xbf16> to vector<8x128xbf16>
    %c0_93 = arith.constant 0 : index
    %c0_94 = arith.constant 0 : index
    %c0_95 = arith.constant 0 : index
    %103 = vector.load %arg2[%c0_93, %c0_94, %c0_95] : memref<2x128x256xbf16, #tpu.memory_space<vmem>>, vector<1x128x256xbf16>
    %104 = vector.shape_cast %103 : vector<1x128x256xbf16> to vector<128x256xbf16>
    %cst_96 = arith.constant dense<0.000000e+00> : vector<8x256xf32>
    %105 = tpu.matmul %102, %104, %cst_96 {dimension_numbers = #tpu.dot_dimension_numbers<[1], [0], [0], [1], [0, 0, 1, 1], [], []>} : vector<8x128xbf16>, vector<128x256xbf16>, vector<8x256xf32> -> vector<8x256xf32>
    %106 = vector.broadcast %0 : vector<1x256xf32> to vector<8x256xf32>
    %107 = arith.addf %105, %106 : vector<8x256xf32>
    %108 = arith.truncf %107 : vector<8x256xf32> to vector<8x256xbf16>
    %c5_97 = arith.constant 5 : index
    %c0_98 = arith.constant 0 : index
    %c0_99 = arith.constant 0 : index
    %c0_100 = arith.constant 0 : index
    %109 = vector.load %arg4[%c5_97, %c0_98, %c0_99, %c0_100] : memref<8x2x8x256xbf16, #tpu.memory_space<vmem>>, vector<1x1x8x256xbf16>
    %110 = vector.shape_cast %109 : vector<1x1x8x256xbf16> to vector<8x256xbf16>
    %111 = vector.shape_cast %108 : vector<8x256xbf16> to vector<1x1x8x256xbf16>
    tpu.vector_store %arg4[%c5_97, %c0_98, %c0_99, %c0_100], %111 {strides = array<i32>} : memref<8x2x8x256xbf16, #tpu.memory_space<vmem>>, vector<1x1x8x256xbf16>,
    %c1_101 = arith.constant 1 : index
    %c0_102 = arith.constant 0 : index
    %c0_103 = arith.constant 0 : index
    %112 = vector.load %arg2[%c1_101, %c0_102, %c0_103] : memref<2x128x256xbf16, #tpu.memory_space<vmem>>, vector<1x128x256xbf16>
    %113 = vector.shape_cast %112 : vector<1x128x256xbf16> to vector<128x256xbf16>
    %cst_104 = arith.constant dense<0.000000e+00> : vector<8x256xf32>
    %114 = tpu.matmul %102, %113, %cst_104 {dimension_numbers = #tpu.dot_dimension_numbers<[1], [0], [0], [1], [0, 0, 1, 1], [], []>} : vector<8x128xbf16>, vector<128x256xbf16>, vector<8x256xf32> -> vector<8x256xf32>
    %115 = vector.broadcast %0 : vector<1x256xf32> to vector<8x256xf32>
    %116 = arith.addf %114, %115 : vector<8x256xf32>
    %117 = arith.truncf %116 : vector<8x256xf32> to vector<8x256xbf16>
    %c5_105 = arith.constant 5 : index
    %c1_106 = arith.constant 1 : index
    %c0_107 = arith.constant 0 : index
    %c0_108 = arith.constant 0 : index
    %118 = vector.load %arg4[%c5_105, %c1_106, %c0_107, %c0_108] : memref<8x2x8x256xbf16, #tpu.memory_space<vmem>>, vector<1x1x8x256xbf16>
    %119 = vector.shape_cast %118 : vector<1x1x8x256xbf16> to vector<8x256xbf16>
    %120 = vector.shape_cast %117 : vector<8x256xbf16> to vector<1x1x8x256xbf16>
    tpu.vector_store %arg4[%c5_105, %c1_106, %c0_107, %c0_108], %120 {strides = array<i32>} : memref<8x2x8x256xbf16, #tpu.memory_space<vmem>>, vector<1x1x8x256xbf16>,
    %c6 = arith.constant 6 : index
    %c0_109 = arith.constant 0 : index
    %c0_110 = arith.constant 0 : index
    %121 = vector.load %arg1[%c6, %c0_109, %c0_110] : memref<8x8x128xbf16, #tpu.memory_space<vmem>>, vector<1x8x128xbf16>
    %122 = vector.shape_cast %121 : vector<1x8x128xbf16> to vector<8x128xbf16>
    %c0_111 = arith.constant 0 : index
    %c0_112 = arith.constant 0 : index
    %c0_113 = arith.constant 0 : index
    %123 = vector.load %arg2[%c0_111, %c0_112, %c0_113] : memref<2x128x256xbf16, #tpu.memory_space<vmem>>, vector<1x128x256xbf16>
    %124 = vector.shape_cast %123 : vector<1x128x256xbf16> to vector<128x256xbf16>
    %cst_114 = arith.constant dense<0.000000e+00> : vector<8x256xf32>
    %125 = tpu.matmul %122, %124, %cst_114 {dimension_numbers = #tpu.dot_dimension_numbers<[1], [0], [0], [1], [0, 0, 1, 1], [], []>} : vector<8x128xbf16>, vector<128x256xbf16>, vector<8x256xf32> -> vector<8x256xf32>
    %126 = vector.broadcast %0 : vector<1x256xf32> to vector<8x256xf32>
    %127 = arith.addf %125, %126 : vector<8x256xf32>
    %128 = arith.truncf %127 : vector<8x256xf32> to vector<8x256xbf16>
    %c6_115 = arith.constant 6 : index
    %c0_116 = arith.constant 0 : index
    %c0_117 = arith.constant 0 : index
    %c0_118 = arith.constant 0 : index
    %129 = vector.load %arg4[%c6_115, %c0_116, %c0_117, %c0_118] : memref<8x2x8x256xbf16, #tpu.memory_space<vmem>>, vector<1x1x8x256xbf16>
    %130 = vector.shape_cast %129 : vector<1x1x8x256xbf16> to vector<8x256xbf16>
    %131 = vector.shape_cast %128 : vector<8x256xbf16> to vector<1x1x8x256xbf16>
    tpu.vector_store %arg4[%c6_115, %c0_116, %c0_117, %c0_118], %131 {strides = array<i32>} : memref<8x2x8x256xbf16, #tpu.memory_space<vmem>>, vector<1x1x8x256xbf16>,
    %c1_119 = arith.constant 1 : index
    %c0_120 = arith.constant 0 : index
    %c0_121 = arith.constant 0 : index
    %132 = vector.load %arg2[%c1_119, %c0_120, %c0_121] : memref<2x128x256xbf16, #tpu.memory_space<vmem>>, vector<1x128x256xbf16>
    %133 = vector.shape_cast %132 : vector<1x128x256xbf16> to vector<128x256xbf16>
    %cst_122 = arith.constant dense<0.000000e+00> : vector<8x256xf32>
    %134 = tpu.matmul %122, %133, %cst_122 {dimension_numbers = #tpu.dot_dimension_numbers<[1], [0], [0], [1], [0, 0, 1, 1], [], []>} : vector<8x128xbf16>, vector<128x256xbf16>, vector<8x256xf32> -> vector<8x256xf32>
    %135 = vector.broadcast %0 : vector<1x256xf32> to vector<8x256xf32>
    %136 = arith.addf %134, %135 : vector<8x256xf32>
    %137 = arith.truncf %136 : vector<8x256xf32> to vector<8x256xbf16>
    %c6_123 = arith.constant 6 : index
    %c1_124 = arith.constant 1 : index
    %c0_125 = arith.constant 0 : index
    %c0_126 = arith.constant 0 : index
    %138 = vector.load %arg4[%c6_123, %c1_124, %c0_125, %c0_126] : memref<8x2x8x256xbf16, #tpu.memory_space<vmem>>, vector<1x1x8x256xbf16>
    %139 = vector.shape_cast %138 : vector<1x1x8x256xbf16> to vector<8x256xbf16>
    %140 = vector.shape_cast %137 : vector<8x256xbf16> to vector<1x1x8x256xbf16>
    tpu.vector_store %arg4[%c6_123, %c1_124, %c0_125, %c0_126], %140 {strides = array<i32>} : memref<8x2x8x256xbf16, #tpu.memory_space<vmem>>, vector<1x1x8x256xbf16>,
    %c7 = arith.constant 7 : index
    %c0_127 = arith.constant 0 : index
    %c0_128 = arith.constant 0 : index
    %141 = vector.load %arg1[%c7, %c0_127, %c0_128] : memref<8x8x128xbf16, #tpu.memory_space<vmem>>, vector<1x8x128xbf16>
    %142 = vector.shape_cast %141 : vector<1x8x128xbf16> to vector<8x128xbf16>
    %c0_129 = arith.constant 0 : index
    %c0_130 = arith.constant 0 : index
    %c0_131 = arith.constant 0 : index
    %143 = vector.load %arg2[%c0_129, %c0_130, %c0_131] : memref<2x128x256xbf16, #tpu.memory_space<vmem>>, vector<1x128x256xbf16>
    %144 = vector.shape_cast %143 : vector<1x128x256xbf16> to vector<128x256xbf16>
    %cst_132 = arith.constant dense<0.000000e+00> : vector<8x256xf32>
    %145 = tpu.matmul %142, %144, %cst_132 {dimension_numbers = #tpu.dot_dimension_numbers<[1], [0], [0], [1], [0, 0, 1, 1], [], []>} : vector<8x128xbf16>, vector<128x256xbf16>, vector<8x256xf32> -> vector<8x256xf32>
    %146 = vector.broadcast %0 : vector<1x256xf32> to vector<8x256xf32>
    %147 = arith.addf %145, %146 : vector<8x256xf32>
    %148 = arith.truncf %147 : vector<8x256xf32> to vector<8x256xbf16>
    %c7_133 = arith.constant 7 : index
    %c0_134 = arith.constant 0 : index
    %c0_135 = arith.constant 0 : index
    %c0_136 = arith.constant 0 : index
    %149 = vector.load %arg4[%c7_133, %c0_134, %c0_135, %c0_136] : memref<8x2x8x256xbf16, #tpu.memory_space<vmem>>, vector<1x1x8x256xbf16>
    %150 = vector.shape_cast %149 : vector<1x1x8x256xbf16> to vector<8x256xbf16>
    %151 = vector.shape_cast %148 : vector<8x256xbf16> to vector<1x1x8x256xbf16>
    tpu.vector_store %arg4[%c7_133, %c0_134, %c0_135, %c0_136], %151 {strides = array<i32>} : memref<8x2x8x256xbf16, #tpu.memory_space<vmem>>, vector<1x1x8x256xbf16>,
    %c1_137 = arith.constant 1 : index
    %c0_138 = arith.constant 0 : index
    %c0_139 = arith.constant 0 : index
    %152 = vector.load %arg2[%c1_137, %c0_138, %c0_139] : memref<2x128x256xbf16, #tpu.memory_space<vmem>>, vector<1x128x256xbf16>
    %153 = vector.shape_cast %152 : vector<1x128x256xbf16> to vector<128x256xbf16>
    %cst_140 = arith.constant dense<0.000000e+00> : vector<8x256xf32>
    %154 = tpu.matmul %142, %153, %cst_140 {dimension_numbers = #tpu.dot_dimension_numbers<[1], [0], [0], [1], [0, 0, 1, 1], [], []>} : vector<8x128xbf16>, vector<128x256xbf16>, vector<8x256xf32> -> vector<8x256xf32>
    %155 = vector.broadcast %0 : vector<1x256xf32> to vector<8x256xf32>
    %156 = arith.addf %154, %155 : vector<8x256xf32>
    %157 = arith.truncf %156 : vector<8x256xf32> to vector<8x256xbf16>
    %c7_141 = arith.constant 7 : index
    %c1_142 = arith.constant 1 : index
    %c0_143 = arith.constant 0 : index
    %c0_144 = arith.constant 0 : index
    %158 = vector.load %arg4[%c7_141, %c1_142, %c0_143, %c0_144] : memref<8x2x8x256xbf16, #tpu.memory_space<vmem>>, vector<1x1x8x256xbf16>
    %159 = vector.shape_cast %158 : vector<1x1x8x256xbf16> to vector<8x256xbf16>
    %160 = vector.shape_cast %157 : vector<8x256xbf16> to vector<1x1x8x256xbf16>
    tpu.vector_store %arg4[%c7_141, %c1_142, %c0_143, %c0_144], %160 {strides = array<i32>} : memref<8x2x8x256xbf16, #tpu.memory_space<vmem>>, vector<1x1x8x256xbf16>,
    return
  }
  func.func @transform_0(%arg0: i32) -> (i32, i32, i32) {
    %c0_i32 = arith.constant 0 : i32
    %c0_i32_0 = arith.constant 0 : i32
    %c0_i32_1 = arith.constant 0 : i32
    return %arg0, %c0_i32, %c0_i32_0 : i32, i32, i32
  }
  func.func @transform_1(%arg0: i32) -> (i32, i32, i32) {
    %c0_i32 = arith.constant 0 : i32
    %c0_i32_0 = arith.constant 0 : i32
    %c0_i32_1 = arith.constant 0 : i32
    %c0_i32_2 = arith.constant 0 : i32
    return %c0_i32, %c0_i32_0, %c0_i32_1 : i32, i32, i32
  }
  func.func @transform_2(%arg0: i32) -> (i32, i32) {
    %c0_i32 = arith.constant 0 : i32
    %c0_i32_0 = arith.constant 0 : i32
    %c0_i32_1 = arith.constant 0 : i32
    return %c0_i32, %c0_i32_0 : i32, i32
  }
  func.func @transform_3(%arg0: i32) -> (i32, i32, i32, i32) {
    %c0_i32 = arith.constant 0 : i32
    %c0_i32_0 = arith.constant 0 : i32
    %c0_i32_1 = arith.constant 0 : i32
    %c0_i32_2 = arith.constant 0 : i32
    return %arg0, %c0_i32, %c0_i32_0, %c0_i32_1 : i32, i32, i32, i32
  }
}

module attributes {stable_mosaic.version = 11 : i64} {
  func.func @_conv3x3_relu_kernel(%arg0: i32, %arg1: memref<1x16x16x128xbf16, #tpu.memory_space<vmem>>, %arg2: memref<1x16x16x128xbf16, #tpu.memory_space<vmem>>, %arg3: memref<9x128x128xbf16, #tpu.memory_space<vmem>>, %arg4: memref<9x128x128xbf16, #tpu.memory_space<vmem>>, %arg5: memref<1x128xf32, #tpu.memory_space<vmem>>, %arg6: memref<1x14x14x128xbf16, #tpu.memory_space<vmem>>) attributes {dimension_semantics = [#tpu.dimension_semantics<parallel>], iteration_bounds = array<i64: 2>, scalar_prefetch = 0 : i64, scratch_operands = 0 : i64, tpu.core_type = #tpu.core_type<tc>, window_params = [{transform_indices = @transform_0, window_bounds = array<i64: 1, 16, 16, 128>}, {transform_indices = @transform_1, window_bounds = array<i64: 1, 16, 16, 128>}, {pipeline_mode = #tpu.pipeline_mode<synchronous>, transform_indices = @transform_2, window_bounds = array<i64: 9, 128, 128>}, {pipeline_mode = #tpu.pipeline_mode<synchronous>, transform_indices = @transform_3, window_bounds = array<i64: 9, 128, 128>}, {pipeline_mode = #tpu.pipeline_mode<synchronous>, transform_indices = @transform_4, window_bounds = array<i64: 1, 128>}, {transform_indices = @transform_5, window_bounds = array<i64: 1, 14, 14, 128>}]} {
    %c0 = arith.constant 0 : index
    %c0_0 = arith.constant 0 : index
    %0 = vector.load %arg5[%c0, %c0_0] : memref<1x128xf32, #tpu.memory_space<vmem>>, vector<1x128xf32>
    %1 = vector.shape_cast %0 : vector<1x128xf32> to vector<1x128xf32>
    %2 = vector.broadcast %1 : vector<1x128xf32> to vector<14x128xf32>
    %c0_i32 = arith.constant 0 : i32
    %c14_i32 = arith.constant 14 : i32
    %3 = arith.addi %c0_i32, %c14_i32 : i32
    %c1_i32 = arith.constant 1 : i32
    scf.for %arg7 = %c0_i32 to %3 step %c1_i32  : i32 {
      %c0_i32_2 = arith.constant 0 : i32
      %4 = arith.addi %arg7, %c0_i32_2 : i32
      %c0_3 = arith.constant 0 : index
      %5 = arith.index_cast %4 : i32 to index
      %c0_4 = arith.constant 0 : index
      %c0_5 = arith.constant 0 : index
      %6 = vector.load %arg1[%c0_3, %5, %c0_4, %c0_5] : memref<1x16x16x128xbf16, #tpu.memory_space<vmem>>, vector<1x1x16x128xbf16>
      %7 = vector.shape_cast %6 : vector<1x1x16x128xbf16> to vector<16x128xbf16>
      %8 = vector.extract_strided_slice %7 {offsets = [0, 0], sizes = [14, 128], strides = [1, 1]} : vector<16x128xbf16> to vector<14x128xbf16>
      %c0_6 = arith.constant 0 : index
      %c0_7 = arith.constant 0 : index
      %c0_8 = arith.constant 0 : index
      %9 = vector.load %arg3[%c0_6, %c0_7, %c0_8] : memref<9x128x128xbf16, #tpu.memory_space<vmem>>, vector<1x128x128xbf16>
      %10 = vector.shape_cast %9 : vector<1x128x128xbf16> to vector<128x128xbf16>
      %cst = arith.constant dense<0.000000e+00> : vector<14x128xf32>
      %11 = tpu.matmul %8, %10, %cst {dimension_numbers = #tpu.dot_dimension_numbers<[1], [0], [0], [1], [0, 0, 1, 1], [], []>} : vector<14x128xbf16>, vector<128x128xbf16>, vector<14x128xf32> -> vector<14x128xf32>
      %12 = arith.addf %2, %11 : vector<14x128xf32>
      %13 = vector.extract_strided_slice %7 {offsets = [1, 0], sizes = [14, 128], strides = [1, 1]} : vector<16x128xbf16> to vector<14x128xbf16>
      %c1 = arith.constant 1 : index
      %c0_9 = arith.constant 0 : index
      %c0_10 = arith.constant 0 : index
      %14 = vector.load %arg3[%c1, %c0_9, %c0_10] : memref<9x128x128xbf16, #tpu.memory_space<vmem>>, vector<1x128x128xbf16>
      %15 = vector.shape_cast %14 : vector<1x128x128xbf16> to vector<128x128xbf16>
      %cst_11 = arith.constant dense<0.000000e+00> : vector<14x128xf32>
      %16 = tpu.matmul %13, %15, %cst_11 {dimension_numbers = #tpu.dot_dimension_numbers<[1], [0], [0], [1], [0, 0, 1, 1], [], []>} : vector<14x128xbf16>, vector<128x128xbf16>, vector<14x128xf32> -> vector<14x128xf32>
      %17 = arith.addf %12, %16 : vector<14x128xf32>
      %18 = vector.extract_strided_slice %7 {offsets = [2, 0], sizes = [14, 128], strides = [1, 1]} : vector<16x128xbf16> to vector<14x128xbf16>
      %c2 = arith.constant 2 : index
      %c0_12 = arith.constant 0 : index
      %c0_13 = arith.constant 0 : index
      %19 = vector.load %arg3[%c2, %c0_12, %c0_13] : memref<9x128x128xbf16, #tpu.memory_space<vmem>>, vector<1x128x128xbf16>
      %20 = vector.shape_cast %19 : vector<1x128x128xbf16> to vector<128x128xbf16>
      %cst_14 = arith.constant dense<0.000000e+00> : vector<14x128xf32>
      %21 = tpu.matmul %18, %20, %cst_14 {dimension_numbers = #tpu.dot_dimension_numbers<[1], [0], [0], [1], [0, 0, 1, 1], [], []>} : vector<14x128xbf16>, vector<128x128xbf16>, vector<14x128xf32> -> vector<14x128xf32>
      %22 = arith.addf %17, %21 : vector<14x128xf32>
      %c1_i32_15 = arith.constant 1 : i32
      %23 = arith.addi %arg7, %c1_i32_15 : i32
      %c0_16 = arith.constant 0 : index
      %24 = arith.index_cast %23 : i32 to index
      %c0_17 = arith.constant 0 : index
      %c0_18 = arith.constant 0 : index
      %25 = vector.load %arg1[%c0_16, %24, %c0_17, %c0_18] : memref<1x16x16x128xbf16, #tpu.memory_space<vmem>>, vector<1x1x16x128xbf16>
      %26 = vector.shape_cast %25 : vector<1x1x16x128xbf16> to vector<16x128xbf16>
      %27 = vector.extract_strided_slice %26 {offsets = [0, 0], sizes = [14, 128], strides = [1, 1]} : vector<16x128xbf16> to vector<14x128xbf16>
      %c3 = arith.constant 3 : index
      %c0_19 = arith.constant 0 : index
      %c0_20 = arith.constant 0 : index
      %28 = vector.load %arg3[%c3, %c0_19, %c0_20] : memref<9x128x128xbf16, #tpu.memory_space<vmem>>, vector<1x128x128xbf16>
      %29 = vector.shape_cast %28 : vector<1x128x128xbf16> to vector<128x128xbf16>
      %cst_21 = arith.constant dense<0.000000e+00> : vector<14x128xf32>
      %30 = tpu.matmul %27, %29, %cst_21 {dimension_numbers = #tpu.dot_dimension_numbers<[1], [0], [0], [1], [0, 0, 1, 1], [], []>} : vector<14x128xbf16>, vector<128x128xbf16>, vector<14x128xf32> -> vector<14x128xf32>
      %31 = arith.addf %22, %30 : vector<14x128xf32>
      %32 = vector.extract_strided_slice %26 {offsets = [1, 0], sizes = [14, 128], strides = [1, 1]} : vector<16x128xbf16> to vector<14x128xbf16>
      %c4 = arith.constant 4 : index
      %c0_22 = arith.constant 0 : index
      %c0_23 = arith.constant 0 : index
      %33 = vector.load %arg3[%c4, %c0_22, %c0_23] : memref<9x128x128xbf16, #tpu.memory_space<vmem>>, vector<1x128x128xbf16>
      %34 = vector.shape_cast %33 : vector<1x128x128xbf16> to vector<128x128xbf16>
      %cst_24 = arith.constant dense<0.000000e+00> : vector<14x128xf32>
      %35 = tpu.matmul %32, %34, %cst_24 {dimension_numbers = #tpu.dot_dimension_numbers<[1], [0], [0], [1], [0, 0, 1, 1], [], []>} : vector<14x128xbf16>, vector<128x128xbf16>, vector<14x128xf32> -> vector<14x128xf32>
      %36 = arith.addf %31, %35 : vector<14x128xf32>
      %37 = vector.extract_strided_slice %26 {offsets = [2, 0], sizes = [14, 128], strides = [1, 1]} : vector<16x128xbf16> to vector<14x128xbf16>
      %c5 = arith.constant 5 : index
      %c0_25 = arith.constant 0 : index
      %c0_26 = arith.constant 0 : index
      %38 = vector.load %arg3[%c5, %c0_25, %c0_26] : memref<9x128x128xbf16, #tpu.memory_space<vmem>>, vector<1x128x128xbf16>
      %39 = vector.shape_cast %38 : vector<1x128x128xbf16> to vector<128x128xbf16>
      %cst_27 = arith.constant dense<0.000000e+00> : vector<14x128xf32>
      %40 = tpu.matmul %37, %39, %cst_27 {dimension_numbers = #tpu.dot_dimension_numbers<[1], [0], [0], [1], [0, 0, 1, 1], [], []>} : vector<14x128xbf16>, vector<128x128xbf16>, vector<14x128xf32> -> vector<14x128xf32>
      %41 = arith.addf %36, %40 : vector<14x128xf32>
      %c2_i32 = arith.constant 2 : i32
      %42 = arith.addi %arg7, %c2_i32 : i32
      %c0_28 = arith.constant 0 : index
      %43 = arith.index_cast %42 : i32 to index
      %c0_29 = arith.constant 0 : index
      %c0_30 = arith.constant 0 : index
      %44 = vector.load %arg1[%c0_28, %43, %c0_29, %c0_30] : memref<1x16x16x128xbf16, #tpu.memory_space<vmem>>, vector<1x1x16x128xbf16>
      %45 = vector.shape_cast %44 : vector<1x1x16x128xbf16> to vector<16x128xbf16>
      %46 = vector.extract_strided_slice %45 {offsets = [0, 0], sizes = [14, 128], strides = [1, 1]} : vector<16x128xbf16> to vector<14x128xbf16>
      %c6 = arith.constant 6 : index
      %c0_31 = arith.constant 0 : index
      %c0_32 = arith.constant 0 : index
      %47 = vector.load %arg3[%c6, %c0_31, %c0_32] : memref<9x128x128xbf16, #tpu.memory_space<vmem>>, vector<1x128x128xbf16>
      %48 = vector.shape_cast %47 : vector<1x128x128xbf16> to vector<128x128xbf16>
      %cst_33 = arith.constant dense<0.000000e+00> : vector<14x128xf32>
      %49 = tpu.matmul %46, %48, %cst_33 {dimension_numbers = #tpu.dot_dimension_numbers<[1], [0], [0], [1], [0, 0, 1, 1], [], []>} : vector<14x128xbf16>, vector<128x128xbf16>, vector<14x128xf32> -> vector<14x128xf32>
      %50 = arith.addf %41, %49 : vector<14x128xf32>
      %51 = vector.extract_strided_slice %45 {offsets = [1, 0], sizes = [14, 128], strides = [1, 1]} : vector<16x128xbf16> to vector<14x128xbf16>
      %c7 = arith.constant 7 : index
      %c0_34 = arith.constant 0 : index
      %c0_35 = arith.constant 0 : index
      %52 = vector.load %arg3[%c7, %c0_34, %c0_35] : memref<9x128x128xbf16, #tpu.memory_space<vmem>>, vector<1x128x128xbf16>
      %53 = vector.shape_cast %52 : vector<1x128x128xbf16> to vector<128x128xbf16>
      %cst_36 = arith.constant dense<0.000000e+00> : vector<14x128xf32>
      %54 = tpu.matmul %51, %53, %cst_36 {dimension_numbers = #tpu.dot_dimension_numbers<[1], [0], [0], [1], [0, 0, 1, 1], [], []>} : vector<14x128xbf16>, vector<128x128xbf16>, vector<14x128xf32> -> vector<14x128xf32>
      %55 = arith.addf %50, %54 : vector<14x128xf32>
      %56 = vector.extract_strided_slice %45 {offsets = [2, 0], sizes = [14, 128], strides = [1, 1]} : vector<16x128xbf16> to vector<14x128xbf16>
      %c8 = arith.constant 8 : index
      %c0_37 = arith.constant 0 : index
      %c0_38 = arith.constant 0 : index
      %57 = vector.load %arg3[%c8, %c0_37, %c0_38] : memref<9x128x128xbf16, #tpu.memory_space<vmem>>, vector<1x128x128xbf16>
      %58 = vector.shape_cast %57 : vector<1x128x128xbf16> to vector<128x128xbf16>
      %cst_39 = arith.constant dense<0.000000e+00> : vector<14x128xf32>
      %59 = tpu.matmul %56, %58, %cst_39 {dimension_numbers = #tpu.dot_dimension_numbers<[1], [0], [0], [1], [0, 0, 1, 1], [], []>} : vector<14x128xbf16>, vector<128x128xbf16>, vector<14x128xf32> -> vector<14x128xf32>
      %60 = arith.addf %55, %59 : vector<14x128xf32>
      %c0_i32_40 = arith.constant 0 : i32
      %61 = arith.addi %arg7, %c0_i32_40 : i32
      %c0_41 = arith.constant 0 : index
      %62 = arith.index_cast %61 : i32 to index
      %c0_42 = arith.constant 0 : index
      %c0_43 = arith.constant 0 : index
      %63 = vector.load %arg2[%c0_41, %62, %c0_42, %c0_43] : memref<1x16x16x128xbf16, #tpu.memory_space<vmem>>, vector<1x1x16x128xbf16>
      %64 = vector.shape_cast %63 : vector<1x1x16x128xbf16> to vector<16x128xbf16>
      %65 = vector.extract_strided_slice %64 {offsets = [0, 0], sizes = [14, 128], strides = [1, 1]} : vector<16x128xbf16> to vector<14x128xbf16>
      %c0_44 = arith.constant 0 : index
      %c0_45 = arith.constant 0 : index
      %c0_46 = arith.constant 0 : index
      %66 = vector.load %arg4[%c0_44, %c0_45, %c0_46] : memref<9x128x128xbf16, #tpu.memory_space<vmem>>, vector<1x128x128xbf16>
      %67 = vector.shape_cast %66 : vector<1x128x128xbf16> to vector<128x128xbf16>
      %cst_47 = arith.constant dense<0.000000e+00> : vector<14x128xf32>
      %68 = tpu.matmul %65, %67, %cst_47 {dimension_numbers = #tpu.dot_dimension_numbers<[1], [0], [0], [1], [0, 0, 1, 1], [], []>} : vector<14x128xbf16>, vector<128x128xbf16>, vector<14x128xf32> -> vector<14x128xf32>
      %69 = arith.addf %60, %68 : vector<14x128xf32>
      %70 = vector.extract_strided_slice %64 {offsets = [1, 0], sizes = [14, 128], strides = [1, 1]} : vector<16x128xbf16> to vector<14x128xbf16>
      %c1_48 = arith.constant 1 : index
      %c0_49 = arith.constant 0 : index
      %c0_50 = arith.constant 0 : index
      %71 = vector.load %arg4[%c1_48, %c0_49, %c0_50] : memref<9x128x128xbf16, #tpu.memory_space<vmem>>, vector<1x128x128xbf16>
      %72 = vector.shape_cast %71 : vector<1x128x128xbf16> to vector<128x128xbf16>
      %cst_51 = arith.constant dense<0.000000e+00> : vector<14x128xf32>
      %73 = tpu.matmul %70, %72, %cst_51 {dimension_numbers = #tpu.dot_dimension_numbers<[1], [0], [0], [1], [0, 0, 1, 1], [], []>} : vector<14x128xbf16>, vector<128x128xbf16>, vector<14x128xf32> -> vector<14x128xf32>
      %74 = arith.addf %69, %73 : vector<14x128xf32>
      %75 = vector.extract_strided_slice %64 {offsets = [2, 0], sizes = [14, 128], strides = [1, 1]} : vector<16x128xbf16> to vector<14x128xbf16>
      %c2_52 = arith.constant 2 : index
      %c0_53 = arith.constant 0 : index
      %c0_54 = arith.constant 0 : index
      %76 = vector.load %arg4[%c2_52, %c0_53, %c0_54] : memref<9x128x128xbf16, #tpu.memory_space<vmem>>, vector<1x128x128xbf16>
      %77 = vector.shape_cast %76 : vector<1x128x128xbf16> to vector<128x128xbf16>
      %cst_55 = arith.constant dense<0.000000e+00> : vector<14x128xf32>
      %78 = tpu.matmul %75, %77, %cst_55 {dimension_numbers = #tpu.dot_dimension_numbers<[1], [0], [0], [1], [0, 0, 1, 1], [], []>} : vector<14x128xbf16>, vector<128x128xbf16>, vector<14x128xf32> -> vector<14x128xf32>
      %79 = arith.addf %74, %78 : vector<14x128xf32>
      %c1_i32_56 = arith.constant 1 : i32
      %80 = arith.addi %arg7, %c1_i32_56 : i32
      %c0_57 = arith.constant 0 : index
      %81 = arith.index_cast %80 : i32 to index
      %c0_58 = arith.constant 0 : index
      %c0_59 = arith.constant 0 : index
      %82 = vector.load %arg2[%c0_57, %81, %c0_58, %c0_59] : memref<1x16x16x128xbf16, #tpu.memory_space<vmem>>, vector<1x1x16x128xbf16>
      %83 = vector.shape_cast %82 : vector<1x1x16x128xbf16> to vector<16x128xbf16>
      %84 = vector.extract_strided_slice %83 {offsets = [0, 0], sizes = [14, 128], strides = [1, 1]} : vector<16x128xbf16> to vector<14x128xbf16>
      %c3_60 = arith.constant 3 : index
      %c0_61 = arith.constant 0 : index
      %c0_62 = arith.constant 0 : index
      %85 = vector.load %arg4[%c3_60, %c0_61, %c0_62] : memref<9x128x128xbf16, #tpu.memory_space<vmem>>, vector<1x128x128xbf16>
      %86 = vector.shape_cast %85 : vector<1x128x128xbf16> to vector<128x128xbf16>
      %cst_63 = arith.constant dense<0.000000e+00> : vector<14x128xf32>
      %87 = tpu.matmul %84, %86, %cst_63 {dimension_numbers = #tpu.dot_dimension_numbers<[1], [0], [0], [1], [0, 0, 1, 1], [], []>} : vector<14x128xbf16>, vector<128x128xbf16>, vector<14x128xf32> -> vector<14x128xf32>
      %88 = arith.addf %79, %87 : vector<14x128xf32>
      %89 = vector.extract_strided_slice %83 {offsets = [1, 0], sizes = [14, 128], strides = [1, 1]} : vector<16x128xbf16> to vector<14x128xbf16>
      %c4_64 = arith.constant 4 : index
      %c0_65 = arith.constant 0 : index
      %c0_66 = arith.constant 0 : index
      %90 = vector.load %arg4[%c4_64, %c0_65, %c0_66] : memref<9x128x128xbf16, #tpu.memory_space<vmem>>, vector<1x128x128xbf16>
      %91 = vector.shape_cast %90 : vector<1x128x128xbf16> to vector<128x128xbf16>
      %cst_67 = arith.constant dense<0.000000e+00> : vector<14x128xf32>
      %92 = tpu.matmul %89, %91, %cst_67 {dimension_numbers = #tpu.dot_dimension_numbers<[1], [0], [0], [1], [0, 0, 1, 1], [], []>} : vector<14x128xbf16>, vector<128x128xbf16>, vector<14x128xf32> -> vector<14x128xf32>
      %93 = arith.addf %88, %92 : vector<14x128xf32>
      %94 = vector.extract_strided_slice %83 {offsets = [2, 0], sizes = [14, 128], strides = [1, 1]} : vector<16x128xbf16> to vector<14x128xbf16>
      %c5_68 = arith.constant 5 : index
      %c0_69 = arith.constant 0 : index
      %c0_70 = arith.constant 0 : index
      %95 = vector.load %arg4[%c5_68, %c0_69, %c0_70] : memref<9x128x128xbf16, #tpu.memory_space<vmem>>, vector<1x128x128xbf16>
      %96 = vector.shape_cast %95 : vector<1x128x128xbf16> to vector<128x128xbf16>
      %cst_71 = arith.constant dense<0.000000e+00> : vector<14x128xf32>
      %97 = tpu.matmul %94, %96, %cst_71 {dimension_numbers = #tpu.dot_dimension_numbers<[1], [0], [0], [1], [0, 0, 1, 1], [], []>} : vector<14x128xbf16>, vector<128x128xbf16>, vector<14x128xf32> -> vector<14x128xf32>
      %98 = arith.addf %93, %97 : vector<14x128xf32>
      %c2_i32_72 = arith.constant 2 : i32
      %99 = arith.addi %arg7, %c2_i32_72 : i32
      %c0_73 = arith.constant 0 : index
      %100 = arith.index_cast %99 : i32 to index
      %c0_74 = arith.constant 0 : index
      %c0_75 = arith.constant 0 : index
      %101 = vector.load %arg2[%c0_73, %100, %c0_74, %c0_75] : memref<1x16x16x128xbf16, #tpu.memory_space<vmem>>, vector<1x1x16x128xbf16>
      %102 = vector.shape_cast %101 : vector<1x1x16x128xbf16> to vector<16x128xbf16>
      %103 = vector.extract_strided_slice %102 {offsets = [0, 0], sizes = [14, 128], strides = [1, 1]} : vector<16x128xbf16> to vector<14x128xbf16>
      %c6_76 = arith.constant 6 : index
      %c0_77 = arith.constant 0 : index
      %c0_78 = arith.constant 0 : index
      %104 = vector.load %arg4[%c6_76, %c0_77, %c0_78] : memref<9x128x128xbf16, #tpu.memory_space<vmem>>, vector<1x128x128xbf16>
      %105 = vector.shape_cast %104 : vector<1x128x128xbf16> to vector<128x128xbf16>
      %cst_79 = arith.constant dense<0.000000e+00> : vector<14x128xf32>
      %106 = tpu.matmul %103, %105, %cst_79 {dimension_numbers = #tpu.dot_dimension_numbers<[1], [0], [0], [1], [0, 0, 1, 1], [], []>} : vector<14x128xbf16>, vector<128x128xbf16>, vector<14x128xf32> -> vector<14x128xf32>
      %107 = arith.addf %98, %106 : vector<14x128xf32>
      %108 = vector.extract_strided_slice %102 {offsets = [1, 0], sizes = [14, 128], strides = [1, 1]} : vector<16x128xbf16> to vector<14x128xbf16>
      %c7_80 = arith.constant 7 : index
      %c0_81 = arith.constant 0 : index
      %c0_82 = arith.constant 0 : index
      %109 = vector.load %arg4[%c7_80, %c0_81, %c0_82] : memref<9x128x128xbf16, #tpu.memory_space<vmem>>, vector<1x128x128xbf16>
      %110 = vector.shape_cast %109 : vector<1x128x128xbf16> to vector<128x128xbf16>
      %cst_83 = arith.constant dense<0.000000e+00> : vector<14x128xf32>
      %111 = tpu.matmul %108, %110, %cst_83 {dimension_numbers = #tpu.dot_dimension_numbers<[1], [0], [0], [1], [0, 0, 1, 1], [], []>} : vector<14x128xbf16>, vector<128x128xbf16>, vector<14x128xf32> -> vector<14x128xf32>
      %112 = arith.addf %107, %111 : vector<14x128xf32>
      %113 = vector.extract_strided_slice %102 {offsets = [2, 0], sizes = [14, 128], strides = [1, 1]} : vector<16x128xbf16> to vector<14x128xbf16>
      %c8_84 = arith.constant 8 : index
      %c0_85 = arith.constant 0 : index
      %c0_86 = arith.constant 0 : index
      %114 = vector.load %arg4[%c8_84, %c0_85, %c0_86] : memref<9x128x128xbf16, #tpu.memory_space<vmem>>, vector<1x128x128xbf16>
      %115 = vector.shape_cast %114 : vector<1x128x128xbf16> to vector<128x128xbf16>
      %cst_87 = arith.constant dense<0.000000e+00> : vector<14x128xf32>
      %116 = tpu.matmul %113, %115, %cst_87 {dimension_numbers = #tpu.dot_dimension_numbers<[1], [0], [0], [1], [0, 0, 1, 1], [], []>} : vector<14x128xbf16>, vector<128x128xbf16>, vector<14x128xf32> -> vector<14x128xf32>
      %117 = arith.addf %112, %116 : vector<14x128xf32>
      %cst_88 = arith.constant 0.000000e+00 : f32
      %118 = vector.broadcast %cst_88 : f32 to vector<14x128xf32>
      %119 = arith.maximumf %117, %118 : vector<14x128xf32>
      %120 = arith.truncf %119 : vector<14x128xf32> to vector<14x128xbf16>
      %c0_89 = arith.constant 0 : index
      %121 = arith.index_cast %arg7 : i32 to index
      %c0_90 = arith.constant 0 : index
      %c0_91 = arith.constant 0 : index
      %122 = vector.load %arg6[%c0_89, %121, %c0_90, %c0_91] : memref<1x14x14x128xbf16, #tpu.memory_space<vmem>>, vector<1x1x14x128xbf16>
      %123 = vector.shape_cast %122 : vector<1x1x14x128xbf16> to vector<14x128xbf16>
      %124 = vector.shape_cast %120 : vector<14x128xbf16> to vector<1x1x14x128xbf16>
      tpu.vector_store %arg6[%c0_89, %121, %c0_90, %c0_91], %124 {strides = array<i32>} : memref<1x14x14x128xbf16, #tpu.memory_space<vmem>>, vector<1x1x14x128xbf16>,
    }
    %c14_i32_1 = arith.constant 14 : i32
    return
  }
  func.func @transform_0(%arg0: i32) -> (i32, i32, i32, i32) {
    %c0_i32 = arith.constant 0 : i32
    %c0_i32_0 = arith.constant 0 : i32
    %c0_i32_1 = arith.constant 0 : i32
    %c0_i32_2 = arith.constant 0 : i32
    return %arg0, %c0_i32, %c0_i32_0, %c0_i32_1 : i32, i32, i32, i32
  }
  func.func @transform_1(%arg0: i32) -> (i32, i32, i32, i32) {
    %c0_i32 = arith.constant 0 : i32
    %c0_i32_0 = arith.constant 0 : i32
    %c0_i32_1 = arith.constant 0 : i32
    %c0_i32_2 = arith.constant 0 : i32
    return %arg0, %c0_i32, %c0_i32_0, %c0_i32_1 : i32, i32, i32, i32
  }
  func.func @transform_2(%arg0: i32) -> (i32, i32, i32) {
    %c0_i32 = arith.constant 0 : i32
    %c0_i32_0 = arith.constant 0 : i32
    %c0_i32_1 = arith.constant 0 : i32
    %c0_i32_2 = arith.constant 0 : i32
    return %c0_i32, %c0_i32_0, %c0_i32_1 : i32, i32, i32
  }
  func.func @transform_3(%arg0: i32) -> (i32, i32, i32) {
    %c0_i32 = arith.constant 0 : i32
    %c0_i32_0 = arith.constant 0 : i32
    %c0_i32_1 = arith.constant 0 : i32
    %c0_i32_2 = arith.constant 0 : i32
    return %c0_i32, %c0_i32_0, %c0_i32_1 : i32, i32, i32
  }
  func.func @transform_4(%arg0: i32) -> (i32, i32) {
    %c0_i32 = arith.constant 0 : i32
    %c0_i32_0 = arith.constant 0 : i32
    %c0_i32_1 = arith.constant 0 : i32
    return %c0_i32, %c0_i32_0 : i32, i32
  }
  func.func @transform_5(%arg0: i32) -> (i32, i32, i32, i32) {
    %c0_i32 = arith.constant 0 : i32
    %c0_i32_0 = arith.constant 0 : i32
    %c0_i32_1 = arith.constant 0 : i32
    %c0_i32_2 = arith.constant 0 : i32
    return %arg0, %c0_i32, %c0_i32_0, %c0_i32_1 : i32, i32, i32, i32
  }
}

module attributes {stable_mosaic.version = 11 : i64} {
  func.func @_conv3x3_relu_kernel(%arg0: i32, %arg1: memref<1x14x14x128xbf16, #tpu.memory_space<vmem>>, %arg2: memref<9x128x128xbf16, #tpu.memory_space<vmem>>, %arg3: memref<1x128xf32, #tpu.memory_space<vmem>>, %arg4: memref<1x12x12x128xf32, #tpu.memory_space<vmem>>) attributes {dimension_semantics = [#tpu.dimension_semantics<parallel>], iteration_bounds = array<i64: 2>, scalar_prefetch = 0 : i64, scratch_operands = 0 : i64, tpu.core_type = #tpu.core_type<tc>, window_params = [{transform_indices = @transform_0, window_bounds = array<i64: 1, 14, 14, 128>}, {pipeline_mode = #tpu.pipeline_mode<synchronous>, transform_indices = @transform_1, window_bounds = array<i64: 9, 128, 128>}, {pipeline_mode = #tpu.pipeline_mode<synchronous>, transform_indices = @transform_2, window_bounds = array<i64: 1, 128>}, {transform_indices = @transform_3, window_bounds = array<i64: 1, 12, 12, 128>}]} {
    %c0 = arith.constant 0 : index
    %c0_0 = arith.constant 0 : index
    %0 = vector.load %arg3[%c0, %c0_0] : memref<1x128xf32, #tpu.memory_space<vmem>>, vector<1x128xf32>
    %1 = vector.shape_cast %0 : vector<1x128xf32> to vector<1x128xf32>
    %2 = vector.broadcast %1 : vector<1x128xf32> to vector<12x128xf32>
    %c0_i32 = arith.constant 0 : i32
    %c12_i32 = arith.constant 12 : i32
    %3 = arith.addi %c0_i32, %c12_i32 : i32
    %c1_i32 = arith.constant 1 : i32
    scf.for %arg5 = %c0_i32 to %3 step %c1_i32  : i32 {
      %c0_i32_2 = arith.constant 0 : i32
      %4 = arith.addi %arg5, %c0_i32_2 : i32
      %c0_3 = arith.constant 0 : index
      %5 = arith.index_cast %4 : i32 to index
      %c0_4 = arith.constant 0 : index
      %c0_5 = arith.constant 0 : index
      %6 = vector.load %arg1[%c0_3, %5, %c0_4, %c0_5] : memref<1x14x14x128xbf16, #tpu.memory_space<vmem>>, vector<1x1x14x128xbf16>
      %7 = vector.shape_cast %6 : vector<1x1x14x128xbf16> to vector<14x128xbf16>
      %8 = vector.extract_strided_slice %7 {offsets = [0, 0], sizes = [12, 128], strides = [1, 1]} : vector<14x128xbf16> to vector<12x128xbf16>
      %c0_6 = arith.constant 0 : index
      %c0_7 = arith.constant 0 : index
      %c0_8 = arith.constant 0 : index
      %9 = vector.load %arg2[%c0_6, %c0_7, %c0_8] : memref<9x128x128xbf16, #tpu.memory_space<vmem>>, vector<1x128x128xbf16>
      %10 = vector.shape_cast %9 : vector<1x128x128xbf16> to vector<128x128xbf16>
      %cst = arith.constant dense<0.000000e+00> : vector<12x128xf32>
      %11 = tpu.matmul %8, %10, %cst {dimension_numbers = #tpu.dot_dimension_numbers<[1], [0], [0], [1], [0, 0, 1, 1], [], []>} : vector<12x128xbf16>, vector<128x128xbf16>, vector<12x128xf32> -> vector<12x128xf32>
      %12 = arith.addf %2, %11 : vector<12x128xf32>
      %13 = vector.extract_strided_slice %7 {offsets = [1, 0], sizes = [12, 128], strides = [1, 1]} : vector<14x128xbf16> to vector<12x128xbf16>
      %c1 = arith.constant 1 : index
      %c0_9 = arith.constant 0 : index
      %c0_10 = arith.constant 0 : index
      %14 = vector.load %arg2[%c1, %c0_9, %c0_10] : memref<9x128x128xbf16, #tpu.memory_space<vmem>>, vector<1x128x128xbf16>
      %15 = vector.shape_cast %14 : vector<1x128x128xbf16> to vector<128x128xbf16>
      %cst_11 = arith.constant dense<0.000000e+00> : vector<12x128xf32>
      %16 = tpu.matmul %13, %15, %cst_11 {dimension_numbers = #tpu.dot_dimension_numbers<[1], [0], [0], [1], [0, 0, 1, 1], [], []>} : vector<12x128xbf16>, vector<128x128xbf16>, vector<12x128xf32> -> vector<12x128xf32>
      %17 = arith.addf %12, %16 : vector<12x128xf32>
      %18 = vector.extract_strided_slice %7 {offsets = [2, 0], sizes = [12, 128], strides = [1, 1]} : vector<14x128xbf16> to vector<12x128xbf16>
      %c2 = arith.constant 2 : index
      %c0_12 = arith.constant 0 : index
      %c0_13 = arith.constant 0 : index
      %19 = vector.load %arg2[%c2, %c0_12, %c0_13] : memref<9x128x128xbf16, #tpu.memory_space<vmem>>, vector<1x128x128xbf16>
      %20 = vector.shape_cast %19 : vector<1x128x128xbf16> to vector<128x128xbf16>
      %cst_14 = arith.constant dense<0.000000e+00> : vector<12x128xf32>
      %21 = tpu.matmul %18, %20, %cst_14 {dimension_numbers = #tpu.dot_dimension_numbers<[1], [0], [0], [1], [0, 0, 1, 1], [], []>} : vector<12x128xbf16>, vector<128x128xbf16>, vector<12x128xf32> -> vector<12x128xf32>
      %22 = arith.addf %17, %21 : vector<12x128xf32>
      %c1_i32_15 = arith.constant 1 : i32
      %23 = arith.addi %arg5, %c1_i32_15 : i32
      %c0_16 = arith.constant 0 : index
      %24 = arith.index_cast %23 : i32 to index
      %c0_17 = arith.constant 0 : index
      %c0_18 = arith.constant 0 : index
      %25 = vector.load %arg1[%c0_16, %24, %c0_17, %c0_18] : memref<1x14x14x128xbf16, #tpu.memory_space<vmem>>, vector<1x1x14x128xbf16>
      %26 = vector.shape_cast %25 : vector<1x1x14x128xbf16> to vector<14x128xbf16>
      %27 = vector.extract_strided_slice %26 {offsets = [0, 0], sizes = [12, 128], strides = [1, 1]} : vector<14x128xbf16> to vector<12x128xbf16>
      %c3 = arith.constant 3 : index
      %c0_19 = arith.constant 0 : index
      %c0_20 = arith.constant 0 : index
      %28 = vector.load %arg2[%c3, %c0_19, %c0_20] : memref<9x128x128xbf16, #tpu.memory_space<vmem>>, vector<1x128x128xbf16>
      %29 = vector.shape_cast %28 : vector<1x128x128xbf16> to vector<128x128xbf16>
      %cst_21 = arith.constant dense<0.000000e+00> : vector<12x128xf32>
      %30 = tpu.matmul %27, %29, %cst_21 {dimension_numbers = #tpu.dot_dimension_numbers<[1], [0], [0], [1], [0, 0, 1, 1], [], []>} : vector<12x128xbf16>, vector<128x128xbf16>, vector<12x128xf32> -> vector<12x128xf32>
      %31 = arith.addf %22, %30 : vector<12x128xf32>
      %32 = vector.extract_strided_slice %26 {offsets = [1, 0], sizes = [12, 128], strides = [1, 1]} : vector<14x128xbf16> to vector<12x128xbf16>
      %c4 = arith.constant 4 : index
      %c0_22 = arith.constant 0 : index
      %c0_23 = arith.constant 0 : index
      %33 = vector.load %arg2[%c4, %c0_22, %c0_23] : memref<9x128x128xbf16, #tpu.memory_space<vmem>>, vector<1x128x128xbf16>
      %34 = vector.shape_cast %33 : vector<1x128x128xbf16> to vector<128x128xbf16>
      %cst_24 = arith.constant dense<0.000000e+00> : vector<12x128xf32>
      %35 = tpu.matmul %32, %34, %cst_24 {dimension_numbers = #tpu.dot_dimension_numbers<[1], [0], [0], [1], [0, 0, 1, 1], [], []>} : vector<12x128xbf16>, vector<128x128xbf16>, vector<12x128xf32> -> vector<12x128xf32>
      %36 = arith.addf %31, %35 : vector<12x128xf32>
      %37 = vector.extract_strided_slice %26 {offsets = [2, 0], sizes = [12, 128], strides = [1, 1]} : vector<14x128xbf16> to vector<12x128xbf16>
      %c5 = arith.constant 5 : index
      %c0_25 = arith.constant 0 : index
      %c0_26 = arith.constant 0 : index
      %38 = vector.load %arg2[%c5, %c0_25, %c0_26] : memref<9x128x128xbf16, #tpu.memory_space<vmem>>, vector<1x128x128xbf16>
      %39 = vector.shape_cast %38 : vector<1x128x128xbf16> to vector<128x128xbf16>
      %cst_27 = arith.constant dense<0.000000e+00> : vector<12x128xf32>
      %40 = tpu.matmul %37, %39, %cst_27 {dimension_numbers = #tpu.dot_dimension_numbers<[1], [0], [0], [1], [0, 0, 1, 1], [], []>} : vector<12x128xbf16>, vector<128x128xbf16>, vector<12x128xf32> -> vector<12x128xf32>
      %41 = arith.addf %36, %40 : vector<12x128xf32>
      %c2_i32 = arith.constant 2 : i32
      %42 = arith.addi %arg5, %c2_i32 : i32
      %c0_28 = arith.constant 0 : index
      %43 = arith.index_cast %42 : i32 to index
      %c0_29 = arith.constant 0 : index
      %c0_30 = arith.constant 0 : index
      %44 = vector.load %arg1[%c0_28, %43, %c0_29, %c0_30] : memref<1x14x14x128xbf16, #tpu.memory_space<vmem>>, vector<1x1x14x128xbf16>
      %45 = vector.shape_cast %44 : vector<1x1x14x128xbf16> to vector<14x128xbf16>
      %46 = vector.extract_strided_slice %45 {offsets = [0, 0], sizes = [12, 128], strides = [1, 1]} : vector<14x128xbf16> to vector<12x128xbf16>
      %c6 = arith.constant 6 : index
      %c0_31 = arith.constant 0 : index
      %c0_32 = arith.constant 0 : index
      %47 = vector.load %arg2[%c6, %c0_31, %c0_32] : memref<9x128x128xbf16, #tpu.memory_space<vmem>>, vector<1x128x128xbf16>
      %48 = vector.shape_cast %47 : vector<1x128x128xbf16> to vector<128x128xbf16>
      %cst_33 = arith.constant dense<0.000000e+00> : vector<12x128xf32>
      %49 = tpu.matmul %46, %48, %cst_33 {dimension_numbers = #tpu.dot_dimension_numbers<[1], [0], [0], [1], [0, 0, 1, 1], [], []>} : vector<12x128xbf16>, vector<128x128xbf16>, vector<12x128xf32> -> vector<12x128xf32>
      %50 = arith.addf %41, %49 : vector<12x128xf32>
      %51 = vector.extract_strided_slice %45 {offsets = [1, 0], sizes = [12, 128], strides = [1, 1]} : vector<14x128xbf16> to vector<12x128xbf16>
      %c7 = arith.constant 7 : index
      %c0_34 = arith.constant 0 : index
      %c0_35 = arith.constant 0 : index
      %52 = vector.load %arg2[%c7, %c0_34, %c0_35] : memref<9x128x128xbf16, #tpu.memory_space<vmem>>, vector<1x128x128xbf16>
      %53 = vector.shape_cast %52 : vector<1x128x128xbf16> to vector<128x128xbf16>
      %cst_36 = arith.constant dense<0.000000e+00> : vector<12x128xf32>
      %54 = tpu.matmul %51, %53, %cst_36 {dimension_numbers = #tpu.dot_dimension_numbers<[1], [0], [0], [1], [0, 0, 1, 1], [], []>} : vector<12x128xbf16>, vector<128x128xbf16>, vector<12x128xf32> -> vector<12x128xf32>
      %55 = arith.addf %50, %54 : vector<12x128xf32>
      %56 = vector.extract_strided_slice %45 {offsets = [2, 0], sizes = [12, 128], strides = [1, 1]} : vector<14x128xbf16> to vector<12x128xbf16>
      %c8 = arith.constant 8 : index
      %c0_37 = arith.constant 0 : index
      %c0_38 = arith.constant 0 : index
      %57 = vector.load %arg2[%c8, %c0_37, %c0_38] : memref<9x128x128xbf16, #tpu.memory_space<vmem>>, vector<1x128x128xbf16>
      %58 = vector.shape_cast %57 : vector<1x128x128xbf16> to vector<128x128xbf16>
      %cst_39 = arith.constant dense<0.000000e+00> : vector<12x128xf32>
      %59 = tpu.matmul %56, %58, %cst_39 {dimension_numbers = #tpu.dot_dimension_numbers<[1], [0], [0], [1], [0, 0, 1, 1], [], []>} : vector<12x128xbf16>, vector<128x128xbf16>, vector<12x128xf32> -> vector<12x128xf32>
      %60 = arith.addf %55, %59 : vector<12x128xf32>
      %cst_40 = arith.constant 0.000000e+00 : f32
      %61 = vector.broadcast %cst_40 : f32 to vector<12x128xf32>
      %62 = arith.maximumf %60, %61 : vector<12x128xf32>
      %c0_41 = arith.constant 0 : index
      %63 = arith.index_cast %arg5 : i32 to index
      %c0_42 = arith.constant 0 : index
      %c0_43 = arith.constant 0 : index
      %64 = vector.load %arg4[%c0_41, %63, %c0_42, %c0_43] : memref<1x12x12x128xf32, #tpu.memory_space<vmem>>, vector<1x1x12x128xf32>
      %65 = vector.shape_cast %64 : vector<1x1x12x128xf32> to vector<12x128xf32>
      %66 = vector.shape_cast %62 : vector<12x128xf32> to vector<1x1x12x128xf32>
      tpu.vector_store %arg4[%c0_41, %63, %c0_42, %c0_43], %66 {strides = array<i32>} : memref<1x12x12x128xf32, #tpu.memory_space<vmem>>, vector<1x1x12x128xf32>,
    }
    %c12_i32_1 = arith.constant 12 : i32
    return
  }
  func.func @transform_0(%arg0: i32) -> (i32, i32, i32, i32) {
    %c0_i32 = arith.constant 0 : i32
    %c0_i32_0 = arith.constant 0 : i32
    %c0_i32_1 = arith.constant 0 : i32
    %c0_i32_2 = arith.constant 0 : i32
    return %arg0, %c0_i32, %c0_i32_0, %c0_i32_1 : i32, i32, i32, i32
  }
  func.func @transform_1(%arg0: i32) -> (i32, i32, i32) {
    %c0_i32 = arith.constant 0 : i32
    %c0_i32_0 = arith.constant 0 : i32
    %c0_i32_1 = arith.constant 0 : i32
    %c0_i32_2 = arith.constant 0 : i32
    return %c0_i32, %c0_i32_0, %c0_i32_1 : i32, i32, i32
  }
  func.func @transform_2(%arg0: i32) -> (i32, i32) {
    %c0_i32 = arith.constant 0 : i32
    %c0_i32_0 = arith.constant 0 : i32
    %c0_i32_1 = arith.constant 0 : i32
    return %c0_i32, %c0_i32_0 : i32, i32
  }
  func.func @transform_3(%arg0: i32) -> (i32, i32, i32, i32) {
    %c0_i32 = arith.constant 0 : i32
    %c0_i32_0 = arith.constant 0 : i32
    %c0_i32_1 = arith.constant 0 : i32
    %c0_i32_2 = arith.constant 0 : i32
    return %arg0, %c0_i32, %c0_i32_0, %c0_i32_1 : i32, i32, i32, i32
  }
}

</mosaic_0001>

<llo_original>
// kernel: tile.8
$region0: #{tile.8}
  #allocation0 [shape = 's32[1]{0}', space=sflag, size = 0x4, scoped, tag = 'scoped memory for tile.8']
  %s0 = inlined_call_operand.vmem [shape: f32[128], index: 0, kind: input, shape index: {}]
  %s1 = inlined_call_operand.vmem [shape: f32[2,128], index: 1, kind: output, shape index: {}]
  // Predicated region
  $region2: #{tile.8} parent=0 // pred_check
    _
  $region3: #{tile.8} parent=0 // pred_check_branch
    %3 = sbr.rel (0) target = $region5
  $region4: #{tile.8} parent=0 // pred_region
    _
  $region5: #{tile.8} parent=0 // pred_fallthru
    _
  %v4 = vld [vmem:[%s0] ss:$0 sm:$0xff]
  %5 = vst [vmem:[%s1] sm:$0x3] %v4

// kernel: up_forward.5
$region0: #{up_forward.5}
  #allocation0 [shape = 'u32[]', space=smem, size = 0x4, offset = 0x4, fixed_abs, tag = 'smem constant byte address 0x4 - core index']
  #allocation1 [shape = 'u32[144,128]{1,0:T(1,128)}', space=vmem, size = 0x12000, scoped, tag = 'internal scratch']
  %s0 = inlined_call_operand.vmem [shape: bf16[2,14,14,128], index: 0, kind: input, shape index: {}]
  %s1 = inlined_call_operand.vmem [shape: bf16[9,128,128], index: 1, kind: input, shape index: {}]
  %s2 = inlined_call_operand.vmem [shape: f32[1,128], index: 2, kind: input, shape index: {}]
  %s3 = inlined_call_operand.vmem [shape: f32[2,12,12,128], index: 3, kind: output, shape index: {}]
  %s4 = sld [smem:[#allocation0]]
  $region52: #{up_forward.5} parent=0
    _
  %s6 = ssub.s32 1, %s4
  %s7 = scalar_select 0, %s6, %s4
  loop: start=0, step=1, limit=4
  $region2: #{up_forward.5} parent=0 // loop_pre_header
    _
  $region3: #{up_forward.5} parent=0 // loop_header
    %s9 = sphi 0, %s13
    %p10 = scmp.ge.s32.totalorder %s9, 4
    %s19 = sphi 0, %s21
    %s22 = sphi 0, %s19
    %s23 = sphi 0, %s22
    %s39 = sphi 0, %s23
    %s43 = sphi 0, %s43
    %s45 = sphi 0, %s43
    %s46 = sphi 0, %s45
    %s60 = sphi 0, %s46
    %s64 = sphi 0, %s64
    %s66 = sphi 0, %s64
    %s67 = sphi 0, %s66
    %s81 = sphi 0, %s67
    %s87 = sphi 0, %s89
    %s90 = sphi 0, %s87
    %s91 = sphi 0, %s90
    %s107 = sphi 0, %s91
  $region4: #{up_forward.5} parent=0 // loop_header_branch
    %12 = sbr.rel (%p10) target = $region8
  $region5: #{up_forward.5} parent=0 // loop_body
    %s14 = ssub.s32 %s9, 1
    %s15 = ssub.s32 %s9, 2
    %s16 = sadd.s32 %s9, 1
    %s17 = ssub.s32 %s9, %s16
    %p18 = scmp.eq.s32.totalorder %s17, 0
    %s20 = sadd.s32 %s19, 1
    %s21 = scalar_select %p18, %s19, %s20
    %p24 = pneg %p18
    %p25 = scmp.eq.s32.totalorder %s9, 1
    %p26 = por %p24, %p25
    %p27 = scmp.ne.s32.totalorder %s19, %s22
    %p28 = scmp.eq.s32.totalorder %s9, 0
    %p29 = por %p27, %p28
    %p30 = scmp.ne.s32.totalorder %s19, %s22
    %p31 = scmp.eq.s32.totalorder %s14, 1
    %p32 = por %p30, %p31
    %p33 = scmp.ne.s32.totalorder %s22, %s23
    %p34 = scmp.eq.s32.totalorder %s14, 0
    %p35 = por %p33, %p34
    %p36 = scmp.ne.s32.totalorder %s22, %s23
    %p37 = scmp.eq.s32.totalorder %s15, 1
    %p38 = por %p36, %p37
    %p40 = scmp.ne.s32.totalorder %s23, %s39
    %p41 = scmp.eq.s32.totalorder %s15, 0
    %p42 = por %p40, %p41
    %s44 = sadd.s32 %s43, 1
    %p47 = scmp.eq.s32.totalorder %s9, 1
    %p48 = scmp.ne.s32.totalorder %s43, %s45
    %p49 = scmp.eq.s32.totalorder %s9, 0
    %p50 = por %p48, %p49
    %p51 = scmp.ne.s32.totalorder %s43, %s45
    %p52 = scmp.eq.s32.totalorder %s14, 1
    %p53 = por %p51, %p52
    %p54 = scmp.ne.s32.totalorder %s45, %s46
    %p55 = scmp.eq.s32.totalorder %s14, 0
    %p56 = por %p54, %p55
    %p57 = scmp.ne.s32.totalorder %s45, %s46
    %p58 = scmp.eq.s32.totalorder %s15, 1
    %p59 = por %p57, %p58
    %p61 = scmp.ne.s32.totalorder %s46, %s60
    %p62 = scmp.eq.s32.totalorder %s15, 0
    %p63 = por %p61, %p62
    %s65 = sadd.s32 %s64, 1
    %p68 = scmp.eq.s32.totalorder %s9, 1
    %p69 = scmp.ne.s32.totalorder %s64, %s66
    %p70 = scmp.eq.s32.totalorder %s9, 0
    %p71 = por %p69, %p70
    %p72 = scmp.ne.s32.totalorder %s64, %s66
    %p73 = scmp.eq.s32.totalorder %s14, 1
    %p74 = por %p72, %p73
    %p75 = scmp.ne.s32.totalorder %s66, %s67
    %p76 = scmp.eq.s32.totalorder %s14, 0
    %p77 = por %p75, %p76
    %p78 = scmp.ne.s32.totalorder %s66, %s67
    %p79 = scmp.eq.s32.totalorder %s15, 1
    %p80 = por %p78, %p79
    %p82 = scmp.ne.s32.totalorder %s67, %s81
    %p83 = scmp.eq.s32.totalorder %s15, 0
    %p84 = por %p82, %p83
    %s85 = ssub.s32 %s9, %s16
    %p86 = scmp.eq.s32.totalorder %s85, 0
    %s88 = sadd.s32 %s87, 1
    %s89 = scalar_select %p86, %s87, %s88
    %p92 = pneg %p86
    %p93 = scmp.eq.s32.totalorder %s9, 1
    %p94 = por %p92, %p93
    %p95 = scmp.ne.s32.totalorder %s87, %s90
    %p96 = scmp.eq.s32.totalorder %s9, 0
    %p97 = por %p95, %p96
    %p98 = scmp.ne.s32.totalorder %s87, %s90
    %p99 = scmp.eq.s32.totalorder %s14, 1
    %p100 = por %p98, %p99
    %p101 = scmp.ne.s32.totalorder %s90, %s91
    %p102 = scmp.eq.s32.totalorder %s14, 0
    %p103 = por %p101, %p102
    %p104 = scmp.ne.s32.totalorder %s90, %s91
    %p105 = scmp.eq.s32.totalorder %s15, 1
    %p106 = por %p104, %p105
    %p108 = scmp.ne.s32.totalorder %s91, %s107
    %p109 = scmp.eq.s32.totalorder %s15, 0
    %p110 = por %p108, %p109
    %p111 = scmp.le.s32.totalorder 1, %s9
    %p112 = scmp.lt.s32.totalorder %s9, 3
    %p113 = pnand %p111, %p112
    %p114 = pneg %p113
    // Predicated region
    $region9: #{up_forward.5} parent=5 // pred_check
      _
    $region10: #{up_forward.5} parent=5 // pred_check_branch
      %116 = sbr.rel (%p113) target = $region12
    $region11: #{up_forward.5} parent=5 // pred_region
      %s117 = ssub.s32 %s9, 1
      // Predicated region
      $region13: #{up_forward.5} parent=11 // pred_check
        %p118 = pneg %p56
      $region14: #{up_forward.5} parent=11 // pred_check_branch
        %120 = sbr.rel (%p118) target = $region16
      $region15: #{up_forward.5} parent=11 // pred_region
        _
      $region16: #{up_forward.5} parent=11 // pred_fallthru
        _
      // Predicated region
      $region17: #{up_forward.5} parent=11 // pred_check
        %p121 = pneg %p77
      $region18: #{up_forward.5} parent=11 // pred_check_branch
        %123 = sbr.rel (%p121) target = $region20
      $region19: #{up_forward.5} parent=11 // pred_region
        _
      $region20: #{up_forward.5} parent=11 // pred_fallthru
        _
    $region12: #{up_forward.5} parent=5 // pred_fallthru
      _
    %p124 = scmp.lt.s32.totalorder %s9, 2
    // Predicated region
    $region21: #{up_forward.5} parent=5 // pred_check
      %p125 = pneg %p124
    $region22: #{up_forward.5} parent=5 // pred_check_branch
      %127 = sbr.rel (%p125) target = $region24
    $region23: #{up_forward.5} parent=5 // pred_region
      // Predicated region
      $region25: #{up_forward.5} parent=23 // pred_check
        %p128 = pneg %p29
      $region26: #{up_forward.5} parent=23 // pred_check_branch
        %130 = sbr.rel (%p128) target = $region28
      $region27: #{up_forward.5} parent=23 // pred_region
        %p131 = scmp.lt.s32.totalorder %s9, 1
        %s132 = scalar_select %p131, %s9, 1
        %s133 = smul.addr %s132, 28
        %s134 = smul.addr %s133, 4
        %s135 = scalar_lea.vmem %s0, %s134
      $region28: #{up_forward.5} parent=23 // pred_fallthru
        _
    $region24: #{up_forward.5} parent=5 // pred_fallthru
      _
    %p136 = scmp.le.s32.totalorder 1, %s9
    %p137 = scmp.lt.s32.totalorder %s9, 3
    %p138 = pnand %p136, %p137
    %p139 = pneg %p138
    // Predicated region
    $region29: #{up_forward.5} parent=5 // pred_check
      _
    $region30: #{up_forward.5} parent=5 // pred_check_branch
      %141 = sbr.rel (%p138) target = $region32
    $region31: #{up_forward.5} parent=5 // pred_region
      %s142 = ssub.s32 %s9, 1
      %p143 = scmp.lt.s32.totalorder %s14, 1
      %s144 = scalar_select %p143, %s14, 1
      %s145 = smul.addr %s144, 28
      %s146 = smul.addr %s145, 4
      %s147 = scalar_lea.vmem %s0, %s146
      %p148 = pneg %p35
      %p149 = pneg %p32
      %p150 = pneg %p56
      %p151 = pneg %p53
      %p152 = pneg %p77
      %p153 = pneg %p74
      %p154 = pneg %p103
      %p155 = pneg %p100
      %p156 = scmp.lt.s32.totalorder %s14, 1
      %s157 = scalar_select %p156, %s14, 1
      %s158 = smul.addr %s157, 24
      %s159 = smul.addr %s158, 8
      %s160 = scalar_lea.vmem %s3, %s159
      %p161 = scmp.lt.s32.totalorder %s14, 1
      %s162 = scalar_select %p161, %s14, 1
      %s163 = smul.addr %s162, 28
      %s164 = smul.addr %s163, 4
      %s165 = scalar_lea.vmem %s0, %s164
      %p166 = scmp.lt.s32.totalorder %s14, 1
      %s167 = scalar_select %p166, %s14, 1
      %s168 = smul.addr %s167, 24
      %s169 = smul.addr %s168, 8
      %s170 = scalar_lea.vmem %s3, %s169
      %v172 = vld [vmem:[%s2] sm:$0x1]
      %v174 = vlaneseq
      %v175 = vshrl.u32 %v174, 7
      %v176 = vsub.s32 0, %v175
      %v177 = vrot.slane %v172, %v176
      loop: start=0, step=1, limit=12
      $region33: #{up_forward.5} parent=31 // loop_pre_header
        _
      $region34: #{up_forward.5} parent=31 // loop_header
        %s180 = sphi 0, %s184
        %p181 = scmp.ge.s32.totalorder %s180, 12
      $region35: #{up_forward.5} parent=31 // loop_header_branch
        %183 = sbr.rel (%p181) target = $region39
      $region36: #{up_forward.5} parent=31 // loop_body
        %s185 = smul.u32 %s180, 2
        %s186 = smul.addr %s185, 4
        %s187 = scalar_lea.vmem %s165, %s186
        %v188 = vld [vmem:[%s187] sm:$0xf]
        %v189 = vld [vmem:[%s187 + $0x4] sm:$0x7]
        %v190 = vld [vmem:[%s1] sm:$0xf]
        %v191 = vld [vmem:[%s1 + $0x4] sm:$0xf]
        %v192 = vld [vmem:[%s1 + $0x8] sm:$0xf]
        %v193 = vld [vmem:[%s1 + $0xc] sm:$0xf]
        %v194 = vld [vmem:[%s1 + $0x10] sm:$0xf]
        %v195 = vld [vmem:[%s1 + $0x14] sm:$0xf]
        %v196 = vld [vmem:[%s1 + $0x18] sm:$0xf]
        %v197 = vld [vmem:[%s1 + $0x1c] sm:$0xf]
        %v198 = vld [vmem:[%s1 + $0x20] sm:$0xf]
        %v199 = vld [vmem:[%s1 + $0x24] sm:$0xf]
        %v200 = vld [vmem:[%s1 + $0x28] sm:$0xf]
        %v201 = vld [vmem:[%s1 + $0x2c] sm:$0xf]
        %v202 = vld [vmem:[%s1 + $0x30] sm:$0xf]
        %v203 = vld [vmem:[%s1 + $0x34] sm:$0xf]
        %v204 = vld [vmem:[%s1 + $0x38] sm:$0xf]
        %v205 = vld [vmem:[%s1 + $0x3c] sm:$0xf]
        %v208 = vunpack.c.l.b16 %v188
        %v209 = vunpack.c.l.b16 %v189
        %v210 = vpack.c.b16 %v209, %v208
        %v228 = vunpack.c.l.b16 %v190
        %v229 = vunpack.c.l.b16 %v191
        %v230 = vunpack.c.l.b16 %v192
        %v231 = vunpack.c.l.b16 %v193
        %v232 = vunpack.c.l.b16 %v194
        %v233 = vunpack.c.l.b16 %v195
        %v234 = vunpack.c.l.b16 %v196
        %v235 = vunpack.c.l.b16 %v197
        %v236 = vunpack.c.l.b16 %v198
        %v237 = vunpack.c.l.b16 %v199
        %v238 = vunpack.c.l.b16 %v200
        %v239 = vunpack.c.l.b16 %v201
        %v240 = vunpack.c.l.b16 %v202
        %v241 = vunpack.c.l.b16 %v203
        %v242 = vunpack.c.l.b16 %v204
        %v243 = vunpack.c.l.b16 %v205
        %v244 = vpack.c.b16 %v229, %v228
        %v245 = vpack.c.b16 %v231, %v230
        %v246 = vpack.c.b16 %v233, %v232
        %v247 = vpack.c.b16 %v235, %v234
        %v248 = vpack.c.b16 %v237, %v236
        %v249 = vpack.c.b16 %v239, %v238
        %v250 = vpack.c.b16 %v241, %v240
        %v251 = vpack.c.b16 %v243, %v242
        %260 = vmatprep.subr.bf16.mxu0 0
        %261 = vmatpush1.bf16.msra.mxu0 %v244
        %262 = vmatprep.subr.bf16.mxu0 0
        %263 = vmatpush1.bf16.msra.mxu0 %v245
        %264 = vmatprep.subr.bf16.mxu0 0
        %265 = vmatpush1.bf16.msra.mxu0 %v246
        %266 = vmatprep.subr.bf16.mxu0 0
        %267 = vmatpush1.bf16.msra.mxu0 %v247
        %268 = vmatprep.subr.bf16.mxu0 0
        %269 = vmatpush1.bf16.msra.mxu0 %v248
        %270 = vmatprep.subr.bf16.mxu0 0
        %271 = vmatpush1.bf16.msra.mxu0 %v249
        %272 = vmatprep.subr.bf16.mxu0 0
        %273 = vmatpush1.bf16.msra.mxu0 %v250
        %274 = vmatprep.subr.bf16.mxu0 0
        %275 = vmatpush1.bf16.msra.mxu0 %v251
        %276 = vmatprep.subr.bf16.mxu0 0
        %277 = vmatpush1.bf16.msra.mxu0 0
        %278 = vmatprep.subr.bf16.mxu0 0
        %279 = vmatpush1.bf16.msra.mxu0 0
        %280 = vmatprep.subr.bf16.mxu0 0
        %281 = vmatpush1.bf16.msra.mxu0 0
        %282 = vmatprep.subr.bf16.mxu0 0
        %283 = vmatpush1.bf16.msra.mxu0 0
        %284 = vmatprep.subr.bf16.mxu0 0
        %285 = vmatpush1.bf16.msra.mxu0 0
        %286 = vmatprep.subr.bf16.mxu0 0
        %287 = vmatpush1.bf16.msra.mxu0 0
        %288 = vmatprep.subr.bf16.mxu0 0
        %289 = vmatpush1.bf16.msra.mxu0 0
        %290 = vmatprep.subr.bf16.mxu0 0
        %291 = vmatpush1.bf16.msra.mxu0 0
        %292 = vmatprep.mubr.bf16.mxu0 0
        %293 = vmatmul.mubr.bf16.gmra.mrb[0].mxu0 %v210
        %v294 = vpop.f32.mrb[0].mxu0
        %v295 = vadd.f32 0.0, %v294
        %v296 = vpop.f32.mrb[0].mxu0
        %v297 = vpop.f32.mrb[0].mxu0
        %v298 = vadd.f32 0.0, %v297
        %v299 = vpop.f32.mrb[0].mxu0
        %300 = vdwg.mxu0
        %v301 = vadd.f32 %v177, %v295
        %v302 = vadd.f32 %v177, %v298
        %s303 = scalar_lea.vmem %s1, 64
        %v304 = vld [vmem:[%s303] sm:$0xf]
        %v305 = vld [vmem:[%s303 + $0x4] sm:$0xf]
        %v306 = vld [vmem:[%s303 + $0x8] sm:$0xf]
        %v307 = vld [vmem:[%s303 + $0xc] sm:$0xf]
        %v308 = vld [vmem:[%s303 + $0x10] sm:$0xf]
        %v309 = vld [vmem:[%s303 + $0x14] sm:$0xf]
        %v310 = vld [vmem:[%s303 + $0x18] sm:$0xf]
        %v311 = vld [vmem:[%s303 + $0x1c] sm:$0xf]
        %v312 = vld [vmem:[%s303 + $0x20] sm:$0xf]
        %v313 = vld [vmem:[%s303 + $0x24] sm:$0xf]
        %v314 = vld [vmem:[%s303 + $0x28] sm:$0xf]
        %v315 = vld [vmem:[%s303 + $0x2c] sm:$0xf]
        %v316 = vld [vmem:[%s303 + $0x30] sm:$0xf]
        %v317 = vld [vmem:[%s303 + $0x34] sm:$0xf]
        %v318 = vld [vmem:[%s303 + $0x38] sm:$0xf]
        %v319 = vld [vmem:[%s303 + $0x3c] sm:$0xf]
        %v321 = vshrl.u32 %v210, 16
        %v323 = vshll.u32 %v210, 16
        %v325 = vrot.slane %v323, 1
        %v326 = vor.u32 %v321, %v325
        %v344 = vunpack.c.l.b16 %v304
        %v345 = vunpack.c.l.b16 %v305
        %v346 = vunpack.c.l.b16 %v306
        %v347 = vunpack.c.l.b16 %v307
        %v348 = vunpack.c.l.b16 %v308
        %v349 = vunpack.c.l.b16 %v309
        %v350 = vunpack.c.l.b16 %v310
        %v351 = vunpack.c.l.b16 %v311
        %v352 = vunpack.c.l.b16 %v312
        %v353 = vunpack.c.l.b16 %v313
        %v354 = vunpack.c.l.b16 %v314
        %v355 = vunpack.c.l.b16 %v315
        %v356 = vunpack.c.l.b16 %v316
        %v357 = vunpack.c.l.b16 %v317
        %v358 = vunpack.c.l.b16 %v318
        %v359 = vunpack.c.l.b16 %v319
        %v360 = vpack.c.b16 %v345, %v344
        %v361 = vpack.c.b16 %v347, %v346
        %v362 = vpack.c.b16 %v349, %v348
        %v363 = vpack.c.b16 %v351, %v350
        %v364 = vpack.c.b16 %v353, %v352
        %v365 = vpack.c.b16 %v355, %v354
        %v366 = vpack.c.b16 %v357, %v356
        %v367 = vpack.c.b16 %v359, %v358
        %376 = vmatprep.subr.bf16.mxu0 0
        %377 = vmatpush1.bf16.msra.mxu0 %v360
        %378 = vmatprep.subr.bf16.mxu0 0
        %379 = vmatpush1.bf16.msra.mxu0 %v361
        %380 = vmatprep.subr.bf16.mxu0 0
        %381 = vmatpush1.bf16.msra.mxu0 %v362
        %382 = vmatprep.subr.bf16.mxu0 0
        %383 = vmatpush1.bf16.msra.mxu0 %v363
        %384 = vmatprep.subr.bf16.mxu0 0
        %385 = vmatpush1.bf16.msra.mxu0 %v364
        %386 = vmatprep.subr.bf16.mxu0 0
        %387 = vmatpush1.bf16.msra.mxu0 %v365
        %388 = vmatprep.subr.bf16.mxu0 0
        %389 = vmatpush1.bf16.msra.mxu0 %v366
        %390 = vmatprep.subr.bf16.mxu0 0
        %391 = vmatpush1.bf16.msra.mxu0 %v367
        %392 = vmatprep.subr.bf16.mxu0 0
        %393 = vmatpush1.bf16.msra.mxu0 0
        %394 = vmatprep.subr.bf16.mxu0 0
        %395 = vmatpush1.bf16.msra.mxu0 0
        %396 = vmatprep.subr.bf16.mxu0 0
        %397 = vmatpush1.bf16.msra.mxu0 0
        %398 = vmatprep.subr.bf16.mxu0 0
        %399 = vmatpush1.bf16.msra.mxu0 0
        %400 = vmatprep.subr.bf16.mxu0 0
        %401 = vmatpush1.bf16.msra.mxu0 0
        %402 = vmatprep.subr.bf16.mxu0 0
        %403 = vmatpush1.bf16.msra.mxu0 0
        %404 = vmatprep.subr.bf16.mxu0 0
        %405 = vmatpush1.bf16.msra.mxu0 0
        %406 = vmatprep.subr.bf16.mxu0 0
        %407 = vmatpush1.bf16.msra.mxu0 0
        %408 = vmatprep.mubr.bf16.mxu0 0
        %409 = vmatmul.mubr.bf16.gmra.mrb[0].mxu0 %v326
        %v410 = vpop.f32.mrb[0].mxu0
        %v411 = vadd.f32 0.0, %v410
        %v412 = vpop.f32.mrb[0].mxu0
        %v413 = vpop.f32.mrb[0].mxu0
        %v414 = vadd.f32 0.0, %v413
        %v415 = vpop.f32.mrb[0].mxu0
        %416 = vdwg.mxu0
        %v417 = vadd.f32 %v301, %v411
        %v418 = vadd.f32 %v302, %v414
        %s419 = scalar_lea.vmem %s1, 128
        %v420 = vld [vmem:[%s419] sm:$0xf]
        %v421 = vld [vmem:[%s419 + $0x4] sm:$0xf]
        %v422 = vld [vmem:[%s419 + $0x8] sm:$0xf]
        %v423 = vld [vmem:[%s419 + $0xc] sm:$0xf]
        %v424 = vld [vmem:[%s419 + $0x10] sm:$0xf]
        %v425 = vld [vmem:[%s419 + $0x14] sm:$0xf]
        %v426 = vld [vmem:[%s419 + $0x18] sm:$0xf]
        %v427 = vld [vmem:[%s419 + $0x1c] sm:$0xf]
        %v428 = vld [vmem:[%s419 + $0x20] sm:$0xf]
        %v429 = vld [vmem:[%s419 + $0x24] sm:$0xf]
        %v430 = vld [vmem:[%s419 + $0x28] sm:$0xf]
        %v431 = vld [vmem:[%s419 + $0x2c] sm:$0xf]
        %v432 = vld [vmem:[%s419 + $0x30] sm:$0xf]
        %v433 = vld [vmem:[%s419 + $0x34] sm:$0xf]
        %v434 = vld [vmem:[%s419 + $0x38] sm:$0xf]
        %v435 = vld [vmem:[%s419 + $0x3c] sm:$0xf]
        %v436 = vrot.slane %v210, 1
        %v454 = vunpack.c.l.b16 %v420
        %v455 = vunpack.c.l.b16 %v421
        %v456 = vunpack.c.l.b16 %v422
        %v457 = vunpack.c.l.b16 %v423
        %v458 = vunpack.c.l.b16 %v424
        %v459 = vunpack.c.l.b16 %v425
        %v460 = vunpack.c.l.b16 %v426
        %v461 = vunpack.c.l.b16 %v427
        %v462 = vunpack.c.l.b16 %v428
        %v463 = vunpack.c.l.b16 %v429
        %v464 = vunpack.c.l.b16 %v430
        %v465 = vunpack.c.l.b16 %v431
        %v466 = vunpack.c.l.b16 %v432
        %v467 = vunpack.c.l.b16 %v433
        %v468 = vunpack.c.l.b16 %v434
        %v469 = vunpack.c.l.b16 %v435
        %v470 = vpack.c.b16 %v455, %v454
        %v471 = vpack.c.b16 %v457, %v456
        %v472 = vpack.c.b16 %v459, %v458
        %v473 = vpack.c.b16 %v461, %v460
        %v474 = vpack.c.b16 %v463, %v462
        %v475 = vpack.c.b16 %v465, %v464
        %v476 = vpack.c.b16 %v467, %v466
        %v477 = vpack.c.b16 %v469, %v468
        %486 = vmatprep.subr.bf16.mxu0 0
        %487 = vmatpush1.bf16.msra.mxu0 %v470
        %488 = vmatprep.subr.bf16.mxu0 0
        %489 = vmatpush1.bf16.msra.mxu0 %v471
        %490 = vmatprep.subr.bf16.mxu0 0
        %491 = vmatpush1.bf16.msra.mxu0 %v472
        %492 = vmatprep.subr.bf16.mxu0 0
        %493 = vmatpush1.bf16.msra.mxu0 %v473
        %494 = vmatprep.subr.bf16.mxu0 0
        %495 = vmatpush1.bf16.msra.mxu0 %v474
        %496 = vmatprep.subr.bf16.mxu0 0
        %497 = vmatpush1.bf16.msra.mxu0 %v475
        %498 = vmatprep.subr.bf16.mxu0 0
        %499 = vmatpush1.bf16.msra.mxu0 %v476
        %500 = vmatprep.subr.bf16.mxu0 0
        %501 = vmatpush1.bf16.msra.mxu0 %v477
        %502 = vmatprep.subr.bf16.mxu0 0
        %503 = vmatpush1.bf16.msra.mxu0 0
        %504 = vmatprep.subr.bf16.mxu0 0
        %505 = vmatpush1.bf16.msra.mxu0 0
        %506 = vmatprep.subr.bf16.mxu0 0
        %507 = vmatpush1.bf16.msra.mxu0 0
        %508 = vmatprep.subr.bf16.mxu0 0
        %509 = vmatpush1.bf16.msra.mxu0 0
        %510 = vmatprep.subr.bf16.mxu0 0
        %511 = vmatpush1.bf16.msra.mxu0 0
        %512 = vmatprep.subr.bf16.mxu0 0
        %513 = vmatpush1.bf16.msra.mxu0 0
        %514 = vmatprep.subr.bf16.mxu0 0
        %515 = vmatpush1.bf16.msra.mxu0 0
        %516 = vmatprep.subr.bf16.mxu0 0
        %517 = vmatpush1.bf16.msra.mxu0 0
        %518 = vmatprep.mubr.bf16.mxu0 0
        %519 = vmatmul.mubr.bf16.gmra.mrb[0].mxu0 %v436
        %v520 = vpop.f32.mrb[0].mxu0
        %v521 = vadd.f32 0.0, %v520
        %v522 = vpop.f32.mrb[0].mxu0
        %v523 = vpop.f32.mrb[0].mxu0
        %v524 = vadd.f32 0.0, %v523
        %v525 = vpop.f32.mrb[0].mxu0
        %526 = vdwg.mxu0
        %v527 = vadd.f32 %v417, %v521
        %v528 = vadd.f32 %v418, %v524
        %s529 = sadd.s32 %s180, 1
        %s530 = smul.u32 %s529, 2
        %s531 = smul.addr %s530, 4
        %s532 = scalar_lea.vmem %s165, %s531
        %v533 = vld [vmem:[%s532] sm:$0xf]
        %v534 = vld [vmem:[%s532 + $0x4] sm:$0x7]
        %s535 = scalar_lea.vmem %s1, 192
        %v536 = vld [vmem:[%s535] sm:$0xf]
        %v537 = vld [vmem:[%s535 + $0x4] sm:$0xf]
        %v538 = vld [vmem:[%s535 + $0x8] sm:$0xf]
        %v539 = vld [vmem:[%s535 + $0xc] sm:$0xf]
        %v540 = vld [vmem:[%s535 + $0x10] sm:$0xf]
        %v541 = vld [vmem:[%s535 + $0x14] sm:$0xf]
        %v542 = vld [vmem:[%s535 + $0x18] sm:$0xf]
        %v543 = vld [vmem:[%s535 + $0x1c] sm:$0xf]
        %v544 = vld [vmem:[%s535 + $0x20] sm:$0xf]
        %v545 = vld [vmem:[%s535 + $0x24] sm:$0xf]
        %v546 = vld [vmem:[%s535 + $0x28] sm:$0xf]
        %v547 = vld [vmem:[%s535 + $0x2c] sm:$0xf]
        %v548 = vld [vmem:[%s535 + $0x30] sm:$0xf]
        %v549 = vld [vmem:[%s535 + $0x34] sm:$0xf]
        %v550 = vld [vmem:[%s535 + $0x38] sm:$0xf]
        %v551 = vld [vmem:[%s535 + $0x3c] sm:$0xf]
        %v554 = vunpack.c.l.b16 %v533
        %v555 = vunpack.c.l.b16 %v534
        %v556 = vpack.c.b16 %v555, %v554
        %v574 = vunpack.c.l.b16 %v536
        %v575 = vunpack.c.l.b16 %v537
        %v576 = vunpack.c.l.b16 %v538
        %v577 = vunpack.c.l.b16 %v539
        %v578 = vunpack.c.l.b16 %v540
        %v579 = vunpack.c.l.b16 %v541
        %v580 = vunpack.c.l.b16 %v542
        %v581 = vunpack.c.l.b16 %v543
        %v582 = vunpack.c.l.b16 %v544
        %v583 = vunpack.c.l.b16 %v545
        %v584 = vunpack.c.l.b16 %v546
        %v585 = vunpack.c.l.b16 %v547
        %v586 = vunpack.c.l.b16 %v548
        %v587 = vunpack.c.l.b16 %v549
        %v588 = vunpack.c.l.b16 %v550
        %v589 = vunpack.c.l.b16 %v551
        %v590 = vpack.c.b16 %v575, %v574
        %v591 = vpack.c.b16 %v577, %v576
        %v592 = vpack.c.b16 %v579, %v578
        %v593 = vpack.c.b16 %v581, %v580
        %v594 = vpack.c.b16 %v583, %v582
        %v595 = vpack.c.b16 %v585, %v584
        %v596 = vpack.c.b16 %v587, %v586
        %v597 = vpack.c.b16 %v589, %v588
        %606 = vmatprep.subr.bf16.mxu0 0
        %607 = vmatpush1.bf16.msra.mxu0 %v590
        %608 = vmatprep.subr.bf16.mxu0 0
        %609 = vmatpush1.bf16.msra.mxu0 %v591
        %610 = vmatprep.subr.bf16.mxu0 0
        %611 = vmatpush1.bf16.msra.mxu0 %v592
        %612 = vmatprep.subr.bf16.mxu0 0
        %613 = vmatpush1.bf16.msra.mxu0 %v593
        %614 = vmatprep.subr.bf16.mxu0 0
        %615 = vmatpush1.bf16.msra.mxu0 %v594
        %616 = vmatprep.subr.bf16.mxu0 0
        %617 = vmatpush1.bf16.msra.mxu0 %v595
        %618 = vmatprep.subr.bf16.mxu0 0
        %619 = vmatpush1.bf16.msra.mxu0 %v596
        %620 = vmatprep.subr.bf16.mxu0 0
        %621 = vmatpush1.bf16.msra.mxu0 %v597
        %622 = vmatprep.subr.bf16.mxu0 0
        %623 = vmatpush1.bf16.msra.mxu0 0
        %624 = vmatprep.subr.bf16.mxu0 0
        %625 = vmatpush1.bf16.msra.mxu0 0
        %626 = vmatprep.subr.bf16.mxu0 0
        %627 = vmatpush1.bf16.msra.mxu0 0
        %628 = vmatprep.subr.bf16.mxu0 0
        %629 = vmatpush1.bf16.msra.mxu0 0
        %630 = vmatprep.subr.bf16.mxu0 0
        %631 = vmatpush1.bf16.msra.mxu0 0
        %632 = vmatprep.subr.bf16.mxu0 0
        %633 = vmatpush1.bf16.msra.mxu0 0
        %634 = vmatprep.subr.bf16.mxu0 0
        %635 = vmatpush1.bf16.msra.mxu0 0
        %636 = vmatprep.subr.bf16.mxu0 0
        %637 = vmatpush1.bf16.msra.mxu0 0
        %638 = vmatprep.mubr.bf16.mxu0 0
        %639 = vmatmul.mubr.bf16.gmra.mrb[0].mxu0 %v556
        %v640 = vpop.f32.mrb[0].mxu0
        %v641 = vadd.f32 0.0, %v640
        %v642 = vpop.f32.mrb[0].mxu0
        %v643 = vpop.f32.mrb[0].mxu0
        %v644 = vadd.f32 0.0, %v643
        %v645 = vpop.f32.mrb[0].mxu0
        %646 = vdwg.mxu0
        %v647 = vadd.f32 %v527, %v641
        %v648 = vadd.f32 %v528, %v644
        %s649 = scalar_lea.vmem %s1, 256
        %v650 = vld [vmem:[%s649] sm:$0xf]
        %v651 = vld [vmem:[%s649 + $0x4] sm:$0xf]
        %v652 = vld [vmem:[%s649 + $0x8] sm:$0xf]
        %v653 = vld [vmem:[%s649 + $0xc] sm:$0xf]
        %v654 = vld [vmem:[%s649 + $0x10] sm:$0xf]
        %v655 = vld [vmem:[%s649 + $0x14] sm:$0xf]
        %v656 = vld [vmem:[%s649 + $0x18] sm:$0xf]
        %v657 = vld [vmem:[%s649 + $0x1c] sm:$0xf]
        %v658 = vld [vmem:[%s649 + $0x20] sm:$0xf]
        %v659 = vld [vmem:[%s649 + $0x24] sm:$0xf]
        %v660 = vld [vmem:[%s649 + $0x28] sm:$0xf]
        %v661 = vld [vmem:[%s649 + $0x2c] sm:$0xf]
        %v662 = vld [vmem:[%s649 + $0x30] sm:$0xf]
        %v663 = vld [vmem:[%s649 + $0x34] sm:$0xf]
        %v664 = vld [vmem:[%s649 + $0x38] sm:$0xf]
        %v665 = vld [vmem:[%s649 + $0x3c] sm:$0xf]
        %v667 = vshrl.u32 %v556, 16
        %v669 = vshll.u32 %v556, 16
        %v671 = vrot.slane %v669, 1
        %v672 = vor.u32 %v667, %v671
        %v690 = vunpack.c.l.b16 %v650
        %v691 = vunpack.c.l.b16 %v651
        %v692 = vunpack.c.l.b16 %v652
        %v693 = vunpack.c.l.b16 %v653
        %v694 = vunpack.c.l.b16 %v654
        %v695 = vunpack.c.l.b16 %v655
        %v696 = vunpack.c.l.b16 %v656
        %v697 = vunpack.c.l.b16 %v657
        %v698 = vunpack.c.l.b16 %v658
        %v699 = vunpack.c.l.b16 %v659
        %v700 = vunpack.c.l.b16 %v660
        %v701 = vunpack.c.l.b16 %v661
        %v702 = vunpack.c.l.b16 %v662
        %v703 = vunpack.c.l.b16 %v663
        %v704 = vunpack.c.l.b16 %v664
        %v705 = vunpack.c.l.b16 %v665
        %v706 = vpack.c.b16 %v691, %v690
        %v707 = vpack.c.b16 %v693, %v692
        %v708 = vpack.c.b16 %v695, %v694
        %v709 = vpack.c.b16 %v697, %v696
        %v710 = vpack.c.b16 %v699, %v698
        %v711 = vpack.c.b16 %v701, %v700
        %v712 = vpack.c.b16 %v703, %v702
        %v713 = vpack.c.b16 %v705, %v704
        %722 = vmatprep.subr.bf16.mxu0 0
        %723 = vmatpush1.bf16.msra.mxu0 %v706
        %724 = vmatprep.subr.bf16.mxu0 0
        %725 = vmatpush1.bf16.msra.mxu0 %v707
        %726 = vmatprep.subr.bf16.mxu0 0
        %727 = vmatpush1.bf16.msra.mxu0 %v708
        %728 = vmatprep.subr.bf16.mxu0 0
        %729 = vmatpush1.bf16.msra.mxu0 %v709
        %730 = vmatprep.subr.bf16.mxu0 0
        %731 = vmatpush1.bf16.msra.mxu0 %v710
        %732 = vmatprep.subr.bf16.mxu0 0
        %733 = vmatpush1.bf16.msra.mxu0 %v711
        %734 = vmatprep.subr.bf16.mxu0 0
        %735 = vmatpush1.bf16.msra.mxu0 %v712
        %736 = vmatprep.subr.bf16.mxu0 0
        %737 = vmatpush1.bf16.msra.mxu0 %v713
        %738 = vmatprep.subr.bf16.mxu0 0
        %739 = vmatpush1.bf16.msra.mxu0 0
        %740 = vmatprep.subr.bf16.mxu0 0
        %741 = vmatpush1.bf16.msra.mxu0 0
        %742 = vmatprep.subr.bf16.mxu0 0
        %743 = vmatpush1.bf16.msra.mxu0 0
        %744 = vmatprep.subr.bf16.mxu0 0
        %745 = vmatpush1.bf16.msra.mxu0 0
        %746 = vmatprep.subr.bf16.mxu0 0
        %747 = vmatpush1.bf16.msra.mxu0 0
        %748 = vmatprep.subr.bf16.mxu0 0
        %749 = vmatpush1.bf16.msra.mxu0 0
        %750 = vmatprep.subr.bf16.mxu0 0
        %751 = vmatpush1.bf16.msra.mxu0 0
        %752 = vmatprep.subr.bf16.mxu0 0
        %753 = vmatpush1.bf16.msra.mxu0 0
        %754 = vmatprep.mubr.bf16.mxu0 0
        %755 = vmatmul.mubr.bf16.gmra.mrb[0].mxu0 %v672
        %v756 = vpop.f32.mrb[0].mxu0
        %v757 = vadd.f32 0.0, %v756
        %v758 = vpop.f32.mrb[0].mxu0
        %v759 = vpop.f32.mrb[0].mxu0
        %v760 = vadd.f32 0.0, %v759
        %v761 = vpop.f32.mrb[0].mxu0
        %762 = vdwg.mxu0
        %v763 = vadd.f32 %v647, %v757
        %v764 = vadd.f32 %v648, %v760
        %s765 = scalar_lea.vmem %s1, 320
        %v766 = vld [vmem:[%s765] sm:$0xf]
        %v767 = vld [vmem:[%s765 + $0x4] sm:$0xf]
        %v768 = vld [vmem:[%s765 + $0x8] sm:$0xf]
        %v769 = vld [vmem:[%s765 + $0xc] sm:$0xf]
        %v770 = vld [vmem:[%s765 + $0x10] sm:$0xf]
        %v771 = vld [vmem:[%s765 + $0x14] sm:$0xf]
        %v772 = vld [vmem:[%s765 + $0x18] sm:$0xf]
        %v773 = vld [vmem:[%s765 + $0x1c] sm:$0xf]
        %v774 = vld [vmem:[%s765 + $0x20] sm:$0xf]
        %v775 = vld [vmem:[%s765 + $0x24] sm:$0xf]
        %v776 = vld [vmem:[%s765 + $0x28] sm:$0xf]
        %v777 = vld [vmem:[%s765 + $0x2c] sm:$0xf]
        %v778 = vld [vmem:[%s765 + $0x30] sm:$0xf]
        %v779 = vld [vmem:[%s765 + $0x34] sm:$0xf]
        %v780 = vld [vmem:[%s765 + $0x38] sm:$0xf]
        %v781 = vld [vmem:[%s765 + $0x3c] sm:$0xf]
        %v782 = vrot.slane %v556, 1
        %v800 = vunpack.c.l.b16 %v766
        %v801 = vunpack.c.l.b16 %v767
        %v802 = vunpack.c.l.b16 %v768
        %v803 = vunpack.c.l.b16 %v769
        %v804 = vunpack.c.l.b16 %v770
        %v805 = vunpack.c.l.b16 %v771
        %v806 = vunpack.c.l.b16 %v772
        %v807 = vunpack.c.l.b16 %v773
        %v808 = vunpack.c.l.b16 %v774
        %v809 = vunpack.c.l.b16 %v775
        %v810 = vunpack.c.l.b16 %v776
        %v811 = vunpack.c.l.b16 %v777
        %v812 = vunpack.c.l.b16 %v778
        %v813 = vunpack.c.l.b16 %v779
        %v814 = vunpack.c.l.b16 %v780
        %v815 = vunpack.c.l.b16 %v781
        %v816 = vpack.c.b16 %v801, %v800
        %v817 = vpack.c.b16 %v803, %v802
        %v818 = vpack.c.b16 %v805, %v804
        %v819 = vpack.c.b16 %v807, %v806
        %v820 = vpack.c.b16 %v809, %v808
        %v821 = vpack.c.b16 %v811, %v810
        %v822 = vpack.c.b16 %v813, %v812
        %v823 = vpack.c.b16 %v815, %v814
        %832 = vmatprep.subr.bf16.mxu0 0
        %833 = vmatpush1.bf16.msra.mxu0 %v816
        %834 = vmatprep.subr.bf16.mxu0 0
        %835 = vmatpush1.bf16.msra.mxu0 %v817
        %836 = vmatprep.subr.bf16.mxu0 0
        %837 = vmatpush1.bf16.msra.mxu0 %v818
        %838 = vmatprep.subr.bf16.mxu0 0
        %839 = vmatpush1.bf16.msra.mxu0 %v819
        %840 = vmatprep.subr.bf16.mxu0 0
        %841 = vmatpush1.bf16.msra.mxu0 %v820
        %842 = vmatprep.subr.bf16.mxu0 0
        %843 = vmatpush1.bf16.msra.mxu0 %v821
        %844 = vmatprep.subr.bf16.mxu0 0
        %845 = vmatpush1.bf16.msra.mxu0 %v822
        %846 = vmatprep.subr.bf16.mxu0 0
        %847 = vmatpush1.bf16.msra.mxu0 %v823
        %848 = vmatprep.subr.bf16.mxu0 0
        %849 = vmatpush1.bf16.msra.mxu0 0
        %850 = vmatprep.subr.bf16.mxu0 0
        %851 = vmatpush1.bf16.msra.mxu0 0
        %852 = vmatprep.subr.bf16.mxu0 0
        %853 = vmatpush1.bf16.msra.mxu0 0
        %854 = vmatprep.subr.bf16.mxu0 0
        %855 = vmatpush1.bf16.msra.mxu0 0
        %856 = vmatprep.subr.bf16.mxu0 0
        %857 = vmatpush1.bf16.msra.mxu0 0
        %858 = vmatprep.subr.bf16.mxu0 0
        %859 = vmatpush1.bf16.msra.mxu0 0
        %860 = vmatprep.subr.bf16.mxu0 0
        %861 = vmatpush1.bf16.msra.mxu0 0
        %862 = vmatprep.subr.bf16.mxu0 0
        %863 = vmatpush1.bf16.msra.mxu0 0
        %864 = vmatprep.mubr.bf16.mxu0 0
        %865 = vmatmul.mubr.bf16.gmra.mrb[0].mxu0 %v782
        %v866 = vpop.f32.mrb[0].mxu0
        %v867 = vadd.f32 0.0, %v866
        %v868 = vpop.f32.mrb[0].mxu0
        %v869 = vpop.f32.mrb[0].mxu0
        %v870 = vadd.f32 0.0, %v869
        %v871 = vpop.f32.mrb[0].mxu0
        %872 = vdwg.mxu0
        %v873 = vadd.f32 %v763, %v867
        %v874 = vadd.f32 %v764, %v870
        %s875 = sadd.s32 %s180, 2
        %s876 = smul.u32 %s875, 2
        %s877 = smul.addr %s876, 4
        %s878 = scalar_lea.vmem %s165, %s877
        %v879 = vld [vmem:[%s878] sm:$0xf]
        %v880 = vld [vmem:[%s878 + $0x4] sm:$0x7]
        %s881 = scalar_lea.vmem %s1, 384
        %v882 = vld [vmem:[%s881] sm:$0xf]
        %v883 = vld [vmem:[%s881 + $0x4] sm:$0xf]
        %v884 = vld [vmem:[%s881 + $0x8] sm:$0xf]
        %v885 = vld [vmem:[%s881 + $0xc] sm:$0xf]
        %v886 = vld [vmem:[%s881 + $0x10] sm:$0xf]
        %v887 = vld [vmem:[%s881 + $0x14] sm:$0xf]
        %v888 = vld [vmem:[%s881 + $0x18] sm:$0xf]
        %v889 = vld [vmem:[%s881 + $0x1c] sm:$0xf]
        %v890 = vld [vmem:[%s881 + $0x20] sm:$0xf]
        %v891 = vld [vmem:[%s881 + $0x24] sm:$0xf]
        %v892 = vld [vmem:[%s881 + $0x28] sm:$0xf]
        %v893 = vld [vmem:[%s881 + $0x2c] sm:$0xf]
        %v894 = vld [vmem:[%s881 + $0x30] sm:$0xf]
        %v895 = vld [vmem:[%s881 + $0x34] sm:$0xf]
        %v896 = vld [vmem:[%s881 + $0x38] sm:$0xf]
        %v897 = vld [vmem:[%s881 + $0x3c] sm:$0xf]
        %v900 = vunpack.c.l.b16 %v879
        %v901 = vunpack.c.l.b16 %v880
        %v902 = vpack.c.b16 %v901, %v900
        %v920 = vunpack.c.l.b16 %v882
        %v921 = vunpack.c.l.b16 %v883
        %v922 = vunpack.c.l.b16 %v884
        %v923 = vunpack.c.l.b16 %v885
        %v924 = vunpack.c.l.b16 %v886
        %v925 = vunpack.c.l.b16 %v887
        %v926 = vunpack.c.l.b16 %v888
        %v927 = vunpack.c.l.b16 %v889
        %v928 = vunpack.c.l.b16 %v890
        %v929 = vunpack.c.l.b16 %v891
        %v930 = vunpack.c.l.b16 %v892
        %v931 = vunpack.c.l.b16 %v893
        %v932 = vunpack.c.l.b16 %v894
        %v933 = vunpack.c.l.b16 %v895
        %v934 = vunpack.c.l.b16 %v896
        %v935 = vunpack.c.l.b16 %v897
        %v936 = vpack.c.b16 %v921, %v920
        %v937 = vpack.c.b16 %v923, %v922
        %v938 = vpack.c.b16 %v925, %v924
        %v939 = vpack.c.b16 %v927, %v926
        %v940 = vpack.c.b16 %v929, %v928
        %v941 = vpack.c.b16 %v931, %v930
        %v942 = vpack.c.b16 %v933, %v932
        %v943 = vpack.c.b16 %v935, %v934
        %952 = vmatprep.subr.bf16.mxu0 0
        %953 = vmatpush1.bf16.msra.mxu0 %v936
        %954 = vmatprep.subr.bf16.mxu0 0
        %955 = vmatpush1.bf16.msra.mxu0 %v937
        %956 = vmatprep.subr.bf16.mxu0 0
        %957 = vmatpush1.bf16.msra.mxu0 %v938
        %958 = vmatprep.subr.bf16.mxu0 0
        %959 = vmatpush1.bf16.msra.mxu0 %v939
        %960 = vmatprep.subr.bf16.mxu0 0
        %961 = vmatpush1.bf16.msra.mxu0 %v940
        %962 = vmatprep.subr.bf16.mxu0 0
        %963 = vmatpush1.bf16.msra.mxu0 %v941
        %964 = vmatprep.subr.bf16.mxu0 0
        %965 = vmatpush1.bf16.msra.mxu0 %v942
        %966 = vmatprep.subr.bf16.mxu0 0
        %967 = vmatpush1.bf16.msra.mxu0 %v943
        %968 = vmatprep.subr.bf16.mxu0 0
        %969 = vmatpush1.bf16.msra.mxu0 0
        %970 = vmatprep.subr.bf16.mxu0 0
        %971 = vmatpush1.bf16.msra.mxu0 0
        %972 = vmatprep.subr.bf16.mxu0 0
        %973 = vmatpush1.bf16.msra.mxu0 0
        %974 = vmatprep.subr.bf16.mxu0 0
        %975 = vmatpush1.bf16.msra.mxu0 0
        %976 = vmatprep.subr.bf16.mxu0 0
        %977 = vmatpush1.bf16.msra.mxu0 0
        %978 = vmatprep.subr.bf16.mxu0 0
        %979 = vmatpush1.bf16.msra.mxu0 0
        %980 = vmatprep.subr.bf16.mxu0 0
        %981 = vmatpush1.bf16.msra.mxu0 0
        %982 = vmatprep.subr.bf16.mxu0 0
        %983 = vmatpush1.bf16.msra.mxu0 0
        %984 = vmatprep.mubr.bf16.mxu0 0
        %985 = vmatmul.mubr.bf16.gmra.mrb[0].mxu0 %v902
        %v986 = vpop.f32.mrb[0].mxu0
        %v987 = vadd.f32 0.0, %v986
        %v988 = vpop.f32.mrb[0].mxu0
        %v989 = vpop.f32.mrb[0].mxu0
        %v990 = vadd.f32 0.0, %v989
        %v991 = vpop.f32.mrb[0].mxu0
        %992 = vdwg.mxu0
        %v993 = vadd.f32 %v873, %v987
        %v994 = vadd.f32 %v874, %v990
        %s995 = scalar_lea.vmem %s1, 448
        %v996 = vld [vmem:[%s995] sm:$0xf]
        %v997 = vld [vmem:[%s995 + $0x4] sm:$0xf]
        %v998 = vld [vmem:[%s995 + $0x8] sm:$0xf]
        %v999 = vld [vmem:[%s995 + $0xc] sm:$0xf]
        %v1000 = vld [vmem:[%s995 + $0x10] sm:$0xf]
        %v1001 = vld [vmem:[%s995 + $0x14] sm:$0xf]
        %v1002 = vld [vmem:[%s995 + $0x18] sm:$0xf]
        %v1003 = vld [vmem:[%s995 + $0x1c] sm:$0xf]
        %v1004 = vld [vmem:[%s995 + $0x20] sm:$0xf]
        %v1005 = vld [vmem:[%s995 + $0x24] sm:$0xf]
        %v1006 = vld [vmem:[%s995 + $0x28] sm:$0xf]
        %v1007 = vld [vmem:[%s995 + $0x2c] sm:$0xf]
        %v1008 = vld [vmem:[%s995 + $0x30] sm:$0xf]
        %v1009 = vld [vmem:[%s995 + $0x34] sm:$0xf]
        %v1010 = vld [vmem:[%s995 + $0x38] sm:$0xf]
        %v1011 = vld [vmem:[%s995 + $0x3c] sm:$0xf]
        %v1013 = vshrl.u32 %v902, 16
        %v1015 = vshll.u32 %v902, 16
        %v1017 = vrot.slane %v1015, 1
        %v1018 = vor.u32 %v1013, %v1017
        %v1036 = vunpack.c.l.b16 %v996
        %v1037 = vunpack.c.l.b16 %v997
        %v1038 = vunpack.c.l.b16 %v998
        %v1039 = vunpack.c.l.b16 %v999
        %v1040 = vunpack.c.l.b16 %v1000
        %v1041 = vunpack.c.l.b16 %v1001
        %v1042 = vunpack.c.l.b16 %v1002
        %v1043 = vunpack.c.l.b16 %v1003
        %v1044 = vunpack.c.l.b16 %v1004
        %v1045 = vunpack.c.l.b16 %v1005
        %v1046 = vunpack.c.l.b16 %v1006
        %v1047 = vunpack.c.l.b16 %v1007
        %v1048 = vunpack.c.l.b16 %v1008
        %v1049 = vunpack.c.l.b16 %v1009
        %v1050 = vunpack.c.l.b16 %v1010
        %v1051 = vunpack.c.l.b16 %v1011
        %v1052 = vpack.c.b16 %v1037, %v1036
        %v1053 = vpack.c.b16 %v1039, %v1038
        %v1054 = vpack.c.b16 %v1041, %v1040
        %v1055 = vpack.c.b16 %v1043, %v1042
        %v1056 = vpack.c.b16 %v1045, %v1044
        %v1057 = vpack.c.b16 %v1047, %v1046
        %v1058 = vpack.c.b16 %v1049, %v1048
        %v1059 = vpack.c.b16 %v1051, %v1050
        %1068 = vmatprep.subr.bf16.mxu0 0
        %1069 = vmatpush1.bf16.msra.mxu0 %v1052
        %1070 = vmatprep.subr.bf16.mxu0 0
        %1071 = vmatpush1.bf16.msra.mxu0 %v1053
        %1072 = vmatprep.subr.bf16.mxu0 0
        %1073 = vmatpush1.bf16.msra.mxu0 %v1054
        %1074 = vmatprep.subr.bf16.mxu0 0
        %1075 = vmatpush1.bf16.msra.mxu0 %v1055
        %1076 = vmatprep.subr.bf16.mxu0 0
        %1077 = vmatpush1.bf16.msra.mxu0 %v1056
        %1078 = vmatprep.subr.bf16.mxu0 0
        %1079 = vmatpush1.bf16.msra.mxu0 %v1057
        %1080 = vmatprep.subr.bf16.mxu0 0
        %1081 = vmatpush1.bf16.msra.mxu0 %v1058
        %1082 = vmatprep.subr.bf16.mxu0 0
        %1083 = vmatpush1.bf16.msra.mxu0 %v1059
        %1084 = vmatprep.subr.bf16.mxu0 0
        %1085 = vmatpush1.bf16.msra.mxu0 0
        %1086 = vmatprep.subr.bf16.mxu0 0
        %1087 = vmatpush1.bf16.msra.mxu0 0
        %1088 = vmatprep.subr.bf16.mxu0 0
        %1089 = vmatpush1.bf16.msra.mxu0 0
        %1090 = vmatprep.subr.bf16.mxu0 0
        %1091 = vmatpush1.bf16.msra.mxu0 0
        %1092 = vmatprep.subr.bf16.mxu0 0
        %1093 = vmatpush1.bf16.msra.mxu0 0
        %1094 = vmatprep.subr.bf16.mxu0 0
        %1095 = vmatpush1.bf16.msra.mxu0 0
        %1096 = vmatprep.subr.bf16.mxu0 0
        %1097 = vmatpush1.bf16.msra.mxu0 0
        %1098 = vmatprep.subr.bf16.mxu0 0
        %1099 = vmatpush1.bf16.msra.mxu0 0
        %1100 = vmatprep.mubr.bf16.mxu0 0
        %1101 = vmatmul.mubr.bf16.gmra.mrb[0].mxu0 %v1018
        %v1102 = vpop.f32.mrb[0].mxu0
        %v1103 = vadd.f32 0.0, %v1102
        %v1104 = vpop.f32.mrb[0].mxu0
        %v1105 = vpop.f32.mrb[0].mxu0
        %v1106 = vadd.f32 0.0, %v1105
        %v1107 = vpop.f32.mrb[0].mxu0
        %1108 = vdwg.mxu0
        %v1109 = vadd.f32 %v993, %v1103
        %v1110 = vadd.f32 %v994, %v1106
        %s1111 = scalar_lea.vmem %s1, 512
        %v1112 = vld [vmem:[%s1111] sm:$0xf]
        %v1113 = vld [vmem:[%s1111 + $0x4] sm:$0xf]
        %v1114 = vld [vmem:[%s1111 + $0x8] sm:$0xf]
        %v1115 = vld [vmem:[%s1111 + $0xc] sm:$0xf]
        %v1116 = vld [vmem:[%s1111 + $0x10] sm:$0xf]
        %v1117 = vld [vmem:[%s1111 + $0x14] sm:$0xf]
        %v1118 = vld [vmem:[%s1111 + $0x18] sm:$0xf]
        %v1119 = vld [vmem:[%s1111 + $0x1c] sm:$0xf]
        %v1120 = vld [vmem:[%s1111 + $0x20] sm:$0xf]
        %v1121 = vld [vmem:[%s1111 + $0x24] sm:$0xf]
        %v1122 = vld [vmem:[%s1111 + $0x28] sm:$0xf]
        %v1123 = vld [vmem:[%s1111 + $0x2c] sm:$0xf]
        %v1124 = vld [vmem:[%s1111 + $0x30] sm:$0xf]
        %v1125 = vld [vmem:[%s1111 + $0x34] sm:$0xf]
        %v1126 = vld [vmem:[%s1111 + $0x38] sm:$0xf]
        %v1127 = vld [vmem:[%s1111 + $0x3c] sm:$0xf]
        %v1128 = vrot.slane %v902, 1
        %v1146 = vunpack.c.l.b16 %v1112
        %v1147 = vunpack.c.l.b16 %v1113
        %v1148 = vunpack.c.l.b16 %v1114
        %v1149 = vunpack.c.l.b16 %v1115
        %v1150 = vunpack.c.l.b16 %v1116
        %v1151 = vunpack.c.l.b16 %v1117
        %v1152 = vunpack.c.l.b16 %v1118
        %v1153 = vunpack.c.l.b16 %v1119
        %v1154 = vunpack.c.l.b16 %v1120
        %v1155 = vunpack.c.l.b16 %v1121
        %v1156 = vunpack.c.l.b16 %v1122
        %v1157 = vunpack.c.l.b16 %v1123
        %v1158 = vunpack.c.l.b16 %v1124
        %v1159 = vunpack.c.l.b16 %v1125
        %v1160 = vunpack.c.l.b16 %v1126
        %v1161 = vunpack.c.l.b16 %v1127
        %v1162 = vpack.c.b16 %v1147, %v1146
        %v1163 = vpack.c.b16 %v1149, %v1148
        %v1164 = vpack.c.b16 %v1151, %v1150
        %v1165 = vpack.c.b16 %v1153, %v1152
        %v1166 = vpack.c.b16 %v1155, %v1154
        %v1167 = vpack.c.b16 %v1157, %v1156
        %v1168 = vpack.c.b16 %v1159, %v1158
        %v1169 = vpack.c.b16 %v1161, %v1160
        %1178 = vmatprep.subr.bf16.mxu0 0
        %1179 = vmatpush1.bf16.msra.mxu0 %v1162
        %1180 = vmatprep.subr.bf16.mxu0 0
        %1181 = vmatpush1.bf16.msra.mxu0 %v1163
        %1182 = vmatprep.subr.bf16.mxu0 0
        %1183 = vmatpush1.bf16.msra.mxu0 %v1164
        %1184 = vmatprep.subr.bf16.mxu0 0
        %1185 = vmatpush1.bf16.msra.mxu0 %v1165
        %1186 = vmatprep.subr.bf16.mxu0 0
        %1187 = vmatpush1.bf16.msra.mxu0 %v1166
        %1188 = vmatprep.subr.bf16.mxu0 0
        %1189 = vmatpush1.bf16.msra.mxu0 %v1167
        %1190 = vmatprep.subr.bf16.mxu0 0
        %1191 = vmatpush1.bf16.msra.mxu0 %v1168
        %1192 = vmatprep.subr.bf16.mxu0 0
        %1193 = vmatpush1.bf16.msra.mxu0 %v1169
        %1194 = vmatprep.subr.bf16.mxu0 0
        %1195 = vmatpush1.bf16.msra.mxu0 0
        %1196 = vmatprep.subr.bf16.mxu0 0
        %1197 = vmatpush1.bf16.msra.mxu0 0
        %1198 = vmatprep.subr.bf16.mxu0 0
        %1199 = vmatpush1.bf16.msra.mxu0 0
        %1200 = vmatprep.subr.bf16.mxu0 0
        %1201 = vmatpush1.bf16.msra.mxu0 0
        %1202 = vmatprep.subr.bf16.mxu0 0
        %1203 = vmatpush1.bf16.msra.mxu0 0
        %1204 = vmatprep.subr.bf16.mxu0 0
        %1205 = vmatpush1.bf16.msra.mxu0 0
        %1206 = vmatprep.subr.bf16.mxu0 0
        %1207 = vmatpush1.bf16.msra.mxu0 0
        %1208 = vmatprep.subr.bf16.mxu0 0
        %1209 = vmatpush1.bf16.msra.mxu0 0
        %1210 = vmatprep.mubr.bf16.mxu0 0
        %1211 = vmatmul.mubr.bf16.gmra.mrb[0].mxu0 %v1128
        %v1212 = vpop.f32.mrb[0].mxu0
        %v1213 = vadd.f32 0.0, %v1212
        %v1214 = vpop.f32.mrb[0].mxu0
        %v1215 = vpop.f32.mrb[0].mxu0
        %v1216 = vadd.f32 0.0, %v1215
        %v1217 = vpop.f32.mrb[0].mxu0
        %1218 = vdwg.mxu0
        %v1219 = vadd.f32 %v1109, %v1213
        %v1220 = vadd.f32 %v1110, %v1216
        %v1221 = vmax.f32 %v1219, 0.0
        %v1222 = vmax.f32 %v1220, 0.0
        %s1223 = smul.u32 %s180, 16
        %s1224 = scalar_lea.vmem %s170, %s1223
        %1225 = vst [vmem:[%s1224] sm:$0xff] %v1221
        %1226 = vst [vmem:[%s1224 + $0x8] sm:$0xf] %v1222
      $region37: #{up_forward.5} parent=31 // loop_footer
        %s184 = sadd.s32 1, %s180
      $region38: #{up_forward.5} parent=31 // loop_footer_branch
        %179 = sbr.rel target = $region34
      $region39: #{up_forward.5} parent=31 // loop_exit
        _
      %p1227 = scmp.lt.s32.totalorder %s14, 1
      %s1228 = scalar_select %p1227, %s14, 1
      %s1229 = smul.addr %s1228, 24
      %s1230 = smul.addr %s1229, 8
      %s1231 = scalar_lea.vmem %s3, %s1230
      // Predicated region
      $region40: #{up_forward.5} parent=31 // pred_check
        %p1232 = pneg %p100
      $region41: #{up_forward.5} parent=31 // pred_check_branch
        %1234 = sbr.rel (%p1232) target = $region43
      $region42: #{up_forward.5} parent=31 // pred_region
        _
      $region43: #{up_forward.5} parent=31 // pred_fallthru
        _
    $region32: #{up_forward.5} parent=5 // pred_fallthru
      _
    %p1235 = scmp.le.s32.totalorder 2, %s9
    // Predicated region
    $region44: #{up_forward.5} parent=5 // pred_check
      %p1236 = pneg %p1235
    $region45: #{up_forward.5} parent=5 // pred_check_branch
      %1238 = sbr.rel (%p1236) target = $region47
    $region46: #{up_forward.5} parent=5 // pred_region
      %s1239 = ssub.s32 %s9, 2
      // Predicated region
      $region48: #{up_forward.5} parent=46 // pred_check
        %p1240 = pneg %p106
      $region49: #{up_forward.5} parent=46 // pred_check_branch
        %1242 = sbr.rel (%p1240) target = $region51
      $region50: #{up_forward.5} parent=46 // pred_region
        %p1243 = scmp.lt.s32.totalorder %s15, 1
        %s1244 = scalar_select %p1243, %s15, 1
        %s1245 = smul.addr %s1244, 24
        %s1246 = smul.addr %s1245, 8
        %s1247 = scalar_lea.vmem %s3, %s1246
      $region51: #{up_forward.5} parent=46 // pred_fallthru
        _
    $region47: #{up_forward.5} parent=5 // pred_fallthru
      _
  $region6: #{up_forward.5} parent=0 // loop_footer
    %s13 = sadd.s32 1, %s9
  $region7: #{up_forward.5} parent=0 // loop_footer_branch
    %8 = sbr.rel target = $region3
  $region8: #{up_forward.5} parent=0 // loop_exit
    _

// kernel: up_forward.3
$region0: #{up_forward.3}
  #allocation0 [shape = 'u32[]', space=smem, size = 0x4, offset = 0x4, fixed_abs, tag = 'smem constant byte address 0x4 - core index']
  #allocation1 [shape = 'u32[144,128]{1,0:T(1,128)}', space=vmem, size = 0x12000, scoped, tag = 'internal scratch']
  %s0 = inlined_call_operand.vmem [shape: bf16[16,8,128], index: 0, kind: input, shape index: {}]
  %s1 = inlined_call_operand.vmem [shape: bf16[2,128,256], index: 1, kind: input, shape index: {}]
  %s2 = inlined_call_operand.vmem [shape: f32[1,256], index: 2, kind: input, shape index: {}]
  %s3 = inlined_call_operand.vmem [shape: bf16[16,2,8,256], index: 3, kind: output, shape index: {}]
  %s4 = sld [smem:[#allocation0]]
  $region45: #{up_forward.3} parent=0
    _
  %s6 = ssub.s32 1, %s4
  %s7 = scalar_select 0, %s6, %s4
  loop: start=0, step=1, limit=4
  $region2: #{up_forward.3} parent=0 // loop_pre_header
    _
  $region3: #{up_forward.3} parent=0 // loop_header
    %s9 = sphi 0, %s13
    %p10 = scmp.ge.s32.totalorder %s9, 4
    %s19 = sphi 0, %s21
    %s22 = sphi 0, %s19
    %s23 = sphi 0, %s22
    %s39 = sphi 0, %s23
    %s43 = sphi 0, %s43
    %s45 = sphi 0, %s43
    %s46 = sphi 0, %s45
    %s60 = sphi 0, %s46
    %s64 = sphi 0, %s64
    %s66 = sphi 0, %s64
    %s67 = sphi 0, %s66
    %s81 = sphi 0, %s67
    %s87 = sphi 0, %s89
    %s90 = sphi 0, %s87
    %s91 = sphi 0, %s90
    %s107 = sphi 0, %s91
  $region4: #{up_forward.3} parent=0 // loop_header_branch
    %12 = sbr.rel (%p10) target = $region8
  $region5: #{up_forward.3} parent=0 // loop_body
    %s14 = ssub.s32 %s9, 1
    %s15 = ssub.s32 %s9, 2
    %s16 = sadd.s32 %s9, 1
    %s17 = ssub.s32 %s9, %s16
    %p18 = scmp.eq.s32.totalorder %s17, 0
    %s20 = sadd.s32 %s19, 1
    %s21 = scalar_select %p18, %s19, %s20
    %p24 = pneg %p18
    %p25 = scmp.eq.s32.totalorder %s9, 1
    %p26 = por %p24, %p25
    %p27 = scmp.ne.s32.totalorder %s19, %s22
    %p28 = scmp.eq.s32.totalorder %s9, 0
    %p29 = por %p27, %p28
    %p30 = scmp.ne.s32.totalorder %s19, %s22
    %p31 = scmp.eq.s32.totalorder %s14, 1
    %p32 = por %p30, %p31
    %p33 = scmp.ne.s32.totalorder %s22, %s23
    %p34 = scmp.eq.s32.totalorder %s14, 0
    %p35 = por %p33, %p34
    %p36 = scmp.ne.s32.totalorder %s22, %s23
    %p37 = scmp.eq.s32.totalorder %s15, 1
    %p38 = por %p36, %p37
    %p40 = scmp.ne.s32.totalorder %s23, %s39
    %p41 = scmp.eq.s32.totalorder %s15, 0
    %p42 = por %p40, %p41
    %s44 = sadd.s32 %s43, 1
    %p47 = scmp.eq.s32.totalorder %s9, 1
    %p48 = scmp.ne.s32.totalorder %s43, %s45
    %p49 = scmp.eq.s32.totalorder %s9, 0
    %p50 = por %p48, %p49
    %p51 = scmp.ne.s32.totalorder %s43, %s45
    %p52 = scmp.eq.s32.totalorder %s14, 1
    %p53 = por %p51, %p52
    %p54 = scmp.ne.s32.totalorder %s45, %s46
    %p55 = scmp.eq.s32.totalorder %s14, 0
    %p56 = por %p54, %p55
    %p57 = scmp.ne.s32.totalorder %s45, %s46
    %p58 = scmp.eq.s32.totalorder %s15, 1
    %p59 = por %p57, %p58
    %p61 = scmp.ne.s32.totalorder %s46, %s60
    %p62 = scmp.eq.s32.totalorder %s15, 0
    %p63 = por %p61, %p62
    %s65 = sadd.s32 %s64, 1
    %p68 = scmp.eq.s32.totalorder %s9, 1
    %p69 = scmp.ne.s32.totalorder %s64, %s66
    %p70 = scmp.eq.s32.totalorder %s9, 0
    %p71 = por %p69, %p70
    %p72 = scmp.ne.s32.totalorder %s64, %s66
    %p73 = scmp.eq.s32.totalorder %s14, 1
    %p74 = por %p72, %p73
    %p75 = scmp.ne.s32.totalorder %s66, %s67
    %p76 = scmp.eq.s32.totalorder %s14, 0
    %p77 = por %p75, %p76
    %p78 = scmp.ne.s32.totalorder %s66, %s67
    %p79 = scmp.eq.s32.totalorder %s15, 1
    %p80 = por %p78, %p79
    %p82 = scmp.ne.s32.totalorder %s67, %s81
    %p83 = scmp.eq.s32.totalorder %s15, 0
    %p84 = por %p82, %p83
    %s85 = ssub.s32 %s9, %s16
    %p86 = scmp.eq.s32.totalorder %s85, 0
    %s88 = sadd.s32 %s87, 1
    %s89 = scalar_select %p86, %s87, %s88
    %p92 = pneg %p86
    %p93 = scmp.eq.s32.totalorder %s9, 1
    %p94 = por %p92, %p93
    %p95 = scmp.ne.s32.totalorder %s87, %s90
    %p96 = scmp.eq.s32.totalorder %s9, 0
    %p97 = por %p95, %p96
    %p98 = scmp.ne.s32.totalorder %s87, %s90
    %p99 = scmp.eq.s32.totalorder %s14, 1
    %p100 = por %p98, %p99
    %p101 = scmp.ne.s32.totalorder %s90, %s91
    %p102 = scmp.eq.s32.totalorder %s14, 0
    %p103 = por %p101, %p102
    %p104 = scmp.ne.s32.totalorder %s90, %s91
    %p105 = scmp.eq.s32.totalorder %s15, 1
    %p106 = por %p104, %p105
    %p108 = scmp.ne.s32.totalorder %s91, %s107
    %p109 = scmp.eq.s32.totalorder %s15, 0
    %p110 = por %p108, %p109
    %p111 = scmp.le.s32.totalorder 1, %s9
    %p112 = scmp.lt.s32.totalorder %s9, 3
    %p113 = pnand %p111, %p112
    %p114 = pneg %p113
    // Predicated region
    $region9: #{up_forward.3} parent=5 // pred_check
      _
    $region10: #{up_forward.3} parent=5 // pred_check_branch
      %116 = sbr.rel (%p113) target = $region12
    $region11: #{up_forward.3} parent=5 // pred_region
      %s117 = ssub.s32 %s9, 1
      // Predicated region
      $region13: #{up_forward.3} parent=11 // pred_check
        %p118 = pneg %p56
      $region14: #{up_forward.3} parent=11 // pred_check_branch
        %120 = sbr.rel (%p118) target = $region16
      $region15: #{up_forward.3} parent=11 // pred_region
        _
      $region16: #{up_forward.3} parent=11 // pred_fallthru
        _
      // Predicated region
      $region17: #{up_forward.3} parent=11 // pred_check
        %p121 = pneg %p77
      $region18: #{up_forward.3} parent=11 // pred_check_branch
        %123 = sbr.rel (%p121) target = $region20
      $region19: #{up_forward.3} parent=11 // pred_region
        _
      $region20: #{up_forward.3} parent=11 // pred_fallthru
        _
    $region12: #{up_forward.3} parent=5 // pred_fallthru
      _
    %p124 = scmp.lt.s32.totalorder %s9, 2
    // Predicated region
    $region21: #{up_forward.3} parent=5 // pred_check
      %p125 = pneg %p124
    $region22: #{up_forward.3} parent=5 // pred_check_branch
      %127 = sbr.rel (%p125) target = $region24
    $region23: #{up_forward.3} parent=5 // pred_region
      // Predicated region
      $region25: #{up_forward.3} parent=23 // pred_check
        %p128 = pneg %p29
      $region26: #{up_forward.3} parent=23 // pred_check_branch
        %130 = sbr.rel (%p128) target = $region28
      $region27: #{up_forward.3} parent=23 // pred_region
        %s131 = smul.u32 8, %s9
        %p132 = scmp.lt.s32.totalorder %s131, 15
        %s133 = scalar_select %p132, %s131, 15
        %s134 = smul.addr %s133, 4
        %s135 = scalar_lea.vmem %s0, %s134
        %s136 = smul.u32 8, %s9
      $region28: #{up_forward.3} parent=23 // pred_fallthru
        _
    $region24: #{up_forward.3} parent=5 // pred_fallthru
      _
    %p137 = scmp.le.s32.totalorder 1, %s9
    %p138 = scmp.lt.s32.totalorder %s9, 3
    %p139 = pnand %p137, %p138
    %p140 = pneg %p139
    // Predicated region
    $region29: #{up_forward.3} parent=5 // pred_check
      _
    $region30: #{up_forward.3} parent=5 // pred_check_branch
      %142 = sbr.rel (%p139) target = $region32
    $region31: #{up_forward.3} parent=5 // pred_region
      %s143 = ssub.s32 %s9, 1
      %s144 = smul.u32 8, %s14
      %p145 = scmp.lt.s32.totalorder %s144, 15
      %s146 = scalar_select %p145, %s144, 15
      %s147 = smul.addr %s146, 4
      %s148 = scalar_lea.vmem %s0, %s147
      %p149 = pneg %p35
      %p150 = pneg %p32
      %p151 = pneg %p56
      %p152 = pneg %p53
      %p153 = pneg %p77
      %p154 = pneg %p74
      %p155 = pneg %p103
      %p156 = pneg %p100
      %s157 = smul.u32 8, %s14
      %p158 = scmp.lt.s32.totalorder %s157, 15
      %s159 = scalar_select %p158, %s157, 15
      %s160 = smul.addr %s159, 4
      %s161 = smul.addr %s160, 4
      %s162 = scalar_lea.vmem %s3, %s161
      %s163 = smul.u32 8, %s14
      %p164 = scmp.lt.s32.totalorder %s163, 15
      %s165 = scalar_select %p164, %s163, 15
      %s166 = smul.addr %s165, 4
      %s167 = scalar_lea.vmem %s0, %s166
      %s168 = smul.u32 8, %s14
      %s169 = smul.u32 8, %s14
      %p170 = scmp.lt.s32.totalorder %s169, 15
      %s171 = scalar_select %p170, %s169, 15
      %s172 = smul.addr %s171, 4
      %s173 = smul.addr %s172, 4
      %s174 = scalar_lea.vmem %s3, %s173
      %s175 = smul.u32 8, %s14
      %v177 = vld [vmem:[%s2] sm:$0x3]
      %v178 = vld [vmem:[%s167] sm:$0xf]
      %v179 = vld [vmem:[%s1] sm:$0xff]
      %v180 = vld [vmem:[%s1 + $0x8] sm:$0xff]
      %v181 = vld [vmem:[%s1 + $0x10] sm:$0xff]
      %v182 = vld [vmem:[%s1 + $0x18] sm:$0xff]
      %v183 = vld [vmem:[%s1 + $0x20] sm:$0xff]
      %v184 = vld [vmem:[%s1 + $0x28] sm:$0xff]
      %v185 = vld [vmem:[%s1 + $0x30] sm:$0xff]
      %v186 = vld [vmem:[%s1 + $0x38] sm:$0xff]
      %v187 = vld [vmem:[%s1 + $0x40] sm:$0xff]
      %v188 = vld [vmem:[%s1 + $0x48] sm:$0xff]
      %v189 = vld [vmem:[%s1 + $0x50] sm:$0xff]
      %v190 = vld [vmem:[%s1 + $0x58] sm:$0xff]
      %v191 = vld [vmem:[%s1 + $0x60] sm:$0xff]
      %v192 = vld [vmem:[%s1 + $0x68] sm:$0xff]
      %v193 = vld [vmem:[%s1 + $0x70] sm:$0xff]
      %v194 = vld [vmem:[%s1 + $0x78] sm:$0xff]
      %v196 = vlaneseq
      %v197 = vshrl.u32 %v196, 7
      %v198 = vsub.s32 0, %v197
      %v199 = vrot.slane %v177, %v198
      %v200 = vlaneseq
      %v201 = vshrl.u32 %v200, 7
      %v202 = vsub.s32 1, %v201
      %v203 = vrot.slane %v177, %v202
      %v222 = vunpack.c.l.b16 %v179
      %v223 = vunpack.c.h.b16 %v179
      %v224 = vunpack.c.l.b16 %v180
      %v225 = vunpack.c.h.b16 %v180
      %v226 = vunpack.c.l.b16 %v181
      %v227 = vunpack.c.h.b16 %v181
      %v228 = vunpack.c.l.b16 %v182
      %v229 = vunpack.c.h.b16 %v182
      %v230 = vunpack.c.l.b16 %v183
      %v231 = vunpack.c.h.b16 %v183
      %v232 = vunpack.c.l.b16 %v184
      %v233 = vunpack.c.h.b16 %v184
      %v234 = vunpack.c.l.b16 %v185
      %v235 = vunpack.c.h.b16 %v185
      %v236 = vunpack.c.l.b16 %v186
      %v237 = vunpack.c.h.b16 %v186
      %v238 = vunpack.c.l.b16 %v187
      %v239 = vunpack.c.h.b16 %v187
      %v240 = vunpack.c.l.b16 %v188
      %v241 = vunpack.c.h.b16 %v188
      %v242 = vunpack.c.l.b16 %v189
      %v243 = vunpack.c.h.b16 %v189
      %v244 = vunpack.c.l.b16 %v190
      %v245 = vunpack.c.h.b16 %v190
      %v246 = vunpack.c.l.b16 %v191
      %v247 = vunpack.c.h.b16 %v191
      %v248 = vunpack.c.l.b16 %v192
      %v249 = vunpack.c.h.b16 %v192
      %v250 = vunpack.c.l.b16 %v193
      %v251 = vunpack.c.h.b16 %v193
      %v252 = vunpack.c.l.b16 %v194
      %v253 = vunpack.c.h.b16 %v194
      %v254 = vpack.c.b16 %v224, %v222
      %v255 = vpack.c.b16 %v225, %v223
      %v256 = vpack.c.b16 %v228, %v226
      %v257 = vpack.c.b16 %v229, %v227
      %v258 = vpack.c.b16 %v232, %v230
      %v259 = vpack.c.b16 %v233, %v231
      %v260 = vpack.c.b16 %v236, %v234
      %v261 = vpack.c.b16 %v237, %v235
      %v262 = vpack.c.b16 %v240, %v238
      %v263 = vpack.c.b16 %v241, %v239
      %v264 = vpack.c.b16 %v244, %v242
      %v265 = vpack.c.b16 %v245, %v243
      %v266 = vpack.c.b16 %v248, %v246
      %v267 = vpack.c.b16 %v249, %v247
      %v268 = vpack.c.b16 %v252, %v250
      %v269 = vpack.c.b16 %v253, %v251
      %286 = vmatprep.subr.bf16.mxu0 %v255
      %287 = vmatpush1.bf16.msra.mxu0 %v254
      %288 = vmatprep.subr.bf16.mxu0 %v257
      %289 = vmatpush1.bf16.msra.mxu0 %v256
      %290 = vmatprep.subr.bf16.mxu0 %v259
      %291 = vmatpush1.bf16.msra.mxu0 %v258
      %292 = vmatprep.subr.bf16.mxu0 %v261
      %293 = vmatpush1.bf16.msra.mxu0 %v260
      %294 = vmatprep.subr.bf16.mxu0 %v263
      %295 = vmatpush1.bf16.msra.mxu0 %v262
      %296 = vmatprep.subr.bf16.mxu0 %v265
      %297 = vmatpush1.bf16.msra.mxu0 %v264
      %298 = vmatprep.subr.bf16.mxu0 %v267
      %299 = vmatpush1.bf16.msra.mxu0 %v266
      %300 = vmatprep.subr.bf16.mxu0 %v269
      %301 = vmatpush1.bf16.msra.mxu0 %v268
      %302 = vmatprep.subr.bf16.mxu0 0
      %303 = vmatpush1.bf16.msra.mxu0 0
      %304 = vmatprep.subr.bf16.mxu0 0
      %305 = vmatpush1.bf16.msra.mxu0 0
      %306 = vmatprep.subr.bf16.mxu0 0
      %307 = vmatpush1.bf16.msra.mxu0 0
      %308 = vmatprep.subr.bf16.mxu0 0
      %309 = vmatpush1.bf16.msra.mxu0 0
      %310 = vmatprep.subr.bf16.mxu0 0
      %311 = vmatpush1.bf16.msra.mxu0 0
      %312 = vmatprep.subr.bf16.mxu0 0
      %313 = vmatpush1.bf16.msra.mxu0 0
      %314 = vmatprep.subr.bf16.mxu0 0
      %315 = vmatpush1.bf16.msra.mxu0 0
      %316 = vmatprep.subr.bf16.mxu0 0
      %317 = vmatpush1.bf16.msra.mxu0 0
      %318 = vmatprep.mubr.bf16.mxu0 0
      %319 = vmatmul.mubr.bf16.gmra.mrb[0].mxu0 %v178
      %v320 = vpop.f32.mrb[0].mxu0
      %v321 = vadd.f32 %v199, %v320
      %v322 = vpop.f32.mrb[0].mxu0
      %v323 = vadd.f32 %v203, %v322
      %v324 = vpop.f32.mrb[0].mxu0
      %v325 = vpop.f32.mrb[0].mxu0
      %326 = vdwg.mxu0
      %v327 = vpack.c.bf16 %v321, %v321
      %v328 = vpack.c.bf16 %v323, %v323
      %v331 = vunpack.c.l.b16 %v327
      %v332 = vunpack.c.l.b16 %v328
      %v333 = vpack.c.b16 %v332, %v331
      %335 = vst [vmem:[%s174] sm:$0xff] %v333
      %s336 = scalar_lea.vmem %s1, 128
      %v337 = vld [vmem:[%s336] sm:$0xff]
      %v338 = vld [vmem:[%s336 + $0x8] sm:$0xff]
      %v339 = vld [vmem:[%s336 + $0x10] sm:$0xff]
      %v340 = vld [vmem:[%s336 + $0x18] sm:$0xff]
      %v341 = vld [vmem:[%s336 + $0x20] sm:$0xff]
      %v342 = vld [vmem:[%s336 + $0x28] sm:$0xff]
      %v343 = vld [vmem:[%s336 + $0x30] sm:$0xff]
      %v344 = vld [vmem:[%s336 + $0x38] sm:$0xff]
      %v345 = vld [vmem:[%s336 + $0x40] sm:$0xff]
      %v346 = vld [vmem:[%s336 + $0x48] sm:$0xff]
      %v347 = vld [vmem:[%s336 + $0x50] sm:$0xff]
      %v348 = vld [vmem:[%s336 + $0x58] sm:$0xff]
      %v349 = vld [vmem:[%s336 + $0x60] sm:$0xff]
      %v350 = vld [vmem:[%s336 + $0x68] sm:$0xff]
      %v351 = vld [vmem:[%s336 + $0x70] sm:$0xff]
      %v352 = vld [vmem:[%s336 + $0x78] sm:$0xff]
      %v369 = vunpack.c.l.b16 %v337
      %v370 = vunpack.c.h.b16 %v337
      %v371 = vunpack.c.l.b16 %v338
      %v372 = vunpack.c.h.b16 %v338
      %v373 = vunpack.c.l.b16 %v339
      %v374 = vunpack.c.h.b16 %v339
      %v375 = vunpack.c.l.b16 %v340
      %v376 = vunpack.c.h.b16 %v340
      %v377 = vunpack.c.l.b16 %v341
      %v378 = vunpack.c.h.b16 %v341
      %v379 = vunpack.c.l.b16 %v342
      %v380 = vunpack.c.h.b16 %v342
      %v381 = vunpack.c.l.b16 %v343
      %v382 = vunpack.c.h.b16 %v343
      %v383 = vunpack.c.l.b16 %v344
      %v384 = vunpack.c.h.b16 %v344
      %v385 = vunpack.c.l.b16 %v345
      %v386 = vunpack.c.h.b16 %v345
      %v387 = vunpack.c.l.b16 %v346
      %v388 = vunpack.c.h.b16 %v346
      %v389 = vunpack.c.l.b16 %v347
      %v390 = vunpack.c.h.b16 %v347
      %v391 = vunpack.c.l.b16 %v348
      %v392 = vunpack.c.h.b16 %v348
      %v393 = vunpack.c.l.b16 %v349
      %v394 = vunpack.c.h.b16 %v349
      %v395 = vunpack.c.l.b16 %v350
      %v396 = vunpack.c.h.b16 %v350
      %v397 = vunpack.c.l.b16 %v351
      %v398 = vunpack.c.h.b16 %v351
      %v399 = vunpack.c.l.b16 %v352
      %v400 = vunpack.c.h.b16 %v352
      %v401 = vpack.c.b16 %v371, %v369
      %v402 = vpack.c.b16 %v372, %v370
      %v403 = vpack.c.b16 %v375, %v373
      %v404 = vpack.c.b16 %v376, %v374
      %v405 = vpack.c.b16 %v379, %v377
      %v406 = vpack.c.b16 %v380, %v378
      %v407 = vpack.c.b16 %v383, %v381
      %v408 = vpack.c.b16 %v384, %v382
      %v409 = vpack.c.b16 %v387, %v385
      %v410 = vpack.c.b16 %v388, %v386
      %v411 = vpack.c.b16 %v391, %v389
      %v412 = vpack.c.b16 %v392, %v390
      %v413 = vpack.c.b16 %v395, %v393
      %v414 = vpack.c.b16 %v396, %v394
      %v415 = vpack.c.b16 %v399, %v397
      %v416 = vpack.c.b16 %v400, %v398
      %433 = vmatprep.subr.bf16.mxu0 %v402
      %434 = vmatpush1.bf16.msra.mxu0 %v401
      %435 = vmatprep.subr.bf16.mxu0 %v404
      %436 = vmatpush1.bf16.msra.mxu0 %v403
      %437 = vmatprep.subr.bf16.mxu0 %v406
      %438 = vmatpush1.bf16.msra.mxu0 %v405
      %439 = vmatprep.subr.bf16.mxu0 %v408
      %440 = vmatpush1.bf16.msra.mxu0 %v407
      %441 = vmatprep.subr.bf16.mxu0 %v410
      %442 = vmatpush1.bf16.msra.mxu0 %v409
      %443 = vmatprep.subr.bf16.mxu0 %v412
      %444 = vmatpush1.bf16.msra.mxu0 %v411
      %445 = vmatprep.subr.bf16.mxu0 %v414
      %446 = vmatpush1.bf16.msra.mxu0 %v413
      %447 = vmatprep.subr.bf16.mxu0 %v416
      %448 = vmatpush1.bf16.msra.mxu0 %v415
      %449 = vmatprep.subr.bf16.mxu0 0
      %450 = vmatpush1.bf16.msra.mxu0 0
      %451 = vmatprep.subr.bf16.mxu0 0
      %452 = vmatpush1.bf16.msra.mxu0 0
      %453 = vmatprep.subr.bf16.mxu0 0
      %454 = vmatpush1.bf16.msra.mxu0 0
      %455 = vmatprep.subr.bf16.mxu0 0
      %456 = vmatpush1.bf16.msra.mxu0 0
      %457 = vmatprep.subr.bf16.mxu0 0
      %458 = vmatpush1.bf16.msra.mxu0 0
      %459 = vmatprep.subr.bf16.mxu0 0
      %460 = vmatpush1.bf16.msra.mxu0 0
      %461 = vmatprep.subr.bf16.mxu0 0
      %462 = vmatpush1.bf16.msra.mxu0 0
      %463 = vmatprep.subr.bf16.mxu0 0
      %464 = vmatpush1.bf16.msra.mxu0 0
      %465 = vmatprep.mubr.bf16.mxu0 0
      %466 = vmatmul.mubr.bf16.gmra.mrb[0].mxu0 %v178
      %v467 = vpop.f32.mrb[0].mxu0
      %v468 = vadd.f32 %v199, %v467
      %v469 = vpop.f32.mrb[0].mxu0
      %v470 = vadd.f32 %v203, %v469
      %v471 = vpop.f32.mrb[0].mxu0
      %v472 = vpop.f32.mrb[0].mxu0
      %473 = vdwg.mxu0
      %v474 = vpack.c.bf16 %v468, %v468
      %v475 = vpack.c.bf16 %v470, %v470
      %v478 = vunpack.c.l.b16 %v474
      %v479 = vunpack.c.l.b16 %v475
      %v480 = vpack.c.b16 %v479, %v478
      %s482 = scalar_lea.vmem %s174, 8
      %483 = vst [vmem:[%s482] sm:$0xff] %v480
      %s484 = scalar_lea.vmem %s167, 4
      %v485 = vld [vmem:[%s484] sm:$0xf]
      %v486 = vld [vmem:[%s1] sm:$0xff]
      %v487 = vld [vmem:[%s1 + $0x8] sm:$0xff]
      %v488 = vld [vmem:[%s1 + $0x10] sm:$0xff]
      %v489 = vld [vmem:[%s1 + $0x18] sm:$0xff]
      %v490 = vld [vmem:[%s1 + $0x20] sm:$0xff]
      %v491 = vld [vmem:[%s1 + $0x28] sm:$0xff]
      %v492 = vld [vmem:[%s1 + $0x30] sm:$0xff]
      %v493 = vld [vmem:[%s1 + $0x38] sm:$0xff]
      %v494 = vld [vmem:[%s1 + $0x40] sm:$0xff]
      %v495 = vld [vmem:[%s1 + $0x48] sm:$0xff]
      %v496 = vld [vmem:[%s1 + $0x50] sm:$0xff]
      %v497 = vld [vmem:[%s1 + $0x58] sm:$0xff]
      %v498 = vld [vmem:[%s1 + $0x60] sm:$0xff]
      %v499 = vld [vmem:[%s1 + $0x68] sm:$0xff]
      %v500 = vld [vmem:[%s1 + $0x70] sm:$0xff]
      %v501 = vld [vmem:[%s1 + $0x78] sm:$0xff]
      %v518 = vunpack.c.l.b16 %v486
      %v519 = vunpack.c.h.b16 %v486
      %v520 = vunpack.c.l.b16 %v487
      %v521 = vunpack.c.h.b16 %v487
      %v522 = vunpack.c.l.b16 %v488
      %v523 = vunpack.c.h.b16 %v488
      %v524 = vunpack.c.l.b16 %v489
      %v525 = vunpack.c.h.b16 %v489
      %v526 = vunpack.c.l.b16 %v490
      %v527 = vunpack.c.h.b16 %v490
      %v528 = vunpack.c.l.b16 %v491
      %v529 = vunpack.c.h.b16 %v491
      %v530 = vunpack.c.l.b16 %v492
      %v531 = vunpack.c.h.b16 %v492
      %v532 = vunpack.c.l.b16 %v493
      %v533 = vunpack.c.h.b16 %v493
      %v534 = vunpack.c.l.b16 %v494
      %v535 = vunpack.c.h.b16 %v494
      %v536 = vunpack.c.l.b16 %v495
      %v537 = vunpack.c.h.b16 %v495
      %v538 = vunpack.c.l.b16 %v496
      %v539 = vunpack.c.h.b16 %v496
      %v540 = vunpack.c.l.b16 %v497
      %v541 = vunpack.c.h.b16 %v497
      %v542 = vunpack.c.l.b16 %v498
      %v543 = vunpack.c.h.b16 %v498
      %v544 = vunpack.c.l.b16 %v499
      %v545 = vunpack.c.h.b16 %v499
      %v546 = vunpack.c.l.b16 %v500
      %v547 = vunpack.c.h.b16 %v500
      %v548 = vunpack.c.l.b16 %v501
      %v549 = vunpack.c.h.b16 %v501
      %v550 = vpack.c.b16 %v520, %v518
      %v551 = vpack.c.b16 %v521, %v519
      %v552 = vpack.c.b16 %v524, %v522
      %v553 = vpack.c.b16 %v525, %v523
      %v554 = vpack.c.b16 %v528, %v526
      %v555 = vpack.c.b16 %v529, %v527
      %v556 = vpack.c.b16 %v532, %v530
      %v557 = vpack.c.b16 %v533, %v531
      %v558 = vpack.c.b16 %v536, %v534
      %v559 = vpack.c.b16 %v537, %v535
      %v560 = vpack.c.b16 %v540, %v538
      %v561 = vpack.c.b16 %v541, %v539
      %v562 = vpack.c.b16 %v544, %v542
      %v563 = vpack.c.b16 %v545, %v543
      %v564 = vpack.c.b16 %v548, %v546
      %v565 = vpack.c.b16 %v549, %v547
      %582 = vmatprep.subr.bf16.mxu0 %v551
      %583 = vmatpush1.bf16.msra.mxu0 %v550
      %584 = vmatprep.subr.bf16.mxu0 %v553
      %585 = vmatpush1.bf16.msra.mxu0 %v552
      %586 = vmatprep.subr.bf16.mxu0 %v555
      %587 = vmatpush1.bf16.msra.mxu0 %v554
      %588 = vmatprep.subr.bf16.mxu0 %v557
      %589 = vmatpush1.bf16.msra.mxu0 %v556
      %590 = vmatprep.subr.bf16.mxu0 %v559
      %591 = vmatpush1.bf16.msra.mxu0 %v558
      %592 = vmatprep.subr.bf16.mxu0 %v561
      %593 = vmatpush1.bf16.msra.mxu0 %v560
      %594 = vmatprep.subr.bf16.mxu0 %v563
      %595 = vmatpush1.bf16.msra.mxu0 %v562
      %596 = vmatprep.subr.bf16.mxu0 %v565
      %597 = vmatpush1.bf16.msra.mxu0 %v564
      %598 = vmatprep.subr.bf16.mxu0 0
      %599 = vmatpush1.bf16.msra.mxu0 0
      %600 = vmatprep.subr.bf16.mxu0 0
      %601 = vmatpush1.bf16.msra.mxu0 0
      %602 = vmatprep.subr.bf16.mxu0 0
      %603 = vmatpush1.bf16.msra.mxu0 0
      %604 = vmatprep.subr.bf16.mxu0 0
      %605 = vmatpush1.bf16.msra.mxu0 0
      %606 = vmatprep.subr.bf16.mxu0 0
      %607 = vmatpush1.bf16.msra.mxu0 0
      %608 = vmatprep.subr.bf16.mxu0 0
      %609 = vmatpush1.bf16.msra.mxu0 0
      %610 = vmatprep.subr.bf16.mxu0 0
      %611 = vmatpush1.bf16.msra.mxu0 0
      %612 = vmatprep.subr.bf16.mxu0 0
      %613 = vmatpush1.bf16.msra.mxu0 0
      %614 = vmatprep.mubr.bf16.mxu0 0
      %615 = vmatmul.mubr.bf16.gmra.mrb[0].mxu0 %v485
      %v616 = vpop.f32.mrb[0].mxu0
      %v617 = vadd.f32 %v199, %v616
      %v618 = vpop.f32.mrb[0].mxu0
      %v619 = vadd.f32 %v203, %v618
      %v620 = vpop.f32.mrb[0].mxu0
      %v621 = vpop.f32.mrb[0].mxu0
      %622 = vdwg.mxu0
      %v623 = vpack.c.bf16 %v617, %v617
      %v624 = vpack.c.bf16 %v619, %v619
      %v627 = vunpack.c.l.b16 %v623
      %v628 = vunpack.c.l.b16 %v624
      %v629 = vpack.c.b16 %v628, %v627
      %s631 = scalar_lea.vmem %s174, 16
      %632 = vst [vmem:[%s631] sm:$0xff] %v629
      %v633 = vld [vmem:[%s336] sm:$0xff]
      %v634 = vld [vmem:[%s336 + $0x8] sm:$0xff]
      %v635 = vld [vmem:[%s336 + $0x10] sm:$0xff]
      %v636 = vld [vmem:[%s336 + $0x18] sm:$0xff]
      %v637 = vld [vmem:[%s336 + $0x20] sm:$0xff]
      %v638 = vld [vmem:[%s336 + $0x28] sm:$0xff]
      %v639 = vld [vmem:[%s336 + $0x30] sm:$0xff]
      %v640 = vld [vmem:[%s336 + $0x38] sm:$0xff]
      %v641 = vld [vmem:[%s336 + $0x40] sm:$0xff]
      %v642 = vld [vmem:[%s336 + $0x48] sm:$0xff]
      %v643 = vld [vmem:[%s336 + $0x50] sm:$0xff]
      %v644 = vld [vmem:[%s336 + $0x58] sm:$0xff]
      %v645 = vld [vmem:[%s336 + $0x60] sm:$0xff]
      %v646 = vld [vmem:[%s336 + $0x68] sm:$0xff]
      %v647 = vld [vmem:[%s336 + $0x70] sm:$0xff]
      %v648 = vld [vmem:[%s336 + $0x78] sm:$0xff]
      %v665 = vunpack.c.l.b16 %v633
      %v666 = vunpack.c.h.b16 %v633
      %v667 = vunpack.c.l.b16 %v634
      %v668 = vunpack.c.h.b16 %v634
      %v669 = vunpack.c.l.b16 %v635
      %v670 = vunpack.c.h.b16 %v635
      %v671 = vunpack.c.l.b16 %v636
      %v672 = vunpack.c.h.b16 %v636
      %v673 = vunpack.c.l.b16 %v637
      %v674 = vunpack.c.h.b16 %v637
      %v675 = vunpack.c.l.b16 %v638
      %v676 = vunpack.c.h.b16 %v638
      %v677 = vunpack.c.l.b16 %v639
      %v678 = vunpack.c.h.b16 %v639
      %v679 = vunpack.c.l.b16 %v640
      %v680 = vunpack.c.h.b16 %v640
      %v681 = vunpack.c.l.b16 %v641
      %v682 = vunpack.c.h.b16 %v641
      %v683 = vunpack.c.l.b16 %v642
      %v684 = vunpack.c.h.b16 %v642
      %v685 = vunpack.c.l.b16 %v643
      %v686 = vunpack.c.h.b16 %v643
      %v687 = vunpack.c.l.b16 %v644
      %v688 = vunpack.c.h.b16 %v644
      %v689 = vunpack.c.l.b16 %v645
      %v690 = vunpack.c.h.b16 %v645
      %v691 = vunpack.c.l.b16 %v646
      %v692 = vunpack.c.h.b16 %v646
      %v693 = vunpack.c.l.b16 %v647
      %v694 = vunpack.c.h.b16 %v647
      %v695 = vunpack.c.l.b16 %v648
      %v696 = vunpack.c.h.b16 %v648
      %v697 = vpack.c.b16 %v667, %v665
      %v698 = vpack.c.b16 %v668, %v666
      %v699 = vpack.c.b16 %v671, %v669
      %v700 = vpack.c.b16 %v672, %v670
      %v701 = vpack.c.b16 %v675, %v673
      %v702 = vpack.c.b16 %v676, %v674
      %v703 = vpack.c.b16 %v679, %v677
      %v704 = vpack.c.b16 %v680, %v678
      %v705 = vpack.c.b16 %v683, %v681
      %v706 = vpack.c.b16 %v684, %v682
      %v707 = vpack.c.b16 %v687, %v685
      %v708 = vpack.c.b16 %v688, %v686
      %v709 = vpack.c.b16 %v691, %v689
      %v710 = vpack.c.b16 %v692, %v690
      %v711 = vpack.c.b16 %v695, %v693
      %v712 = vpack.c.b16 %v696, %v694
      %729 = vmatprep.subr.bf16.mxu0 %v698
      %730 = vmatpush1.bf16.msra.mxu0 %v697
      %731 = vmatprep.subr.bf16.mxu0 %v700
      %732 = vmatpush1.bf16.msra.mxu0 %v699
      %733 = vmatprep.subr.bf16.mxu0 %v702
      %734 = vmatpush1.bf16.msra.mxu0 %v701
      %735 = vmatprep.subr.bf16.mxu0 %v704
      %736 = vmatpush1.bf16.msra.mxu0 %v703
      %737 = vmatprep.subr.bf16.mxu0 %v706
      %738 = vmatpush1.bf16.msra.mxu0 %v705
      %739 = vmatprep.subr.bf16.mxu0 %v708
      %740 = vmatpush1.bf16.msra.mxu0 %v707
      %741 = vmatprep.subr.bf16.mxu0 %v710
      %742 = vmatpush1.bf16.msra.mxu0 %v709
      %743 = vmatprep.subr.bf16.mxu0 %v712
      %744 = vmatpush1.bf16.msra.mxu0 %v711
      %745 = vmatprep.subr.bf16.mxu0 0
      %746 = vmatpush1.bf16.msra.mxu0 0
      %747 = vmatprep.subr.bf16.mxu0 0
      %748 = vmatpush1.bf16.msra.mxu0 0
      %749 = vmatprep.subr.bf16.mxu0 0
      %750 = vmatpush1.bf16.msra.mxu0 0
      %751 = vmatprep.subr.bf16.mxu0 0
      %752 = vmatpush1.bf16.msra.mxu0 0
      %753 = vmatprep.subr.bf16.mxu0 0
      %754 = vmatpush1.bf16.msra.mxu0 0
      %755 = vmatprep.subr.bf16.mxu0 0
      %756 = vmatpush1.bf16.msra.mxu0 0
      %757 = vmatprep.subr.bf16.mxu0 0
      %758 = vmatpush1.bf16.msra.mxu0 0
      %759 = vmatprep.subr.bf16.mxu0 0
      %760 = vmatpush1.bf16.msra.mxu0 0
      %761 = vmatprep.mubr.bf16.mxu0 0
      %762 = vmatmul.mubr.bf16.gmra.mrb[0].mxu0 %v485
      %v763 = vpop.f32.mrb[0].mxu0
      %v764 = vadd.f32 %v199, %v763
      %v765 = vpop.f32.mrb[0].mxu0
      %v766 = vadd.f32 %v203, %v765
      %v767 = vpop.f32.mrb[0].mxu0
      %v768 = vpop.f32.mrb[0].mxu0
      %769 = vdwg.mxu0
      %v770 = vpack.c.bf16 %v764, %v764
      %v771 = vpack.c.bf16 %v766, %v766
      %v774 = vunpack.c.l.b16 %v770
      %v775 = vunpack.c.l.b16 %v771
      %v776 = vpack.c.b16 %v775, %v774
      %s778 = scalar_lea.vmem %s174, 24
      %779 = vst [vmem:[%s778] sm:$0xff] %v776
      %s780 = scalar_lea.vmem %s167, 8
      %v781 = vld [vmem:[%s780] sm:$0xf]
      %v782 = vld [vmem:[%s1] sm:$0xff]
      %v783 = vld [vmem:[%s1 + $0x8] sm:$0xff]
      %v784 = vld [vmem:[%s1 + $0x10] sm:$0xff]
      %v785 = vld [vmem:[%s1 + $0x18] sm:$0xff]
      %v786 = vld [vmem:[%s1 + $0x20] sm:$0xff]
      %v787 = vld [vmem:[%s1 + $0x28] sm:$0xff]
      %v788 = vld [vmem:[%s1 + $0x30] sm:$0xff]
      %v789 = vld [vmem:[%s1 + $0x38] sm:$0xff]
      %v790 = vld [vmem:[%s1 + $0x40] sm:$0xff]
      %v791 = vld [vmem:[%s1 + $0x48] sm:$0xff]
      %v792 = vld [vmem:[%s1 + $0x50] sm:$0xff]
      %v793 = vld [vmem:[%s1 + $0x58] sm:$0xff]
      %v794 = vld [vmem:[%s1 + $0x60] sm:$0xff]
      %v795 = vld [vmem:[%s1 + $0x68] sm:$0xff]
      %v796 = vld [vmem:[%s1 + $0x70] sm:$0xff]
      %v797 = vld [vmem:[%s1 + $0x78] sm:$0xff]
      %v814 = vunpack.c.l.b16 %v782
      %v815 = vunpack.c.h.b16 %v782
      %v816 = vunpack.c.l.b16 %v783
      %v817 = vunpack.c.h.b16 %v783
      %v818 = vunpack.c.l.b16 %v784
      %v819 = vunpack.c.h.b16 %v784
      %v820 = vunpack.c.l.b16 %v785
      %v821 = vunpack.c.h.b16 %v785
      %v822 = vunpack.c.l.b16 %v786
      %v823 = vunpack.c.h.b16 %v786
      %v824 = vunpack.c.l.b16 %v787
      %v825 = vunpack.c.h.b16 %v787
      %v826 = vunpack.c.l.b16 %v788
      %v827 = vunpack.c.h.b16 %v788
      %v828 = vunpack.c.l.b16 %v789
      %v829 = vunpack.c.h.b16 %v789
      %v830 = vunpack.c.l.b16 %v790
      %v831 = vunpack.c.h.b16 %v790
      %v832 = vunpack.c.l.b16 %v791
      %v833 = vunpack.c.h.b16 %v791
      %v834 = vunpack.c.l.b16 %v792
      %v835 = vunpack.c.h.b16 %v792
      %v836 = vunpack.c.l.b16 %v793
      %v837 = vunpack.c.h.b16 %v793
      %v838 = vunpack.c.l.b16 %v794
      %v839 = vunpack.c.h.b16 %v794
      %v840 = vunpack.c.l.b16 %v795
      %v841 = vunpack.c.h.b16 %v795
      %v842 = vunpack.c.l.b16 %v796
      %v843 = vunpack.c.h.b16 %v796
      %v844 = vunpack.c.l.b16 %v797
      %v845 = vunpack.c.h.b16 %v797
      %v846 = vpack.c.b16 %v816, %v814
      %v847 = vpack.c.b16 %v817, %v815
      %v848 = vpack.c.b16 %v820, %v818
      %v849 = vpack.c.b16 %v821, %v819
      %v850 = vpack.c.b16 %v824, %v822
      %v851 = vpack.c.b16 %v825, %v823
      %v852 = vpack.c.b16 %v828, %v826
      %v853 = vpack.c.b16 %v829, %v827
      %v854 = vpack.c.b16 %v832, %v830
      %v855 = vpack.c.b16 %v833, %v831
      %v856 = vpack.c.b16 %v836, %v834
      %v857 = vpack.c.b16 %v837, %v835
      %v858 = vpack.c.b16 %v840, %v838
      %v859 = vpack.c.b16 %v841, %v839
      %v860 = vpack.c.b16 %v844, %v842
      %v861 = vpack.c.b16 %v845, %v843
      %878 = vmatprep.subr.bf16.mxu0 %v847
      %879 = vmatpush1.bf16.msra.mxu0 %v846
      %880 = vmatprep.subr.bf16.mxu0 %v849
      %881 = vmatpush1.bf16.msra.mxu0 %v848
      %882 = vmatprep.subr.bf16.mxu0 %v851
      %883 = vmatpush1.bf16.msra.mxu0 %v850
      %884 = vmatprep.subr.bf16.mxu0 %v853
      %885 = vmatpush1.bf16.msra.mxu0 %v852
      %886 = vmatprep.subr.bf16.mxu0 %v855
      %887 = vmatpush1.bf16.msra.mxu0 %v854
      %888 = vmatprep.subr.bf16.mxu0 %v857
      %889 = vmatpush1.bf16.msra.mxu0 %v856
      %890 = vmatprep.subr.bf16.mxu0 %v859
      %891 = vmatpush1.bf16.msra.mxu0 %v858
      %892 = vmatprep.subr.bf16.mxu0 %v861
      %893 = vmatpush1.bf16.msra.mxu0 %v860
      %894 = vmatprep.subr.bf16.mxu0 0
      %895 = vmatpush1.bf16.msra.mxu0 0
      %896 = vmatprep.subr.bf16.mxu0 0
      %897 = vmatpush1.bf16.msra.mxu0 0
      %898 = vmatprep.subr.bf16.mxu0 0
      %899 = vmatpush1.bf16.msra.mxu0 0
      %900 = vmatprep.subr.bf16.mxu0 0
      %901 = vmatpush1.bf16.msra.mxu0 0
      %902 = vmatprep.subr.bf16.mxu0 0
      %903 = vmatpush1.bf16.msra.mxu0 0
      %904 = vmatprep.subr.bf16.mxu0 0
      %905 = vmatpush1.bf16.msra.mxu0 0
      %906 = vmatprep.subr.bf16.mxu0 0
      %907 = vmatpush1.bf16.msra.mxu0 0
      %908 = vmatprep.subr.bf16.mxu0 0
      %909 = vmatpush1.bf16.msra.mxu0 0
      %910 = vmatprep.mubr.bf16.mxu0 0
      %911 = vmatmul.mubr.bf16.gmra.mrb[0].mxu0 %v781
      %v912 = vpop.f32.mrb[0].mxu0
      %v913 = vadd.f32 %v199, %v912
      %v914 = vpop.f32.mrb[0].mxu0
      %v915 = vadd.f32 %v203, %v914
      %v916 = vpop.f32.mrb[0].mxu0
      %v917 = vpop.f32.mrb[0].mxu0
      %918 = vdwg.mxu0
      %v919 = vpack.c.bf16 %v913, %v913
      %v920 = vpack.c.bf16 %v915, %v915
      %v923 = vunpack.c.l.b16 %v919
      %v924 = vunpack.c.l.b16 %v920
      %v925 = vpack.c.b16 %v924, %v923
      %s927 = scalar_lea.vmem %s174, 32
      %928 = vst [vmem:[%s927] sm:$0xff] %v925
      %v929 = vld [vmem:[%s336] sm:$0xff]
      %v930 = vld [vmem:[%s336 + $0x8] sm:$0xff]
      %v931 = vld [vmem:[%s336 + $0x10] sm:$0xff]
      %v932 = vld [vmem:[%s336 + $0x18] sm:$0xff]
      %v933 = vld [vmem:[%s336 + $0x20] sm:$0xff]
      %v934 = vld [vmem:[%s336 + $0x28] sm:$0xff]
      %v935 = vld [vmem:[%s336 + $0x30] sm:$0xff]
      %v936 = vld [vmem:[%s336 + $0x38] sm:$0xff]
      %v937 = vld [vmem:[%s336 + $0x40] sm:$0xff]
      %v938 = vld [vmem:[%s336 + $0x48] sm:$0xff]
      %v939 = vld [vmem:[%s336 + $0x50] sm:$0xff]
      %v940 = vld [vmem:[%s336 + $0x58] sm:$0xff]
      %v941 = vld [vmem:[%s336 + $0x60] sm:$0xff]
      %v942 = vld [vmem:[%s336 + $0x68] sm:$0xff]
      %v943 = vld [vmem:[%s336 + $0x70] sm:$0xff]
      %v944 = vld [vmem:[%s336 + $0x78] sm:$0xff]
      %v961 = vunpack.c.l.b16 %v929
      %v962 = vunpack.c.h.b16 %v929
      %v963 = vunpack.c.l.b16 %v930
      %v964 = vunpack.c.h.b16 %v930
      %v965 = vunpack.c.l.b16 %v931
      %v966 = vunpack.c.h.b16 %v931
      %v967 = vunpack.c.l.b16 %v932
      %v968 = vunpack.c.h.b16 %v932
      %v969 = vunpack.c.l.b16 %v933
      %v970 = vunpack.c.h.b16 %v933
      %v971 = vunpack.c.l.b16 %v934
      %v972 = vunpack.c.h.b16 %v934
      %v973 = vunpack.c.l.b16 %v935
      %v974 = vunpack.c.h.b16 %v935
      %v975 = vunpack.c.l.b16 %v936
      %v976 = vunpack.c.h.b16 %v936
      %v977 = vunpack.c.l.b16 %v937
      %v978 = vunpack.c.h.b16 %v937
      %v979 = vunpack.c.l.b16 %v938
      %v980 = vunpack.c.h.b16 %v938
      %v981 = vunpack.c.l.b16 %v939
      %v982 = vunpack.c.h.b16 %v939
      %v983 = vunpack.c.l.b16 %v940
      %v984 = vunpack.c.h.b16 %v940
      %v985 = vunpack.c.l.b16 %v941
      %v986 = vunpack.c.h.b16 %v941
      %v987 = vunpack.c.l.b16 %v942
      %v988 = vunpack.c.h.b16 %v942
      %v989 = vunpack.c.l.b16 %v943
      %v990 = vunpack.c.h.b16 %v943
      %v991 = vunpack.c.l.b16 %v944
      %v992 = vunpack.c.h.b16 %v944
      %v993 = vpack.c.b16 %v963, %v961
      %v994 = vpack.c.b16 %v964, %v962
      %v995 = vpack.c.b16 %v967, %v965
      %v996 = vpack.c.b16 %v968, %v966
      %v997 = vpack.c.b16 %v971, %v969
      %v998 = vpack.c.b16 %v972, %v970
      %v999 = vpack.c.b16 %v975, %v973
      %v1000 = vpack.c.b16 %v976, %v974
      %v1001 = vpack.c.b16 %v979, %v977
      %v1002 = vpack.c.b16 %v980, %v978
      %v1003 = vpack.c.b16 %v983, %v981
      %v1004 = vpack.c.b16 %v984, %v982
      %v1005 = vpack.c.b16 %v987, %v985
      %v1006 = vpack.c.b16 %v988, %v986
      %v1007 = vpack.c.b16 %v991, %v989
      %v1008 = vpack.c.b16 %v992, %v990
      %1025 = vmatprep.subr.bf16.mxu0 %v994
      %1026 = vmatpush1.bf16.msra.mxu0 %v993
      %1027 = vmatprep.subr.bf16.mxu0 %v996
      %1028 = vmatpush1.bf16.msra.mxu0 %v995
      %1029 = vmatprep.subr.bf16.mxu0 %v998
      %1030 = vmatpush1.bf16.msra.mxu0 %v997
      %1031 = vmatprep.subr.bf16.mxu0 %v1000
      %1032 = vmatpush1.bf16.msra.mxu0 %v999
      %1033 = vmatprep.subr.bf16.mxu0 %v1002
      %1034 = vmatpush1.bf16.msra.mxu0 %v1001
      %1035 = vmatprep.subr.bf16.mxu0 %v1004
      %1036 = vmatpush1.bf16.msra.mxu0 %v1003
      %1037 = vmatprep.subr.bf16.mxu0 %v1006
      %1038 = vmatpush1.bf16.msra.mxu0 %v1005
      %1039 = vmatprep.subr.bf16.mxu0 %v1008
      %1040 = vmatpush1.bf16.msra.mxu0 %v1007
      %1041 = vmatprep.subr.bf16.mxu0 0
      %1042 = vmatpush1.bf16.msra.mxu0 0
      %1043 = vmatprep.subr.bf16.mxu0 0
      %1044 = vmatpush1.bf16.msra.mxu0 0
      %1045 = vmatprep.subr.bf16.mxu0 0
      %1046 = vmatpush1.bf16.msra.mxu0 0
      %1047 = vmatprep.subr.bf16.mxu0 0
      %1048 = vmatpush1.bf16.msra.mxu0 0
      %1049 = vmatprep.subr.bf16.mxu0 0
      %1050 = vmatpush1.bf16.msra.mxu0 0
      %1051 = vmatprep.subr.bf16.mxu0 0
      %1052 = vmatpush1.bf16.msra.mxu0 0
      %1053 = vmatprep.subr.bf16.mxu0 0
      %1054 = vmatpush1.bf16.msra.mxu0 0
      %1055 = vmatprep.subr.bf16.mxu0 0
      %1056 = vmatpush1.bf16.msra.mxu0 0
      %1057 = vmatprep.mubr.bf16.mxu0 0
      %1058 = vmatmul.mubr.bf16.gmra.mrb[0].mxu0 %v781
      %v1059 = vpop.f32.mrb[0].mxu0
      %v1060 = vadd.f32 %v199, %v1059
      %v1061 = vpop.f32.mrb[0].mxu0
      %v1062 = vadd.f32 %v203, %v1061
      %v1063 = vpop.f32.mrb[0].mxu0
      %v1064 = vpop.f32.mrb[0].mxu0
      %1065 = vdwg.mxu0
      %v1066 = vpack.c.bf16 %v1060, %v1060
      %v1067 = vpack.c.bf16 %v1062, %v1062
      %v1070 = vunpack.c.l.b16 %v1066
      %v1071 = vunpack.c.l.b16 %v1067
      %v1072 = vpack.c.b16 %v1071, %v1070
      %s1074 = scalar_lea.vmem %s174, 40
      %1075 = vst [vmem:[%s1074] sm:$0xff] %v1072
      %s1076 = scalar_lea.vmem %s167, 12
      %v1077 = vld [vmem:[%s1076] sm:$0xf]
      %v1078 = vld [vmem:[%s1] sm:$0xff]
      %v1079 = vld [vmem:[%s1 + $0x8] sm:$0xff]
      %v1080 = vld [vmem:[%s1 + $0x10] sm:$0xff]
      %v1081 = vld [vmem:[%s1 + $0x18] sm:$0xff]
      %v1082 = vld [vmem:[%s1 + $0x20] sm:$0xff]
      %v1083 = vld [vmem:[%s1 + $0x28] sm:$0xff]
      %v1084 = vld [vmem:[%s1 + $0x30] sm:$0xff]
      %v1085 = vld [vmem:[%s1 + $0x38] sm:$0xff]
      %v1086 = vld [vmem:[%s1 + $0x40] sm:$0xff]
      %v1087 = vld [vmem:[%s1 + $0x48] sm:$0xff]
      %v1088 = vld [vmem:[%s1 + $0x50] sm:$0xff]
      %v1089 = vld [vmem:[%s1 + $0x58] sm:$0xff]
      %v1090 = vld [vmem:[%s1 + $0x60] sm:$0xff]
      %v1091 = vld [vmem:[%s1 + $0x68] sm:$0xff]
      %v1092 = vld [vmem:[%s1 + $0x70] sm:$0xff]
      %v1093 = vld [vmem:[%s1 + $0x78] sm:$0xff]
      %v1110 = vunpack.c.l.b16 %v1078
      %v1111 = vunpack.c.h.b16 %v1078
      %v1112 = vunpack.c.l.b16 %v1079
      %v1113 = vunpack.c.h.b16 %v1079
      %v1114 = vunpack.c.l.b16 %v1080
      %v1115 = vunpack.c.h.b16 %v1080
      %v1116 = vunpack.c.l.b16 %v1081
      %v1117 = vunpack.c.h.b16 %v1081
      %v1118 = vunpack.c.l.b16 %v1082
      %v1119 = vunpack.c.h.b16 %v1082
      %v1120 = vunpack.c.l.b16 %v1083
      %v1121 = vunpack.c.h.b16 %v1083
      %v1122 = vunpack.c.l.b16 %v1084
      %v1123 = vunpack.c.h.b16 %v1084
      %v1124 = vunpack.c.l.b16 %v1085
      %v1125 = vunpack.c.h.b16 %v1085
      %v1126 = vunpack.c.l.b16 %v1086
      %v1127 = vunpack.c.h.b16 %v1086
      %v1128 = vunpack.c.l.b16 %v1087
      %v1129 = vunpack.c.h.b16 %v1087
      %v1130 = vunpack.c.l.b16 %v1088
      %v1131 = vunpack.c.h.b16 %v1088
      %v1132 = vunpack.c.l.b16 %v1089
      %v1133 = vunpack.c.h.b16 %v1089
      %v1134 = vunpack.c.l.b16 %v1090
      %v1135 = vunpack.c.h.b16 %v1090
      %v1136 = vunpack.c.l.b16 %v1091
      %v1137 = vunpack.c.h.b16 %v1091
      %v1138 = vunpack.c.l.b16 %v1092
      %v1139 = vunpack.c.h.b16 %v1092
      %v1140 = vunpack.c.l.b16 %v1093
      %v1141 = vunpack.c.h.b16 %v1093
      %v1142 = vpack.c.b16 %v1112, %v1110
      %v1143 = vpack.c.b16 %v1113, %v1111
      %v1144 = vpack.c.b16 %v1116, %v1114
      %v1145 = vpack.c.b16 %v1117, %v1115
      %v1146 = vpack.c.b16 %v1120, %v1118
      %v1147 = vpack.c.b16 %v1121, %v1119
      %v1148 = vpack.c.b16 %v1124, %v1122
      %v1149 = vpack.c.b16 %v1125, %v1123
      %v1150 = vpack.c.b16 %v1128, %v1126
      %v1151 = vpack.c.b16 %v1129, %v1127
      %v1152 = vpack.c.b16 %v1132, %v1130
      %v1153 = vpack.c.b16 %v1133, %v1131
      %v1154 = vpack.c.b16 %v1136, %v1134
      %v1155 = vpack.c.b16 %v1137, %v1135
      %v1156 = vpack.c.b16 %v1140, %v1138
      %v1157 = vpack.c.b16 %v1141, %v1139
      %1174 = vmatprep.subr.bf16.mxu0 %v1143
      %1175 = vmatpush1.bf16.msra.mxu0 %v1142
      %1176 = vmatprep.subr.bf16.mxu0 %v1145
      %1177 = vmatpush1.bf16.msra.mxu0 %v1144
      %1178 = vmatprep.subr.bf16.mxu0 %v1147
      %1179 = vmatpush1.bf16.msra.mxu0 %v1146
      %1180 = vmatprep.subr.bf16.mxu0 %v1149
      %1181 = vmatpush1.bf16.msra.mxu0 %v1148
      %1182 = vmatprep.subr.bf16.mxu0 %v1151
      %1183 = vmatpush1.bf16.msra.mxu0 %v1150
      %1184 = vmatprep.subr.bf16.mxu0 %v1153
      %1185 = vmatpush1.bf16.msra.mxu0 %v1152
      %1186 = vmatprep.subr.bf16.mxu0 %v1155
      %1187 = vmatpush1.bf16.msra.mxu0 %v1154
      %1188 = vmatprep.subr.bf16.mxu0 %v1157
      %1189 = vmatpush1.bf16.msra.mxu0 %v1156
      %1190 = vmatprep.subr.bf16.mxu0 0
      %1191 = vmatpush1.bf16.msra.mxu0 0
      %1192 = vmatprep.subr.bf16.mxu0 0
      %1193 = vmatpush1.bf16.msra.mxu0 0
      %1194 = vmatprep.subr.bf16.mxu0 0
      %1195 = vmatpush1.bf16.msra.mxu0 0
      %1196 = vmatprep.subr.bf16.mxu0 0
      %1197 = vmatpush1.bf16.msra.mxu0 0
      %1198 = vmatprep.subr.bf16.mxu0 0
      %1199 = vmatpush1.bf16.msra.mxu0 0
      %1200 = vmatprep.subr.bf16.mxu0 0
      %1201 = vmatpush1.bf16.msra.mxu0 0
      %1202 = vmatprep.subr.bf16.mxu0 0
      %1203 = vmatpush1.bf16.msra.mxu0 0
      %1204 = vmatprep.subr.bf16.mxu0 0
      %1205 = vmatpush1.bf16.msra.mxu0 0
      %1206 = vmatprep.mubr.bf16.mxu0 0
      %1207 = vmatmul.mubr.bf16.gmra.mrb[0].mxu0 %v1077
      %v1208 = vpop.f32.mrb[0].mxu0
      %v1209 = vadd.f32 %v199, %v1208
      %v1210 = vpop.f32.mrb[0].mxu0
      %v1211 = vadd.f32 %v203, %v1210
      %v1212 = vpop.f32.mrb[0].mxu0
      %v1213 = vpop.f32.mrb[0].mxu0
      %1214 = vdwg.mxu0
      %v1215 = vpack.c.bf16 %v1209, %v1209
      %v1216 = vpack.c.bf16 %v1211, %v1211
      %v1219 = vunpack.c.l.b16 %v1215
      %v1220 = vunpack.c.l.b16 %v1216
      %v1221 = vpack.c.b16 %v1220, %v1219
      %s1223 = scalar_lea.vmem %s174, 48
      %1224 = vst [vmem:[%s1223] sm:$0xff] %v1221
      %v1225 = vld [vmem:[%s336] sm:$0xff]
      %v1226 = vld [vmem:[%s336 + $0x8] sm:$0xff]
      %v1227 = vld [vmem:[%s336 + $0x10] sm:$0xff]
      %v1228 = vld [vmem:[%s336 + $0x18] sm:$0xff]
      %v1229 = vld [vmem:[%s336 + $0x20] sm:$0xff]
      %v1230 = vld [vmem:[%s336 + $0x28] sm:$0xff]
      %v1231 = vld [vmem:[%s336 + $0x30] sm:$0xff]
      %v1232 = vld [vmem:[%s336 + $0x38] sm:$0xff]
      %v1233 = vld [vmem:[%s336 + $0x40] sm:$0xff]
      %v1234 = vld [vmem:[%s336 + $0x48] sm:$0xff]
      %v1235 = vld [vmem:[%s336 + $0x50] sm:$0xff]
      %v1236 = vld [vmem:[%s336 + $0x58] sm:$0xff]
      %v1237 = vld [vmem:[%s336 + $0x60] sm:$0xff]
      %v1238 = vld [vmem:[%s336 + $0x68] sm:$0xff]
      %v1239 = vld [vmem:[%s336 + $0x70] sm:$0xff]
      %v1240 = vld [vmem:[%s336 + $0x78] sm:$0xff]
      %v1257 = vunpack.c.l.b16 %v1225
      %v1258 = vunpack.c.h.b16 %v1225
      %v1259 = vunpack.c.l.b16 %v1226
      %v1260 = vunpack.c.h.b16 %v1226
      %v1261 = vunpack.c.l.b16 %v1227
      %v1262 = vunpack.c.h.b16 %v1227
      %v1263 = vunpack.c.l.b16 %v1228
      %v1264 = vunpack.c.h.b16 %v1228
      %v1265 = vunpack.c.l.b16 %v1229
      %v1266 = vunpack.c.h.b16 %v1229
      %v1267 = vunpack.c.l.b16 %v1230
      %v1268 = vunpack.c.h.b16 %v1230
      %v1269 = vunpack.c.l.b16 %v1231
      %v1270 = vunpack.c.h.b16 %v1231
      %v1271 = vunpack.c.l.b16 %v1232
      %v1272 = vunpack.c.h.b16 %v1232
      %v1273 = vunpack.c.l.b16 %v1233
      %v1274 = vunpack.c.h.b16 %v1233
      %v1275 = vunpack.c.l.b16 %v1234
      %v1276 = vunpack.c.h.b16 %v1234
      %v1277 = vunpack.c.l.b16 %v1235
      %v1278 = vunpack.c.h.b16 %v1235
      %v1279 = vunpack.c.l.b16 %v1236
      %v1280 = vunpack.c.h.b16 %v1236
      %v1281 = vunpack.c.l.b16 %v1237
      %v1282 = vunpack.c.h.b16 %v1237
      %v1283 = vunpack.c.l.b16 %v1238
      %v1284 = vunpack.c.h.b16 %v1238
      %v1285 = vunpack.c.l.b16 %v1239
      %v1286 = vunpack.c.h.b16 %v1239
      %v1287 = vunpack.c.l.b16 %v1240
      %v1288 = vunpack.c.h.b16 %v1240
      %v1289 = vpack.c.b16 %v1259, %v1257
      %v1290 = vpack.c.b16 %v1260, %v1258
      %v1291 = vpack.c.b16 %v1263, %v1261
      %v1292 = vpack.c.b16 %v1264, %v1262
      %v1293 = vpack.c.b16 %v1267, %v1265
      %v1294 = vpack.c.b16 %v1268, %v1266
      %v1295 = vpack.c.b16 %v1271, %v1269
      %v1296 = vpack.c.b16 %v1272, %v1270
      %v1297 = vpack.c.b16 %v1275, %v1273
      %v1298 = vpack.c.b16 %v1276, %v1274
      %v1299 = vpack.c.b16 %v1279, %v1277
      %v1300 = vpack.c.b16 %v1280, %v1278
      %v1301 = vpack.c.b16 %v1283, %v1281
      %v1302 = vpack.c.b16 %v1284, %v1282
      %v1303 = vpack.c.b16 %v1287, %v1285
      %v1304 = vpack.c.b16 %v1288, %v1286
      %1321 = vmatprep.subr.bf16.mxu0 %v1290
      %1322 = vmatpush1.bf16.msra.mxu0 %v1289
      %1323 = vmatprep.subr.bf16.mxu0 %v1292
      %1324 = vmatpush1.bf16.msra.mxu0 %v1291
      %1325 = vmatprep.subr.bf16.mxu0 %v1294
      %1326 = vmatpush1.bf16.msra.mxu0 %v1293
      %1327 = vmatprep.subr.bf16.mxu0 %v1296
      %1328 = vmatpush1.bf16.msra.mxu0 %v1295
      %1329 = vmatprep.subr.bf16.mxu0 %v1298
      %1330 = vmatpush1.bf16.msra.mxu0 %v1297
      %1331 = vmatprep.subr.bf16.mxu0 %v1300
      %1332 = vmatpush1.bf16.msra.mxu0 %v1299
      %1333 = vmatprep.subr.bf16.mxu0 %v1302
      %1334 = vmatpush1.bf16.msra.mxu0 %v1301
      %1335 = vmatprep.subr.bf16.mxu0 %v1304
      %1336 = vmatpush1.bf16.msra.mxu0 %v1303
      %1337 = vmatprep.subr.bf16.mxu0 0
      %1338 = vmatpush1.bf16.msra.mxu0 0
      %1339 = vmatprep.subr.bf16.mxu0 0
      %1340 = vmatpush1.bf16.msra.mxu0 0
      %1341 = vmatprep.subr.bf16.mxu0 0
      %1342 = vmatpush1.bf16.msra.mxu0 0
      %1343 = vmatprep.subr.bf16.mxu0 0
      %1344 = vmatpush1.bf16.msra.mxu0 0
      %1345 = vmatprep.subr.bf16.mxu0 0
      %1346 = vmatpush1.bf16.msra.mxu0 0
      %1347 = vmatprep.subr.bf16.mxu0 0
      %1348 = vmatpush1.bf16.msra.mxu0 0
      %1349 = vmatprep.subr.bf16.mxu0 0
      %1350 = vmatpush1.bf16.msra.mxu0 0
      %1351 = vmatprep.subr.bf16.mxu0 0
      %1352 = vmatpush1.bf16.msra.mxu0 0
      %1353 = vmatprep.mubr.bf16.mxu0 0
      %1354 = vmatmul.mubr.bf16.gmra.mrb[0].mxu0 %v1077
      %v1355 = vpop.f32.mrb[0].mxu0
      %v1356 = vadd.f32 %v199, %v1355
      %v1357 = vpop.f32.mrb[0].mxu0
      %v1358 = vadd.f32 %v203, %v1357
      %v1359 = vpop.f32.mrb[0].mxu0
      %v1360 = vpop.f32.mrb[0].mxu0
      %1361 = vdwg.mxu0
      %v1362 = vpack.c.bf16 %v1356, %v1356
      %v1363 = vpack.c.bf16 %v1358, %v1358
      %v1366 = vunpack.c.l.b16 %v1362
      %v1367 = vunpack.c.l.b16 %v1363
      %v1368 = vpack.c.b16 %v1367, %v1366
      %s1370 = scalar_lea.vmem %s174, 56
      %1371 = vst [vmem:[%s1370] sm:$0xff] %v1368
      %s1372 = scalar_lea.vmem %s167, 16
      %v1373 = vld [vmem:[%s1372] sm:$0xf]
      %v1374 = vld [vmem:[%s1] sm:$0xff]
      %v1375 = vld [vmem:[%s1 + $0x8] sm:$0xff]
      %v1376 = vld [vmem:[%s1 + $0x10] sm:$0xff]
      %v1377 = vld [vmem:[%s1 + $0x18] sm:$0xff]
      %v1378 = vld [vmem:[%s1 + $0x20] sm:$0xff]
      %v1379 = vld [vmem:[%s1 + $0x28] sm:$0xff]
      %v1380 = vld [vmem:[%s1 + $0x30] sm:$0xff]
      %v1381 = vld [vmem:[%s1 + $0x38] sm:$0xff]
      %v1382 = vld [vmem:[%s1 + $0x40] sm:$0xff]
      %v1383 = vld [vmem:[%s1 + $0x48] sm:$0xff]
      %v1384 = vld [vmem:[%s1 + $0x50] sm:$0xff]
      %v1385 = vld [vmem:[%s1 + $0x58] sm:$0xff]
      %v1386 = vld [vmem:[%s1 + $0x60] sm:$0xff]
      %v1387 = vld [vmem:[%s1 + $0x68] sm:$0xff]
      %v1388 = vld [vmem:[%s1 + $0x70] sm:$0xff]
      %v1389 = vld [vmem:[%s1 + $0x78] sm:$0xff]
      %v1406 = vunpack.c.l.b16 %v1374
      %v1407 = vunpack.c.h.b16 %v1374
      %v1408 = vunpack.c.l.b16 %v1375
      %v1409 = vunpack.c.h.b16 %v1375
      %v1410 = vunpack.c.l.b16 %v1376
      %v1411 = vunpack.c.h.b16 %v1376
      %v1412 = vunpack.c.l.b16 %v1377
      %v1413 = vunpack.c.h.b16 %v1377
      %v1414 = vunpack.c.l.b16 %v1378
      %v1415 = vunpack.c.h.b16 %v1378
      %v1416 = vunpack.c.l.b16 %v1379
      %v1417 = vunpack.c.h.b16 %v1379
      %v1418 = vunpack.c.l.b16 %v1380
      %v1419 = vunpack.c.h.b16 %v1380
      %v1420 = vunpack.c.l.b16 %v1381
      %v1421 = vunpack.c.h.b16 %v1381
      %v1422 = vunpack.c.l.b16 %v1382
      %v1423 = vunpack.c.h.b16 %v1382
      %v1424 = vunpack.c.l.b16 %v1383
      %v1425 = vunpack.c.h.b16 %v1383
      %v1426 = vunpack.c.l.b16 %v1384
      %v1427 = vunpack.c.h.b16 %v1384
      %v1428 = vunpack.c.l.b16 %v1385
      %v1429 = vunpack.c.h.b16 %v1385
      %v1430 = vunpack.c.l.b16 %v1386
      %v1431 = vunpack.c.h.b16 %v1386
      %v1432 = vunpack.c.l.b16 %v1387
      %v1433 = vunpack.c.h.b16 %v1387
      %v1434 = vunpack.c.l.b16 %v1388
      %v1435 = vunpack.c.h.b16 %v1388
      %v1436 = vunpack.c.l.b16 %v1389
      %v1437 = vunpack.c.h.b16 %v1389
      %v1438 = vpack.c.b16 %v1408, %v1406
      %v1439 = vpack.c.b16 %v1409, %v1407
      %v1440 = vpack.c.b16 %v1412, %v1410
      %v1441 = vpack.c.b16 %v1413, %v1411
      %v1442 = vpack.c.b16 %v1416, %v1414
      %v1443 = vpack.c.b16 %v1417, %v1415
      %v1444 = vpack.c.b16 %v1420, %v1418
      %v1445 = vpack.c.b16 %v1421, %v1419
      %v1446 = vpack.c.b16 %v1424, %v1422
      %v1447 = vpack.c.b16 %v1425, %v1423
      %v1448 = vpack.c.b16 %v1428, %v1426
      %v1449 = vpack.c.b16 %v1429, %v1427
      %v1450 = vpack.c.b16 %v1432, %v1430
      %v1451 = vpack.c.b16 %v1433, %v1431
      %v1452 = vpack.c.b16 %v1436, %v1434
      %v1453 = vpack.c.b16 %v1437, %v1435
      %1470 = vmatprep.subr.bf16.mxu0 %v1439
      %1471 = vmatpush1.bf16.msra.mxu0 %v1438
      %1472 = vmatprep.subr.bf16.mxu0 %v1441
      %1473 = vmatpush1.bf16.msra.mxu0 %v1440
      %1474 = vmatprep.subr.bf16.mxu0 %v1443
      %1475 = vmatpush1.bf16.msra.mxu0 %v1442
      %1476 = vmatprep.subr.bf16.mxu0 %v1445
      %1477 = vmatpush1.bf16.msra.mxu0 %v1444
      %1478 = vmatprep.subr.bf16.mxu0 %v1447
      %1479 = vmatpush1.bf16.msra.mxu0 %v1446
      %1480 = vmatprep.subr.bf16.mxu0 %v1449
      %1481 = vmatpush1.bf16.msra.mxu0 %v1448
      %1482 = vmatprep.subr.bf16.mxu0 %v1451
      %1483 = vmatpush1.bf16.msra.mxu0 %v1450
      %1484 = vmatprep.subr.bf16.mxu0 %v1453
      %1485 = vmatpush1.bf16.msra.mxu0 %v1452
      %1486 = vmatprep.subr.bf16.mxu0 0
      %1487 = vmatpush1.bf16.msra.mxu0 0
      %1488 = vmatprep.subr.bf16.mxu0 0
      %1489 = vmatpush1.bf16.msra.mxu0 0
      %1490 = vmatprep.subr.bf16.mxu0 0
      %1491 = vmatpush1.bf16.msra.mxu0 0
      %1492 = vmatprep.subr.bf16.mxu0 0
      %1493 = vmatpush1.bf16.msra.mxu0 0
      %1494 = vmatprep.subr.bf16.mxu0 0
      %1495 = vmatpush1.bf16.msra.mxu0 0
      %1496 = vmatprep.subr.bf16.mxu0 0
      %1497 = vmatpush1.bf16.msra.mxu0 0
      %1498 = vmatprep.subr.bf16.mxu0 0
      %1499 = vmatpush1.bf16.msra.mxu0 0
      %1500 = vmatprep.subr.bf16.mxu0 0
      %1501 = vmatpush1.bf16.msra.mxu0 0
      %1502 = vmatprep.mubr.bf16.mxu0 0
      %1503 = vmatmul.mubr.bf16.gmra.mrb[0].mxu0 %v1373
      %v1504 = vpop.f32.mrb[0].mxu0
      %v1505 = vadd.f32 %v199, %v1504
      %v1506 = vpop.f32.mrb[0].mxu0
      %v1507 = vadd.f32 %v203, %v1506
      %v1508 = vpop.f32.mrb[0].mxu0
      %v1509 = vpop.f32.mrb[0].mxu0
      %1510 = vdwg.mxu0
      %v1511 = vpack.c.bf16 %v1505, %v1505
      %v1512 = vpack.c.bf16 %v1507, %v1507
      %v1515 = vunpack.c.l.b16 %v1511
      %v1516 = vunpack.c.l.b16 %v1512
      %v1517 = vpack.c.b16 %v1516, %v1515
      %s1519 = scalar_lea.vmem %s174, 64
      %1520 = vst [vmem:[%s1519] sm:$0xff] %v1517
      %v1521 = vld [vmem:[%s336] sm:$0xff]
      %v1522 = vld [vmem:[%s336 + $0x8] sm:$0xff]
      %v1523 = vld [vmem:[%s336 + $0x10] sm:$0xff]
      %v1524 = vld [vmem:[%s336 + $0x18] sm:$0xff]
      %v1525 = vld [vmem:[%s336 + $0x20] sm:$0xff]
      %v1526 = vld [vmem:[%s336 + $0x28] sm:$0xff]
      %v1527 = vld [vmem:[%s336 + $0x30] sm:$0xff]
      %v1528 = vld [vmem:[%s336 + $0x38] sm:$0xff]
      %v1529 = vld [vmem:[%s336 + $0x40] sm:$0xff]
      %v1530 = vld [vmem:[%s336 + $0x48] sm:$0xff]
      %v1531 = vld [vmem:[%s336 + $0x50] sm:$0xff]
      %v1532 = vld [vmem:[%s336 + $0x58] sm:$0xff]
      %v1533 = vld [vmem:[%s336 + $0x60] sm:$0xff]
      %v1534 = vld [vmem:[%s336 + $0x68] sm:$0xff]
      %v1535 = vld [vmem:[%s336 + $0x70] sm:$0xff]
      %v1536 = vld [vmem:[%s336 + $0x78] sm:$0xff]
      %v1553 = vunpack.c.l.b16 %v1521
      %v1554 = vunpack.c.h.b16 %v1521
      %v1555 = vunpack.c.l.b16 %v1522
      %v1556 = vunpack.c.h.b16 %v1522
      %v1557 = vunpack.c.l.b16 %v1523
      %v1558 = vunpack.c.h.b16 %v1523
      %v1559 = vunpack.c.l.b16 %v1524
      %v1560 = vunpack.c.h.b16 %v1524
      %v1561 = vunpack.c.l.b16 %v1525
      %v1562 = vunpack.c.h.b16 %v1525
      %v1563 = vunpack.c.l.b16 %v1526
      %v1564 = vunpack.c.h.b16 %v1526
      %v1565 = vunpack.c.l.b16 %v1527
      %v1566 = vunpack.c.h.b16 %v1527
      %v1567 = vunpack.c.l.b16 %v1528
      %v1568 = vunpack.c.h.b16 %v1528
      %v1569 = vunpack.c.l.b16 %v1529
      %v1570 = vunpack.c.h.b16 %v1529
      %v1571 = vunpack.c.l.b16 %v1530
      %v1572 = vunpack.c.h.b16 %v1530
      %v1573 = vunpack.c.l.b16 %v1531
      %v1574 = vunpack.c.h.b16 %v1531
      %v1575 = vunpack.c.l.b16 %v1532
      %v1576 = vunpack.c.h.b16 %v1532
      %v1577 = vunpack.c.l.b16 %v1533
      %v1578 = vunpack.c.h.b16 %v1533
      %v1579 = vunpack.c.l.b16 %v1534
      %v1580 = vunpack.c.h.b16 %v1534
      %v1581 = vunpack.c.l.b16 %v1535
      %v1582 = vunpack.c.h.b16 %v1535
      %v1583 = vunpack.c.l.b16 %v1536
      %v1584 = vunpack.c.h.b16 %v1536
      %v1585 = vpack.c.b16 %v1555, %v1553
      %v1586 = vpack.c.b16 %v1556, %v1554
      %v1587 = vpack.c.b16 %v1559, %v1557
      %v1588 = vpack.c.b16 %v1560, %v1558
      %v1589 = vpack.c.b16 %v1563, %v1561
      %v1590 = vpack.c.b16 %v1564, %v1562
      %v1591 = vpack.c.b16 %v1567, %v1565
      %v1592 = vpack.c.b16 %v1568, %v1566
      %v1593 = vpack.c.b16 %v1571, %v1569
      %v1594 = vpack.c.b16 %v1572, %v1570
      %v1595 = vpack.c.b16 %v1575, %v1573
      %v1596 = vpack.c.b16 %v1576, %v1574
      %v1597 = vpack.c.b16 %v1579, %v1577
      %v1598 = vpack.c.b16 %v1580, %v1578
      %v1599 = vpack.c.b16 %v1583, %v1581
      %v1600 = vpack.c.b16 %v1584, %v1582
      %1617 = vmatprep.subr.bf16.mxu0 %v1586
      %1618 = vmatpush1.bf16.msra.mxu0 %v1585
      %1619 = vmatprep.subr.bf16.mxu0 %v1588
      %1620 = vmatpush1.bf16.msra.mxu0 %v1587
      %1621 = vmatprep.subr.bf16.mxu0 %v1590
      %1622 = vmatpush1.bf16.msra.mxu0 %v1589
      %1623 = vmatprep.subr.bf16.mxu0 %v1592
      %1624 = vmatpush1.bf16.msra.mxu0 %v1591
      %1625 = vmatprep.subr.bf16.mxu0 %v1594
      %1626 = vmatpush1.bf16.msra.mxu0 %v1593
      %1627 = vmatprep.subr.bf16.mxu0 %v1596
      %1628 = vmatpush1.bf16.msra.mxu0 %v1595
      %1629 = vmatprep.subr.bf16.mxu0 %v1598
      %1630 = vmatpush1.bf16.msra.mxu0 %v1597
      %1631 = vmatprep.subr.bf16.mxu0 %v1600
      %1632 = vmatpush1.bf16.msra.mxu0 %v1599
      %1633 = vmatprep.subr.bf16.mxu0 0
      %1634 = vmatpush1.bf16.msra.mxu0 0
      %1635 = vmatprep.subr.bf16.mxu0 0
      %1636 = vmatpush1.bf16.msra.mxu0 0
      %1637 = vmatprep.subr.bf16.mxu0 0
      %1638 = vmatpush1.bf16.msra.mxu0 0
      %1639 = vmatprep.subr.bf16.mxu0 0
      %1640 = vmatpush1.bf16.msra.mxu0 0
      %1641 = vmatprep.subr.bf16.mxu0 0
      %1642 = vmatpush1.bf16.msra.mxu0 0
      %1643 = vmatprep.subr.bf16.mxu0 0
      %1644 = vmatpush1.bf16.msra.mxu0 0
      %1645 = vmatprep.subr.bf16.mxu0 0
      %1646 = vmatpush1.bf16.msra.mxu0 0
      %1647 = vmatprep.subr.bf16.mxu0 0
      %1648 = vmatpush1.bf16.msra.mxu0 0
      %1649 = vmatprep.mubr.bf16.mxu0 0
      %1650 = vmatmul.mubr.bf16.gmra.mrb[0].mxu0 %v1373
      %v1651 = vpop.f32.mrb[0].mxu0
      %v1652 = vadd.f32 %v199, %v1651
      %v1653 = vpop.f32.mrb[0].mxu0
      %v1654 = vadd.f32 %v203, %v1653
      %v1655 = vpop.f32.mrb[0].mxu0
      %v1656 = vpop.f32.mrb[0].mxu0
      %1657 = vdwg.mxu0
      %v1658 = vpack.c.bf16 %v1652, %v1652
      %v1659 = vpack.c.bf16 %v1654, %v1654
      %v1662 = vunpack.c.l.b16 %v1658
      %v1663 = vunpack.c.l.b16 %v1659
      %v1664 = vpack.c.b16 %v1663, %v1662
      %s1666 = scalar_lea.vmem %s174, 72
      %1667 = vst [vmem:[%s1666] sm:$0xff] %v1664
      %s1668 = scalar_lea.vmem %s167, 20
      %v1669 = vld [vmem:[%s1668] sm:$0xf]
      %v1670 = vld [vmem:[%s1] sm:$0xff]
      %v1671 = vld [vmem:[%s1 + $0x8] sm:$0xff]
      %v1672 = vld [vmem:[%s1 + $0x10] sm:$0xff]
      %v1673 = vld [vmem:[%s1 + $0x18] sm:$0xff]
      %v1674 = vld [vmem:[%s1 + $0x20] sm:$0xff]
      %v1675 = vld [vmem:[%s1 + $0x28] sm:$0xff]
      %v1676 = vld [vmem:[%s1 + $0x30] sm:$0xff]
      %v1677 = vld [vmem:[%s1 + $0x38] sm:$0xff]
      %v1678 = vld [vmem:[%s1 + $0x40] sm:$0xff]
      %v1679 = vld [vmem:[%s1 + $0x48] sm:$0xff]
      %v1680 = vld [vmem:[%s1 + $0x50] sm:$0xff]
      %v1681 = vld [vmem:[%s1 + $0x58] sm:$0xff]
      %v1682 = vld [vmem:[%s1 + $0x60] sm:$0xff]
      %v1683 = vld [vmem:[%s1 + $0x68] sm:$0xff]
      %v1684 = vld [vmem:[%s1 + $0x70] sm:$0xff]
      %v1685 = vld [vmem:[%s1 + $0x78] sm:$0xff]
      %v1702 = vunpack.c.l.b16 %v1670
      %v1703 = vunpack.c.h.b16 %v1670
      %v1704 = vunpack.c.l.b16 %v1671
      %v1705 = vunpack.c.h.b16 %v1671
      %v1706 = vunpack.c.l.b16 %v1672
      %v1707 = vunpack.c.h.b16 %v1672
      %v1708 = vunpack.c.l.b16 %v1673
      %v1709 = vunpack.c.h.b16 %v1673
      %v1710 = vunpack.c.l.b16 %v1674
      %v1711 = vunpack.c.h.b16 %v1674
      %v1712 = vunpack.c.l.b16 %v1675
      %v1713 = vunpack.c.h.b16 %v1675
      %v1714 = vunpack.c.l.b16 %v1676
      %v1715 = vunpack.c.h.b16 %v1676
      %v1716 = vunpack.c.l.b16 %v1677
      %v1717 = vunpack.c.h.b16 %v1677
      %v1718 = vunpack.c.l.b16 %v1678
      %v1719 = vunpack.c.h.b16 %v1678
      %v1720 = vunpack.c.l.b16 %v1679
      %v1721 = vunpack.c.h.b16 %v1679
      %v1722 = vunpack.c.l.b16 %v1680
      %v1723 = vunpack.c.h.b16 %v1680
      %v1724 = vunpack.c.l.b16 %v1681
      %v1725 = vunpack.c.h.b16 %v1681
      %v1726 = vunpack.c.l.b16 %v1682
      %v1727 = vunpack.c.h.b16 %v1682
      %v1728 = vunpack.c.l.b16 %v1683
      %v1729 = vunpack.c.h.b16 %v1683
      %v1730 = vunpack.c.l.b16 %v1684
      %v1731 = vunpack.c.h.b16 %v1684
      %v1732 = vunpack.c.l.b16 %v1685
      %v1733 = vunpack.c.h.b16 %v1685
      %v1734 = vpack.c.b16 %v1704, %v1702
      %v1735 = vpack.c.b16 %v1705, %v1703
      %v1736 = vpack.c.b16 %v1708, %v1706
      %v1737 = vpack.c.b16 %v1709, %v1707
      %v1738 = vpack.c.b16 %v1712, %v1710
      %v1739 = vpack.c.b16 %v1713, %v1711
      %v1740 = vpack.c.b16 %v1716, %v1714
      %v1741 = vpack.c.b16 %v1717, %v1715
      %v1742 = vpack.c.b16 %v1720, %v1718
      %v1743 = vpack.c.b16 %v1721, %v1719
      %v1744 = vpack.c.b16 %v1724, %v1722
      %v1745 = vpack.c.b16 %v1725, %v1723
      %v1746 = vpack.c.b16 %v1728, %v1726
      %v1747 = vpack.c.b16 %v1729, %v1727
      %v1748 = vpack.c.b16 %v1732, %v1730
      %v1749 = vpack.c.b16 %v1733, %v1731
      %1766 = vmatprep.subr.bf16.mxu0 %v1735
      %1767 = vmatpush1.bf16.msra.mxu0 %v1734
      %1768 = vmatprep.subr.bf16.mxu0 %v1737
      %1769 = vmatpush1.bf16.msra.mxu0 %v1736
      %1770 = vmatprep.subr.bf16.mxu0 %v1739
      %1771 = vmatpush1.bf16.msra.mxu0 %v1738
      %1772 = vmatprep.subr.bf16.mxu0 %v1741
      %1773 = vmatpush1.bf16.msra.mxu0 %v1740
      %1774 = vmatprep.subr.bf16.mxu0 %v1743
      %1775 = vmatpush1.bf16.msra.mxu0 %v1742
      %1776 = vmatprep.subr.bf16.mxu0 %v1745
      %1777 = vmatpush1.bf16.msra.mxu0 %v1744
      %1778 = vmatprep.subr.bf16.mxu0 %v1747
      %1779 = vmatpush1.bf16.msra.mxu0 %v1746
      %1780 = vmatprep.subr.bf16.mxu0 %v1749
      %1781 = vmatpush1.bf16.msra.mxu0 %v1748
      %1782 = vmatprep.subr.bf16.mxu0 0
      %1783 = vmatpush1.bf16.msra.mxu0 0
      %1784 = vmatprep.subr.bf16.mxu0 0
      %1785 = vmatpush1.bf16.msra.mxu0 0
      %1786 = vmatprep.subr.bf16.mxu0 0
      %1787 = vmatpush1.bf16.msra.mxu0 0
      %1788 = vmatprep.subr.bf16.mxu0 0
      %1789 = vmatpush1.bf16.msra.mxu0 0
      %1790 = vmatprep.subr.bf16.mxu0 0
      %1791 = vmatpush1.bf16.msra.mxu0 0
      %1792 = vmatprep.subr.bf16.mxu0 0
      %1793 = vmatpush1.bf16.msra.mxu0 0
      %1794 = vmatprep.subr.bf16.mxu0 0
      %1795 = vmatpush1.bf16.msra.mxu0 0
      %1796 = vmatprep.subr.bf16.mxu0 0
      %1797 = vmatpush1.bf16.msra.mxu0 0
      %1798 = vmatprep.mubr.bf16.mxu0 0
      %1799 = vmatmul.mubr.bf16.gmra.mrb[0].mxu0 %v1669
      %v1800 = vpop.f32.mrb[0].mxu0
      %v1801 = vadd.f32 %v199, %v1800
      %v1802 = vpop.f32.mrb[0].mxu0
      %v1803 = vadd.f32 %v203, %v1802
      %v1804 = vpop.f32.mrb[0].mxu0
      %v1805 = vpop.f32.mrb[0].mxu0
      %1806 = vdwg.mxu0
      %v1807 = vpack.c.bf16 %v1801, %v1801
      %v1808 = vpack.c.bf16 %v1803, %v1803
      %v1811 = vunpack.c.l.b16 %v1807
      %v1812 = vunpack.c.l.b16 %v1808
      %v1813 = vpack.c.b16 %v1812, %v1811
      %s1815 = scalar_lea.vmem %s174, 80
      %1816 = vst [vmem:[%s1815] sm:$0xff] %v1813
      %v1817 = vld [vmem:[%s336] sm:$0xff]
      %v1818 = vld [vmem:[%s336 + $0x8] sm:$0xff]
      %v1819 = vld [vmem:[%s336 + $0x10] sm:$0xff]
      %v1820 = vld [vmem:[%s336 + $0x18] sm:$0xff]
      %v1821 = vld [vmem:[%s336 + $0x20] sm:$0xff]
      %v1822 = vld [vmem:[%s336 + $0x28] sm:$0xff]
      %v1823 = vld [vmem:[%s336 + $0x30] sm:$0xff]
      %v1824 = vld [vmem:[%s336 + $0x38] sm:$0xff]
      %v1825 = vld [vmem:[%s336 + $0x40] sm:$0xff]
      %v1826 = vld [vmem:[%s336 + $0x48] sm:$0xff]
      %v1827 = vld [vmem:[%s336 + $0x50] sm:$0xff]
      %v1828 = vld [vmem:[%s336 + $0x58] sm:$0xff]
      %v1829 = vld [vmem:[%s336 + $0x60] sm:$0xff]
      %v1830 = vld [vmem:[%s336 + $0x68] sm:$0xff]
      %v1831 = vld [vmem:[%s336 + $0x70] sm:$0xff]
      %v1832 = vld [vmem:[%s336 + $0x78] sm:$0xff]
      %v1849 = vunpack.c.l.b16 %v1817
      %v1850 = vunpack.c.h.b16 %v1817
      %v1851 = vunpack.c.l.b16 %v1818
      %v1852 = vunpack.c.h.b16 %v1818
      %v1853 = vunpack.c.l.b16 %v1819
      %v1854 = vunpack.c.h.b16 %v1819
      %v1855 = vunpack.c.l.b16 %v1820
      %v1856 = vunpack.c.h.b16 %v1820
      %v1857 = vunpack.c.l.b16 %v1821
      %v1858 = vunpack.c.h.b16 %v1821
      %v1859 = vunpack.c.l.b16 %v1822
      %v1860 = vunpack.c.h.b16 %v1822
      %v1861 = vunpack.c.l.b16 %v1823
      %v1862 = vunpack.c.h.b16 %v1823
      %v1863 = vunpack.c.l.b16 %v1824
      %v1864 = vunpack.c.h.b16 %v1824
      %v1865 = vunpack.c.l.b16 %v1825
      %v1866 = vunpack.c.h.b16 %v1825
      %v1867 = vunpack.c.l.b16 %v1826
      %v1868 = vunpack.c.h.b16 %v1826
      %v1869 = vunpack.c.l.b16 %v1827
      %v1870 = vunpack.c.h.b16 %v1827
      %v1871 = vunpack.c.l.b16 %v1828
      %v1872 = vunpack.c.h.b16 %v1828
      %v1873 = vunpack.c.l.b16 %v1829
      %v1874 = vunpack.c.h.b16 %v1829
      %v1875 = vunpack.c.l.b16 %v1830
      %v1876 = vunpack.c.h.b16 %v1830
      %v1877 = vunpack.c.l.b16 %v1831
      %v1878 = vunpack.c.h.b16 %v1831
      %v1879 = vunpack.c.l.b16 %v1832
      %v1880 = vunpack.c.h.b16 %v1832
      %v1881 = vpack.c.b16 %v1851, %v1849
      %v1882 = vpack.c.b16 %v1852, %v1850
      %v1883 = vpack.c.b16 %v1855, %v1853
      %v1884 = vpack.c.b16 %v1856, %v1854
      %v1885 = vpack.c.b16 %v1859, %v1857
      %v1886 = vpack.c.b16 %v1860, %v1858
      %v1887 = vpack.c.b16 %v1863, %v1861
      %v1888 = vpack.c.b16 %v1864, %v1862
      %v1889 = vpack.c.b16 %v1867, %v1865
      %v1890 = vpack.c.b16 %v1868, %v1866
      %v1891 = vpack.c.b16 %v1871, %v1869
      %v1892 = vpack.c.b16 %v1872, %v1870
      %v1893 = vpack.c.b16 %v1875, %v1873
      %v1894 = vpack.c.b16 %v1876, %v1874
      %v1895 = vpack.c.b16 %v1879, %v1877
      %v1896 = vpack.c.b16 %v1880, %v1878
      %1913 = vmatprep.subr.bf16.mxu0 %v1882
      %1914 = vmatpush1.bf16.msra.mxu0 %v1881
      %1915 = vmatprep.subr.bf16.mxu0 %v1884
      %1916 = vmatpush1.bf16.msra.mxu0 %v1883
      %1917 = vmatprep.subr.bf16.mxu0 %v1886
      %1918 = vmatpush1.bf16.msra.mxu0 %v1885
      %1919 = vmatprep.subr.bf16.mxu0 %v1888
      %1920 = vmatpush1.bf16.msra.mxu0 %v1887
      %1921 = vmatprep.subr.bf16.mxu0 %v1890
      %1922 = vmatpush1.bf16.msra.mxu0 %v1889
      %1923 = vmatprep.subr.bf16.mxu0 %v1892
      %1924 = vmatpush1.bf16.msra.mxu0 %v1891
      %1925 = vmatprep.subr.bf16.mxu0 %v1894
      %1926 = vmatpush1.bf16.msra.mxu0 %v1893
      %1927 = vmatprep.subr.bf16.mxu0 %v1896
      %1928 = vmatpush1.bf16.msra.mxu0 %v1895
      %1929 = vmatprep.subr.bf16.mxu0 0
      %1930 = vmatpush1.bf16.msra.mxu0 0
      %1931 = vmatprep.subr.bf16.mxu0 0
      %1932 = vmatpush1.bf16.msra.mxu0 0
      %1933 = vmatprep.subr.bf16.mxu0 0
      %1934 = vmatpush1.bf16.msra.mxu0 0
      %1935 = vmatprep.subr.bf16.mxu0 0
      %1936 = vmatpush1.bf16.msra.mxu0 0
      %1937 = vmatprep.subr.bf16.mxu0 0
      %1938 = vmatpush1.bf16.msra.mxu0 0
      %1939 = vmatprep.subr.bf16.mxu0 0
      %1940 = vmatpush1.bf16.msra.mxu0 0
      %1941 = vmatprep.subr.bf16.mxu0 0
      %1942 = vmatpush1.bf16.msra.mxu0 0
      %1943 = vmatprep.subr.bf16.mxu0 0
      %1944 = vmatpush1.bf16.msra.mxu0 0
      %1945 = vmatprep.mubr.bf16.mxu0 0
      %1946 = vmatmul.mubr.bf16.gmra.mrb[0].mxu0 %v1669
      %v1947 = vpop.f32.mrb[0].mxu0
      %v1948 = vadd.f32 %v199, %v1947
      %v1949 = vpop.f32.mrb[0].mxu0
      %v1950 = vadd.f32 %v203, %v1949
      %v1951 = vpop.f32.mrb[0].mxu0
      %v1952 = vpop.f32.mrb[0].mxu0
      %1953 = vdwg.mxu0
      %v1954 = vpack.c.bf16 %v1948, %v1948
      %v1955 = vpack.c.bf16 %v1950, %v1950
      %v1958 = vunpack.c.l.b16 %v1954
      %v1959 = vunpack.c.l.b16 %v1955
      %v1960 = vpack.c.b16 %v1959, %v1958
      %s1962 = scalar_lea.vmem %s174, 88
      %1963 = vst [vmem:[%s1962] sm:$0xff] %v1960
      %s1964 = scalar_lea.vmem %s167, 24
      %v1965 = vld [vmem:[%s1964] sm:$0xf]
      %v1966 = vld [vmem:[%s1] sm:$0xff]
      %v1967 = vld [vmem:[%s1 + $0x8] sm:$0xff]
      %v1968 = vld [vmem:[%s1 + $0x10] sm:$0xff]
      %v1969 = vld [vmem:[%s1 + $0x18] sm:$0xff]
      %v1970 = vld [vmem:[%s1 + $0x20] sm:$0xff]
      %v1971 = vld [vmem:[%s1 + $0x28] sm:$0xff]
      %v1972 = vld [vmem:[%s1 + $0x30] sm:$0xff]
      %v1973 = vld [vmem:[%s1 + $0x38] sm:$0xff]
      %v1974 = vld [vmem:[%s1 + $0x40] sm:$0xff]
      %v1975 = vld [vmem:[%s1 + $0x48] sm:$0xff]
      %v1976 = vld [vmem:[%s1 + $0x50] sm:$0xff]
      %v1977 = vld [vmem:[%s1 + $0x58] sm:$0xff]
      %v1978 = vld [vmem:[%s1 + $0x60] sm:$0xff]
      %v1979 = vld [vmem:[%s1 + $0x68] sm:$0xff]
      %v1980 = vld [vmem:[%s1 + $0x70] sm:$0xff]
      %v1981 = vld [vmem:[%s1 + $0x78] sm:$0xff]
      %v1998 = vunpack.c.l.b16 %v1966
      %v1999 = vunpack.c.h.b16 %v1966
      %v2000 = vunpack.c.l.b16 %v1967
      %v2001 = vunpack.c.h.b16 %v1967
      %v2002 = vunpack.c.l.b16 %v1968
      %v2003 = vunpack.c.h.b16 %v1968
      %v2004 = vunpack.c.l.b16 %v1969
      %v2005 = vunpack.c.h.b16 %v1969
      %v2006 = vunpack.c.l.b16 %v1970
      %v2007 = vunpack.c.h.b16 %v1970
      %v2008 = vunpack.c.l.b16 %v1971
      %v2009 = vunpack.c.h.b16 %v1971
      %v2010 = vunpack.c.l.b16 %v1972
      %v2011 = vunpack.c.h.b16 %v1972
      %v2012 = vunpack.c.l.b16 %v1973
      %v2013 = vunpack.c.h.b16 %v1973
      %v2014 = vunpack.c.l.b16 %v1974
      %v2015 = vunpack.c.h.b16 %v1974
      %v2016 = vunpack.c.l.b16 %v1975
      %v2017 = vunpack.c.h.b16 %v1975
      %v2018 = vunpack.c.l.b16 %v1976
      %v2019 = vunpack.c.h.b16 %v1976
      %v2020 = vunpack.c.l.b16 %v1977
      %v2021 = vunpack.c.h.b16 %v1977
      %v2022 = vunpack.c.l.b16 %v1978
      %v2023 = vunpack.c.h.b16 %v1978
      %v2024 = vunpack.c.l.b16 %v1979
      %v2025 = vunpack.c.h.b16 %v1979
      %v2026 = vunpack.c.l.b16 %v1980
      %v2027 = vunpack.c.h.b16 %v1980
      %v2028 = vunpack.c.l.b16 %v1981
      %v2029 = vunpack.c.h.b16 %v1981
      %v2030 = vpack.c.b16 %v2000, %v1998
      %v2031 = vpack.c.b16 %v2001, %v1999
      %v2032 = vpack.c.b16 %v2004, %v2002
      %v2033 = vpack.c.b16 %v2005, %v2003
      %v2034 = vpack.c.b16 %v2008, %v2006
      %v2035 = vpack.c.b16 %v2009, %v2007
      %v2036 = vpack.c.b16 %v2012, %v2010
      %v2037 = vpack.c.b16 %v2013, %v2011
      %v2038 = vpack.c.b16 %v2016, %v2014
      %v2039 = vpack.c.b16 %v2017, %v2015
      %v2040 = vpack.c.b16 %v2020, %v2018
      %v2041 = vpack.c.b16 %v2021, %v2019
      %v2042 = vpack.c.b16 %v2024, %v2022
      %v2043 = vpack.c.b16 %v2025, %v2023
      %v2044 = vpack.c.b16 %v2028, %v2026
      %v2045 = vpack.c.b16 %v2029, %v2027
      %2062 = vmatprep.subr.bf16.mxu0 %v2031
      %2063 = vmatpush1.bf16.msra.mxu0 %v2030
      %2064 = vmatprep.subr.bf16.mxu0 %v2033
      %2065 = vmatpush1.bf16.msra.mxu0 %v2032
      %2066 = vmatprep.subr.bf16.mxu0 %v2035
      %2067 = vmatpush1.bf16.msra.mxu0 %v2034
      %2068 = vmatprep.subr.bf16.mxu0 %v2037
      %2069 = vmatpush1.bf16.msra.mxu0 %v2036
      %2070 = vmatprep.subr.bf16.mxu0 %v2039
      %2071 = vmatpush1.bf16.msra.mxu0 %v2038
      %2072 = vmatprep.subr.bf16.mxu0 %v2041
      %2073 = vmatpush1.bf16.msra.mxu0 %v2040
      %2074 = vmatprep.subr.bf16.mxu0 %v2043
      %2075 = vmatpush1.bf16.msra.mxu0 %v2042
      %2076 = vmatprep.subr.bf16.mxu0 %v2045
      %2077 = vmatpush1.bf16.msra.mxu0 %v2044
      %2078 = vmatprep.subr.bf16.mxu0 0
      %2079 = vmatpush1.bf16.msra.mxu0 0
      %2080 = vmatprep.subr.bf16.mxu0 0
      %2081 = vmatpush1.bf16.msra.mxu0 0
      %2082 = vmatprep.subr.bf16.mxu0 0
      %2083 = vmatpush1.bf16.msra.mxu0 0
      %2084 = vmatprep.subr.bf16.mxu0 0
      %2085 = vmatpush1.bf16.msra.mxu0 0
      %2086 = vmatprep.subr.bf16.mxu0 0
      %2087 = vmatpush1.bf16.msra.mxu0 0
      %2088 = vmatprep.subr.bf16.mxu0 0
      %2089 = vmatpush1.bf16.msra.mxu0 0
      %2090 = vmatprep.subr.bf16.mxu0 0
      %2091 = vmatpush1.bf16.msra.mxu0 0
      %2092 = vmatprep.subr.bf16.mxu0 0
      %2093 = vmatpush1.bf16.msra.mxu0 0
      %2094 = vmatprep.mubr.bf16.mxu0 0
      %2095 = vmatmul.mubr.bf16.gmra.mrb[0].mxu0 %v1965
      %v2096 = vpop.f32.mrb[0].mxu0
      %v2097 = vadd.f32 %v199, %v2096
      %v2098 = vpop.f32.mrb[0].mxu0
      %v2099 = vadd.f32 %v203, %v2098
      %v2100 = vpop.f32.mrb[0].mxu0
      %v2101 = vpop.f32.mrb[0].mxu0
      %2102 = vdwg.mxu0
      %v2103 = vpack.c.bf16 %v2097, %v2097
      %v2104 = vpack.c.bf16 %v2099, %v2099
      %v2107 = vunpack.c.l.b16 %v2103
      %v2108 = vunpack.c.l.b16 %v2104
      %v2109 = vpack.c.b16 %v2108, %v2107
      %s2111 = scalar_lea.vmem %s174, 96
      %2112 = vst [vmem:[%s2111] sm:$0xff] %v2109
      %v2113 = vld [vmem:[%s336] sm:$0xff]
      %v2114 = vld [vmem:[%s336 + $0x8] sm:$0xff]
      %v2115 = vld [vmem:[%s336 + $0x10] sm:$0xff]
      %v2116 = vld [vmem:[%s336 + $0x18] sm:$0xff]
      %v2117 = vld [vmem:[%s336 + $0x20] sm:$0xff]
      %v2118 = vld [vmem:[%s336 + $0x28] sm:$0xff]
      %v2119 = vld [vmem:[%s336 + $0x30] sm:$0xff]
      %v2120 = vld [vmem:[%s336 + $0x38] sm:$0xff]
      %v2121 = vld [vmem:[%s336 + $0x40] sm:$0xff]
      %v2122 = vld [vmem:[%s336 + $0x48] sm:$0xff]
      %v2123 = vld [vmem:[%s336 + $0x50] sm:$0xff]
      %v2124 = vld [vmem:[%s336 + $0x58] sm:$0xff]
      %v2125 = vld [vmem:[%s336 + $0x60] sm:$0xff]
      %v2126 = vld [vmem:[%s336 + $0x68] sm:$0xff]
      %v2127 = vld [vmem:[%s336 + $0x70] sm:$0xff]
      %v2128 = vld [vmem:[%s336 + $0x78] sm:$0xff]
      %v2145 = vunpack.c.l.b16 %v2113
      %v2146 = vunpack.c.h.b16 %v2113
      %v2147 = vunpack.c.l.b16 %v2114
      %v2148 = vunpack.c.h.b16 %v2114
      %v2149 = vunpack.c.l.b16 %v2115
      %v2150 = vunpack.c.h.b16 %v2115
      %v2151 = vunpack.c.l.b16 %v2116
      %v2152 = vunpack.c.h.b16 %v2116
      %v2153 = vunpack.c.l.b16 %v2117
      %v2154 = vunpack.c.h.b16 %v2117
      %v2155 = vunpack.c.l.b16 %v2118
      %v2156 = vunpack.c.h.b16 %v2118
      %v2157 = vunpack.c.l.b16 %v2119
      %v2158 = vunpack.c.h.b16 %v2119
      %v2159 = vunpack.c.l.b16 %v2120
      %v2160 = vunpack.c.h.b16 %v2120
      %v2161 = vunpack.c.l.b16 %v2121
      %v2162 = vunpack.c.h.b16 %v2121
      %v2163 = vunpack.c.l.b16 %v2122
      %v2164 = vunpack.c.h.b16 %v2122
      %v2165 = vunpack.c.l.b16 %v2123
      %v2166 = vunpack.c.h.b16 %v2123
      %v2167 = vunpack.c.l.b16 %v2124
      %v2168 = vunpack.c.h.b16 %v2124
      %v2169 = vunpack.c.l.b16 %v2125
      %v2170 = vunpack.c.h.b16 %v2125
      %v2171 = vunpack.c.l.b16 %v2126
      %v2172 = vunpack.c.h.b16 %v2126
      %v2173 = vunpack.c.l.b16 %v2127
      %v2174 = vunpack.c.h.b16 %v2127
      %v2175 = vunpack.c.l.b16 %v2128
      %v2176 = vunpack.c.h.b16 %v2128
      %v2177 = vpack.c.b16 %v2147, %v2145
      %v2178 = vpack.c.b16 %v2148, %v2146
      %v2179 = vpack.c.b16 %v2151, %v2149
      %v2180 = vpack.c.b16 %v2152, %v2150
      %v2181 = vpack.c.b16 %v2155, %v2153
      %v2182 = vpack.c.b16 %v2156, %v2154
      %v2183 = vpack.c.b16 %v2159, %v2157
      %v2184 = vpack.c.b16 %v2160, %v2158
      %v2185 = vpack.c.b16 %v2163, %v2161
      %v2186 = vpack.c.b16 %v2164, %v2162
      %v2187 = vpack.c.b16 %v2167, %v2165
      %v2188 = vpack.c.b16 %v2168, %v2166
      %v2189 = vpack.c.b16 %v2171, %v2169
      %v2190 = vpack.c.b16 %v2172, %v2170
      %v2191 = vpack.c.b16 %v2175, %v2173
      %v2192 = vpack.c.b16 %v2176, %v2174
      %2209 = vmatprep.subr.bf16.mxu0 %v2178
      %2210 = vmatpush1.bf16.msra.mxu0 %v2177
      %2211 = vmatprep.subr.bf16.mxu0 %v2180
      %2212 = vmatpush1.bf16.msra.mxu0 %v2179
      %2213 = vmatprep.subr.bf16.mxu0 %v2182
      %2214 = vmatpush1.bf16.msra.mxu0 %v2181
      %2215 = vmatprep.subr.bf16.mxu0 %v2184
      %2216 = vmatpush1.bf16.msra.mxu0 %v2183
      %2217 = vmatprep.subr.bf16.mxu0 %v2186
      %2218 = vmatpush1.bf16.msra.mxu0 %v2185
      %2219 = vmatprep.subr.bf16.mxu0 %v2188
      %2220 = vmatpush1.bf16.msra.mxu0 %v2187
      %2221 = vmatprep.subr.bf16.mxu0 %v2190
      %2222 = vmatpush1.bf16.msra.mxu0 %v2189
      %2223 = vmatprep.subr.bf16.mxu0 %v2192
      %2224 = vmatpush1.bf16.msra.mxu0 %v2191
      %2225 = vmatprep.subr.bf16.mxu0 0
      %2226 = vmatpush1.bf16.msra.mxu0 0
      %2227 = vmatprep.subr.bf16.mxu0 0
      %2228 = vmatpush1.bf16.msra.mxu0 0
      %2229 = vmatprep.subr.bf16.mxu0 0
      %2230 = vmatpush1.bf16.msra.mxu0 0
      %2231 = vmatprep.subr.bf16.mxu0 0
      %2232 = vmatpush1.bf16.msra.mxu0 0
      %2233 = vmatprep.subr.bf16.mxu0 0
      %2234 = vmatpush1.bf16.msra.mxu0 0
      %2235 = vmatprep.subr.bf16.mxu0 0
      %2236 = vmatpush1.bf16.msra.mxu0 0
      %2237 = vmatprep.subr.bf16.mxu0 0
      %2238 = vmatpush1.bf16.msra.mxu0 0
      %2239 = vmatprep.subr.bf16.mxu0 0
      %2240 = vmatpush1.bf16.msra.mxu0 0
      %2241 = vmatprep.mubr.bf16.mxu0 0
      %2242 = vmatmul.mubr.bf16.gmra.mrb[0].mxu0 %v1965
      %v2243 = vpop.f32.mrb[0].mxu0
      %v2244 = vadd.f32 %v199, %v2243
      %v2245 = vpop.f32.mrb[0].mxu0
      %v2246 = vadd.f32 %v203, %v2245
      %v2247 = vpop.f32.mrb[0].mxu0
      %v2248 = vpop.f32.mrb[0].mxu0
      %2249 = vdwg.mxu0
      %v2250 = vpack.c.bf16 %v2244, %v2244
      %v2251 = vpack.c.bf16 %v2246, %v2246
      %v2254 = vunpack.c.l.b16 %v2250
      %v2255 = vunpack.c.l.b16 %v2251
      %v2256 = vpack.c.b16 %v2255, %v2254
      %s2258 = scalar_lea.vmem %s174, 104
      %2259 = vst [vmem:[%s2258] sm:$0xff] %v2256
      %s2260 = scalar_lea.vmem %s167, 28
      %v2261 = vld [vmem:[%s2260] sm:$0xf]
      %v2262 = vld [vmem:[%s1] sm:$0xff]
      %v2263 = vld [vmem:[%s1 + $0x8] sm:$0xff]
      %v2264 = vld [vmem:[%s1 + $0x10] sm:$0xff]
      %v2265 = vld [vmem:[%s1 + $0x18] sm:$0xff]
      %v2266 = vld [vmem:[%s1 + $0x20] sm:$0xff]
      %v2267 = vld [vmem:[%s1 + $0x28] sm:$0xff]
      %v2268 = vld [vmem:[%s1 + $0x30] sm:$0xff]
      %v2269 = vld [vmem:[%s1 + $0x38] sm:$0xff]
      %v2270 = vld [vmem:[%s1 + $0x40] sm:$0xff]
      %v2271 = vld [vmem:[%s1 + $0x48] sm:$0xff]
      %v2272 = vld [vmem:[%s1 + $0x50] sm:$0xff]
      %v2273 = vld [vmem:[%s1 + $0x58] sm:$0xff]
      %v2274 = vld [vmem:[%s1 + $0x60] sm:$0xff]
      %v2275 = vld [vmem:[%s1 + $0x68] sm:$0xff]
      %v2276 = vld [vmem:[%s1 + $0x70] sm:$0xff]
      %v2277 = vld [vmem:[%s1 + $0x78] sm:$0xff]
      %v2294 = vunpack.c.l.b16 %v2262
      %v2295 = vunpack.c.h.b16 %v2262
      %v2296 = vunpack.c.l.b16 %v2263
      %v2297 = vunpack.c.h.b16 %v2263
      %v2298 = vunpack.c.l.b16 %v2264
      %v2299 = vunpack.c.h.b16 %v2264
      %v2300 = vunpack.c.l.b16 %v2265
      %v2301 = vunpack.c.h.b16 %v2265
      %v2302 = vunpack.c.l.b16 %v2266
      %v2303 = vunpack.c.h.b16 %v2266
      %v2304 = vunpack.c.l.b16 %v2267
      %v2305 = vunpack.c.h.b16 %v2267
      %v2306 = vunpack.c.l.b16 %v2268
      %v2307 = vunpack.c.h.b16 %v2268
      %v2308 = vunpack.c.l.b16 %v2269
      %v2309 = vunpack.c.h.b16 %v2269
      %v2310 = vunpack.c.l.b16 %v2270
      %v2311 = vunpack.c.h.b16 %v2270
      %v2312 = vunpack.c.l.b16 %v2271
      %v2313 = vunpack.c.h.b16 %v2271
      %v2314 = vunpack.c.l.b16 %v2272
      %v2315 = vunpack.c.h.b16 %v2272
      %v2316 = vunpack.c.l.b16 %v2273
      %v2317 = vunpack.c.h.b16 %v2273
      %v2318 = vunpack.c.l.b16 %v2274
      %v2319 = vunpack.c.h.b16 %v2274
      %v2320 = vunpack.c.l.b16 %v2275
      %v2321 = vunpack.c.h.b16 %v2275
      %v2322 = vunpack.c.l.b16 %v2276
      %v2323 = vunpack.c.h.b16 %v2276
      %v2324 = vunpack.c.l.b16 %v2277
      %v2325 = vunpack.c.h.b16 %v2277
      %v2326 = vpack.c.b16 %v2296, %v2294
      %v2327 = vpack.c.b16 %v2297, %v2295
      %v2328 = vpack.c.b16 %v2300, %v2298
      %v2329 = vpack.c.b16 %v2301, %v2299
      %v2330 = vpack.c.b16 %v2304, %v2302
      %v2331 = vpack.c.b16 %v2305, %v2303
      %v2332 = vpack.c.b16 %v2308, %v2306
      %v2333 = vpack.c.b16 %v2309, %v2307
      %v2334 = vpack.c.b16 %v2312, %v2310
      %v2335 = vpack.c.b16 %v2313, %v2311
      %v2336 = vpack.c.b16 %v2316, %v2314
      %v2337 = vpack.c.b16 %v2317, %v2315
      %v2338 = vpack.c.b16 %v2320, %v2318
      %v2339 = vpack.c.b16 %v2321, %v2319
      %v2340 = vpack.c.b16 %v2324, %v2322
      %v2341 = vpack.c.b16 %v2325, %v2323
      %2358 = vmatprep.subr.bf16.mxu0 %v2327
      %2359 = vmatpush1.bf16.msra.mxu0 %v2326
      %2360 = vmatprep.subr.bf16.mxu0 %v2329
      %2361 = vmatpush1.bf16.msra.mxu0 %v2328
      %2362 = vmatprep.subr.bf16.mxu0 %v2331
      %2363 = vmatpush1.bf16.msra.mxu0 %v2330
      %2364 = vmatprep.subr.bf16.mxu0 %v2333
      %2365 = vmatpush1.bf16.msra.mxu0 %v2332
      %2366 = vmatprep.subr.bf16.mxu0 %v2335
      %2367 = vmatpush1.bf16.msra.mxu0 %v2334
      %2368 = vmatprep.subr.bf16.mxu0 %v2337
      %2369 = vmatpush1.bf16.msra.mxu0 %v2336
      %2370 = vmatprep.subr.bf16.mxu0 %v2339
      %2371 = vmatpush1.bf16.msra.mxu0 %v2338
      %2372 = vmatprep.subr.bf16.mxu0 %v2341
      %2373 = vmatpush1.bf16.msra.mxu0 %v2340
      %2374 = vmatprep.subr.bf16.mxu0 0
      %2375 = vmatpush1.bf16.msra.mxu0 0
      %2376 = vmatprep.subr.bf16.mxu0 0
      %2377 = vmatpush1.bf16.msra.mxu0 0
      %2378 = vmatprep.subr.bf16.mxu0 0
      %2379 = vmatpush1.bf16.msra.mxu0 0
      %2380 = vmatprep.subr.bf16.mxu0 0
      %2381 = vmatpush1.bf16.msra.mxu0 0
      %2382 = vmatprep.subr.bf16.mxu0 0
      %2383 = vmatpush1.bf16.msra.mxu0 0
      %2384 = vmatprep.subr.bf16.mxu0 0
      %2385 = vmatpush1.bf16.msra.mxu0 0
      %2386 = vmatprep.subr.bf16.mxu0 0
      %2387 = vmatpush1.bf16.msra.mxu0 0
      %2388 = vmatprep.subr.bf16.mxu0 0
      %2389 = vmatpush1.bf16.msra.mxu0 0
      %2390 = vmatprep.mubr.bf16.mxu0 0
      %2391 = vmatmul.mubr.bf16.gmra.mrb[0].mxu0 %v2261
      %v2392 = vpop.f32.mrb[0].mxu0
      %v2393 = vadd.f32 %v199, %v2392
      %v2394 = vpop.f32.mrb[0].mxu0
      %v2395 = vadd.f32 %v203, %v2394
      %v2396 = vpop.f32.mrb[0].mxu0
      %v2397 = vpop.f32.mrb[0].mxu0
      %2398 = vdwg.mxu0
      %v2399 = vpack.c.bf16 %v2393, %v2393
      %v2400 = vpack.c.bf16 %v2395, %v2395
      %v2403 = vunpack.c.l.b16 %v2399
      %v2404 = vunpack.c.l.b16 %v2400
      %v2405 = vpack.c.b16 %v2404, %v2403
      %s2407 = scalar_lea.vmem %s174, 112
      %2408 = vst [vmem:[%s2407] sm:$0xff] %v2405
      %v2409 = vld [vmem:[%s336] sm:$0xff]
      %v2410 = vld [vmem:[%s336 + $0x8] sm:$0xff]
      %v2411 = vld [vmem:[%s336 + $0x10] sm:$0xff]
      %v2412 = vld [vmem:[%s336 + $0x18] sm:$0xff]
      %v2413 = vld [vmem:[%s336 + $0x20] sm:$0xff]
      %v2414 = vld [vmem:[%s336 + $0x28] sm:$0xff]
      %v2415 = vld [vmem:[%s336 + $0x30] sm:$0xff]
      %v2416 = vld [vmem:[%s336 + $0x38] sm:$0xff]
      %v2417 = vld [vmem:[%s336 + $0x40] sm:$0xff]
      %v2418 = vld [vmem:[%s336 + $0x48] sm:$0xff]
      %v2419 = vld [vmem:[%s336 + $0x50] sm:$0xff]
      %v2420 = vld [vmem:[%s336 + $0x58] sm:$0xff]
      %v2421 = vld [vmem:[%s336 + $0x60] sm:$0xff]
      %v2422 = vld [vmem:[%s336 + $0x68] sm:$0xff]
      %v2423 = vld [vmem:[%s336 + $0x70] sm:$0xff]
      %v2424 = vld [vmem:[%s336 + $0x78] sm:$0xff]
      %v2441 = vunpack.c.l.b16 %v2409
      %v2442 = vunpack.c.h.b16 %v2409
      %v2443 = vunpack.c.l.b16 %v2410
      %v2444 = vunpack.c.h.b16 %v2410
      %v2445 = vunpack.c.l.b16 %v2411
      %v2446 = vunpack.c.h.b16 %v2411
      %v2447 = vunpack.c.l.b16 %v2412
      %v2448 = vunpack.c.h.b16 %v2412
      %v2449 = vunpack.c.l.b16 %v2413
      %v2450 = vunpack.c.h.b16 %v2413
      %v2451 = vunpack.c.l.b16 %v2414
      %v2452 = vunpack.c.h.b16 %v2414
      %v2453 = vunpack.c.l.b16 %v2415
      %v2454 = vunpack.c.h.b16 %v2415
      %v2455 = vunpack.c.l.b16 %v2416
      %v2456 = vunpack.c.h.b16 %v2416
      %v2457 = vunpack.c.l.b16 %v2417
      %v2458 = vunpack.c.h.b16 %v2417
      %v2459 = vunpack.c.l.b16 %v2418
      %v2460 = vunpack.c.h.b16 %v2418
      %v2461 = vunpack.c.l.b16 %v2419
      %v2462 = vunpack.c.h.b16 %v2419
      %v2463 = vunpack.c.l.b16 %v2420
      %v2464 = vunpack.c.h.b16 %v2420
      %v2465 = vunpack.c.l.b16 %v2421
      %v2466 = vunpack.c.h.b16 %v2421
      %v2467 = vunpack.c.l.b16 %v2422
      %v2468 = vunpack.c.h.b16 %v2422
      %v2469 = vunpack.c.l.b16 %v2423
      %v2470 = vunpack.c.h.b16 %v2423
      %v2471 = vunpack.c.l.b16 %v2424
      %v2472 = vunpack.c.h.b16 %v2424
      %v2473 = vpack.c.b16 %v2443, %v2441
      %v2474 = vpack.c.b16 %v2444, %v2442
      %v2475 = vpack.c.b16 %v2447, %v2445
      %v2476 = vpack.c.b16 %v2448, %v2446
      %v2477 = vpack.c.b16 %v2451, %v2449
      %v2478 = vpack.c.b16 %v2452, %v2450
      %v2479 = vpack.c.b16 %v2455, %v2453
      %v2480 = vpack.c.b16 %v2456, %v2454
      %v2481 = vpack.c.b16 %v2459, %v2457
      %v2482 = vpack.c.b16 %v2460, %v2458
      %v2483 = vpack.c.b16 %v2463, %v2461
      %v2484 = vpack.c.b16 %v2464, %v2462
      %v2485 = vpack.c.b16 %v2467, %v2465
      %v2486 = vpack.c.b16 %v2468, %v2466
      %v2487 = vpack.c.b16 %v2471, %v2469
      %v2488 = vpack.c.b16 %v2472, %v2470
      %2505 = vmatprep.subr.bf16.mxu0 %v2474
      %2506 = vmatpush1.bf16.msra.mxu0 %v2473
      %2507 = vmatprep.subr.bf16.mxu0 %v2476
      %2508 = vmatpush1.bf16.msra.mxu0 %v2475
      %2509 = vmatprep.subr.bf16.mxu0 %v2478
      %2510 = vmatpush1.bf16.msra.mxu0 %v2477
      %2511 = vmatprep.subr.bf16.mxu0 %v2480
      %2512 = vmatpush1.bf16.msra.mxu0 %v2479
      %2513 = vmatprep.subr.bf16.mxu0 %v2482
      %2514 = vmatpush1.bf16.msra.mxu0 %v2481
      %2515 = vmatprep.subr.bf16.mxu0 %v2484
      %2516 = vmatpush1.bf16.msra.mxu0 %v2483
      %2517 = vmatprep.subr.bf16.mxu0 %v2486
      %2518 = vmatpush1.bf16.msra.mxu0 %v2485
      %2519 = vmatprep.subr.bf16.mxu0 %v2488
      %2520 = vmatpush1.bf16.msra.mxu0 %v2487
      %2521 = vmatprep.subr.bf16.mxu0 0
      %2522 = vmatpush1.bf16.msra.mxu0 0
      %2523 = vmatprep.subr.bf16.mxu0 0
      %2524 = vmatpush1.bf16.msra.mxu0 0
      %2525 = vmatprep.subr.bf16.mxu0 0
      %2526 = vmatpush1.bf16.msra.mxu0 0
      %2527 = vmatprep.subr.bf16.mxu0 0
      %2528 = vmatpush1.bf16.msra.mxu0 0
      %2529 = vmatprep.subr.bf16.mxu0 0
      %2530 = vmatpush1.bf16.msra.mxu0 0
      %2531 = vmatprep.subr.bf16.mxu0 0
      %2532 = vmatpush1.bf16.msra.mxu0 0
      %2533 = vmatprep.subr.bf16.mxu0 0
      %2534 = vmatpush1.bf16.msra.mxu0 0
      %2535 = vmatprep.subr.bf16.mxu0 0
      %2536 = vmatpush1.bf16.msra.mxu0 0
      %2537 = vmatprep.mubr.bf16.mxu0 0
      %2538 = vmatmul.mubr.bf16.gmra.mrb[0].mxu0 %v2261
      %v2539 = vpop.f32.mrb[0].mxu0
      %v2540 = vadd.f32 %v199, %v2539
      %v2541 = vpop.f32.mrb[0].mxu0
      %v2542 = vadd.f32 %v203, %v2541
      %v2543 = vpop.f32.mrb[0].mxu0
      %v2544 = vpop.f32.mrb[0].mxu0
      %2545 = vdwg.mxu0
      %v2546 = vpack.c.bf16 %v2540, %v2540
      %v2547 = vpack.c.bf16 %v2542, %v2542
      %v2550 = vunpack.c.l.b16 %v2546
      %v2551 = vunpack.c.l.b16 %v2547
      %v2552 = vpack.c.b16 %v2551, %v2550
      %s2554 = scalar_lea.vmem %s174, 120
      %2555 = vst [vmem:[%s2554] sm:$0xff] %v2552
      %s2556 = smul.u32 8, %s14
      %p2557 = scmp.lt.s32.totalorder %s2556, 15
      %s2558 = scalar_select %p2557, %s2556, 15
      %s2559 = smul.addr %s2558, 4
      %s2560 = smul.addr %s2559, 4
      %s2561 = scalar_lea.vmem %s3, %s2560
      // Predicated region
      $region33: #{up_forward.3} parent=31 // pred_check
        %p2562 = pneg %p100
      $region34: #{up_forward.3} parent=31 // pred_check_branch
        %2564 = sbr.rel (%p2562) target = $region36
      $region35: #{up_forward.3} parent=31 // pred_region
        %s2565 = smul.u32 8, %s14
      $region36: #{up_forward.3} parent=31 // pred_fallthru
        _
    $region32: #{up_forward.3} parent=5 // pred_fallthru
      _
    %p2566 = scmp.le.s32.totalorder 2, %s9
    // Predicated region
    $region37: #{up_forward.3} parent=5 // pred_check
      %p2567 = pneg %p2566
    $region38: #{up_forward.3} parent=5 // pred_check_branch
      %2569 = sbr.rel (%p2567) target = $region40
    $region39: #{up_forward.3} parent=5 // pred_region
      %s2570 = ssub.s32 %s9, 2
      // Predicated region
      $region41: #{up_forward.3} parent=39 // pred_check
        %p2571 = pneg %p106
      $region42: #{up_forward.3} parent=39 // pred_check_branch
        %2573 = sbr.rel (%p2571) target = $region44
      $region43: #{up_forward.3} parent=39 // pred_region
        %s2574 = smul.u32 8, %s15
        %p2575 = scmp.lt.s32.totalorder %s2574, 15
        %s2576 = scalar_select %p2575, %s2574, 15
        %s2577 = smul.addr %s2576, 4
        %s2578 = smul.addr %s2577, 4
        %s2579 = scalar_lea.vmem %s3, %s2578
      $region44: #{up_forward.3} parent=39 // pred_fallthru
        _
    $region40: #{up_forward.3} parent=5 // pred_fallthru
      _
  $region6: #{up_forward.3} parent=0 // loop_footer
    %s13 = sadd.s32 1, %s9
  $region7: #{up_forward.3} parent=0 // loop_footer_branch
    %8 = sbr.rel target = $region3
  $region8: #{up_forward.3} parent=0 // loop_exit
    _

// kernel: up_forward.4
$region0: #{up_forward.4}
  #allocation0 [shape = 'u32[]', space=smem, size = 0x4, offset = 0x4, fixed_abs, tag = 'smem constant byte address 0x4 - core index']
  #allocation1 [shape = 'u32[144,128]{1,0:T(1,128)}', space=vmem, size = 0x12000, scoped, tag = 'internal scratch']
  %s0 = inlined_call_operand.vmem [shape: bf16[2,16,16,128], index: 0, kind: input, shape index: {}]
  %s1 = inlined_call_operand.vmem [shape: bf16[2,16,16,128], index: 1, kind: input, shape index: {}]
  %s2 = inlined_call_operand.vmem [shape: bf16[9,128,128], index: 2, kind: input, shape index: {}]
  %s3 = inlined_call_operand.vmem [shape: bf16[9,128,128], index: 3, kind: input, shape index: {}]
  %s4 = inlined_call_operand.vmem [shape: f32[1,128], index: 4, kind: input, shape index: {}]
  %s5 = inlined_call_operand.vmem [shape: bf16[2,14,14,128], index: 5, kind: output, shape index: {}]
  %s6 = sld [smem:[#allocation0]]
  $region60: #{up_forward.4} parent=0
    _
  %s8 = ssub.s32 1, %s6
  %s9 = scalar_select 0, %s8, %s6
  loop: start=0, step=1, limit=4
  $region2: #{up_forward.4} parent=0 // loop_pre_header
    _
  $region3: #{up_forward.4} parent=0 // loop_header
    %s11 = sphi 0, %s15
    %p12 = scmp.ge.s32.totalorder %s11, 4
    %s21 = sphi 0, %s23
    %s24 = sphi 0, %s21
    %s25 = sphi 0, %s24
    %s41 = sphi 0, %s25
    %s47 = sphi 0, %s49
    %s50 = sphi 0, %s47
    %s51 = sphi 0, %s50
    %s67 = sphi 0, %s51
    %s71 = sphi 0, %s71
    %s73 = sphi 0, %s71
    %s74 = sphi 0, %s73
    %s88 = sphi 0, %s74
    %s92 = sphi 0, %s92
    %s94 = sphi 0, %s92
    %s95 = sphi 0, %s94
    %s109 = sphi 0, %s95
    %s113 = sphi 0, %s113
    %s115 = sphi 0, %s113
    %s116 = sphi 0, %s115
    %s130 = sphi 0, %s116
    %s136 = sphi 0, %s138
    %s139 = sphi 0, %s136
    %s140 = sphi 0, %s139
    %s156 = sphi 0, %s140
  $region4: #{up_forward.4} parent=0 // loop_header_branch
    %14 = sbr.rel (%p12) target = $region8
  $region5: #{up_forward.4} parent=0 // loop_body
    %s16 = ssub.s32 %s11, 1
    %s17 = ssub.s32 %s11, 2
    %s18 = sadd.s32 %s11, 1
    %s19 = ssub.s32 %s11, %s18
    %p20 = scmp.eq.s32.totalorder %s19, 0
    %s22 = sadd.s32 %s21, 1
    %s23 = scalar_select %p20, %s21, %s22
    %p26 = pneg %p20
    %p27 = scmp.eq.s32.totalorder %s11, 1
    %p28 = por %p26, %p27
    %p29 = scmp.ne.s32.totalorder %s21, %s24
    %p30 = scmp.eq.s32.totalorder %s11, 0
    %p31 = por %p29, %p30
    %p32 = scmp.ne.s32.totalorder %s21, %s24
    %p33 = scmp.eq.s32.totalorder %s16, 1
    %p34 = por %p32, %p33
    %p35 = scmp.ne.s32.totalorder %s24, %s25
    %p36 = scmp.eq.s32.totalorder %s16, 0
    %p37 = por %p35, %p36
    %p38 = scmp.ne.s32.totalorder %s24, %s25
    %p39 = scmp.eq.s32.totalorder %s17, 1
    %p40 = por %p38, %p39
    %p42 = scmp.ne.s32.totalorder %s25, %s41
    %p43 = scmp.eq.s32.totalorder %s17, 0
    %p44 = por %p42, %p43
    %s45 = ssub.s32 %s11, %s18
    %p46 = scmp.eq.s32.totalorder %s45, 0
    %s48 = sadd.s32 %s47, 1
    %s49 = scalar_select %p46, %s47, %s48
    %p52 = pneg %p46
    %p53 = scmp.eq.s32.totalorder %s11, 1
    %p54 = por %p52, %p53
    %p55 = scmp.ne.s32.totalorder %s47, %s50
    %p56 = scmp.eq.s32.totalorder %s11, 0
    %p57 = por %p55, %p56
    %p58 = scmp.ne.s32.totalorder %s47, %s50
    %p59 = scmp.eq.s32.totalorder %s16, 1
    %p60 = por %p58, %p59
    %p61 = scmp.ne.s32.totalorder %s50, %s51
    %p62 = scmp.eq.s32.totalorder %s16, 0
    %p63 = por %p61, %p62
    %p64 = scmp.ne.s32.totalorder %s50, %s51
    %p65 = scmp.eq.s32.totalorder %s17, 1
    %p66 = por %p64, %p65
    %p68 = scmp.ne.s32.totalorder %s51, %s67
    %p69 = scmp.eq.s32.totalorder %s17, 0
    %p70 = por %p68, %p69
    %s72 = sadd.s32 %s71, 1
    %p75 = scmp.eq.s32.totalorder %s11, 1
    %p76 = scmp.ne.s32.totalorder %s71, %s73
    %p77 = scmp.eq.s32.totalorder %s11, 0
    %p78 = por %p76, %p77
    %p79 = scmp.ne.s32.totalorder %s71, %s73
    %p80 = scmp.eq.s32.totalorder %s16, 1
    %p81 = por %p79, %p80
    %p82 = scmp.ne.s32.totalorder %s73, %s74
    %p83 = scmp.eq.s32.totalorder %s16, 0
    %p84 = por %p82, %p83
    %p85 = scmp.ne.s32.totalorder %s73, %s74
    %p86 = scmp.eq.s32.totalorder %s17, 1
    %p87 = por %p85, %p86
    %p89 = scmp.ne.s32.totalorder %s74, %s88
    %p90 = scmp.eq.s32.totalorder %s17, 0
    %p91 = por %p89, %p90
    %s93 = sadd.s32 %s92, 1
    %p96 = scmp.eq.s32.totalorder %s11, 1
    %p97 = scmp.ne.s32.totalorder %s92, %s94
    %p98 = scmp.eq.s32.totalorder %s11, 0
    %p99 = por %p97, %p98
    %p100 = scmp.ne.s32.totalorder %s92, %s94
    %p101 = scmp.eq.s32.totalorder %s16, 1
    %p102 = por %p100, %p101
    %p103 = scmp.ne.s32.totalorder %s94, %s95
    %p104 = scmp.eq.s32.totalorder %s16, 0
    %p105 = por %p103, %p104
    %p106 = scmp.ne.s32.totalorder %s94, %s95
    %p107 = scmp.eq.s32.totalorder %s17, 1
    %p108 = por %p106, %p107
    %p110 = scmp.ne.s32.totalorder %s95, %s109
    %p111 = scmp.eq.s32.totalorder %s17, 0
    %p112 = por %p110, %p111
    %s114 = sadd.s32 %s113, 1
    %p117 = scmp.eq.s32.totalorder %s11, 1
    %p118 = scmp.ne.s32.totalorder %s113, %s115
    %p119 = scmp.eq.s32.totalorder %s11, 0
    %p120 = por %p118, %p119
    %p121 = scmp.ne.s32.totalorder %s113, %s115
    %p122 = scmp.eq.s32.totalorder %s16, 1
    %p123 = por %p121, %p122
    %p124 = scmp.ne.s32.totalorder %s115, %s116
    %p125 = scmp.eq.s32.totalorder %s16, 0
    %p126 = por %p124, %p125
    %p127 = scmp.ne.s32.totalorder %s115, %s116
    %p128 = scmp.eq.s32.totalorder %s17, 1
    %p129 = por %p127, %p128
    %p131 = scmp.ne.s32.totalorder %s116, %s130
    %p132 = scmp.eq.s32.totalorder %s17, 0
    %p133 = por %p131, %p132
    %s134 = ssub.s32 %s11, %s18
    %p135 = scmp.eq.s32.totalorder %s134, 0
    %s137 = sadd.s32 %s136, 1
    %s138 = scalar_select %p135, %s136, %s137
    %p141 = pneg %p135
    %p142 = scmp.eq.s32.totalorder %s11, 1
    %p143 = por %p141, %p142
    %p144 = scmp.ne.s32.totalorder %s136, %s139
    %p145 = scmp.eq.s32.totalorder %s11, 0
    %p146 = por %p144, %p145
    %p147 = scmp.ne.s32.totalorder %s136, %s139
    %p148 = scmp.eq.s32.totalorder %s16, 1
    %p149 = por %p147, %p148
    %p150 = scmp.ne.s32.totalorder %s139, %s140
    %p151 = scmp.eq.s32.totalorder %s16, 0
    %p152 = por %p150, %p151
    %p153 = scmp.ne.s32.totalorder %s139, %s140
    %p154 = scmp.eq.s32.totalorder %s17, 1
    %p155 = por %p153, %p154
    %p157 = scmp.ne.s32.totalorder %s140, %s156
    %p158 = scmp.eq.s32.totalorder %s17, 0
    %p159 = por %p157, %p158
    %p160 = scmp.le.s32.totalorder 1, %s11
    %p161 = scmp.lt.s32.totalorder %s11, 3
    %p162 = pnand %p160, %p161
    %p163 = pneg %p162
    // Predicated region
    $region9: #{up_forward.4} parent=5 // pred_check
      _
    $region10: #{up_forward.4} parent=5 // pred_check_branch
      %165 = sbr.rel (%p162) target = $region12
    $region11: #{up_forward.4} parent=5 // pred_region
      %s166 = ssub.s32 %s11, 1
      // Predicated region
      $region13: #{up_forward.4} parent=11 // pred_check
        %p167 = pneg %p84
      $region14: #{up_forward.4} parent=11 // pred_check_branch
        %169 = sbr.rel (%p167) target = $region16
      $region15: #{up_forward.4} parent=11 // pred_region
        _
      $region16: #{up_forward.4} parent=11 // pred_fallthru
        _
      // Predicated region
      $region17: #{up_forward.4} parent=11 // pred_check
        %p170 = pneg %p105
      $region18: #{up_forward.4} parent=11 // pred_check_branch
        %172 = sbr.rel (%p170) target = $region20
      $region19: #{up_forward.4} parent=11 // pred_region
        _
      $region20: #{up_forward.4} parent=11 // pred_fallthru
        _
      // Predicated region
      $region21: #{up_forward.4} parent=11 // pred_check
        %p173 = pneg %p126
      $region22: #{up_forward.4} parent=11 // pred_check_branch
        %175 = sbr.rel (%p173) target = $region24
      $region23: #{up_forward.4} parent=11 // pred_region
        _
      $region24: #{up_forward.4} parent=11 // pred_fallthru
        _
    $region12: #{up_forward.4} parent=5 // pred_fallthru
      _
    %p176 = scmp.lt.s32.totalorder %s11, 2
    // Predicated region
    $region25: #{up_forward.4} parent=5 // pred_check
      %p177 = pneg %p176
    $region26: #{up_forward.4} parent=5 // pred_check_branch
      %179 = sbr.rel (%p177) target = $region28
    $region27: #{up_forward.4} parent=5 // pred_region
      // Predicated region
      $region29: #{up_forward.4} parent=27 // pred_check
        %p180 = pneg %p31
      $region30: #{up_forward.4} parent=27 // pred_check_branch
        %182 = sbr.rel (%p180) target = $region32
      $region31: #{up_forward.4} parent=27 // pred_region
        %p183 = scmp.lt.s32.totalorder %s11, 1
        %s184 = scalar_select %p183, %s11, 1
        %s185 = smul.addr %s184, 32
        %s186 = smul.addr %s185, 4
        %s187 = scalar_lea.vmem %s0, %s186
      $region32: #{up_forward.4} parent=27 // pred_fallthru
        _
      // Predicated region
      $region33: #{up_forward.4} parent=27 // pred_check
        %p188 = pneg %p57
      $region34: #{up_forward.4} parent=27 // pred_check_branch
        %190 = sbr.rel (%p188) target = $region36
      $region35: #{up_forward.4} parent=27 // pred_region
        %p191 = scmp.lt.s32.totalorder %s11, 1
        %s192 = scalar_select %p191, %s11, 1
        %s193 = smul.addr %s192, 32
        %s194 = smul.addr %s193, 4
        %s195 = scalar_lea.vmem %s1, %s194
      $region36: #{up_forward.4} parent=27 // pred_fallthru
        _
    $region28: #{up_forward.4} parent=5 // pred_fallthru
      _
    %p196 = scmp.le.s32.totalorder 1, %s11
    %p197 = scmp.lt.s32.totalorder %s11, 3
    %p198 = pnand %p196, %p197
    %p199 = pneg %p198
    // Predicated region
    $region37: #{up_forward.4} parent=5 // pred_check
      _
    $region38: #{up_forward.4} parent=5 // pred_check_branch
      %201 = sbr.rel (%p198) target = $region40
    $region39: #{up_forward.4} parent=5 // pred_region
      %s202 = ssub.s32 %s11, 1
      %p203 = scmp.lt.s32.totalorder %s16, 1
      %s204 = scalar_select %p203, %s16, 1
      %s205 = smul.addr %s204, 32
      %s206 = smul.addr %s205, 4
      %s207 = scalar_lea.vmem %s0, %s206
      %p208 = pneg %p37
      %p209 = pneg %p34
      %p210 = scmp.lt.s32.totalorder %s16, 1
      %s211 = scalar_select %p210, %s16, 1
      %s212 = smul.addr %s211, 32
      %s213 = smul.addr %s212, 4
      %s214 = scalar_lea.vmem %s1, %s213
      %p215 = pneg %p63
      %p216 = pneg %p60
      %p217 = pneg %p84
      %p218 = pneg %p81
      %p219 = pneg %p105
      %p220 = pneg %p102
      %p221 = pneg %p126
      %p222 = pneg %p123
      %p223 = pneg %p152
      %p224 = pneg %p149
      %p225 = scmp.lt.s32.totalorder %s16, 1
      %s226 = scalar_select %p225, %s16, 1
      %s227 = smul.addr %s226, 28
      %s228 = smul.addr %s227, 4
      %s229 = scalar_lea.vmem %s5, %s228
      %p230 = scmp.lt.s32.totalorder %s16, 1
      %s231 = scalar_select %p230, %s16, 1
      %s232 = smul.addr %s231, 32
      %s233 = smul.addr %s232, 4
      %s234 = scalar_lea.vmem %s0, %s233
      %p235 = scmp.lt.s32.totalorder %s16, 1
      %s236 = scalar_select %p235, %s16, 1
      %s237 = smul.addr %s236, 32
      %s238 = smul.addr %s237, 4
      %s239 = scalar_lea.vmem %s1, %s238
      %p240 = scmp.lt.s32.totalorder %s16, 1
      %s241 = scalar_select %p240, %s16, 1
      %s242 = smul.addr %s241, 28
      %s243 = smul.addr %s242, 4
      %s244 = scalar_lea.vmem %s5, %s243
      %v246 = vld [vmem:[%s4] sm:$0x1]
      %v248 = vlaneseq
      %v249 = vshrl.u32 %v248, 7
      %v250 = vsub.s32 0, %v249
      %v251 = vrot.slane %v246, %v250
      loop: start=0, step=1, limit=14
      $region41: #{up_forward.4} parent=39 // loop_pre_header
        _
      $region42: #{up_forward.4} parent=39 // loop_header
        %s254 = sphi 0, %s258
        %p255 = scmp.ge.s32.totalorder %s254, 14
      $region43: #{up_forward.4} parent=39 // loop_header_branch
        %257 = sbr.rel (%p255) target = $region47
      $region44: #{up_forward.4} parent=39 // loop_body
        %s259 = smul.u32 %s254, 2
        %s260 = smul.addr %s259, 4
        %s261 = scalar_lea.vmem %s234, %s260
        %v262 = vld [vmem:[%s261] sm:$0xf]
        %v263 = vld [vmem:[%s261 + $0x4] sm:$0xf]
        %v264 = vld [vmem:[%s2] sm:$0xf]
        %v265 = vld [vmem:[%s2 + $0x4] sm:$0xf]
        %v266 = vld [vmem:[%s2 + $0x8] sm:$0xf]
        %v267 = vld [vmem:[%s2 + $0xc] sm:$0xf]
        %v268 = vld [vmem:[%s2 + $0x10] sm:$0xf]
        %v269 = vld [vmem:[%s2 + $0x14] sm:$0xf]
        %v270 = vld [vmem:[%s2 + $0x18] sm:$0xf]
        %v271 = vld [vmem:[%s2 + $0x1c] sm:$0xf]
        %v272 = vld [vmem:[%s2 + $0x20] sm:$0xf]
        %v273 = vld [vmem:[%s2 + $0x24] sm:$0xf]
        %v274 = vld [vmem:[%s2 + $0x28] sm:$0xf]
        %v275 = vld [vmem:[%s2 + $0x2c] sm:$0xf]
        %v276 = vld [vmem:[%s2 + $0x30] sm:$0xf]
        %v277 = vld [vmem:[%s2 + $0x34] sm:$0xf]
        %v278 = vld [vmem:[%s2 + $0x38] sm:$0xf]
        %v279 = vld [vmem:[%s2 + $0x3c] sm:$0xf]
        %v282 = vunpack.c.l.b16 %v262
        %v283 = vunpack.c.l.b16 %v263
        %v284 = vpack.c.b16 %v283, %v282
        %v302 = vunpack.c.l.b16 %v264
        %v303 = vunpack.c.l.b16 %v265
        %v304 = vunpack.c.l.b16 %v266
        %v305 = vunpack.c.l.b16 %v267
        %v306 = vunpack.c.l.b16 %v268
        %v307 = vunpack.c.l.b16 %v269
        %v308 = vunpack.c.l.b16 %v270
        %v309 = vunpack.c.l.b16 %v271
        %v310 = vunpack.c.l.b16 %v272
        %v311 = vunpack.c.l.b16 %v273
        %v312 = vunpack.c.l.b16 %v274
        %v313 = vunpack.c.l.b16 %v275
        %v314 = vunpack.c.l.b16 %v276
        %v315 = vunpack.c.l.b16 %v277
        %v316 = vunpack.c.l.b16 %v278
        %v317 = vunpack.c.l.b16 %v279
        %v318 = vpack.c.b16 %v303, %v302
        %v319 = vpack.c.b16 %v305, %v304
        %v320 = vpack.c.b16 %v307, %v306
        %v321 = vpack.c.b16 %v309, %v308
        %v322 = vpack.c.b16 %v311, %v310
        %v323 = vpack.c.b16 %v313, %v312
        %v324 = vpack.c.b16 %v315, %v314
        %v325 = vpack.c.b16 %v317, %v316
        %334 = vmatprep.subr.bf16.mxu0 0
        %335 = vmatpush1.bf16.msra.mxu0 %v318
        %336 = vmatprep.subr.bf16.mxu0 0
        %337 = vmatpush1.bf16.msra.mxu0 %v319
        %338 = vmatprep.subr.bf16.mxu0 0
        %339 = vmatpush1.bf16.msra.mxu0 %v320
        %340 = vmatprep.subr.bf16.mxu0 0
        %341 = vmatpush1.bf16.msra.mxu0 %v321
        %342 = vmatprep.subr.bf16.mxu0 0
        %343 = vmatpush1.bf16.msra.mxu0 %v322
        %344 = vmatprep.subr.bf16.mxu0 0
        %345 = vmatpush1.bf16.msra.mxu0 %v323
        %346 = vmatprep.subr.bf16.mxu0 0
        %347 = vmatpush1.bf16.msra.mxu0 %v324
        %348 = vmatprep.subr.bf16.mxu0 0
        %349 = vmatpush1.bf16.msra.mxu0 %v325
        %350 = vmatprep.subr.bf16.mxu0 0
        %351 = vmatpush1.bf16.msra.mxu0 0
        %352 = vmatprep.subr.bf16.mxu0 0
        %353 = vmatpush1.bf16.msra.mxu0 0
        %354 = vmatprep.subr.bf16.mxu0 0
        %355 = vmatpush1.bf16.msra.mxu0 0
        %356 = vmatprep.subr.bf16.mxu0 0
        %357 = vmatpush1.bf16.msra.mxu0 0
        %358 = vmatprep.subr.bf16.mxu0 0
        %359 = vmatpush1.bf16.msra.mxu0 0
        %360 = vmatprep.subr.bf16.mxu0 0
        %361 = vmatpush1.bf16.msra.mxu0 0
        %362 = vmatprep.subr.bf16.mxu0 0
        %363 = vmatpush1.bf16.msra.mxu0 0
        %364 = vmatprep.subr.bf16.mxu0 0
        %365 = vmatpush1.bf16.msra.mxu0 0
        %366 = vmatprep.mubr.bf16.mxu0 0
        %367 = vmatmul.mubr.bf16.gmra.mrb[0].mxu0 %v284
        %v368 = vpop.f32.mrb[0].mxu0
        %v369 = vadd.f32 0.0, %v368
        %v370 = vpop.f32.mrb[0].mxu0
        %v371 = vpop.f32.mrb[0].mxu0
        %v372 = vadd.f32 0.0, %v371
        %v373 = vpop.f32.mrb[0].mxu0
        %374 = vdwg.mxu0
        %v375 = vadd.f32 %v251, %v369
        %v376 = vadd.f32 %v251, %v372
        %s377 = scalar_lea.vmem %s2, 64
        %v378 = vld [vmem:[%s377] sm:$0xf]
        %v379 = vld [vmem:[%s377 + $0x4] sm:$0xf]
        %v380 = vld [vmem:[%s377 + $0x8] sm:$0xf]
        %v381 = vld [vmem:[%s377 + $0xc] sm:$0xf]
        %v382 = vld [vmem:[%s377 + $0x10] sm:$0xf]
        %v383 = vld [vmem:[%s377 + $0x14] sm:$0xf]
        %v384 = vld [vmem:[%s377 + $0x18] sm:$0xf]
        %v385 = vld [vmem:[%s377 + $0x1c] sm:$0xf]
        %v386 = vld [vmem:[%s377 + $0x20] sm:$0xf]
        %v387 = vld [vmem:[%s377 + $0x24] sm:$0xf]
        %v388 = vld [vmem:[%s377 + $0x28] sm:$0xf]
        %v389 = vld [vmem:[%s377 + $0x2c] sm:$0xf]
        %v390 = vld [vmem:[%s377 + $0x30] sm:$0xf]
        %v391 = vld [vmem:[%s377 + $0x34] sm:$0xf]
        %v392 = vld [vmem:[%s377 + $0x38] sm:$0xf]
        %v393 = vld [vmem:[%s377 + $0x3c] sm:$0xf]
        %v395 = vshrl.u32 %v284, 16
        %v397 = vshll.u32 %v284, 16
        %v399 = vrot.slane %v397, 1
        %v400 = vor.u32 %v395, %v399
        %v418 = vunpack.c.l.b16 %v378
        %v419 = vunpack.c.l.b16 %v379
        %v420 = vunpack.c.l.b16 %v380
        %v421 = vunpack.c.l.b16 %v381
        %v422 = vunpack.c.l.b16 %v382
        %v423 = vunpack.c.l.b16 %v383
        %v424 = vunpack.c.l.b16 %v384
        %v425 = vunpack.c.l.b16 %v385
        %v426 = vunpack.c.l.b16 %v386
        %v427 = vunpack.c.l.b16 %v387
        %v428 = vunpack.c.l.b16 %v388
        %v429 = vunpack.c.l.b16 %v389
        %v430 = vunpack.c.l.b16 %v390
        %v431 = vunpack.c.l.b16 %v391
        %v432 = vunpack.c.l.b16 %v392
        %v433 = vunpack.c.l.b16 %v393
        %v434 = vpack.c.b16 %v419, %v418
        %v435 = vpack.c.b16 %v421, %v420
        %v436 = vpack.c.b16 %v423, %v422
        %v437 = vpack.c.b16 %v425, %v424
        %v438 = vpack.c.b16 %v427, %v426
        %v439 = vpack.c.b16 %v429, %v428
        %v440 = vpack.c.b16 %v431, %v430
        %v441 = vpack.c.b16 %v433, %v432
        %450 = vmatprep.subr.bf16.mxu0 0
        %451 = vmatpush1.bf16.msra.mxu0 %v434
        %452 = vmatprep.subr.bf16.mxu0 0
        %453 = vmatpush1.bf16.msra.mxu0 %v435
        %454 = vmatprep.subr.bf16.mxu0 0
        %455 = vmatpush1.bf16.msra.mxu0 %v436
        %456 = vmatprep.subr.bf16.mxu0 0
        %457 = vmatpush1.bf16.msra.mxu0 %v437
        %458 = vmatprep.subr.bf16.mxu0 0
        %459 = vmatpush1.bf16.msra.mxu0 %v438
        %460 = vmatprep.subr.bf16.mxu0 0
        %461 = vmatpush1.bf16.msra.mxu0 %v439
        %462 = vmatprep.subr.bf16.mxu0 0
        %463 = vmatpush1.bf16.msra.mxu0 %v440
        %464 = vmatprep.subr.bf16.mxu0 0
        %465 = vmatpush1.bf16.msra.mxu0 %v441
        %466 = vmatprep.subr.bf16.mxu0 0
        %467 = vmatpush1.bf16.msra.mxu0 0
        %468 = vmatprep.subr.bf16.mxu0 0
        %469 = vmatpush1.bf16.msra.mxu0 0
        %470 = vmatprep.subr.bf16.mxu0 0
        %471 = vmatpush1.bf16.msra.mxu0 0
        %472 = vmatprep.subr.bf16.mxu0 0
        %473 = vmatpush1.bf16.msra.mxu0 0
        %474 = vmatprep.subr.bf16.mxu0 0
        %475 = vmatpush1.bf16.msra.mxu0 0
        %476 = vmatprep.subr.bf16.mxu0 0
        %477 = vmatpush1.bf16.msra.mxu0 0
        %478 = vmatprep.subr.bf16.mxu0 0
        %479 = vmatpush1.bf16.msra.mxu0 0
        %480 = vmatprep.subr.bf16.mxu0 0
        %481 = vmatpush1.bf16.msra.mxu0 0
        %482 = vmatprep.mubr.bf16.mxu0 0
        %483 = vmatmul.mubr.bf16.gmra.mrb[0].mxu0 %v400
        %v484 = vpop.f32.mrb[0].mxu0
        %v485 = vadd.f32 0.0, %v484
        %v486 = vpop.f32.mrb[0].mxu0
        %v487 = vpop.f32.mrb[0].mxu0
        %v488 = vadd.f32 0.0, %v487
        %v489 = vpop.f32.mrb[0].mxu0
        %490 = vdwg.mxu0
        %v491 = vadd.f32 %v375, %v485
        %v492 = vadd.f32 %v376, %v488
        %s493 = scalar_lea.vmem %s2, 128
        %v494 = vld [vmem:[%s493] sm:$0xf]
        %v495 = vld [vmem:[%s493 + $0x4] sm:$0xf]
        %v496 = vld [vmem:[%s493 + $0x8] sm:$0xf]
        %v497 = vld [vmem:[%s493 + $0xc] sm:$0xf]
        %v498 = vld [vmem:[%s493 + $0x10] sm:$0xf]
        %v499 = vld [vmem:[%s493 + $0x14] sm:$0xf]
        %v500 = vld [vmem:[%s493 + $0x18] sm:$0xf]
        %v501 = vld [vmem:[%s493 + $0x1c] sm:$0xf]
        %v502 = vld [vmem:[%s493 + $0x20] sm:$0xf]
        %v503 = vld [vmem:[%s493 + $0x24] sm:$0xf]
        %v504 = vld [vmem:[%s493 + $0x28] sm:$0xf]
        %v505 = vld [vmem:[%s493 + $0x2c] sm:$0xf]
        %v506 = vld [vmem:[%s493 + $0x30] sm:$0xf]
        %v507 = vld [vmem:[%s493 + $0x34] sm:$0xf]
        %v508 = vld [vmem:[%s493 + $0x38] sm:$0xf]
        %v509 = vld [vmem:[%s493 + $0x3c] sm:$0xf]
        %v510 = vrot.slane %v284, 1
        %v528 = vunpack.c.l.b16 %v494
        %v529 = vunpack.c.l.b16 %v495
        %v530 = vunpack.c.l.b16 %v496
        %v531 = vunpack.c.l.b16 %v497
        %v532 = vunpack.c.l.b16 %v498
        %v533 = vunpack.c.l.b16 %v499
        %v534 = vunpack.c.l.b16 %v500
        %v535 = vunpack.c.l.b16 %v501
        %v536 = vunpack.c.l.b16 %v502
        %v537 = vunpack.c.l.b16 %v503
        %v538 = vunpack.c.l.b16 %v504
        %v539 = vunpack.c.l.b16 %v505
        %v540 = vunpack.c.l.b16 %v506
        %v541 = vunpack.c.l.b16 %v507
        %v542 = vunpack.c.l.b16 %v508
        %v543 = vunpack.c.l.b16 %v509
        %v544 = vpack.c.b16 %v529, %v528
        %v545 = vpack.c.b16 %v531, %v530
        %v546 = vpack.c.b16 %v533, %v532
        %v547 = vpack.c.b16 %v535, %v534
        %v548 = vpack.c.b16 %v537, %v536
        %v549 = vpack.c.b16 %v539, %v538
        %v550 = vpack.c.b16 %v541, %v540
        %v551 = vpack.c.b16 %v543, %v542
        %560 = vmatprep.subr.bf16.mxu0 0
        %561 = vmatpush1.bf16.msra.mxu0 %v544
        %562 = vmatprep.subr.bf16.mxu0 0
        %563 = vmatpush1.bf16.msra.mxu0 %v545
        %564 = vmatprep.subr.bf16.mxu0 0
        %565 = vmatpush1.bf16.msra.mxu0 %v546
        %566 = vmatprep.subr.bf16.mxu0 0
        %567 = vmatpush1.bf16.msra.mxu0 %v547
        %568 = vmatprep.subr.bf16.mxu0 0
        %569 = vmatpush1.bf16.msra.mxu0 %v548
        %570 = vmatprep.subr.bf16.mxu0 0
        %571 = vmatpush1.bf16.msra.mxu0 %v549
        %572 = vmatprep.subr.bf16.mxu0 0
        %573 = vmatpush1.bf16.msra.mxu0 %v550
        %574 = vmatprep.subr.bf16.mxu0 0
        %575 = vmatpush1.bf16.msra.mxu0 %v551
        %576 = vmatprep.subr.bf16.mxu0 0
        %577 = vmatpush1.bf16.msra.mxu0 0
        %578 = vmatprep.subr.bf16.mxu0 0
        %579 = vmatpush1.bf16.msra.mxu0 0
        %580 = vmatprep.subr.bf16.mxu0 0
        %581 = vmatpush1.bf16.msra.mxu0 0
        %582 = vmatprep.subr.bf16.mxu0 0
        %583 = vmatpush1.bf16.msra.mxu0 0
        %584 = vmatprep.subr.bf16.mxu0 0
        %585 = vmatpush1.bf16.msra.mxu0 0
        %586 = vmatprep.subr.bf16.mxu0 0
        %587 = vmatpush1.bf16.msra.mxu0 0
        %588 = vmatprep.subr.bf16.mxu0 0
        %589 = vmatpush1.bf16.msra.mxu0 0
        %590 = vmatprep.subr.bf16.mxu0 0
        %591 = vmatpush1.bf16.msra.mxu0 0
        %592 = vmatprep.mubr.bf16.mxu0 0
        %593 = vmatmul.mubr.bf16.gmra.mrb[0].mxu0 %v510
        %v594 = vpop.f32.mrb[0].mxu0
        %v595 = vadd.f32 0.0, %v594
        %v596 = vpop.f32.mrb[0].mxu0
        %v597 = vpop.f32.mrb[0].mxu0
        %v598 = vadd.f32 0.0, %v597
        %v599 = vpop.f32.mrb[0].mxu0
        %600 = vdwg.mxu0
        %v601 = vadd.f32 %v491, %v595
        %v602 = vadd.f32 %v492, %v598
        %s603 = sadd.s32 %s254, 1
        %s604 = smul.u32 %s603, 2
        %s605 = smul.addr %s604, 4
        %s606 = scalar_lea.vmem %s234, %s605
        %v607 = vld [vmem:[%s606] sm:$0xf]
        %v608 = vld [vmem:[%s606 + $0x4] sm:$0xf]
        %s609 = scalar_lea.vmem %s2, 192
        %v610 = vld [vmem:[%s609] sm:$0xf]
        %v611 = vld [vmem:[%s609 + $0x4] sm:$0xf]
        %v612 = vld [vmem:[%s609 + $0x8] sm:$0xf]
        %v613 = vld [vmem:[%s609 + $0xc] sm:$0xf]
        %v614 = vld [vmem:[%s609 + $0x10] sm:$0xf]
        %v615 = vld [vmem:[%s609 + $0x14] sm:$0xf]
        %v616 = vld [vmem:[%s609 + $0x18] sm:$0xf]
        %v617 = vld [vmem:[%s609 + $0x1c] sm:$0xf]
        %v618 = vld [vmem:[%s609 + $0x20] sm:$0xf]
        %v619 = vld [vmem:[%s609 + $0x24] sm:$0xf]
        %v620 = vld [vmem:[%s609 + $0x28] sm:$0xf]
        %v621 = vld [vmem:[%s609 + $0x2c] sm:$0xf]
        %v622 = vld [vmem:[%s609 + $0x30] sm:$0xf]
        %v623 = vld [vmem:[%s609 + $0x34] sm:$0xf]
        %v624 = vld [vmem:[%s609 + $0x38] sm:$0xf]
        %v625 = vld [vmem:[%s609 + $0x3c] sm:$0xf]
        %v628 = vunpack.c.l.b16 %v607
        %v629 = vunpack.c.l.b16 %v608
        %v630 = vpack.c.b16 %v629, %v628
        %v648 = vunpack.c.l.b16 %v610
        %v649 = vunpack.c.l.b16 %v611
        %v650 = vunpack.c.l.b16 %v612
        %v651 = vunpack.c.l.b16 %v613
        %v652 = vunpack.c.l.b16 %v614
        %v653 = vunpack.c.l.b16 %v615
        %v654 = vunpack.c.l.b16 %v616
        %v655 = vunpack.c.l.b16 %v617
        %v656 = vunpack.c.l.b16 %v618
        %v657 = vunpack.c.l.b16 %v619
        %v658 = vunpack.c.l.b16 %v620
        %v659 = vunpack.c.l.b16 %v621
        %v660 = vunpack.c.l.b16 %v622
        %v661 = vunpack.c.l.b16 %v623
        %v662 = vunpack.c.l.b16 %v624
        %v663 = vunpack.c.l.b16 %v625
        %v664 = vpack.c.b16 %v649, %v648
        %v665 = vpack.c.b16 %v651, %v650
        %v666 = vpack.c.b16 %v653, %v652
        %v667 = vpack.c.b16 %v655, %v654
        %v668 = vpack.c.b16 %v657, %v656
        %v669 = vpack.c.b16 %v659, %v658
        %v670 = vpack.c.b16 %v661, %v660
        %v671 = vpack.c.b16 %v663, %v662
        %680 = vmatprep.subr.bf16.mxu0 0
        %681 = vmatpush1.bf16.msra.mxu0 %v664
        %682 = vmatprep.subr.bf16.mxu0 0
        %683 = vmatpush1.bf16.msra.mxu0 %v665
        %684 = vmatprep.subr.bf16.mxu0 0
        %685 = vmatpush1.bf16.msra.mxu0 %v666
        %686 = vmatprep.subr.bf16.mxu0 0
        %687 = vmatpush1.bf16.msra.mxu0 %v667
        %688 = vmatprep.subr.bf16.mxu0 0
        %689 = vmatpush1.bf16.msra.mxu0 %v668
        %690 = vmatprep.subr.bf16.mxu0 0
        %691 = vmatpush1.bf16.msra.mxu0 %v669
        %692 = vmatprep.subr.bf16.mxu0 0
        %693 = vmatpush1.bf16.msra.mxu0 %v670
        %694 = vmatprep.subr.bf16.mxu0 0
        %695 = vmatpush1.bf16.msra.mxu0 %v671
        %696 = vmatprep.subr.bf16.mxu0 0
        %697 = vmatpush1.bf16.msra.mxu0 0
        %698 = vmatprep.subr.bf16.mxu0 0
        %699 = vmatpush1.bf16.msra.mxu0 0
        %700 = vmatprep.subr.bf16.mxu0 0
        %701 = vmatpush1.bf16.msra.mxu0 0
        %702 = vmatprep.subr.bf16.mxu0 0
        %703 = vmatpush1.bf16.msra.mxu0 0
        %704 = vmatprep.subr.bf16.mxu0 0
        %705 = vmatpush1.bf16.msra.mxu0 0
        %706 = vmatprep.subr.bf16.mxu0 0
        %707 = vmatpush1.bf16.msra.mxu0 0
        %708 = vmatprep.subr.bf16.mxu0 0
        %709 = vmatpush1.bf16.msra.mxu0 0
        %710 = vmatprep.subr.bf16.mxu0 0
        %711 = vmatpush1.bf16.msra.mxu0 0
        %712 = vmatprep.mubr.bf16.mxu0 0
        %713 = vmatmul.mubr.bf16.gmra.mrb[0].mxu0 %v630
        %v714 = vpop.f32.mrb[0].mxu0
        %v715 = vadd.f32 0.0, %v714
        %v716 = vpop.f32.mrb[0].mxu0
        %v717 = vpop.f32.mrb[0].mxu0
        %v718 = vadd.f32 0.0, %v717
        %v719 = vpop.f32.mrb[0].mxu0
        %720 = vdwg.mxu0
        %v721 = vadd.f32 %v601, %v715
        %v722 = vadd.f32 %v602, %v718
        %s723 = scalar_lea.vmem %s2, 256
        %v724 = vld [vmem:[%s723] sm:$0xf]
        %v725 = vld [vmem:[%s723 + $0x4] sm:$0xf]
        %v726 = vld [vmem:[%s723 + $0x8] sm:$0xf]
        %v727 = vld [vmem:[%s723 + $0xc] sm:$0xf]
        %v728 = vld [vmem:[%s723 + $0x10] sm:$0xf]
        %v729 = vld [vmem:[%s723 + $0x14] sm:$0xf]
        %v730 = vld [vmem:[%s723 + $0x18] sm:$0xf]
        %v731 = vld [vmem:[%s723 + $0x1c] sm:$0xf]
        %v732 = vld [vmem:[%s723 + $0x20] sm:$0xf]
        %v733 = vld [vmem:[%s723 + $0x24] sm:$0xf]
        %v734 = vld [vmem:[%s723 + $0x28] sm:$0xf]
        %v735 = vld [vmem:[%s723 + $0x2c] sm:$0xf]
        %v736 = vld [vmem:[%s723 + $0x30] sm:$0xf]
        %v737 = vld [vmem:[%s723 + $0x34] sm:$0xf]
        %v738 = vld [vmem:[%s723 + $0x38] sm:$0xf]
        %v739 = vld [vmem:[%s723 + $0x3c] sm:$0xf]
        %v741 = vshrl.u32 %v630, 16
        %v743 = vshll.u32 %v630, 16
        %v745 = vrot.slane %v743, 1
        %v746 = vor.u32 %v741, %v745
        %v764 = vunpack.c.l.b16 %v724
        %v765 = vunpack.c.l.b16 %v725
        %v766 = vunpack.c.l.b16 %v726
        %v767 = vunpack.c.l.b16 %v727
        %v768 = vunpack.c.l.b16 %v728
        %v769 = vunpack.c.l.b16 %v729
        %v770 = vunpack.c.l.b16 %v730
        %v771 = vunpack.c.l.b16 %v731
        %v772 = vunpack.c.l.b16 %v732
        %v773 = vunpack.c.l.b16 %v733
        %v774 = vunpack.c.l.b16 %v734
        %v775 = vunpack.c.l.b16 %v735
        %v776 = vunpack.c.l.b16 %v736
        %v777 = vunpack.c.l.b16 %v737
        %v778 = vunpack.c.l.b16 %v738
        %v779 = vunpack.c.l.b16 %v739
        %v780 = vpack.c.b16 %v765, %v764
        %v781 = vpack.c.b16 %v767, %v766
        %v782 = vpack.c.b16 %v769, %v768
        %v783 = vpack.c.b16 %v771, %v770
        %v784 = vpack.c.b16 %v773, %v772
        %v785 = vpack.c.b16 %v775, %v774
        %v786 = vpack.c.b16 %v777, %v776
        %v787 = vpack.c.b16 %v779, %v778
        %796 = vmatprep.subr.bf16.mxu0 0
        %797 = vmatpush1.bf16.msra.mxu0 %v780
        %798 = vmatprep.subr.bf16.mxu0 0
        %799 = vmatpush1.bf16.msra.mxu0 %v781
        %800 = vmatprep.subr.bf16.mxu0 0
        %801 = vmatpush1.bf16.msra.mxu0 %v782
        %802 = vmatprep.subr.bf16.mxu0 0
        %803 = vmatpush1.bf16.msra.mxu0 %v783
        %804 = vmatprep.subr.bf16.mxu0 0
        %805 = vmatpush1.bf16.msra.mxu0 %v784
        %806 = vmatprep.subr.bf16.mxu0 0
        %807 = vmatpush1.bf16.msra.mxu0 %v785
        %808 = vmatprep.subr.bf16.mxu0 0
        %809 = vmatpush1.bf16.msra.mxu0 %v786
        %810 = vmatprep.subr.bf16.mxu0 0
        %811 = vmatpush1.bf16.msra.mxu0 %v787
        %812 = vmatprep.subr.bf16.mxu0 0
        %813 = vmatpush1.bf16.msra.mxu0 0
        %814 = vmatprep.subr.bf16.mxu0 0
        %815 = vmatpush1.bf16.msra.mxu0 0
        %816 = vmatprep.subr.bf16.mxu0 0
        %817 = vmatpush1.bf16.msra.mxu0 0
        %818 = vmatprep.subr.bf16.mxu0 0
        %819 = vmatpush1.bf16.msra.mxu0 0
        %820 = vmatprep.subr.bf16.mxu0 0
        %821 = vmatpush1.bf16.msra.mxu0 0
        %822 = vmatprep.subr.bf16.mxu0 0
        %823 = vmatpush1.bf16.msra.mxu0 0
        %824 = vmatprep.subr.bf16.mxu0 0
        %825 = vmatpush1.bf16.msra.mxu0 0
        %826 = vmatprep.subr.bf16.mxu0 0
        %827 = vmatpush1.bf16.msra.mxu0 0
        %828 = vmatprep.mubr.bf16.mxu0 0
        %829 = vmatmul.mubr.bf16.gmra.mrb[0].mxu0 %v746
        %v830 = vpop.f32.mrb[0].mxu0
        %v831 = vadd.f32 0.0, %v830
        %v832 = vpop.f32.mrb[0].mxu0
        %v833 = vpop.f32.mrb[0].mxu0
        %v834 = vadd.f32 0.0, %v833
        %v835 = vpop.f32.mrb[0].mxu0
        %836 = vdwg.mxu0
        %v837 = vadd.f32 %v721, %v831
        %v838 = vadd.f32 %v722, %v834
        %s839 = scalar_lea.vmem %s2, 320
        %v840 = vld [vmem:[%s839] sm:$0xf]
        %v841 = vld [vmem:[%s839 + $0x4] sm:$0xf]
        %v842 = vld [vmem:[%s839 + $0x8] sm:$0xf]
        %v843 = vld [vmem:[%s839 + $0xc] sm:$0xf]
        %v844 = vld [vmem:[%s839 + $0x10] sm:$0xf]
        %v845 = vld [vmem:[%s839 + $0x14] sm:$0xf]
        %v846 = vld [vmem:[%s839 + $0x18] sm:$0xf]
        %v847 = vld [vmem:[%s839 + $0x1c] sm:$0xf]
        %v848 = vld [vmem:[%s839 + $0x20] sm:$0xf]
        %v849 = vld [vmem:[%s839 + $0x24] sm:$0xf]
        %v850 = vld [vmem:[%s839 + $0x28] sm:$0xf]
        %v851 = vld [vmem:[%s839 + $0x2c] sm:$0xf]
        %v852 = vld [vmem:[%s839 + $0x30] sm:$0xf]
        %v853 = vld [vmem:[%s839 + $0x34] sm:$0xf]
        %v854 = vld [vmem:[%s839 + $0x38] sm:$0xf]
        %v855 = vld [vmem:[%s839 + $0x3c] sm:$0xf]
        %v856 = vrot.slane %v630, 1
        %v874 = vunpack.c.l.b16 %v840
        %v875 = vunpack.c.l.b16 %v841
        %v876 = vunpack.c.l.b16 %v842
        %v877 = vunpack.c.l.b16 %v843
        %v878 = vunpack.c.l.b16 %v844
        %v879 = vunpack.c.l.b16 %v845
        %v880 = vunpack.c.l.b16 %v846
        %v881 = vunpack.c.l.b16 %v847
        %v882 = vunpack.c.l.b16 %v848
        %v883 = vunpack.c.l.b16 %v849
        %v884 = vunpack.c.l.b16 %v850
        %v885 = vunpack.c.l.b16 %v851
        %v886 = vunpack.c.l.b16 %v852
        %v887 = vunpack.c.l.b16 %v853
        %v888 = vunpack.c.l.b16 %v854
        %v889 = vunpack.c.l.b16 %v855
        %v890 = vpack.c.b16 %v875, %v874
        %v891 = vpack.c.b16 %v877, %v876
        %v892 = vpack.c.b16 %v879, %v878
        %v893 = vpack.c.b16 %v881, %v880
        %v894 = vpack.c.b16 %v883, %v882
        %v895 = vpack.c.b16 %v885, %v884
        %v896 = vpack.c.b16 %v887, %v886
        %v897 = vpack.c.b16 %v889, %v888
        %906 = vmatprep.subr.bf16.mxu0 0
        %907 = vmatpush1.bf16.msra.mxu0 %v890
        %908 = vmatprep.subr.bf16.mxu0 0
        %909 = vmatpush1.bf16.msra.mxu0 %v891
        %910 = vmatprep.subr.bf16.mxu0 0
        %911 = vmatpush1.bf16.msra.mxu0 %v892
        %912 = vmatprep.subr.bf16.mxu0 0
        %913 = vmatpush1.bf16.msra.mxu0 %v893
        %914 = vmatprep.subr.bf16.mxu0 0
        %915 = vmatpush1.bf16.msra.mxu0 %v894
        %916 = vmatprep.subr.bf16.mxu0 0
        %917 = vmatpush1.bf16.msra.mxu0 %v895
        %918 = vmatprep.subr.bf16.mxu0 0
        %919 = vmatpush1.bf16.msra.mxu0 %v896
        %920 = vmatprep.subr.bf16.mxu0 0
        %921 = vmatpush1.bf16.msra.mxu0 %v897
        %922 = vmatprep.subr.bf16.mxu0 0
        %923 = vmatpush1.bf16.msra.mxu0 0
        %924 = vmatprep.subr.bf16.mxu0 0
        %925 = vmatpush1.bf16.msra.mxu0 0
        %926 = vmatprep.subr.bf16.mxu0 0
        %927 = vmatpush1.bf16.msra.mxu0 0
        %928 = vmatprep.subr.bf16.mxu0 0
        %929 = vmatpush1.bf16.msra.mxu0 0
        %930 = vmatprep.subr.bf16.mxu0 0
        %931 = vmatpush1.bf16.msra.mxu0 0
        %932 = vmatprep.subr.bf16.mxu0 0
        %933 = vmatpush1.bf16.msra.mxu0 0
        %934 = vmatprep.subr.bf16.mxu0 0
        %935 = vmatpush1.bf16.msra.mxu0 0
        %936 = vmatprep.subr.bf16.mxu0 0
        %937 = vmatpush1.bf16.msra.mxu0 0
        %938 = vmatprep.mubr.bf16.mxu0 0
        %939 = vmatmul.mubr.bf16.gmra.mrb[0].mxu0 %v856
        %v940 = vpop.f32.mrb[0].mxu0
        %v941 = vadd.f32 0.0, %v940
        %v942 = vpop.f32.mrb[0].mxu0
        %v943 = vpop.f32.mrb[0].mxu0
        %v944 = vadd.f32 0.0, %v943
        %v945 = vpop.f32.mrb[0].mxu0
        %946 = vdwg.mxu0
        %v947 = vadd.f32 %v837, %v941
        %v948 = vadd.f32 %v838, %v944
        %s949 = sadd.s32 %s254, 2
        %s950 = smul.u32 %s949, 2
        %s951 = smul.addr %s950, 4
        %s952 = scalar_lea.vmem %s234, %s951
        %v953 = vld [vmem:[%s952] sm:$0xf]
        %v954 = vld [vmem:[%s952 + $0x4] sm:$0xf]
        %s955 = scalar_lea.vmem %s2, 384
        %v956 = vld [vmem:[%s955] sm:$0xf]
        %v957 = vld [vmem:[%s955 + $0x4] sm:$0xf]
        %v958 = vld [vmem:[%s955 + $0x8] sm:$0xf]
        %v959 = vld [vmem:[%s955 + $0xc] sm:$0xf]
        %v960 = vld [vmem:[%s955 + $0x10] sm:$0xf]
        %v961 = vld [vmem:[%s955 + $0x14] sm:$0xf]
        %v962 = vld [vmem:[%s955 + $0x18] sm:$0xf]
        %v963 = vld [vmem:[%s955 + $0x1c] sm:$0xf]
        %v964 = vld [vmem:[%s955 + $0x20] sm:$0xf]
        %v965 = vld [vmem:[%s955 + $0x24] sm:$0xf]
        %v966 = vld [vmem:[%s955 + $0x28] sm:$0xf]
        %v967 = vld [vmem:[%s955 + $0x2c] sm:$0xf]
        %v968 = vld [vmem:[%s955 + $0x30] sm:$0xf]
        %v969 = vld [vmem:[%s955 + $0x34] sm:$0xf]
        %v970 = vld [vmem:[%s955 + $0x38] sm:$0xf]
        %v971 = vld [vmem:[%s955 + $0x3c] sm:$0xf]
        %v974 = vunpack.c.l.b16 %v953
        %v975 = vunpack.c.l.b16 %v954
        %v976 = vpack.c.b16 %v975, %v974
        %v994 = vunpack.c.l.b16 %v956
        %v995 = vunpack.c.l.b16 %v957
        %v996 = vunpack.c.l.b16 %v958
        %v997 = vunpack.c.l.b16 %v959
        %v998 = vunpack.c.l.b16 %v960
        %v999 = vunpack.c.l.b16 %v961
        %v1000 = vunpack.c.l.b16 %v962
        %v1001 = vunpack.c.l.b16 %v963
        %v1002 = vunpack.c.l.b16 %v964
        %v1003 = vunpack.c.l.b16 %v965
        %v1004 = vunpack.c.l.b16 %v966
        %v1005 = vunpack.c.l.b16 %v967
        %v1006 = vunpack.c.l.b16 %v968
        %v1007 = vunpack.c.l.b16 %v969
        %v1008 = vunpack.c.l.b16 %v970
        %v1009 = vunpack.c.l.b16 %v971
        %v1010 = vpack.c.b16 %v995, %v994
        %v1011 = vpack.c.b16 %v997, %v996
        %v1012 = vpack.c.b16 %v999, %v998
        %v1013 = vpack.c.b16 %v1001, %v1000
        %v1014 = vpack.c.b16 %v1003, %v1002
        %v1015 = vpack.c.b16 %v1005, %v1004
        %v1016 = vpack.c.b16 %v1007, %v1006
        %v1017 = vpack.c.b16 %v1009, %v1008
        %1026 = vmatprep.subr.bf16.mxu0 0
        %1027 = vmatpush1.bf16.msra.mxu0 %v1010
        %1028 = vmatprep.subr.bf16.mxu0 0
        %1029 = vmatpush1.bf16.msra.mxu0 %v1011
        %1030 = vmatprep.subr.bf16.mxu0 0
        %1031 = vmatpush1.bf16.msra.mxu0 %v1012
        %1032 = vmatprep.subr.bf16.mxu0 0
        %1033 = vmatpush1.bf16.msra.mxu0 %v1013
        %1034 = vmatprep.subr.bf16.mxu0 0
        %1035 = vmatpush1.bf16.msra.mxu0 %v1014
        %1036 = vmatprep.subr.bf16.mxu0 0
        %1037 = vmatpush1.bf16.msra.mxu0 %v1015
        %1038 = vmatprep.subr.bf16.mxu0 0
        %1039 = vmatpush1.bf16.msra.mxu0 %v1016
        %1040 = vmatprep.subr.bf16.mxu0 0
        %1041 = vmatpush1.bf16.msra.mxu0 %v1017
        %1042 = vmatprep.subr.bf16.mxu0 0
        %1043 = vmatpush1.bf16.msra.mxu0 0
        %1044 = vmatprep.subr.bf16.mxu0 0
        %1045 = vmatpush1.bf16.msra.mxu0 0
        %1046 = vmatprep.subr.bf16.mxu0 0
        %1047 = vmatpush1.bf16.msra.mxu0 0
        %1048 = vmatprep.subr.bf16.mxu0 0
        %1049 = vmatpush1.bf16.msra.mxu0 0
        %1050 = vmatprep.subr.bf16.mxu0 0
        %1051 = vmatpush1.bf16.msra.mxu0 0
        %1052 = vmatprep.subr.bf16.mxu0 0
        %1053 = vmatpush1.bf16.msra.mxu0 0
        %1054 = vmatprep.subr.bf16.mxu0 0
        %1055 = vmatpush1.bf16.msra.mxu0 0
        %1056 = vmatprep.subr.bf16.mxu0 0
        %1057 = vmatpush1.bf16.msra.mxu0 0
        %1058 = vmatprep.mubr.bf16.mxu0 0
        %1059 = vmatmul.mubr.bf16.gmra.mrb[0].mxu0 %v976
        %v1060 = vpop.f32.mrb[0].mxu0
        %v1061 = vadd.f32 0.0, %v1060
        %v1062 = vpop.f32.mrb[0].mxu0
        %v1063 = vpop.f32.mrb[0].mxu0
        %v1064 = vadd.f32 0.0, %v1063
        %v1065 = vpop.f32.mrb[0].mxu0
        %1066 = vdwg.mxu0
        %v1067 = vadd.f32 %v947, %v1061
        %v1068 = vadd.f32 %v948, %v1064
        %s1069 = scalar_lea.vmem %s2, 448
        %v1070 = vld [vmem:[%s1069] sm:$0xf]
        %v1071 = vld [vmem:[%s1069 + $0x4] sm:$0xf]
        %v1072 = vld [vmem:[%s1069 + $0x8] sm:$0xf]
        %v1073 = vld [vmem:[%s1069 + $0xc] sm:$0xf]
        %v1074 = vld [vmem:[%s1069 + $0x10] sm:$0xf]
        %v1075 = vld [vmem:[%s1069 + $0x14] sm:$0xf]
        %v1076 = vld [vmem:[%s1069 + $0x18] sm:$0xf]
        %v1077 = vld [vmem:[%s1069 + $0x1c] sm:$0xf]
        %v1078 = vld [vmem:[%s1069 + $0x20] sm:$0xf]
        %v1079 = vld [vmem:[%s1069 + $0x24] sm:$0xf]
        %v1080 = vld [vmem:[%s1069 + $0x28] sm:$0xf]
        %v1081 = vld [vmem:[%s1069 + $0x2c] sm:$0xf]
        %v1082 = vld [vmem:[%s1069 + $0x30] sm:$0xf]
        %v1083 = vld [vmem:[%s1069 + $0x34] sm:$0xf]
        %v1084 = vld [vmem:[%s1069 + $0x38] sm:$0xf]
        %v1085 = vld [vmem:[%s1069 + $0x3c] sm:$0xf]
        %v1087 = vshrl.u32 %v976, 16
        %v1089 = vshll.u32 %v976, 16
        %v1091 = vrot.slane %v1089, 1
        %v1092 = vor.u32 %v1087, %v1091
        %v1110 = vunpack.c.l.b16 %v1070
        %v1111 = vunpack.c.l.b16 %v1071
        %v1112 = vunpack.c.l.b16 %v1072
        %v1113 = vunpack.c.l.b16 %v1073
        %v1114 = vunpack.c.l.b16 %v1074
        %v1115 = vunpack.c.l.b16 %v1075
        %v1116 = vunpack.c.l.b16 %v1076
        %v1117 = vunpack.c.l.b16 %v1077
        %v1118 = vunpack.c.l.b16 %v1078
        %v1119 = vunpack.c.l.b16 %v1079
        %v1120 = vunpack.c.l.b16 %v1080
        %v1121 = vunpack.c.l.b16 %v1081
        %v1122 = vunpack.c.l.b16 %v1082
        %v1123 = vunpack.c.l.b16 %v1083
        %v1124 = vunpack.c.l.b16 %v1084
        %v1125 = vunpack.c.l.b16 %v1085
        %v1126 = vpack.c.b16 %v1111, %v1110
        %v1127 = vpack.c.b16 %v1113, %v1112
        %v1128 = vpack.c.b16 %v1115, %v1114
        %v1129 = vpack.c.b16 %v1117, %v1116
        %v1130 = vpack.c.b16 %v1119, %v1118
        %v1131 = vpack.c.b16 %v1121, %v1120
        %v1132 = vpack.c.b16 %v1123, %v1122
        %v1133 = vpack.c.b16 %v1125, %v1124
        %1142 = vmatprep.subr.bf16.mxu0 0
        %1143 = vmatpush1.bf16.msra.mxu0 %v1126
        %1144 = vmatprep.subr.bf16.mxu0 0
        %1145 = vmatpush1.bf16.msra.mxu0 %v1127
        %1146 = vmatprep.subr.bf16.mxu0 0
        %1147 = vmatpush1.bf16.msra.mxu0 %v1128
        %1148 = vmatprep.subr.bf16.mxu0 0
        %1149 = vmatpush1.bf16.msra.mxu0 %v1129
        %1150 = vmatprep.subr.bf16.mxu0 0
        %1151 = vmatpush1.bf16.msra.mxu0 %v1130
        %1152 = vmatprep.subr.bf16.mxu0 0
        %1153 = vmatpush1.bf16.msra.mxu0 %v1131
        %1154 = vmatprep.subr.bf16.mxu0 0
        %1155 = vmatpush1.bf16.msra.mxu0 %v1132
        %1156 = vmatprep.subr.bf16.mxu0 0
        %1157 = vmatpush1.bf16.msra.mxu0 %v1133
        %1158 = vmatprep.subr.bf16.mxu0 0
        %1159 = vmatpush1.bf16.msra.mxu0 0
        %1160 = vmatprep.subr.bf16.mxu0 0
        %1161 = vmatpush1.bf16.msra.mxu0 0
        %1162 = vmatprep.subr.bf16.mxu0 0
        %1163 = vmatpush1.bf16.msra.mxu0 0
        %1164 = vmatprep.subr.bf16.mxu0 0
        %1165 = vmatpush1.bf16.msra.mxu0 0
        %1166 = vmatprep.subr.bf16.mxu0 0
        %1167 = vmatpush1.bf16.msra.mxu0 0
        %1168 = vmatprep.subr.bf16.mxu0 0
        %1169 = vmatpush1.bf16.msra.mxu0 0
        %1170 = vmatprep.subr.bf16.mxu0 0
        %1171 = vmatpush1.bf16.msra.mxu0 0
        %1172 = vmatprep.subr.bf16.mxu0 0
        %1173 = vmatpush1.bf16.msra.mxu0 0
        %1174 = vmatprep.mubr.bf16.mxu0 0
        %1175 = vmatmul.mubr.bf16.gmra.mrb[0].mxu0 %v1092
        %v1176 = vpop.f32.mrb[0].mxu0
        %v1177 = vadd.f32 0.0, %v1176
        %v1178 = vpop.f32.mrb[0].mxu0
        %v1179 = vpop.f32.mrb[0].mxu0
        %v1180 = vadd.f32 0.0, %v1179
        %v1181 = vpop.f32.mrb[0].mxu0
        %1182 = vdwg.mxu0
        %v1183 = vadd.f32 %v1067, %v1177
        %v1184 = vadd.f32 %v1068, %v1180
        %s1185 = scalar_lea.vmem %s2, 512
        %v1186 = vld [vmem:[%s1185] sm:$0xf]
        %v1187 = vld [vmem:[%s1185 + $0x4] sm:$0xf]
        %v1188 = vld [vmem:[%s1185 + $0x8] sm:$0xf]
        %v1189 = vld [vmem:[%s1185 + $0xc] sm:$0xf]
        %v1190 = vld [vmem:[%s1185 + $0x10] sm:$0xf]
        %v1191 = vld [vmem:[%s1185 + $0x14] sm:$0xf]
        %v1192 = vld [vmem:[%s1185 + $0x18] sm:$0xf]
        %v1193 = vld [vmem:[%s1185 + $0x1c] sm:$0xf]
        %v1194 = vld [vmem:[%s1185 + $0x20] sm:$0xf]
        %v1195 = vld [vmem:[%s1185 + $0x24] sm:$0xf]
        %v1196 = vld [vmem:[%s1185 + $0x28] sm:$0xf]
        %v1197 = vld [vmem:[%s1185 + $0x2c] sm:$0xf]
        %v1198 = vld [vmem:[%s1185 + $0x30] sm:$0xf]
        %v1199 = vld [vmem:[%s1185 + $0x34] sm:$0xf]
        %v1200 = vld [vmem:[%s1185 + $0x38] sm:$0xf]
        %v1201 = vld [vmem:[%s1185 + $0x3c] sm:$0xf]
        %v1202 = vrot.slane %v976, 1
        %v1220 = vunpack.c.l.b16 %v1186
        %v1221 = vunpack.c.l.b16 %v1187
        %v1222 = vunpack.c.l.b16 %v1188
        %v1223 = vunpack.c.l.b16 %v1189
        %v1224 = vunpack.c.l.b16 %v1190
        %v1225 = vunpack.c.l.b16 %v1191
        %v1226 = vunpack.c.l.b16 %v1192
        %v1227 = vunpack.c.l.b16 %v1193
        %v1228 = vunpack.c.l.b16 %v1194
        %v1229 = vunpack.c.l.b16 %v1195
        %v1230 = vunpack.c.l.b16 %v1196
        %v1231 = vunpack.c.l.b16 %v1197
        %v1232 = vunpack.c.l.b16 %v1198
        %v1233 = vunpack.c.l.b16 %v1199
        %v1234 = vunpack.c.l.b16 %v1200
        %v1235 = vunpack.c.l.b16 %v1201
        %v1236 = vpack.c.b16 %v1221, %v1220
        %v1237 = vpack.c.b16 %v1223, %v1222
        %v1238 = vpack.c.b16 %v1225, %v1224
        %v1239 = vpack.c.b16 %v1227, %v1226
        %v1240 = vpack.c.b16 %v1229, %v1228
        %v1241 = vpack.c.b16 %v1231, %v1230
        %v1242 = vpack.c.b16 %v1233, %v1232
        %v1243 = vpack.c.b16 %v1235, %v1234
        %1252 = vmatprep.subr.bf16.mxu0 0
        %1253 = vmatpush1.bf16.msra.mxu0 %v1236
        %1254 = vmatprep.subr.bf16.mxu0 0
        %1255 = vmatpush1.bf16.msra.mxu0 %v1237
        %1256 = vmatprep.subr.bf16.mxu0 0
        %1257 = vmatpush1.bf16.msra.mxu0 %v1238
        %1258 = vmatprep.subr.bf16.mxu0 0
        %1259 = vmatpush1.bf16.msra.mxu0 %v1239
        %1260 = vmatprep.subr.bf16.mxu0 0
        %1261 = vmatpush1.bf16.msra.mxu0 %v1240
        %1262 = vmatprep.subr.bf16.mxu0 0
        %1263 = vmatpush1.bf16.msra.mxu0 %v1241
        %1264 = vmatprep.subr.bf16.mxu0 0
        %1265 = vmatpush1.bf16.msra.mxu0 %v1242
        %1266 = vmatprep.subr.bf16.mxu0 0
        %1267 = vmatpush1.bf16.msra.mxu0 %v1243
        %1268 = vmatprep.subr.bf16.mxu0 0
        %1269 = vmatpush1.bf16.msra.mxu0 0
        %1270 = vmatprep.subr.bf16.mxu0 0
        %1271 = vmatpush1.bf16.msra.mxu0 0
        %1272 = vmatprep.subr.bf16.mxu0 0
        %1273 = vmatpush1.bf16.msra.mxu0 0
        %1274 = vmatprep.subr.bf16.mxu0 0
        %1275 = vmatpush1.bf16.msra.mxu0 0
        %1276 = vmatprep.subr.bf16.mxu0 0
        %1277 = vmatpush1.bf16.msra.mxu0 0
        %1278 = vmatprep.subr.bf16.mxu0 0
        %1279 = vmatpush1.bf16.msra.mxu0 0
        %1280 = vmatprep.subr.bf16.mxu0 0
        %1281 = vmatpush1.bf16.msra.mxu0 0
        %1282 = vmatprep.subr.bf16.mxu0 0
        %1283 = vmatpush1.bf16.msra.mxu0 0
        %1284 = vmatprep.mubr.bf16.mxu0 0
        %1285 = vmatmul.mubr.bf16.gmra.mrb[0].mxu0 %v1202
        %v1286 = vpop.f32.mrb[0].mxu0
        %v1287 = vadd.f32 0.0, %v1286
        %v1288 = vpop.f32.mrb[0].mxu0
        %v1289 = vpop.f32.mrb[0].mxu0
        %v1290 = vadd.f32 0.0, %v1289
        %v1291 = vpop.f32.mrb[0].mxu0
        %1292 = vdwg.mxu0
        %v1293 = vadd.f32 %v1183, %v1287
        %v1294 = vadd.f32 %v1184, %v1290
        %s1295 = smul.addr %s259, 4
        %s1296 = scalar_lea.vmem %s239, %s1295
        %v1297 = vld [vmem:[%s1296] sm:$0xf]
        %v1298 = vld [vmem:[%s1296 + $0x4] sm:$0xf]
        %v1299 = vld [vmem:[%s3] sm:$0xf]
        %v1300 = vld [vmem:[%s3 + $0x4] sm:$0xf]
        %v1301 = vld [vmem:[%s3 + $0x8] sm:$0xf]
        %v1302 = vld [vmem:[%s3 + $0xc] sm:$0xf]
        %v1303 = vld [vmem:[%s3 + $0x10] sm:$0xf]
        %v1304 = vld [vmem:[%s3 + $0x14] sm:$0xf]
        %v1305 = vld [vmem:[%s3 + $0x18] sm:$0xf]
        %v1306 = vld [vmem:[%s3 + $0x1c] sm:$0xf]
        %v1307 = vld [vmem:[%s3 + $0x20] sm:$0xf]
        %v1308 = vld [vmem:[%s3 + $0x24] sm:$0xf]
        %v1309 = vld [vmem:[%s3 + $0x28] sm:$0xf]
        %v1310 = vld [vmem:[%s3 + $0x2c] sm:$0xf]
        %v1311 = vld [vmem:[%s3 + $0x30] sm:$0xf]
        %v1312 = vld [vmem:[%s3 + $0x34] sm:$0xf]
        %v1313 = vld [vmem:[%s3 + $0x38] sm:$0xf]
        %v1314 = vld [vmem:[%s3 + $0x3c] sm:$0xf]
        %v1317 = vunpack.c.l.b16 %v1297
        %v1318 = vunpack.c.l.b16 %v1298
        %v1319 = vpack.c.b16 %v1318, %v1317
        %v1337 = vunpack.c.l.b16 %v1299
        %v1338 = vunpack.c.l.b16 %v1300
        %v1339 = vunpack.c.l.b16 %v1301
        %v1340 = vunpack.c.l.b16 %v1302
        %v1341 = vunpack.c.l.b16 %v1303
        %v1342 = vunpack.c.l.b16 %v1304
        %v1343 = vunpack.c.l.b16 %v1305
        %v1344 = vunpack.c.l.b16 %v1306
        %v1345 = vunpack.c.l.b16 %v1307
        %v1346 = vunpack.c.l.b16 %v1308
        %v1347 = vunpack.c.l.b16 %v1309
        %v1348 = vunpack.c.l.b16 %v1310
        %v1349 = vunpack.c.l.b16 %v1311
        %v1350 = vunpack.c.l.b16 %v1312
        %v1351 = vunpack.c.l.b16 %v1313
        %v1352 = vunpack.c.l.b16 %v1314
        %v1353 = vpack.c.b16 %v1338, %v1337
        %v1354 = vpack.c.b16 %v1340, %v1339
        %v1355 = vpack.c.b16 %v1342, %v1341
        %v1356 = vpack.c.b16 %v1344, %v1343
        %v1357 = vpack.c.b16 %v1346, %v1345
        %v1358 = vpack.c.b16 %v1348, %v1347
        %v1359 = vpack.c.b16 %v1350, %v1349
        %v1360 = vpack.c.b16 %v1352, %v1351
        %1369 = vmatprep.subr.bf16.mxu0 0
        %1370 = vmatpush1.bf16.msra.mxu0 %v1353
        %1371 = vmatprep.subr.bf16.mxu0 0
        %1372 = vmatpush1.bf16.msra.mxu0 %v1354
        %1373 = vmatprep.subr.bf16.mxu0 0
        %1374 = vmatpush1.bf16.msra.mxu0 %v1355
        %1375 = vmatprep.subr.bf16.mxu0 0
        %1376 = vmatpush1.bf16.msra.mxu0 %v1356
        %1377 = vmatprep.subr.bf16.mxu0 0
        %1378 = vmatpush1.bf16.msra.mxu0 %v1357
        %1379 = vmatprep.subr.bf16.mxu0 0
        %1380 = vmatpush1.bf16.msra.mxu0 %v1358
        %1381 = vmatprep.subr.bf16.mxu0 0
        %1382 = vmatpush1.bf16.msra.mxu0 %v1359
        %1383 = vmatprep.subr.bf16.mxu0 0
        %1384 = vmatpush1.bf16.msra.mxu0 %v1360
        %1385 = vmatprep.subr.bf16.mxu0 0
        %1386 = vmatpush1.bf16.msra.mxu0 0
        %1387 = vmatprep.subr.bf16.mxu0 0
        %1388 = vmatpush1.bf16.msra.mxu0 0
        %1389 = vmatprep.subr.bf16.mxu0 0
        %1390 = vmatpush1.bf16.msra.mxu0 0
        %1391 = vmatprep.subr.bf16.mxu0 0
        %1392 = vmatpush1.bf16.msra.mxu0 0
        %1393 = vmatprep.subr.bf16.mxu0 0
        %1394 = vmatpush1.bf16.msra.mxu0 0
        %1395 = vmatprep.subr.bf16.mxu0 0
        %1396 = vmatpush1.bf16.msra.mxu0 0
        %1397 = vmatprep.subr.bf16.mxu0 0
        %1398 = vmatpush1.bf16.msra.mxu0 0
        %1399 = vmatprep.subr.bf16.mxu0 0
        %1400 = vmatpush1.bf16.msra.mxu0 0
        %1401 = vmatprep.mubr.bf16.mxu0 0
        %1402 = vmatmul.mubr.bf16.gmra.mrb[0].mxu0 %v1319
        %v1403 = vpop.f32.mrb[0].mxu0
        %v1404 = vadd.f32 0.0, %v1403
        %v1405 = vpop.f32.mrb[0].mxu0
        %v1406 = vpop.f32.mrb[0].mxu0
        %v1407 = vadd.f32 0.0, %v1406
        %v1408 = vpop.f32.mrb[0].mxu0
        %1409 = vdwg.mxu0
        %v1410 = vadd.f32 %v1293, %v1404
        %v1411 = vadd.f32 %v1294, %v1407
        %s1412 = scalar_lea.vmem %s3, 64
        %v1413 = vld [vmem:[%s1412] sm:$0xf]
        %v1414 = vld [vmem:[%s1412 + $0x4] sm:$0xf]
        %v1415 = vld [vmem:[%s1412 + $0x8] sm:$0xf]
        %v1416 = vld [vmem:[%s1412 + $0xc] sm:$0xf]
        %v1417 = vld [vmem:[%s1412 + $0x10] sm:$0xf]
        %v1418 = vld [vmem:[%s1412 + $0x14] sm:$0xf]
        %v1419 = vld [vmem:[%s1412 + $0x18] sm:$0xf]
        %v1420 = vld [vmem:[%s1412 + $0x1c] sm:$0xf]
        %v1421 = vld [vmem:[%s1412 + $0x20] sm:$0xf]
        %v1422 = vld [vmem:[%s1412 + $0x24] sm:$0xf]
        %v1423 = vld [vmem:[%s1412 + $0x28] sm:$0xf]
        %v1424 = vld [vmem:[%s1412 + $0x2c] sm:$0xf]
        %v1425 = vld [vmem:[%s1412 + $0x30] sm:$0xf]
        %v1426 = vld [vmem:[%s1412 + $0x34] sm:$0xf]
        %v1427 = vld [vmem:[%s1412 + $0x38] sm:$0xf]
        %v1428 = vld [vmem:[%s1412 + $0x3c] sm:$0xf]
        %v1430 = vshrl.u32 %v1319, 16
        %v1432 = vshll.u32 %v1319, 16
        %v1434 = vrot.slane %v1432, 1
        %v1435 = vor.u32 %v1430, %v1434
        %v1453 = vunpack.c.l.b16 %v1413
        %v1454 = vunpack.c.l.b16 %v1414
        %v1455 = vunpack.c.l.b16 %v1415
        %v1456 = vunpack.c.l.b16 %v1416
        %v1457 = vunpack.c.l.b16 %v1417
        %v1458 = vunpack.c.l.b16 %v1418
        %v1459 = vunpack.c.l.b16 %v1419
        %v1460 = vunpack.c.l.b16 %v1420
        %v1461 = vunpack.c.l.b16 %v1421
        %v1462 = vunpack.c.l.b16 %v1422
        %v1463 = vunpack.c.l.b16 %v1423
        %v1464 = vunpack.c.l.b16 %v1424
        %v1465 = vunpack.c.l.b16 %v1425
        %v1466 = vunpack.c.l.b16 %v1426
        %v1467 = vunpack.c.l.b16 %v1427
        %v1468 = vunpack.c.l.b16 %v1428
        %v1469 = vpack.c.b16 %v1454, %v1453
        %v1470 = vpack.c.b16 %v1456, %v1455
        %v1471 = vpack.c.b16 %v1458, %v1457
        %v1472 = vpack.c.b16 %v1460, %v1459
        %v1473 = vpack.c.b16 %v1462, %v1461
        %v1474 = vpack.c.b16 %v1464, %v1463
        %v1475 = vpack.c.b16 %v1466, %v1465
        %v1476 = vpack.c.b16 %v1468, %v1467
        %1485 = vmatprep.subr.bf16.mxu0 0
        %1486 = vmatpush1.bf16.msra.mxu0 %v1469
        %1487 = vmatprep.subr.bf16.mxu0 0
        %1488 = vmatpush1.bf16.msra.mxu0 %v1470
        %1489 = vmatprep.subr.bf16.mxu0 0
        %1490 = vmatpush1.bf16.msra.mxu0 %v1471
        %1491 = vmatprep.subr.bf16.mxu0 0
        %1492 = vmatpush1.bf16.msra.mxu0 %v1472
        %1493 = vmatprep.subr.bf16.mxu0 0
        %1494 = vmatpush1.bf16.msra.mxu0 %v1473
        %1495 = vmatprep.subr.bf16.mxu0 0
        %1496 = vmatpush1.bf16.msra.mxu0 %v1474
        %1497 = vmatprep.subr.bf16.mxu0 0
        %1498 = vmatpush1.bf16.msra.mxu0 %v1475
        %1499 = vmatprep.subr.bf16.mxu0 0
        %1500 = vmatpush1.bf16.msra.mxu0 %v1476
        %1501 = vmatprep.subr.bf16.mxu0 0
        %1502 = vmatpush1.bf16.msra.mxu0 0
        %1503 = vmatprep.subr.bf16.mxu0 0
        %1504 = vmatpush1.bf16.msra.mxu0 0
        %1505 = vmatprep.subr.bf16.mxu0 0
        %1506 = vmatpush1.bf16.msra.mxu0 0
        %1507 = vmatprep.subr.bf16.mxu0 0
        %1508 = vmatpush1.bf16.msra.mxu0 0
        %1509 = vmatprep.subr.bf16.mxu0 0
        %1510 = vmatpush1.bf16.msra.mxu0 0
        %1511 = vmatprep.subr.bf16.mxu0 0
        %1512 = vmatpush1.bf16.msra.mxu0 0
        %1513 = vmatprep.subr.bf16.mxu0 0
        %1514 = vmatpush1.bf16.msra.mxu0 0
        %1515 = vmatprep.subr.bf16.mxu0 0
        %1516 = vmatpush1.bf16.msra.mxu0 0
        %1517 = vmatprep.mubr.bf16.mxu0 0
        %1518 = vmatmul.mubr.bf16.gmra.mrb[0].mxu0 %v1435
        %v1519 = vpop.f32.mrb[0].mxu0
        %v1520 = vadd.f32 0.0, %v1519
        %v1521 = vpop.f32.mrb[0].mxu0
        %v1522 = vpop.f32.mrb[0].mxu0
        %v1523 = vadd.f32 0.0, %v1522
        %v1524 = vpop.f32.mrb[0].mxu0
        %1525 = vdwg.mxu0
        %v1526 = vadd.f32 %v1410, %v1520
        %v1527 = vadd.f32 %v1411, %v1523
        %s1528 = scalar_lea.vmem %s3, 128
        %v1529 = vld [vmem:[%s1528] sm:$0xf]
        %v1530 = vld [vmem:[%s1528 + $0x4] sm:$0xf]
        %v1531 = vld [vmem:[%s1528 + $0x8] sm:$0xf]
        %v1532 = vld [vmem:[%s1528 + $0xc] sm:$0xf]
        %v1533 = vld [vmem:[%s1528 + $0x10] sm:$0xf]
        %v1534 = vld [vmem:[%s1528 + $0x14] sm:$0xf]
        %v1535 = vld [vmem:[%s1528 + $0x18] sm:$0xf]
        %v1536 = vld [vmem:[%s1528 + $0x1c] sm:$0xf]
        %v1537 = vld [vmem:[%s1528 + $0x20] sm:$0xf]
        %v1538 = vld [vmem:[%s1528 + $0x24] sm:$0xf]
        %v1539 = vld [vmem:[%s1528 + $0x28] sm:$0xf]
        %v1540 = vld [vmem:[%s1528 + $0x2c] sm:$0xf]
        %v1541 = vld [vmem:[%s1528 + $0x30] sm:$0xf]
        %v1542 = vld [vmem:[%s1528 + $0x34] sm:$0xf]
        %v1543 = vld [vmem:[%s1528 + $0x38] sm:$0xf]
        %v1544 = vld [vmem:[%s1528 + $0x3c] sm:$0xf]
        %v1545 = vrot.slane %v1319, 1
        %v1563 = vunpack.c.l.b16 %v1529
        %v1564 = vunpack.c.l.b16 %v1530
        %v1565 = vunpack.c.l.b16 %v1531
        %v1566 = vunpack.c.l.b16 %v1532
        %v1567 = vunpack.c.l.b16 %v1533
        %v1568 = vunpack.c.l.b16 %v1534
        %v1569 = vunpack.c.l.b16 %v1535
        %v1570 = vunpack.c.l.b16 %v1536
        %v1571 = vunpack.c.l.b16 %v1537
        %v1572 = vunpack.c.l.b16 %v1538
        %v1573 = vunpack.c.l.b16 %v1539
        %v1574 = vunpack.c.l.b16 %v1540
        %v1575 = vunpack.c.l.b16 %v1541
        %v1576 = vunpack.c.l.b16 %v1542
        %v1577 = vunpack.c.l.b16 %v1543
        %v1578 = vunpack.c.l.b16 %v1544
        %v1579 = vpack.c.b16 %v1564, %v1563
        %v1580 = vpack.c.b16 %v1566, %v1565
        %v1581 = vpack.c.b16 %v1568, %v1567
        %v1582 = vpack.c.b16 %v1570, %v1569
        %v1583 = vpack.c.b16 %v1572, %v1571
        %v1584 = vpack.c.b16 %v1574, %v1573
        %v1585 = vpack.c.b16 %v1576, %v1575
        %v1586 = vpack.c.b16 %v1578, %v1577
        %1595 = vmatprep.subr.bf16.mxu0 0
        %1596 = vmatpush1.bf16.msra.mxu0 %v1579
        %1597 = vmatprep.subr.bf16.mxu0 0
        %1598 = vmatpush1.bf16.msra.mxu0 %v1580
        %1599 = vmatprep.subr.bf16.mxu0 0
        %1600 = vmatpush1.bf16.msra.mxu0 %v1581
        %1601 = vmatprep.subr.bf16.mxu0 0
        %1602 = vmatpush1.bf16.msra.mxu0 %v1582
        %1603 = vmatprep.subr.bf16.mxu0 0
        %1604 = vmatpush1.bf16.msra.mxu0 %v1583
        %1605 = vmatprep.subr.bf16.mxu0 0
        %1606 = vmatpush1.bf16.msra.mxu0 %v1584
        %1607 = vmatprep.subr.bf16.mxu0 0
        %1608 = vmatpush1.bf16.msra.mxu0 %v1585
        %1609 = vmatprep.subr.bf16.mxu0 0
        %1610 = vmatpush1.bf16.msra.mxu0 %v1586
        %1611 = vmatprep.subr.bf16.mxu0 0
        %1612 = vmatpush1.bf16.msra.mxu0 0
        %1613 = vmatprep.subr.bf16.mxu0 0
        %1614 = vmatpush1.bf16.msra.mxu0 0
        %1615 = vmatprep.subr.bf16.mxu0 0
        %1616 = vmatpush1.bf16.msra.mxu0 0
        %1617 = vmatprep.subr.bf16.mxu0 0
        %1618 = vmatpush1.bf16.msra.mxu0 0
        %1619 = vmatprep.subr.bf16.mxu0 0
        %1620 = vmatpush1.bf16.msra.mxu0 0
        %1621 = vmatprep.subr.bf16.mxu0 0
        %1622 = vmatpush1.bf16.msra.mxu0 0
        %1623 = vmatprep.subr.bf16.mxu0 0
        %1624 = vmatpush1.bf16.msra.mxu0 0
        %1625 = vmatprep.subr.bf16.mxu0 0
        %1626 = vmatpush1.bf16.msra.mxu0 0
        %1627 = vmatprep.mubr.bf16.mxu0 0
        %1628 = vmatmul.mubr.bf16.gmra.mrb[0].mxu0 %v1545
        %v1629 = vpop.f32.mrb[0].mxu0
        %v1630 = vadd.f32 0.0, %v1629
        %v1631 = vpop.f32.mrb[0].mxu0
        %v1632 = vpop.f32.mrb[0].mxu0
        %v1633 = vadd.f32 0.0, %v1632
        %v1634 = vpop.f32.mrb[0].mxu0
        %1635 = vdwg.mxu0
        %v1636 = vadd.f32 %v1526, %v1630
        %v1637 = vadd.f32 %v1527, %v1633
        %s1638 = smul.addr %s604, 4
        %s1639 = scalar_lea.vmem %s239, %s1638
        %v1640 = vld [vmem:[%s1639] sm:$0xf]
        %v1641 = vld [vmem:[%s1639 + $0x4] sm:$0xf]
        %s1642 = scalar_lea.vmem %s3, 192
        %v1643 = vld [vmem:[%s1642] sm:$0xf]
        %v1644 = vld [vmem:[%s1642 + $0x4] sm:$0xf]
        %v1645 = vld [vmem:[%s1642 + $0x8] sm:$0xf]
        %v1646 = vld [vmem:[%s1642 + $0xc] sm:$0xf]
        %v1647 = vld [vmem:[%s1642 + $0x10] sm:$0xf]
        %v1648 = vld [vmem:[%s1642 + $0x14] sm:$0xf]
        %v1649 = vld [vmem:[%s1642 + $0x18] sm:$0xf]
        %v1650 = vld [vmem:[%s1642 + $0x1c] sm:$0xf]
        %v1651 = vld [vmem:[%s1642 + $0x20] sm:$0xf]
        %v1652 = vld [vmem:[%s1642 + $0x24] sm:$0xf]
        %v1653 = vld [vmem:[%s1642 + $0x28] sm:$0xf]
        %v1654 = vld [vmem:[%s1642 + $0x2c] sm:$0xf]
        %v1655 = vld [vmem:[%s1642 + $0x30] sm:$0xf]
        %v1656 = vld [vmem:[%s1642 + $0x34] sm:$0xf]
        %v1657 = vld [vmem:[%s1642 + $0x38] sm:$0xf]
        %v1658 = vld [vmem:[%s1642 + $0x3c] sm:$0xf]
        %v1661 = vunpack.c.l.b16 %v1640
        %v1662 = vunpack.c.l.b16 %v1641
        %v1663 = vpack.c.b16 %v1662, %v1661
        %v1681 = vunpack.c.l.b16 %v1643
        %v1682 = vunpack.c.l.b16 %v1644
        %v1683 = vunpack.c.l.b16 %v1645
        %v1684 = vunpack.c.l.b16 %v1646
        %v1685 = vunpack.c.l.b16 %v1647
        %v1686 = vunpack.c.l.b16 %v1648
        %v1687 = vunpack.c.l.b16 %v1649
        %v1688 = vunpack.c.l.b16 %v1650
        %v1689 = vunpack.c.l.b16 %v1651
        %v1690 = vunpack.c.l.b16 %v1652
        %v1691 = vunpack.c.l.b16 %v1653
        %v1692 = vunpack.c.l.b16 %v1654
        %v1693 = vunpack.c.l.b16 %v1655
        %v1694 = vunpack.c.l.b16 %v1656
        %v1695 = vunpack.c.l.b16 %v1657
        %v1696 = vunpack.c.l.b16 %v1658
        %v1697 = vpack.c.b16 %v1682, %v1681
        %v1698 = vpack.c.b16 %v1684, %v1683
        %v1699 = vpack.c.b16 %v1686, %v1685
        %v1700 = vpack.c.b16 %v1688, %v1687
        %v1701 = vpack.c.b16 %v1690, %v1689
        %v1702 = vpack.c.b16 %v1692, %v1691
        %v1703 = vpack.c.b16 %v1694, %v1693
        %v1704 = vpack.c.b16 %v1696, %v1695
        %1713 = vmatprep.subr.bf16.mxu0 0
        %1714 = vmatpush1.bf16.msra.mxu0 %v1697
        %1715 = vmatprep.subr.bf16.mxu0 0
        %1716 = vmatpush1.bf16.msra.mxu0 %v1698
        %1717 = vmatprep.subr.bf16.mxu0 0
        %1718 = vmatpush1.bf16.msra.mxu0 %v1699
        %1719 = vmatprep.subr.bf16.mxu0 0
        %1720 = vmatpush1.bf16.msra.mxu0 %v1700
        %1721 = vmatprep.subr.bf16.mxu0 0
        %1722 = vmatpush1.bf16.msra.mxu0 %v1701
        %1723 = vmatprep.subr.bf16.mxu0 0
        %1724 = vmatpush1.bf16.msra.mxu0 %v1702
        %1725 = vmatprep.subr.bf16.mxu0 0
        %1726 = vmatpush1.bf16.msra.mxu0 %v1703
        %1727 = vmatprep.subr.bf16.mxu0 0
        %1728 = vmatpush1.bf16.msra.mxu0 %v1704
        %1729 = vmatprep.subr.bf16.mxu0 0
        %1730 = vmatpush1.bf16.msra.mxu0 0
        %1731 = vmatprep.subr.bf16.mxu0 0
        %1732 = vmatpush1.bf16.msra.mxu0 0
        %1733 = vmatprep.subr.bf16.mxu0 0
        %1734 = vmatpush1.bf16.msra.mxu0 0
        %1735 = vmatprep.subr.bf16.mxu0 0
        %1736 = vmatpush1.bf16.msra.mxu0 0
        %1737 = vmatprep.subr.bf16.mxu0 0
        %1738 = vmatpush1.bf16.msra.mxu0 0
        %1739 = vmatprep.subr.bf16.mxu0 0
        %1740 = vmatpush1.bf16.msra.mxu0 0
        %1741 = vmatprep.subr.bf16.mxu0 0
        %1742 = vmatpush1.bf16.msra.mxu0 0
        %1743 = vmatprep.subr.bf16.mxu0 0
        %1744 = vmatpush1.bf16.msra.mxu0 0
        %1745 = vmatprep.mubr.bf16.mxu0 0
        %1746 = vmatmul.mubr.bf16.gmra.mrb[0].mxu0 %v1663
        %v1747 = vpop.f32.mrb[0].mxu0
        %v1748 = vadd.f32 0.0, %v1747
        %v1749 = vpop.f32.mrb[0].mxu0
        %v1750 = vpop.f32.mrb[0].mxu0
        %v1751 = vadd.f32 0.0, %v1750
        %v1752 = vpop.f32.mrb[0].mxu0
        %1753 = vdwg.mxu0
        %v1754 = vadd.f32 %v1636, %v1748
        %v1755 = vadd.f32 %v1637, %v1751
        %s1756 = scalar_lea.vmem %s3, 256
        %v1757 = vld [vmem:[%s1756] sm:$0xf]
        %v1758 = vld [vmem:[%s1756 + $0x4] sm:$0xf]
        %v1759 = vld [vmem:[%s1756 + $0x8] sm:$0xf]
        %v1760 = vld [vmem:[%s1756 + $0xc] sm:$0xf]
        %v1761 = vld [vmem:[%s1756 + $0x10] sm:$0xf]
        %v1762 = vld [vmem:[%s1756 + $0x14] sm:$0xf]
        %v1763 = vld [vmem:[%s1756 + $0x18] sm:$0xf]
        %v1764 = vld [vmem:[%s1756 + $0x1c] sm:$0xf]
        %v1765 = vld [vmem:[%s1756 + $0x20] sm:$0xf]
        %v1766 = vld [vmem:[%s1756 + $0x24] sm:$0xf]
        %v1767 = vld [vmem:[%s1756 + $0x28] sm:$0xf]
        %v1768 = vld [vmem:[%s1756 + $0x2c] sm:$0xf]
        %v1769 = vld [vmem:[%s1756 + $0x30] sm:$0xf]
        %v1770 = vld [vmem:[%s1756 + $0x34] sm:$0xf]
        %v1771 = vld [vmem:[%s1756 + $0x38] sm:$0xf]
        %v1772 = vld [vmem:[%s1756 + $0x3c] sm:$0xf]
        %v1774 = vshrl.u32 %v1663, 16
        %v1776 = vshll.u32 %v1663, 16
        %v1778 = vrot.slane %v1776, 1
        %v1779 = vor.u32 %v1774, %v1778
        %v1797 = vunpack.c.l.b16 %v1757
        %v1798 = vunpack.c.l.b16 %v1758
        %v1799 = vunpack.c.l.b16 %v1759
        %v1800 = vunpack.c.l.b16 %v1760
        %v1801 = vunpack.c.l.b16 %v1761
        %v1802 = vunpack.c.l.b16 %v1762
        %v1803 = vunpack.c.l.b16 %v1763
        %v1804 = vunpack.c.l.b16 %v1764
        %v1805 = vunpack.c.l.b16 %v1765
        %v1806 = vunpack.c.l.b16 %v1766
        %v1807 = vunpack.c.l.b16 %v1767
        %v1808 = vunpack.c.l.b16 %v1768
        %v1809 = vunpack.c.l.b16 %v1769
        %v1810 = vunpack.c.l.b16 %v1770
        %v1811 = vunpack.c.l.b16 %v1771
        %v1812 = vunpack.c.l.b16 %v1772
        %v1813 = vpack.c.b16 %v1798, %v1797
        %v1814 = vpack.c.b16 %v1800, %v1799
        %v1815 = vpack.c.b16 %v1802, %v1801
        %v1816 = vpack.c.b16 %v1804, %v1803
        %v1817 = vpack.c.b16 %v1806, %v1805
        %v1818 = vpack.c.b16 %v1808, %v1807
        %v1819 = vpack.c.b16 %v1810, %v1809
        %v1820 = vpack.c.b16 %v1812, %v1811
        %1829 = vmatprep.subr.bf16.mxu0 0
        %1830 = vmatpush1.bf16.msra.mxu0 %v1813
        %1831 = vmatprep.subr.bf16.mxu0 0
        %1832 = vmatpush1.bf16.msra.mxu0 %v1814
        %1833 = vmatprep.subr.bf16.mxu0 0
        %1834 = vmatpush1.bf16.msra.mxu0 %v1815
        %1835 = vmatprep.subr.bf16.mxu0 0
        %1836 = vmatpush1.bf16.msra.mxu0 %v1816
        %1837 = vmatprep.subr.bf16.mxu0 0
        %1838 = vmatpush1.bf16.msra.mxu0 %v1817
        %1839 = vmatprep.subr.bf16.mxu0 0
        %1840 = vmatpush1.bf16.msra.mxu0 %v1818
        %1841 = vmatprep.subr.bf16.mxu0 0
        %1842 = vmatpush1.bf16.msra.mxu0 %v1819
        %1843 = vmatprep.subr.bf16.mxu0 0
        %1844 = vmatpush1.bf16.msra.mxu0 %v1820
        %1845 = vmatprep.subr.bf16.mxu0 0
        %1846 = vmatpush1.bf16.msra.mxu0 0
        %1847 = vmatprep.subr.bf16.mxu0 0
        %1848 = vmatpush1.bf16.msra.mxu0 0
        %1849 = vmatprep.subr.bf16.mxu0 0
        %1850 = vmatpush1.bf16.msra.mxu0 0
        %1851 = vmatprep.subr.bf16.mxu0 0
        %1852 = vmatpush1.bf16.msra.mxu0 0
        %1853 = vmatprep.subr.bf16.mxu0 0
        %1854 = vmatpush1.bf16.msra.mxu0 0
        %1855 = vmatprep.subr.bf16.mxu0 0
        %1856 = vmatpush1.bf16.msra.mxu0 0
        %1857 = vmatprep.subr.bf16.mxu0 0
        %1858 = vmatpush1.bf16.msra.mxu0 0
        %1859 = vmatprep.subr.bf16.mxu0 0
        %1860 = vmatpush1.bf16.msra.mxu0 0
        %1861 = vmatprep.mubr.bf16.mxu0 0
        %1862 = vmatmul.mubr.bf16.gmra.mrb[0].mxu0 %v1779
        %v1863 = vpop.f32.mrb[0].mxu0
        %v1864 = vadd.f32 0.0, %v1863
        %v1865 = vpop.f32.mrb[0].mxu0
        %v1866 = vpop.f32.mrb[0].mxu0
        %v1867 = vadd.f32 0.0, %v1866
        %v1868 = vpop.f32.mrb[0].mxu0
        %1869 = vdwg.mxu0
        %v1870 = vadd.f32 %v1754, %v1864
        %v1871 = vadd.f32 %v1755, %v1867
        %s1872 = scalar_lea.vmem %s3, 320
        %v1873 = vld [vmem:[%s1872] sm:$0xf]
        %v1874 = vld [vmem:[%s1872 + $0x4] sm:$0xf]
        %v1875 = vld [vmem:[%s1872 + $0x8] sm:$0xf]
        %v1876 = vld [vmem:[%s1872 + $0xc] sm:$0xf]
        %v1877 = vld [vmem:[%s1872 + $0x10] sm:$0xf]
        %v1878 = vld [vmem:[%s1872 + $0x14] sm:$0xf]
        %v1879 = vld [vmem:[%s1872 + $0x18] sm:$0xf]
        %v1880 = vld [vmem:[%s1872 + $0x1c] sm:$0xf]
        %v1881 = vld [vmem:[%s1872 + $0x20] sm:$0xf]
        %v1882 = vld [vmem:[%s1872 + $0x24] sm:$0xf]
        %v1883 = vld [vmem:[%s1872 + $0x28] sm:$0xf]
        %v1884 = vld [vmem:[%s1872 + $0x2c] sm:$0xf]
        %v1885 = vld [vmem:[%s1872 + $0x30] sm:$0xf]
        %v1886 = vld [vmem:[%s1872 + $0x34] sm:$0xf]
        %v1887 = vld [vmem:[%s1872 + $0x38] sm:$0xf]
        %v1888 = vld [vmem:[%s1872 + $0x3c] sm:$0xf]
        %v1889 = vrot.slane %v1663, 1
        %v1907 = vunpack.c.l.b16 %v1873
        %v1908 = vunpack.c.l.b16 %v1874
        %v1909 = vunpack.c.l.b16 %v1875
        %v1910 = vunpack.c.l.b16 %v1876
        %v1911 = vunpack.c.l.b16 %v1877
        %v1912 = vunpack.c.l.b16 %v1878
        %v1913 = vunpack.c.l.b16 %v1879
        %v1914 = vunpack.c.l.b16 %v1880
        %v1915 = vunpack.c.l.b16 %v1881
        %v1916 = vunpack.c.l.b16 %v1882
        %v1917 = vunpack.c.l.b16 %v1883
        %v1918 = vunpack.c.l.b16 %v1884
        %v1919 = vunpack.c.l.b16 %v1885
        %v1920 = vunpack.c.l.b16 %v1886
        %v1921 = vunpack.c.l.b16 %v1887
        %v1922 = vunpack.c.l.b16 %v1888
        %v1923 = vpack.c.b16 %v1908, %v1907
        %v1924 = vpack.c.b16 %v1910, %v1909
        %v1925 = vpack.c.b16 %v1912, %v1911
        %v1926 = vpack.c.b16 %v1914, %v1913
        %v1927 = vpack.c.b16 %v1916, %v1915
        %v1928 = vpack.c.b16 %v1918, %v1917
        %v1929 = vpack.c.b16 %v1920, %v1919
        %v1930 = vpack.c.b16 %v1922, %v1921
        %1939 = vmatprep.subr.bf16.mxu0 0
        %1940 = vmatpush1.bf16.msra.mxu0 %v1923
        %1941 = vmatprep.subr.bf16.mxu0 0
        %1942 = vmatpush1.bf16.msra.mxu0 %v1924
        %1943 = vmatprep.subr.bf16.mxu0 0
        %1944 = vmatpush1.bf16.msra.mxu0 %v1925
        %1945 = vmatprep.subr.bf16.mxu0 0
        %1946 = vmatpush1.bf16.msra.mxu0 %v1926
        %1947 = vmatprep.subr.bf16.mxu0 0
        %1948 = vmatpush1.bf16.msra.mxu0 %v1927
        %1949 = vmatprep.subr.bf16.mxu0 0
        %1950 = vmatpush1.bf16.msra.mxu0 %v1928
        %1951 = vmatprep.subr.bf16.mxu0 0
        %1952 = vmatpush1.bf16.msra.mxu0 %v1929
        %1953 = vmatprep.subr.bf16.mxu0 0
        %1954 = vmatpush1.bf16.msra.mxu0 %v1930
        %1955 = vmatprep.subr.bf16.mxu0 0
        %1956 = vmatpush1.bf16.msra.mxu0 0
        %1957 = vmatprep.subr.bf16.mxu0 0
        %1958 = vmatpush1.bf16.msra.mxu0 0
        %1959 = vmatprep.subr.bf16.mxu0 0
        %1960 = vmatpush1.bf16.msra.mxu0 0
        %1961 = vmatprep.subr.bf16.mxu0 0
        %1962 = vmatpush1.bf16.msra.mxu0 0
        %1963 = vmatprep.subr.bf16.mxu0 0
        %1964 = vmatpush1.bf16.msra.mxu0 0
        %1965 = vmatprep.subr.bf16.mxu0 0
        %1966 = vmatpush1.bf16.msra.mxu0 0
        %1967 = vmatprep.subr.bf16.mxu0 0
        %1968 = vmatpush1.bf16.msra.mxu0 0
        %1969 = vmatprep.subr.bf16.mxu0 0
        %1970 = vmatpush1.bf16.msra.mxu0 0
        %1971 = vmatprep.mubr.bf16.mxu0 0
        %1972 = vmatmul.mubr.bf16.gmra.mrb[0].mxu0 %v1889
        %v1973 = vpop.f32.mrb[0].mxu0
        %v1974 = vadd.f32 0.0, %v1973
        %v1975 = vpop.f32.mrb[0].mxu0
        %v1976 = vpop.f32.mrb[0].mxu0
        %v1977 = vadd.f32 0.0, %v1976
        %v1978 = vpop.f32.mrb[0].mxu0
        %1979 = vdwg.mxu0
        %v1980 = vadd.f32 %v1870, %v1974
        %v1981 = vadd.f32 %v1871, %v1977
        %s1982 = smul.addr %s950, 4
        %s1983 = scalar_lea.vmem %s239, %s1982
        %v1984 = vld [vmem:[%s1983] sm:$0xf]
        %v1985 = vld [vmem:[%s1983 + $0x4] sm:$0xf]
        %s1986 = scalar_lea.vmem %s3, 384
        %v1987 = vld [vmem:[%s1986] sm:$0xf]
        %v1988 = vld [vmem:[%s1986 + $0x4] sm:$0xf]
        %v1989 = vld [vmem:[%s1986 + $0x8] sm:$0xf]
        %v1990 = vld [vmem:[%s1986 + $0xc] sm:$0xf]
        %v1991 = vld [vmem:[%s1986 + $0x10] sm:$0xf]
        %v1992 = vld [vmem:[%s1986 + $0x14] sm:$0xf]
        %v1993 = vld [vmem:[%s1986 + $0x18] sm:$0xf]
        %v1994 = vld [vmem:[%s1986 + $0x1c] sm:$0xf]
        %v1995 = vld [vmem:[%s1986 + $0x20] sm:$0xf]
        %v1996 = vld [vmem:[%s1986 + $0x24] sm:$0xf]
        %v1997 = vld [vmem:[%s1986 + $0x28] sm:$0xf]
        %v1998 = vld [vmem:[%s1986 + $0x2c] sm:$0xf]
        %v1999 = vld [vmem:[%s1986 + $0x30] sm:$0xf]
        %v2000 = vld [vmem:[%s1986 + $0x34] sm:$0xf]
        %v2001 = vld [vmem:[%s1986 + $0x38] sm:$0xf]
        %v2002 = vld [vmem:[%s1986 + $0x3c] sm:$0xf]
        %v2005 = vunpack.c.l.b16 %v1984
        %v2006 = vunpack.c.l.b16 %v1985
        %v2007 = vpack.c.b16 %v2006, %v2005
        %v2025 = vunpack.c.l.b16 %v1987
        %v2026 = vunpack.c.l.b16 %v1988
        %v2027 = vunpack.c.l.b16 %v1989
        %v2028 = vunpack.c.l.b16 %v1990
        %v2029 = vunpack.c.l.b16 %v1991
        %v2030 = vunpack.c.l.b16 %v1992
        %v2031 = vunpack.c.l.b16 %v1993
        %v2032 = vunpack.c.l.b16 %v1994
        %v2033 = vunpack.c.l.b16 %v1995
        %v2034 = vunpack.c.l.b16 %v1996
        %v2035 = vunpack.c.l.b16 %v1997
        %v2036 = vunpack.c.l.b16 %v1998
        %v2037 = vunpack.c.l.b16 %v1999
        %v2038 = vunpack.c.l.b16 %v2000
        %v2039 = vunpack.c.l.b16 %v2001
        %v2040 = vunpack.c.l.b16 %v2002
        %v2041 = vpack.c.b16 %v2026, %v2025
        %v2042 = vpack.c.b16 %v2028, %v2027
        %v2043 = vpack.c.b16 %v2030, %v2029
        %v2044 = vpack.c.b16 %v2032, %v2031
        %v2045 = vpack.c.b16 %v2034, %v2033
        %v2046 = vpack.c.b16 %v2036, %v2035
        %v2047 = vpack.c.b16 %v2038, %v2037
        %v2048 = vpack.c.b16 %v2040, %v2039
        %2057 = vmatprep.subr.bf16.mxu0 0
        %2058 = vmatpush1.bf16.msra.mxu0 %v2041
        %2059 = vmatprep.subr.bf16.mxu0 0
        %2060 = vmatpush1.bf16.msra.mxu0 %v2042
        %2061 = vmatprep.subr.bf16.mxu0 0
        %2062 = vmatpush1.bf16.msra.mxu0 %v2043
        %2063 = vmatprep.subr.bf16.mxu0 0
        %2064 = vmatpush1.bf16.msra.mxu0 %v2044
        %2065 = vmatprep.subr.bf16.mxu0 0
        %2066 = vmatpush1.bf16.msra.mxu0 %v2045
        %2067 = vmatprep.subr.bf16.mxu0 0
        %2068 = vmatpush1.bf16.msra.mxu0 %v2046
        %2069 = vmatprep.subr.bf16.mxu0 0
        %2070 = vmatpush1.bf16.msra.mxu0 %v2047
        %2071 = vmatprep.subr.bf16.mxu0 0
        %2072 = vmatpush1.bf16.msra.mxu0 %v2048
        %2073 = vmatprep.subr.bf16.mxu0 0
        %2074 = vmatpush1.bf16.msra.mxu0 0
        %2075 = vmatprep.subr.bf16.mxu0 0
        %2076 = vmatpush1.bf16.msra.mxu0 0
        %2077 = vmatprep.subr.bf16.mxu0 0
        %2078 = vmatpush1.bf16.msra.mxu0 0
        %2079 = vmatprep.subr.bf16.mxu0 0
        %2080 = vmatpush1.bf16.msra.mxu0 0
        %2081 = vmatprep.subr.bf16.mxu0 0
        %2082 = vmatpush1.bf16.msra.mxu0 0
        %2083 = vmatprep.subr.bf16.mxu0 0
        %2084 = vmatpush1.bf16.msra.mxu0 0
        %2085 = vmatprep.subr.bf16.mxu0 0
        %2086 = vmatpush1.bf16.msra.mxu0 0
        %2087 = vmatprep.subr.bf16.mxu0 0
        %2088 = vmatpush1.bf16.msra.mxu0 0
        %2089 = vmatprep.mubr.bf16.mxu0 0
        %2090 = vmatmul.mubr.bf16.gmra.mrb[0].mxu0 %v2007
        %v2091 = vpop.f32.mrb[0].mxu0
        %v2092 = vadd.f32 0.0, %v2091
        %v2093 = vpop.f32.mrb[0].mxu0
        %v2094 = vpop.f32.mrb[0].mxu0
        %v2095 = vadd.f32 0.0, %v2094
        %v2096 = vpop.f32.mrb[0].mxu0
        %2097 = vdwg.mxu0
        %v2098 = vadd.f32 %v1980, %v2092
        %v2099 = vadd.f32 %v1981, %v2095
        %s2100 = scalar_lea.vmem %s3, 448
        %v2101 = vld [vmem:[%s2100] sm:$0xf]
        %v2102 = vld [vmem:[%s2100 + $0x4] sm:$0xf]
        %v2103 = vld [vmem:[%s2100 + $0x8] sm:$0xf]
        %v2104 = vld [vmem:[%s2100 + $0xc] sm:$0xf]
        %v2105 = vld [vmem:[%s2100 + $0x10] sm:$0xf]
        %v2106 = vld [vmem:[%s2100 + $0x14] sm:$0xf]
        %v2107 = vld [vmem:[%s2100 + $0x18] sm:$0xf]
        %v2108 = vld [vmem:[%s2100 + $0x1c] sm:$0xf]
        %v2109 = vld [vmem:[%s2100 + $0x20] sm:$0xf]
        %v2110 = vld [vmem:[%s2100 + $0x24] sm:$0xf]
        %v2111 = vld [vmem:[%s2100 + $0x28] sm:$0xf]
        %v2112 = vld [vmem:[%s2100 + $0x2c] sm:$0xf]
        %v2113 = vld [vmem:[%s2100 + $0x30] sm:$0xf]
        %v2114 = vld [vmem:[%s2100 + $0x34] sm:$0xf]
        %v2115 = vld [vmem:[%s2100 + $0x38] sm:$0xf]
        %v2116 = vld [vmem:[%s2100 + $0x3c] sm:$0xf]
        %v2118 = vshrl.u32 %v2007, 16
        %v2120 = vshll.u32 %v2007, 16
        %v2122 = vrot.slane %v2120, 1
        %v2123 = vor.u32 %v2118, %v2122
        %v2141 = vunpack.c.l.b16 %v2101
        %v2142 = vunpack.c.l.b16 %v2102
        %v2143 = vunpack.c.l.b16 %v2103
        %v2144 = vunpack.c.l.b16 %v2104
        %v2145 = vunpack.c.l.b16 %v2105
        %v2146 = vunpack.c.l.b16 %v2106
        %v2147 = vunpack.c.l.b16 %v2107
        %v2148 = vunpack.c.l.b16 %v2108
        %v2149 = vunpack.c.l.b16 %v2109
        %v2150 = vunpack.c.l.b16 %v2110
        %v2151 = vunpack.c.l.b16 %v2111
        %v2152 = vunpack.c.l.b16 %v2112
        %v2153 = vunpack.c.l.b16 %v2113
        %v2154 = vunpack.c.l.b16 %v2114
        %v2155 = vunpack.c.l.b16 %v2115
        %v2156 = vunpack.c.l.b16 %v2116
        %v2157 = vpack.c.b16 %v2142, %v2141
        %v2158 = vpack.c.b16 %v2144, %v2143
        %v2159 = vpack.c.b16 %v2146, %v2145
        %v2160 = vpack.c.b16 %v2148, %v2147
        %v2161 = vpack.c.b16 %v2150, %v2149
        %v2162 = vpack.c.b16 %v2152, %v2151
        %v2163 = vpack.c.b16 %v2154, %v2153
        %v2164 = vpack.c.b16 %v2156, %v2155
        %2173 = vmatprep.subr.bf16.mxu0 0
        %2174 = vmatpush1.bf16.msra.mxu0 %v2157
        %2175 = vmatprep.subr.bf16.mxu0 0
        %2176 = vmatpush1.bf16.msra.mxu0 %v2158
        %2177 = vmatprep.subr.bf16.mxu0 0
        %2178 = vmatpush1.bf16.msra.mxu0 %v2159
        %2179 = vmatprep.subr.bf16.mxu0 0
        %2180 = vmatpush1.bf16.msra.mxu0 %v2160
        %2181 = vmatprep.subr.bf16.mxu0 0
        %2182 = vmatpush1.bf16.msra.mxu0 %v2161
        %2183 = vmatprep.subr.bf16.mxu0 0
        %2184 = vmatpush1.bf16.msra.mxu0 %v2162
        %2185 = vmatprep.subr.bf16.mxu0 0
        %2186 = vmatpush1.bf16.msra.mxu0 %v2163
        %2187 = vmatprep.subr.bf16.mxu0 0
        %2188 = vmatpush1.bf16.msra.mxu0 %v2164
        %2189 = vmatprep.subr.bf16.mxu0 0
        %2190 = vmatpush1.bf16.msra.mxu0 0
        %2191 = vmatprep.subr.bf16.mxu0 0
        %2192 = vmatpush1.bf16.msra.mxu0 0
        %2193 = vmatprep.subr.bf16.mxu0 0
        %2194 = vmatpush1.bf16.msra.mxu0 0
        %2195 = vmatprep.subr.bf16.mxu0 0
        %2196 = vmatpush1.bf16.msra.mxu0 0
        %2197 = vmatprep.subr.bf16.mxu0 0
        %2198 = vmatpush1.bf16.msra.mxu0 0
        %2199 = vmatprep.subr.bf16.mxu0 0
        %2200 = vmatpush1.bf16.msra.mxu0 0
        %2201 = vmatprep.subr.bf16.mxu0 0
        %2202 = vmatpush1.bf16.msra.mxu0 0
        %2203 = vmatprep.subr.bf16.mxu0 0
        %2204 = vmatpush1.bf16.msra.mxu0 0
        %2205 = vmatprep.mubr.bf16.mxu0 0
        %2206 = vmatmul.mubr.bf16.gmra.mrb[0].mxu0 %v2123
        %v2207 = vpop.f32.mrb[0].mxu0
        %v2208 = vadd.f32 0.0, %v2207
        %v2209 = vpop.f32.mrb[0].mxu0
        %v2210 = vpop.f32.mrb[0].mxu0
        %v2211 = vadd.f32 0.0, %v2210
        %v2212 = vpop.f32.mrb[0].mxu0
        %2213 = vdwg.mxu0
        %v2214 = vadd.f32 %v2098, %v2208
        %v2215 = vadd.f32 %v2099, %v2211
        %s2216 = scalar_lea.vmem %s3, 512
        %v2217 = vld [vmem:[%s2216] sm:$0xf]
        %v2218 = vld [vmem:[%s2216 + $0x4] sm:$0xf]
        %v2219 = vld [vmem:[%s2216 + $0x8] sm:$0xf]
        %v2220 = vld [vmem:[%s2216 + $0xc] sm:$0xf]
        %v2221 = vld [vmem:[%s2216 + $0x10] sm:$0xf]
        %v2222 = vld [vmem:[%s2216 + $0x14] sm:$0xf]
        %v2223 = vld [vmem:[%s2216 + $0x18] sm:$0xf]
        %v2224 = vld [vmem:[%s2216 + $0x1c] sm:$0xf]
        %v2225 = vld [vmem:[%s2216 + $0x20] sm:$0xf]
        %v2226 = vld [vmem:[%s2216 + $0x24] sm:$0xf]
        %v2227 = vld [vmem:[%s2216 + $0x28] sm:$0xf]
        %v2228 = vld [vmem:[%s2216 + $0x2c] sm:$0xf]
        %v2229 = vld [vmem:[%s2216 + $0x30] sm:$0xf]
        %v2230 = vld [vmem:[%s2216 + $0x34] sm:$0xf]
        %v2231 = vld [vmem:[%s2216 + $0x38] sm:$0xf]
        %v2232 = vld [vmem:[%s2216 + $0x3c] sm:$0xf]
        %v2233 = vrot.slane %v2007, 1
        %v2251 = vunpack.c.l.b16 %v2217
        %v2252 = vunpack.c.l.b16 %v2218
        %v2253 = vunpack.c.l.b16 %v2219
        %v2254 = vunpack.c.l.b16 %v2220
        %v2255 = vunpack.c.l.b16 %v2221
        %v2256 = vunpack.c.l.b16 %v2222
        %v2257 = vunpack.c.l.b16 %v2223
        %v2258 = vunpack.c.l.b16 %v2224
        %v2259 = vunpack.c.l.b16 %v2225
        %v2260 = vunpack.c.l.b16 %v2226
        %v2261 = vunpack.c.l.b16 %v2227
        %v2262 = vunpack.c.l.b16 %v2228
        %v2263 = vunpack.c.l.b16 %v2229
        %v2264 = vunpack.c.l.b16 %v2230
        %v2265 = vunpack.c.l.b16 %v2231
        %v2266 = vunpack.c.l.b16 %v2232
        %v2267 = vpack.c.b16 %v2252, %v2251
        %v2268 = vpack.c.b16 %v2254, %v2253
        %v2269 = vpack.c.b16 %v2256, %v2255
        %v2270 = vpack.c.b16 %v2258, %v2257
        %v2271 = vpack.c.b16 %v2260, %v2259
        %v2272 = vpack.c.b16 %v2262, %v2261
        %v2273 = vpack.c.b16 %v2264, %v2263
        %v2274 = vpack.c.b16 %v2266, %v2265
        %2283 = vmatprep.subr.bf16.mxu0 0
        %2284 = vmatpush1.bf16.msra.mxu0 %v2267
        %2285 = vmatprep.subr.bf16.mxu0 0
        %2286 = vmatpush1.bf16.msra.mxu0 %v2268
        %2287 = vmatprep.subr.bf16.mxu0 0
        %2288 = vmatpush1.bf16.msra.mxu0 %v2269
        %2289 = vmatprep.subr.bf16.mxu0 0
        %2290 = vmatpush1.bf16.msra.mxu0 %v2270
        %2291 = vmatprep.subr.bf16.mxu0 0
        %2292 = vmatpush1.bf16.msra.mxu0 %v2271
        %2293 = vmatprep.subr.bf16.mxu0 0
        %2294 = vmatpush1.bf16.msra.mxu0 %v2272
        %2295 = vmatprep.subr.bf16.mxu0 0
        %2296 = vmatpush1.bf16.msra.mxu0 %v2273
        %2297 = vmatprep.subr.bf16.mxu0 0
        %2298 = vmatpush1.bf16.msra.mxu0 %v2274
        %2299 = vmatprep.subr.bf16.mxu0 0
        %2300 = vmatpush1.bf16.msra.mxu0 0
        %2301 = vmatprep.subr.bf16.mxu0 0
        %2302 = vmatpush1.bf16.msra.mxu0 0
        %2303 = vmatprep.subr.bf16.mxu0 0
        %2304 = vmatpush1.bf16.msra.mxu0 0
        %2305 = vmatprep.subr.bf16.mxu0 0
        %2306 = vmatpush1.bf16.msra.mxu0 0
        %2307 = vmatprep.subr.bf16.mxu0 0
        %2308 = vmatpush1.bf16.msra.mxu0 0
        %2309 = vmatprep.subr.bf16.mxu0 0
        %2310 = vmatpush1.bf16.msra.mxu0 0
        %2311 = vmatprep.subr.bf16.mxu0 0
        %2312 = vmatpush1.bf16.msra.mxu0 0
        %2313 = vmatprep.subr.bf16.mxu0 0
        %2314 = vmatpush1.bf16.msra.mxu0 0
        %2315 = vmatprep.mubr.bf16.mxu0 0
        %2316 = vmatmul.mubr.bf16.gmra.mrb[0].mxu0 %v2233
        %v2317 = vpop.f32.mrb[0].mxu0
        %v2318 = vadd.f32 0.0, %v2317
        %v2319 = vpop.f32.mrb[0].mxu0
        %v2320 = vpop.f32.mrb[0].mxu0
        %v2321 = vadd.f32 0.0, %v2320
        %v2322 = vpop.f32.mrb[0].mxu0
        %2323 = vdwg.mxu0
        %v2324 = vadd.f32 %v2214, %v2318
        %v2325 = vadd.f32 %v2215, %v2321
        %v2326 = vmax.f32 %v2324, 0.0
        %v2327 = vmax.f32 %v2325, 0.0
        %v2328 = vpack.c.bf16 %v2327, %v2326
        %v2330 = vunpack.c.l.b16 %v2328
        %v2331 = vunpack.c.h.b16 %v2328
        %v2332 = vpack.c.b16 %v2330, %v2330
        %v2333 = vpack.c.b16 %v2331, %v2331
        %s2336 = smul.addr %s259, 4
        %s2337 = scalar_lea.vmem %s244, %s2336
        %2338 = vst [vmem:[%s2337] sm:$0xf] %v2332
        %2339 = vst [vmem:[%s2337 + $0x4] sm:$0x7] %v2333
      $region45: #{up_forward.4} parent=39 // loop_footer
        %s258 = sadd.s32 1, %s254
      $region46: #{up_forward.4} parent=39 // loop_footer_branch
        %253 = sbr.rel target = $region42
      $region47: #{up_forward.4} parent=39 // loop_exit
        _
      %p2340 = scmp.lt.s32.totalorder %s16, 1
      %s2341 = scalar_select %p2340, %s16, 1
      %s2342 = smul.addr %s2341, 28
      %s2343 = smul.addr %s2342, 4
      %s2344 = scalar_lea.vmem %s5, %s2343
      // Predicated region
      $region48: #{up_forward.4} parent=39 // pred_check
        %p2345 = pneg %p149
      $region49: #{up_forward.4} parent=39 // pred_check_branch
        %2347 = sbr.rel (%p2345) target = $region51
      $region50: #{up_forward.4} parent=39 // pred_region
        _
      $region51: #{up_forward.4} parent=39 // pred_fallthru
        _
    $region40: #{up_forward.4} parent=5 // pred_fallthru
      _
    %p2348 = scmp.le.s32.totalorder 2, %s11
    // Predicated region
    $region52: #{up_forward.4} parent=5 // pred_check
      %p2349 = pneg %p2348
    $region53: #{up_forward.4} parent=5 // pred_check_branch
      %2351 = sbr.rel (%p2349) target = $region55
    $region54: #{up_forward.4} parent=5 // pred_region
      %s2352 = ssub.s32 %s11, 2
      // Predicated region
      $region56: #{up_forward.4} parent=54 // pred_check
        %p2353 = pneg %p155
      $region57: #{up_forward.4} parent=54 // pred_check_branch
        %2355 = sbr.rel (%p2353) target = $region59
      $region58: #{up_forward.4} parent=54 // pred_region
        %p2356 = scmp.lt.s32.totalorder %s17, 1
        %s2357 = scalar_select %p2356, %s17, 1
        %s2358 = smul.addr %s2357, 28
        %s2359 = smul.addr %s2358, 4
        %s2360 = scalar_lea.vmem %s5, %s2359
      $region59: #{up_forward.4} parent=54 // pred_fallthru
        _
    $region55: #{up_forward.4} parent=5 // pred_fallthru
      _
  $region6: #{up_forward.4} parent=0 // loop_footer
    %s15 = sadd.s32 1, %s11
  $region7: #{up_forward.4} parent=0 // loop_footer_branch
    %10 = sbr.rel target = $region3
  $region8: #{up_forward.4} parent=0 // loop_exit
    _

</llo_original>
